<compile_context>
chip_gen: v6e
topology: v6e:2x2x1
jax: 0.10.0
libtpu: 0.0.40
codegen_flags: <defaults>
</compile_context>

<pallas_src>
import functools

import jax
import jax.numpy as jnp
from jax.experimental import pallas as pl
from jax.experimental.pallas import tpu as pltpu

N_FOURIER_LAYERS = 4


# --------------------------------------------------------------------------- #
# Helpers
# --------------------------------------------------------------------------- #
def _apply_act(y, act):
    if act is None:
        return y
    if act == "relu":
        return jnp.maximum(y, 0.0)
    if act == "gelu":  # tanh approximation (EUP-friendly; small drift vs erf GELU)
        c = 0.7978845608028654
        return 0.5 * y * (1.0 + jnp.tanh(c * (y + 0.044715 * y * y * y)))
    raise ValueError(act)


def _pick_tile_m(M, per_col_bytes, budget_bytes=4 << 20):
    """Largest lane tile along M (multiple of 128) that fits a conservative VMEM
    budget (v7x-safe: never falls back to a whole huge array)."""
    if M <= 256:
        return M
    t = (budget_bytes // max(per_col_bytes, 1)) // 128 * 128
    t = int(max(128, min(t, 8192)))
    if M % 128 == 0:
        return min(t, M)
    return t  # partial last block handled by pl.cdiv grid (OOB lanes dropped)


# --------------------------------------------------------------------------- #
# Fused transposed linear: y = act(W^T @ x + b [+ residual]);  lane-dense output
# --------------------------------------------------------------------------- #
def _linear_t_kernel(x_ref, w_ref, b_ref, o_ref, *, act):
    y = jnp.dot(w_ref[...], x_ref[...], preferred_element_type=jnp.float32)
    y = y + b_ref[...]
    o_ref[...] = _apply_act(y, act).astype(o_ref.dtype)


def _linear_t_add_kernel(x_ref, w_ref, b_ref, a_ref, o_ref, *, act):
    y = jnp.dot(w_ref[...], x_ref[...], preferred_element_type=jnp.float32)
    y = y + b_ref[...] + a_ref[...].astype(jnp.float32)
    o_ref[...] = _apply_act(y, act).astype(o_ref.dtype)


def pallas_linear_t(x, wT, b, add=None, act=None, out_dtype=jnp.float32):
    """x: (Cin, M), wT: (Cout, Cin), b: (Cout,), add: (Cout, M) -> (Cout, M)."""
    Cin, M = x.shape
    Cout = wT.shape[0]
    b2 = b.reshape(Cout, 1).astype(jnp.float32)

    per_col = 8 * (Cin + 3 * Cout)  # rough bytes/column incl. double buffering
    tM = _pick_tile_m(M, per_col)
    grid = (pl.cdiv(M, tM),)

    x_spec = pl.BlockSpec((Cin, tM), lambda i: (0, i))
    w_spec = pl.BlockSpec((Cout, Cin), lambda i: (0, 0))
    b_spec = pl.BlockSpec((Cout, 1), lambda i: (0, 0))
    o_spec = pl.BlockSpec((Cout, tM), lambda i: (0, i))
    out_shape = jax.ShapeDtypeStruct((Cout, M), out_dtype)
    cparams = pltpu.CompilerParams(dimension_semantics=("parallel",))

    if add is None:
        return pl.pallas_call(
            functools.partial(_linear_t_kernel, act=act),
            grid=grid,
            in_specs=[x_spec, w_spec, b_spec],
            out_specs=o_spec,
            out_shape=out_shape,
            compiler_params=cparams,
        )(x, wT, b2)

    a_spec = pl.BlockSpec((Cout, tM), lambda i: (0, i))
    return pl.pallas_call(
        functools.partial(_linear_t_add_kernel, act=act),
        grid=grid,
        in_specs=[x_spec, w_spec, b_spec, a_spec],
        out_specs=o_spec,
        out_shape=out_shape,
        compiler_params=cparams,
        input_output_aliases={3: 0},  # reuse the residual buffer for the output
    )(x, wT, b2, add)


# --------------------------------------------------------------------------- #
# Spectral conv: all-mode complex channel mixing (modes on lanes, Gauss 3-mult)
# --------------------------------------------------------------------------- #
def _spectral_mix_kernel(xr_ref, xi_ref, wr_ref, wi_ref, or_ref, oi_ref):
    # xr/xi: (Cin, B, tM); wr/wi: (Cin, Cout, tM); out: (Cout, B, tM)
    xr = xr_ref[...]
    xi = xi_ref[...]
    wr = wr_ref[...]
    wi = wi_ref[...]
    xs = xr + xi
    ws = wr + wi
    cin, bsz, tm = xr.shape
    cout = wr.shape[1]
    # Gauss trick: real = rr - ii, imag = t - rr - ii with only 3 products.
    # Small Cin/Cout (= width) contraction statically unrolled on the VPU.
    for o in range(cout):
        rr = jnp.zeros((bsz, tm), jnp.float32)
        ii = jnp.zeros((bsz, tm), jnp.float32)
        tt = jnp.zeros((bsz, tm), jnp.float32)
        for c in range(cin):
            rr = rr + xr[c] * wr[c, o:o + 1, :]
            ii = ii + xi[c] * wi[c, o:o + 1, :]
            tt = tt + xs[c] * ws[c, o:o + 1, :]
        or_ref[o] = rr - ii
        oi_ref[o] = tt - rr - ii


def pallas_spectral_mix(xr, xi, wr, wi):
    """xr/xi: (Cin, B, nM); wr/wi: (Cin, Cout, nM) -> 2x (Cout, B, nM) f32."""
    Cin, B, nM = xr.shape
    Cout = wr.shape[1]
    if nM % 128 == 0 and nM > 1024:
        tM = 1024 if nM % 1024 == 0 else 128
    else:
        tM = nM
    grid = (nM // tM,)

    x_spec = pl.BlockSpec((Cin, B, tM), lambda i: (0, 0, i))
    w_spec = pl.BlockSpec((Cin, Cout, tM), lambda i: (0, 0, i))
    o_spec = pl.BlockSpec((Cout, B, tM), lambda i: (0, 0, i))
    out_shape = (
        jax.ShapeDtypeStruct((Cout, B, nM), jnp.float32),
        jax.ShapeDtypeStruct((Cout, B, nM), jnp.float32),
    )
    return pl.pallas_call(
        _spectral_mix_kernel,
        grid=grid,
        in_specs=[x_spec, x_spec, w_spec, w_spec],
        out_specs=(o_spec, o_spec),
        out_shape=out_shape,
        compiler_params=pltpu.CompilerParams(dimension_semantics=("parallel",)),
    )(xr, xi, wr, wi)


def spectral_conv3d(h_cm, wr, wi, modes, B, D, H, W):
    """h_cm: (C, B*D*H*W).  wr/wi: (Cin, Cout, 4*m^3).  Returns (Cout, B*D*H*W)."""
    C = h_cm.shape[0]
    m = modes
    Cout = wr.shape[1]
    x = h_cm.astype(jnp.float32).reshape(C, B, D, H, W)

    # TODO(synk): 3-D (i)rFFT has no clean Pallas/Mosaic equivalent; done in plain JAX.
    x_ft = jnp.fft.rfftn(x, axes=(2, 3, 4))  # (C, B, D, H, Wr) complex64
    Wr_dim = x_ft.shape[-1]

    corners = [
        x_ft[:, :, :m, :m, :m],
        x_ft[:, :, -m:, :m, :m],
        x_ft[:, :, :m, -m:, :m],
        x_ft[:, :, -m:, -m:, :m],
    ]
    n_modes = 4 * m * m * m
    xs = jnp.stack(corners, axis=2).reshape(C, B, n_modes)  # (Cin, B, nM)

    o_r, o_i = pallas_spectral_mix(xs.real, xs.imag, wr, wi)  # (Cout, B, nM)
    out_modes = (o_r + 1j * o_i).reshape(Cout, B, 4, m, m, m)

    # Assemble full spectrum by concatenation / padding (no zeros + scatter).
    zH = jnp.zeros((Cout, B, m, H - 2 * m, m), jnp.complex64)
    lo = jnp.concatenate([out_modes[:, :, 0], zH, out_modes[:, :, 2]], axis=3)
    hi = jnp.concatenate([out_modes[:, :, 1], zH, out_modes[:, :, 3]], axis=3)
    zD = jnp.zeros((Cout, B, D - 2 * m, H, m), jnp.complex64)
    out_ft = jnp.concatenate([lo, zD, hi], axis=2)              # (Cout, B, D, H, m)
    out_ft = jnp.pad(out_ft, ((0, 0), (0, 0), (0, 0), (0, 0), (0, Wr_dim - m)))

    y = jnp.fft.irfftn(out_ft, s=(D, H, W), axes=(2, 3, 4))    # (Cout, B, D, H, W)
    return y.astype(jnp.float32).reshape(Cout, B * D * H * W)


# --------------------------------------------------------------------------- #
# Fused tail: pointwise projection + global spatial mean + fc head (one launch)
# --------------------------------------------------------------------------- #
def _tail_kernel(h_ref, pw_ref, pb_ref, w1_ref, b1_ref, w2_ref, b2_ref,
                 w3_ref, b3_ref, o_ref, acc_ref, *, inv_s, s_total):
    i = pl.program_id(0)

    @pl.when(i == 0)
    def _():
        acc_ref[...] = jnp.zeros_like(acc_ref)

    hv = h_ref[...].astype(jnp.float32)                         # (C, B, tS)
    tS = hv.shape[2]
    lane = jax.lax.broadcasted_iota(jnp.int32, hv.shape, 2) + i * tS
    hv = jnp.where(lane < s_total, hv, 0.0)                     # mask partial tiles
    acc_ref[...] += jnp.sum(hv, axis=2)                         # (C, B)

    @pl.when(i == pl.num_programs(0) - 1)
    def _():
        mean_cb = acc_ref[...] * inv_s                          # (Cin, B)
        # projection is linear & pointwise => proj(mean(h)) == mean(proj(h))
        z = jnp.dot(pw_ref[...], mean_cb,
                    preferred_element_type=jnp.float32) + pb_ref[...]   # (width, B)
        z = jnp.maximum(jnp.dot(w1_ref[...], z,
                                preferred_element_type=jnp.float32) + b1_ref[...], 0.0)
        z = jnp.maximum(jnp.dot(w2_ref[...], z,
                                preferred_element_type=jnp.float32) + b2_ref[...], 0.0)
        z = jnp.dot(w3_ref[...], z,
                    preferred_element_type=jnp.float32) + b3_ref[...]   # (3, B)
        o_ref[...] = z.astype(o_ref.dtype)


def pallas_proj_mean_fc(h, params):
    """h: (width, B, S) -> (B, 3).  Projection + spatial mean + fc head fused."""
    Cw, B, S = h.shape
    tS = min(S, 2048)
    if tS >= 128:
        tS = (tS // 128) * 128
    grid = (pl.cdiv(S, tS),)

    pw = params["proj_w"]
    pb = params["proj_b"].reshape(-1, 1)
    w1 = params["fc1_w"]
    b1 = params["fc1_b"].reshape(-1, 1)
    w2 = params["fc2_w"]
    b2 = params["fc2_b"].reshape(-1, 1)
    w3 = params["fc3_w"]
    b3 = params["fc3_b"].reshape(-1, 1)

    def const(shape):
        return pl.BlockSpec(shape, lambda i, _n=len(shape): (0,) * _n)

    out = pl.pallas_call(
        functools.partial(_tail_kernel, inv_s=1.0 / S, s_total=S),
        grid=grid,
        in_specs=[
            pl.BlockSpec((Cw, B, tS), lambda i: (0, 0, i)),
            const(pw.shape), const(pb.shape),
            const(w1.shape), const(b1.shape),
            const(w2.shape), const(b2.shape),
            const(w3.shape), const(b3.shape),
        ],
        out_specs=pl.BlockSpec((3, B), lambda i: (0, 0)),
        out_shape=jax.ShapeDtypeStruct((3, B), jnp.float32),
        scratch_shapes=[pltpu.VMEM((Cw, B), jnp.float32)],
        compiler_params=pltpu.CompilerParams(dimension_semantics=("arbitrary",)),
    )(h, pw, pb, w1, b1, w2, b2, w3, b3)
    return out.T  # (B, 3)


# --------------------------------------------------------------------------- #
# Parameter init (deterministic, synthetic) and full forward
# --------------------------------------------------------------------------- #
def init_params(key, modes, width, in_channels=2):
    keys = iter(jax.random.split(key, 64))
    p = {}

    def lin_t(cin, cout):  # weights stored pre-transposed: (Cout, Cin)
        s = 1.0 / jnp.sqrt(cin)
        return (
            jax.random.uniform(next(keys), (cout, cin), jnp.float32, -s, s),
            jax.random.uniform(next(keys), (cout,), jnp.float32, -s, s),
        )

    p["lift_w"], p["lift_b"] = lin_t(in_channels, width)
    n_modes = 4 * modes ** 3
    spec_scale = 1.0 / (width * width)
    for l in range(N_FOURIER_LAYERS):
        p[f"spec_wr_{l}"] = spec_scale * jax.random.normal(
            next(keys), (width, width, n_modes), jnp.float32)
        p[f"spec_wi_{l}"] = spec_scale * jax.random.normal(
            next(keys), (width, width, n_modes), jnp.float32)
        p[f"skip_w_{l}"], p[f"skip_b_{l}"] = lin_t(width, width)
    p["proj_w"], p["proj_b"] = lin_t(width, width)  # out_channels == width
    p["fc1_w"], p["fc1_b"] = lin_t(width, 128)
    p["fc2_w"], p["fc2_b"] = lin_t(128, 64)
    p["fc3_w"], p["fc3_b"] = lin_t(64, 3)
    return p


def inverse_pino_forward(params, velocity_model, partial_travel_time, modes, width):
    # Inputs are NCDHW like PyTorch: (B, 1, D, H, W) each.
    x = jnp.concatenate([velocity_model, partial_travel_time], axis=1)  # (B, 2, D, H, W)
    B, Cin, D, H, W = x.shape
    S = D * H * W
    M = B * S

    # Channels-first flattened layout: (C, B*S), M on lanes; bf16 matmul operands.
    xc = jnp.transpose(x, (1, 0, 2, 3, 4)).reshape(Cin, M).astype(jnp.bfloat16)
    bf = lambda a: a.astype(jnp.bfloat16)

    # Lifting (pointwise 1x1x1 conv == channel matmul).
    h = pallas_linear_t(xc, bf(params["lift_w"]), params["lift_b"],
                        out_dtype=jnp.bfloat16)                       # (width, M)

    # Fourier blocks: gelu(spectral(h) + skip(h)); no activation after last block.
    for l in range(N_FOURIER_LAYERS):
        spec = spectral_conv3d(h, params[f"spec_wr_{l}"], params[f"spec_wi_{l}"],
                               modes, B, D, H, W)                     # (width, M) f32
        act = "gelu" if l < N_FOURIER_LAYERS - 1 else None
        h = pallas_linear_t(h, bf(params[f"skip_w_{l}"]), params[f"skip_b_{l}"],
                            add=bf(spec), act=act, out_dtype=jnp.bfloat16)

    # Projection (out_channels == width) + torch.mean over spatial dims + fc head,
    # all fused in one kernel (projection is linear & pointwise, so it commutes
    # with the spatial mean).
    y = pallas_proj_mean_fc(h.reshape(width, B, S), params)
    return y  # (B, 3) float32


if __name__ == "__main__":
    modes, width = 4, 8
    B, D, H, W = 2, 8, 8, 8

    key = jax.random.PRNGKey(0)
    k_p, k_v, k_t = jax.random.split(key, 3)
    params = init_params(k_p, modes, width)
    velocity_model = jax.random.normal(k_v, (B, 1, D, H, W), jnp.float32)
    partial_travel_time = jax.random.normal(k_t, (B, 1, D, H, W), jnp.float32)

    fwd = jax.jit(functools.partial(inverse_pino_forward, modes=modes, width=width))
    out = fwd(params, velocity_model, partial_travel_time)
    out = jax.block_until_ready(out)
    assert out.shape == (B, 3) and out.dtype == jnp.float32
    print("KERNEL_OK")
</pallas_src>

<mosaic_0001>
module attributes {stable_mosaic.version = 11 : i64} {
  func.func @_linear_t_kernel(%arg0: i32, %arg1: memref<2x1024xbf16, #tpu.memory_space<vmem>>, %arg2: memref<8x2xbf16, #tpu.memory_space<vmem>>, %arg3: memref<8x1xf32, #tpu.memory_space<vmem>>, %arg4: memref<8x1024xbf16, #tpu.memory_space<vmem>>) attributes {dimension_semantics = [#tpu.dimension_semantics<parallel>], iteration_bounds = array<i64: 1>, scalar_prefetch = 0 : i64, scratch_operands = 0 : i64, tpu.core_type = #tpu.core_type<tc>, window_params = [{transform_indices = @transform_0, window_bounds = array<i64: 2, 1024>}, {pipeline_mode = #tpu.pipeline_mode<synchronous>, transform_indices = @transform_1, window_bounds = array<i64: 8, 2>}, {pipeline_mode = #tpu.pipeline_mode<synchronous>, transform_indices = @transform_2, window_bounds = array<i64: 8, 1>}, {transform_indices = @transform_3, window_bounds = array<i64: 8, 1024>}]} {
    %c0 = arith.constant 0 : index
    %c0_0 = arith.constant 0 : index
    %0 = vector.load %arg2[%c0, %c0_0] : memref<8x2xbf16, #tpu.memory_space<vmem>>, vector<8x2xbf16>
    %c0_1 = arith.constant 0 : index
    %c0_2 = arith.constant 0 : index
    %1 = vector.load %arg1[%c0_1, %c0_2] : memref<2x1024xbf16, #tpu.memory_space<vmem>>, vector<2x1024xbf16>
    %cst = arith.constant dense<0.000000e+00> : vector<8x1024xf32>
    %2 = tpu.matmul %0, %1, %cst {dimension_numbers = #tpu.dot_dimension_numbers<[1], [0], [0], [1], [0, 0, 1, 1], [], []>} : vector<8x2xbf16>, vector<2x1024xbf16>, vector<8x1024xf32> -> vector<8x1024xf32>
    %c0_3 = arith.constant 0 : index
    %c0_4 = arith.constant 0 : index
    %3 = vector.load %arg3[%c0_3, %c0_4] : memref<8x1xf32, #tpu.memory_space<vmem>>, vector<8x1xf32>
    %4 = vector.broadcast %3 : vector<8x1xf32> to vector<8x1024xf32>
    %5 = arith.addf %2, %4 : vector<8x1024xf32>
    %6 = arith.truncf %5 : vector<8x1024xf32> to vector<8x1024xbf16>
    %c0_5 = arith.constant 0 : index
    %c0_6 = arith.constant 0 : index
    %7 = vector.load %arg4[%c0_5, %c0_6] : memref<8x1024xbf16, #tpu.memory_space<vmem>>, vector<8x1024xbf16>
    tpu.vector_store %arg4[%c0_5, %c0_6], %6 {strides = array<i32>} : memref<8x1024xbf16, #tpu.memory_space<vmem>>, vector<8x1024xbf16>,
    return
  }
  func.func @transform_0(%arg0: i32) -> (i32, i32) {
    %c0_i32 = arith.constant 0 : i32
    %c0_i32_0 = arith.constant 0 : i32
    return %c0_i32, %arg0 : i32, i32
  }
  func.func @transform_1(%arg0: i32) -> (i32, i32) {
    %c0_i32 = arith.constant 0 : i32
    %c0_i32_0 = arith.constant 0 : i32
    %c0_i32_1 = arith.constant 0 : i32
    return %c0_i32, %c0_i32_0 : i32, i32
  }
  func.func @transform_2(%arg0: i32) -> (i32, i32) {
    %c0_i32 = arith.constant 0 : i32
    %c0_i32_0 = arith.constant 0 : i32
    %c0_i32_1 = arith.constant 0 : i32
    return %c0_i32, %c0_i32_0 : i32, i32
  }
  func.func @transform_3(%arg0: i32) -> (i32, i32) {
    %c0_i32 = arith.constant 0 : i32
    %c0_i32_0 = arith.constant 0 : i32
    return %c0_i32, %arg0 : i32, i32
  }
}

module attributes {stable_mosaic.version = 11 : i64} {
  func.func @_spectral_mix_kernel(%arg0: i32, %arg1: memref<8x2x256xf32, #tpu.memory_space<vmem>>, %arg2: memref<8x2x256xf32, #tpu.memory_space<vmem>>, %arg3: memref<8x8x256xf32, #tpu.memory_space<vmem>>, %arg4: memref<8x8x256xf32, #tpu.memory_space<vmem>>, %arg5: memref<8x2x256xf32, #tpu.memory_space<vmem>>, %arg6: memref<8x2x256xf32, #tpu.memory_space<vmem>>) attributes {dimension_semantics = [#tpu.dimension_semantics<parallel>], iteration_bounds = array<i64: 1>, scalar_prefetch = 0 : i64, scratch_operands = 0 : i64, tpu.core_type = #tpu.core_type<tc>, window_params = [{transform_indices = @transform_0, window_bounds = array<i64: 8, 2, 256>}, {transform_indices = @transform_1, window_bounds = array<i64: 8, 2, 256>}, {transform_indices = @transform_2, window_bounds = array<i64: 8, 8, 256>}, {transform_indices = @transform_3, window_bounds = array<i64: 8, 8, 256>}, {transform_indices = @transform_4, window_bounds = array<i64: 8, 2, 256>}, {transform_indices = @transform_5, window_bounds = array<i64: 8, 2, 256>}]} {
    %c0 = arith.constant 0 : index
    %c0_0 = arith.constant 0 : index
    %c0_1 = arith.constant 0 : index
    %0 = vector.load %arg1[%c0, %c0_0, %c0_1] : memref<8x2x256xf32, #tpu.memory_space<vmem>>, vector<8x2x256xf32>
    %c0_2 = arith.constant 0 : index
    %c0_3 = arith.constant 0 : index
    %c0_4 = arith.constant 0 : index
    %1 = vector.load %arg2[%c0_2, %c0_3, %c0_4] : memref<8x2x256xf32, #tpu.memory_space<vmem>>, vector<8x2x256xf32>
    %c0_5 = arith.constant 0 : index
    %c0_6 = arith.constant 0 : index
    %c0_7 = arith.constant 0 : index
    %2 = vector.load %arg3[%c0_5, %c0_6, %c0_7] : memref<8x8x256xf32, #tpu.memory_space<vmem>>, vector<8x8x256xf32>
    %c0_8 = arith.constant 0 : index
    %c0_9 = arith.constant 0 : index
    %c0_10 = arith.constant 0 : index
    %3 = vector.load %arg4[%c0_8, %c0_9, %c0_10] : memref<8x8x256xf32, #tpu.memory_space<vmem>>, vector<8x8x256xf32>
    %4 = arith.addf %0, %1 : vector<8x2x256xf32>
    %5 = arith.addf %2, %3 : vector<8x8x256xf32>
    %cst = arith.constant 0.000000e+00 : f32
    %6 = vector.broadcast %cst : f32 to vector<2x256xf32>
    %cst_11 = arith.constant 0.000000e+00 : f32
    %7 = vector.broadcast %cst_11 : f32 to vector<2x256xf32>
    %cst_12 = arith.constant 0.000000e+00 : f32
    %8 = vector.broadcast %cst_12 : f32 to vector<2x256xf32>
    %9 = vector.extract_strided_slice %0 {offsets = [0, 0, 0], sizes = [1, 2, 256], strides = [1, 1, 1]} : vector<8x2x256xf32> to vector<1x2x256xf32>
    %10 = vector.shape_cast %9 : vector<1x2x256xf32> to vector<2x256xf32>
    %11 = vector.extract_strided_slice %2 {offsets = [0, 0, 0], sizes = [1, 1, 256], strides = [1, 1, 1]} : vector<8x8x256xf32> to vector<1x1x256xf32>
    %12 = vector.shape_cast %11 : vector<1x1x256xf32> to vector<1x256xf32>
    %13 = vector.broadcast %12 : vector<1x256xf32> to vector<2x256xf32>
    %14 = arith.mulf %10, %13 : vector<2x256xf32>
    %15 = arith.addf %6, %14 : vector<2x256xf32>
    %16 = vector.extract_strided_slice %1 {offsets = [0, 0, 0], sizes = [1, 2, 256], strides = [1, 1, 1]} : vector<8x2x256xf32> to vector<1x2x256xf32>
    %17 = vector.shape_cast %16 : vector<1x2x256xf32> to vector<2x256xf32>
    %18 = vector.extract_strided_slice %3 {offsets = [0, 0, 0], sizes = [1, 1, 256], strides = [1, 1, 1]} : vector<8x8x256xf32> to vector<1x1x256xf32>
    %19 = vector.shape_cast %18 : vector<1x1x256xf32> to vector<1x256xf32>
    %20 = vector.broadcast %19 : vector<1x256xf32> to vector<2x256xf32>
    %21 = arith.mulf %17, %20 : vector<2x256xf32>
    %22 = arith.addf %7, %21 : vector<2x256xf32>
    %23 = vector.extract_strided_slice %4 {offsets = [0, 0, 0], sizes = [1, 2, 256], strides = [1, 1, 1]} : vector<8x2x256xf32> to vector<1x2x256xf32>
    %24 = vector.shape_cast %23 : vector<1x2x256xf32> to vector<2x256xf32>
    %25 = vector.extract_strided_slice %5 {offsets = [0, 0, 0], sizes = [1, 1, 256], strides = [1, 1, 1]} : vector<8x8x256xf32> to vector<1x1x256xf32>
    %26 = vector.shape_cast %25 : vector<1x1x256xf32> to vector<1x256xf32>
    %27 = vector.broadcast %26 : vector<1x256xf32> to vector<2x256xf32>
    %28 = arith.mulf %24, %27 : vector<2x256xf32>
    %29 = arith.addf %8, %28 : vector<2x256xf32>
    %30 = vector.extract_strided_slice %0 {offsets = [1, 0, 0], sizes = [1, 2, 256], strides = [1, 1, 1]} : vector<8x2x256xf32> to vector<1x2x256xf32>
    %31 = vector.shape_cast %30 : vector<1x2x256xf32> to vector<2x256xf32>
    %32 = vector.extract_strided_slice %2 {offsets = [1, 0, 0], sizes = [1, 1, 256], strides = [1, 1, 1]} : vector<8x8x256xf32> to vector<1x1x256xf32>
    %33 = vector.shape_cast %32 : vector<1x1x256xf32> to vector<1x256xf32>
    %34 = vector.broadcast %33 : vector<1x256xf32> to vector<2x256xf32>
    %35 = arith.mulf %31, %34 : vector<2x256xf32>
    %36 = arith.addf %15, %35 : vector<2x256xf32>
    %37 = vector.extract_strided_slice %1 {offsets = [1, 0, 0], sizes = [1, 2, 256], strides = [1, 1, 1]} : vector<8x2x256xf32> to vector<1x2x256xf32>
    %38 = vector.shape_cast %37 : vector<1x2x256xf32> to vector<2x256xf32>
    %39 = vector.extract_strided_slice %3 {offsets = [1, 0, 0], sizes = [1, 1, 256], strides = [1, 1, 1]} : vector<8x8x256xf32> to vector<1x1x256xf32>
    %40 = vector.shape_cast %39 : vector<1x1x256xf32> to vector<1x256xf32>
    %41 = vector.broadcast %40 : vector<1x256xf32> to vector<2x256xf32>
    %42 = arith.mulf %38, %41 : vector<2x256xf32>
    %43 = arith.addf %22, %42 : vector<2x256xf32>
    %44 = vector.extract_strided_slice %4 {offsets = [1, 0, 0], sizes = [1, 2, 256], strides = [1, 1, 1]} : vector<8x2x256xf32> to vector<1x2x256xf32>
    %45 = vector.shape_cast %44 : vector<1x2x256xf32> to vector<2x256xf32>
    %46 = vector.extract_strided_slice %5 {offsets = [1, 0, 0], sizes = [1, 1, 256], strides = [1, 1, 1]} : vector<8x8x256xf32> to vector<1x1x256xf32>
    %47 = vector.shape_cast %46 : vector<1x1x256xf32> to vector<1x256xf32>
    %48 = vector.broadcast %47 : vector<1x256xf32> to vector<2x256xf32>
    %49 = arith.mulf %45, %48 : vector<2x256xf32>
    %50 = arith.addf %29, %49 : vector<2x256xf32>
    %51 = vector.extract_strided_slice %0 {offsets = [2, 0, 0], sizes = [1, 2, 256], strides = [1, 1, 1]} : vector<8x2x256xf32> to vector<1x2x256xf32>
    %52 = vector.shape_cast %51 : vector<1x2x256xf32> to vector<2x256xf32>
    %53 = vector.extract_strided_slice %2 {offsets = [2, 0, 0], sizes = [1, 1, 256], strides = [1, 1, 1]} : vector<8x8x256xf32> to vector<1x1x256xf32>
    %54 = vector.shape_cast %53 : vector<1x1x256xf32> to vector<1x256xf32>
    %55 = vector.broadcast %54 : vector<1x256xf32> to vector<2x256xf32>
    %56 = arith.mulf %52, %55 : vector<2x256xf32>
    %57 = arith.addf %36, %56 : vector<2x256xf32>
    %58 = vector.extract_strided_slice %1 {offsets = [2, 0, 0], sizes = [1, 2, 256], strides = [1, 1, 1]} : vector<8x2x256xf32> to vector<1x2x256xf32>
    %59 = vector.shape_cast %58 : vector<1x2x256xf32> to vector<2x256xf32>
    %60 = vector.extract_strided_slice %3 {offsets = [2, 0, 0], sizes = [1, 1, 256], strides = [1, 1, 1]} : vector<8x8x256xf32> to vector<1x1x256xf32>
    %61 = vector.shape_cast %60 : vector<1x1x256xf32> to vector<1x256xf32>
    %62 = vector.broadcast %61 : vector<1x256xf32> to vector<2x256xf32>
    %63 = arith.mulf %59, %62 : vector<2x256xf32>
    %64 = arith.addf %43, %63 : vector<2x256xf32>
    %65 = vector.extract_strided_slice %4 {offsets = [2, 0, 0], sizes = [1, 2, 256], strides = [1, 1, 1]} : vector<8x2x256xf32> to vector<1x2x256xf32>
    %66 = vector.shape_cast %65 : vector<1x2x256xf32> to vector<2x256xf32>
    %67 = vector.extract_strided_slice %5 {offsets = [2, 0, 0], sizes = [1, 1, 256], strides = [1, 1, 1]} : vector<8x8x256xf32> to vector<1x1x256xf32>
    %68 = vector.shape_cast %67 : vector<1x1x256xf32> to vector<1x256xf32>
    %69 = vector.broadcast %68 : vector<1x256xf32> to vector<2x256xf32>
    %70 = arith.mulf %66, %69 : vector<2x256xf32>
    %71 = arith.addf %50, %70 : vector<2x256xf32>
    %72 = vector.extract_strided_slice %0 {offsets = [3, 0, 0], sizes = [1, 2, 256], strides = [1, 1, 1]} : vector<8x2x256xf32> to vector<1x2x256xf32>
    %73 = vector.shape_cast %72 : vector<1x2x256xf32> to vector<2x256xf32>
    %74 = vector.extract_strided_slice %2 {offsets = [3, 0, 0], sizes = [1, 1, 256], strides = [1, 1, 1]} : vector<8x8x256xf32> to vector<1x1x256xf32>
    %75 = vector.shape_cast %74 : vector<1x1x256xf32> to vector<1x256xf32>
    %76 = vector.broadcast %75 : vector<1x256xf32> to vector<2x256xf32>
    %77 = arith.mulf %73, %76 : vector<2x256xf32>
    %78 = arith.addf %57, %77 : vector<2x256xf32>
    %79 = vector.extract_strided_slice %1 {offsets = [3, 0, 0], sizes = [1, 2, 256], strides = [1, 1, 1]} : vector<8x2x256xf32> to vector<1x2x256xf32>
    %80 = vector.shape_cast %79 : vector<1x2x256xf32> to vector<2x256xf32>
    %81 = vector.extract_strided_slice %3 {offsets = [3, 0, 0], sizes = [1, 1, 256], strides = [1, 1, 1]} : vector<8x8x256xf32> to vector<1x1x256xf32>
    %82 = vector.shape_cast %81 : vector<1x1x256xf32> to vector<1x256xf32>
    %83 = vector.broadcast %82 : vector<1x256xf32> to vector<2x256xf32>
    %84 = arith.mulf %80, %83 : vector<2x256xf32>
    %85 = arith.addf %64, %84 : vector<2x256xf32>
    %86 = vector.extract_strided_slice %4 {offsets = [3, 0, 0], sizes = [1, 2, 256], strides = [1, 1, 1]} : vector<8x2x256xf32> to vector<1x2x256xf32>
    %87 = vector.shape_cast %86 : vector<1x2x256xf32> to vector<2x256xf32>
    %88 = vector.extract_strided_slice %5 {offsets = [3, 0, 0], sizes = [1, 1, 256], strides = [1, 1, 1]} : vector<8x8x256xf32> to vector<1x1x256xf32>
    %89 = vector.shape_cast %88 : vector<1x1x256xf32> to vector<1x256xf32>
    %90 = vector.broadcast %89 : vector<1x256xf32> to vector<2x256xf32>
    %91 = arith.mulf %87, %90 : vector<2x256xf32>
    %92 = arith.addf %71, %91 : vector<2x256xf32>
    %93 = vector.extract_strided_slice %0 {offsets = [4, 0, 0], sizes = [1, 2, 256], strides = [1, 1, 1]} : vector<8x2x256xf32> to vector<1x2x256xf32>
    %94 = vector.shape_cast %93 : vector<1x2x256xf32> to vector<2x256xf32>
    %95 = vector.extract_strided_slice %2 {offsets = [4, 0, 0], sizes = [1, 1, 256], strides = [1, 1, 1]} : vector<8x8x256xf32> to vector<1x1x256xf32>
    %96 = vector.shape_cast %95 : vector<1x1x256xf32> to vector<1x256xf32>
    %97 = vector.broadcast %96 : vector<1x256xf32> to vector<2x256xf32>
    %98 = arith.mulf %94, %97 : vector<2x256xf32>
    %99 = arith.addf %78, %98 : vector<2x256xf32>
    %100 = vector.extract_strided_slice %1 {offsets = [4, 0, 0], sizes = [1, 2, 256], strides = [1, 1, 1]} : vector<8x2x256xf32> to vector<1x2x256xf32>
    %101 = vector.shape_cast %100 : vector<1x2x256xf32> to vector<2x256xf32>
    %102 = vector.extract_strided_slice %3 {offsets = [4, 0, 0], sizes = [1, 1, 256], strides = [1, 1, 1]} : vector<8x8x256xf32> to vector<1x1x256xf32>
    %103 = vector.shape_cast %102 : vector<1x1x256xf32> to vector<1x256xf32>
    %104 = vector.broadcast %103 : vector<1x256xf32> to vector<2x256xf32>
    %105 = arith.mulf %101, %104 : vector<2x256xf32>
    %106 = arith.addf %85, %105 : vector<2x256xf32>
    %107 = vector.extract_strided_slice %4 {offsets = [4, 0, 0], sizes = [1, 2, 256], strides = [1, 1, 1]} : vector<8x2x256xf32> to vector<1x2x256xf32>
    %108 = vector.shape_cast %107 : vector<1x2x256xf32> to vector<2x256xf32>
    %109 = vector.extract_strided_slice %5 {offsets = [4, 0, 0], sizes = [1, 1, 256], strides = [1, 1, 1]} : vector<8x8x256xf32> to vector<1x1x256xf32>
    %110 = vector.shape_cast %109 : vector<1x1x256xf32> to vector<1x256xf32>
    %111 = vector.broadcast %110 : vector<1x256xf32> to vector<2x256xf32>
    %112 = arith.mulf %108, %111 : vector<2x256xf32>
    %113 = arith.addf %92, %112 : vector<2x256xf32>
    %114 = vector.extract_strided_slice %0 {offsets = [5, 0, 0], sizes = [1, 2, 256], strides = [1, 1, 1]} : vector<8x2x256xf32> to vector<1x2x256xf32>
    %115 = vector.shape_cast %114 : vector<1x2x256xf32> to vector<2x256xf32>
    %116 = vector.extract_strided_slice %2 {offsets = [5, 0, 0], sizes = [1, 1, 256], strides = [1, 1, 1]} : vector<8x8x256xf32> to vector<1x1x256xf32>
    %117 = vector.shape_cast %116 : vector<1x1x256xf32> to vector<1x256xf32>
    %118 = vector.broadcast %117 : vector<1x256xf32> to vector<2x256xf32>
    %119 = arith.mulf %115, %118 : vector<2x256xf32>
    %120 = arith.addf %99, %119 : vector<2x256xf32>
    %121 = vector.extract_strided_slice %1 {offsets = [5, 0, 0], sizes = [1, 2, 256], strides = [1, 1, 1]} : vector<8x2x256xf32> to vector<1x2x256xf32>
    %122 = vector.shape_cast %121 : vector<1x2x256xf32> to vector<2x256xf32>
    %123 = vector.extract_strided_slice %3 {offsets = [5, 0, 0], sizes = [1, 1, 256], strides = [1, 1, 1]} : vector<8x8x256xf32> to vector<1x1x256xf32>
    %124 = vector.shape_cast %123 : vector<1x1x256xf32> to vector<1x256xf32>
    %125 = vector.broadcast %124 : vector<1x256xf32> to vector<2x256xf32>
    %126 = arith.mulf %122, %125 : vector<2x256xf32>
    %127 = arith.addf %106, %126 : vector<2x256xf32>
    %128 = vector.extract_strided_slice %4 {offsets = [5, 0, 0], sizes = [1, 2, 256], strides = [1, 1, 1]} : vector<8x2x256xf32> to vector<1x2x256xf32>
    %129 = vector.shape_cast %128 : vector<1x2x256xf32> to vector<2x256xf32>
    %130 = vector.extract_strided_slice %5 {offsets = [5, 0, 0], sizes = [1, 1, 256], strides = [1, 1, 1]} : vector<8x8x256xf32> to vector<1x1x256xf32>
    %131 = vector.shape_cast %130 : vector<1x1x256xf32> to vector<1x256xf32>
    %132 = vector.broadcast %131 : vector<1x256xf32> to vector<2x256xf32>
    %133 = arith.mulf %129, %132 : vector<2x256xf32>
    %134 = arith.addf %113, %133 : vector<2x256xf32>
    %135 = vector.extract_strided_slice %0 {offsets = [6, 0, 0], sizes = [1, 2, 256], strides = [1, 1, 1]} : vector<8x2x256xf32> to vector<1x2x256xf32>
    %136 = vector.shape_cast %135 : vector<1x2x256xf32> to vector<2x256xf32>
    %137 = vector.extract_strided_slice %2 {offsets = [6, 0, 0], sizes = [1, 1, 256], strides = [1, 1, 1]} : vector<8x8x256xf32> to vector<1x1x256xf32>
    %138 = vector.shape_cast %137 : vector<1x1x256xf32> to vector<1x256xf32>
    %139 = vector.broadcast %138 : vector<1x256xf32> to vector<2x256xf32>
    %140 = arith.mulf %136, %139 : vector<2x256xf32>
    %141 = arith.addf %120, %140 : vector<2x256xf32>
    %142 = vector.extract_strided_slice %1 {offsets = [6, 0, 0], sizes = [1, 2, 256], strides = [1, 1, 1]} : vector<8x2x256xf32> to vector<1x2x256xf32>
    %143 = vector.shape_cast %142 : vector<1x2x256xf32> to vector<2x256xf32>
    %144 = vector.extract_strided_slice %3 {offsets = [6, 0, 0], sizes = [1, 1, 256], strides = [1, 1, 1]} : vector<8x8x256xf32> to vector<1x1x256xf32>
    %145 = vector.shape_cast %144 : vector<1x1x256xf32> to vector<1x256xf32>
    %146 = vector.broadcast %145 : vector<1x256xf32> to vector<2x256xf32>
    %147 = arith.mulf %143, %146 : vector<2x256xf32>
    %148 = arith.addf %127, %147 : vector<2x256xf32>
    %149 = vector.extract_strided_slice %4 {offsets = [6, 0, 0], sizes = [1, 2, 256], strides = [1, 1, 1]} : vector<8x2x256xf32> to vector<1x2x256xf32>
    %150 = vector.shape_cast %149 : vector<1x2x256xf32> to vector<2x256xf32>
    %151 = vector.extract_strided_slice %5 {offsets = [6, 0, 0], sizes = [1, 1, 256], strides = [1, 1, 1]} : vector<8x8x256xf32> to vector<1x1x256xf32>
    %152 = vector.shape_cast %151 : vector<1x1x256xf32> to vector<1x256xf32>
    %153 = vector.broadcast %152 : vector<1x256xf32> to vector<2x256xf32>
    %154 = arith.mulf %150, %153 : vector<2x256xf32>
    %155 = arith.addf %134, %154 : vector<2x256xf32>
    %156 = vector.extract_strided_slice %0 {offsets = [7, 0, 0], sizes = [1, 2, 256], strides = [1, 1, 1]} : vector<8x2x256xf32> to vector<1x2x256xf32>
    %157 = vector.shape_cast %156 : vector<1x2x256xf32> to vector<2x256xf32>
    %158 = vector.extract_strided_slice %2 {offsets = [7, 0, 0], sizes = [1, 1, 256], strides = [1, 1, 1]} : vector<8x8x256xf32> to vector<1x1x256xf32>
    %159 = vector.shape_cast %158 : vector<1x1x256xf32> to vector<1x256xf32>
    %160 = vector.broadcast %159 : vector<1x256xf32> to vector<2x256xf32>
    %161 = arith.mulf %157, %160 : vector<2x256xf32>
    %162 = arith.addf %141, %161 : vector<2x256xf32>
    %163 = vector.extract_strided_slice %1 {offsets = [7, 0, 0], sizes = [1, 2, 256], strides = [1, 1, 1]} : vector<8x2x256xf32> to vector<1x2x256xf32>
    %164 = vector.shape_cast %163 : vector<1x2x256xf32> to vector<2x256xf32>
    %165 = vector.extract_strided_slice %3 {offsets = [7, 0, 0], sizes = [1, 1, 256], strides = [1, 1, 1]} : vector<8x8x256xf32> to vector<1x1x256xf32>
    %166 = vector.shape_cast %165 : vector<1x1x256xf32> to vector<1x256xf32>
    %167 = vector.broadcast %166 : vector<1x256xf32> to vector<2x256xf32>
    %168 = arith.mulf %164, %167 : vector<2x256xf32>
    %169 = arith.addf %148, %168 : vector<2x256xf32>
    %170 = vector.extract_strided_slice %4 {offsets = [7, 0, 0], sizes = [1, 2, 256], strides = [1, 1, 1]} : vector<8x2x256xf32> to vector<1x2x256xf32>
    %171 = vector.shape_cast %170 : vector<1x2x256xf32> to vector<2x256xf32>
    %172 = vector.extract_strided_slice %5 {offsets = [7, 0, 0], sizes = [1, 1, 256], strides = [1, 1, 1]} : vector<8x8x256xf32> to vector<1x1x256xf32>
    %173 = vector.shape_cast %172 : vector<1x1x256xf32> to vector<1x256xf32>
    %174 = vector.broadcast %173 : vector<1x256xf32> to vector<2x256xf32>
    %175 = arith.mulf %171, %174 : vector<2x256xf32>
    %176 = arith.addf %155, %175 : vector<2x256xf32>
    %177 = arith.subf %162, %169 : vector<2x256xf32>
    %c0_13 = arith.constant 0 : index
    %c0_14 = arith.constant 0 : index
    %c0_15 = arith.constant 0 : index
    %178 = vector.load %arg5[%c0_13, %c0_14, %c0_15] : memref<8x2x256xf32, #tpu.memory_space<vmem>>, vector<1x2x256xf32>
    %179 = vector.shape_cast %178 : vector<1x2x256xf32> to vector<2x256xf32>
    %180 = vector.shape_cast %177 : vector<2x256xf32> to vector<1x2x256xf32>
    tpu.vector_store %arg5[%c0_13, %c0_14, %c0_15], %180 {strides = array<i32>} : memref<8x2x256xf32, #tpu.memory_space<vmem>>, vector<1x2x256xf32>,
    %181 = arith.subf %176, %162 : vector<2x256xf32>
    %182 = arith.subf %181, %169 : vector<2x256xf32>
    %c0_16 = arith.constant 0 : index
    %c0_17 = arith.constant 0 : index
    %c0_18 = arith.constant 0 : index
    %183 = vector.load %arg6[%c0_16, %c0_17, %c0_18] : memref<8x2x256xf32, #tpu.memory_space<vmem>>, vector<1x2x256xf32>
    %184 = vector.shape_cast %183 : vector<1x2x256xf32> to vector<2x256xf32>
    %185 = vector.shape_cast %182 : vector<2x256xf32> to vector<1x2x256xf32>
    tpu.vector_store %arg6[%c0_16, %c0_17, %c0_18], %185 {strides = array<i32>} : memref<8x2x256xf32, #tpu.memory_space<vmem>>, vector<1x2x256xf32>,
    %cst_19 = arith.constant 0.000000e+00 : f32
    %186 = vector.broadcast %cst_19 : f32 to vector<2x256xf32>
    %cst_20 = arith.constant 0.000000e+00 : f32
    %187 = vector.broadcast %cst_20 : f32 to vector<2x256xf32>
    %cst_21 = arith.constant 0.000000e+00 : f32
    %188 = vector.broadcast %cst_21 : f32 to vector<2x256xf32>
    %189 = vector.extract_strided_slice %0 {offsets = [0, 0, 0], sizes = [1, 2, 256], strides = [1, 1, 1]} : vector<8x2x256xf32> to vector<1x2x256xf32>
    %190 = vector.shape_cast %189 : vector<1x2x256xf32> to vector<2x256xf32>
    %191 = vector.extract_strided_slice %2 {offsets = [0, 1, 0], sizes = [1, 1, 256], strides = [1, 1, 1]} : vector<8x8x256xf32> to vector<1x1x256xf32>
    %192 = vector.shape_cast %191 : vector<1x1x256xf32> to vector<1x256xf32>
    %193 = vector.broadcast %192 : vector<1x256xf32> to vector<2x256xf32>
    %194 = arith.mulf %190, %193 : vector<2x256xf32>
    %195 = arith.addf %186, %194 : vector<2x256xf32>
    %196 = vector.extract_strided_slice %1 {offsets = [0, 0, 0], sizes = [1, 2, 256], strides = [1, 1, 1]} : vector<8x2x256xf32> to vector<1x2x256xf32>
    %197 = vector.shape_cast %196 : vector<1x2x256xf32> to vector<2x256xf32>
    %198 = vector.extract_strided_slice %3 {offsets = [0, 1, 0], sizes = [1, 1, 256], strides = [1, 1, 1]} : vector<8x8x256xf32> to vector<1x1x256xf32>
    %199 = vector.shape_cast %198 : vector<1x1x256xf32> to vector<1x256xf32>
    %200 = vector.broadcast %199 : vector<1x256xf32> to vector<2x256xf32>
    %201 = arith.mulf %197, %200 : vector<2x256xf32>
    %202 = arith.addf %187, %201 : vector<2x256xf32>
    %203 = vector.extract_strided_slice %4 {offsets = [0, 0, 0], sizes = [1, 2, 256], strides = [1, 1, 1]} : vector<8x2x256xf32> to vector<1x2x256xf32>
    %204 = vector.shape_cast %203 : vector<1x2x256xf32> to vector<2x256xf32>
    %205 = vector.extract_strided_slice %5 {offsets = [0, 1, 0], sizes = [1, 1, 256], strides = [1, 1, 1]} : vector<8x8x256xf32> to vector<1x1x256xf32>
    %206 = vector.shape_cast %205 : vector<1x1x256xf32> to vector<1x256xf32>
    %207 = vector.broadcast %206 : vector<1x256xf32> to vector<2x256xf32>
    %208 = arith.mulf %204, %207 : vector<2x256xf32>
    %209 = arith.addf %188, %208 : vector<2x256xf32>
    %210 = vector.extract_strided_slice %0 {offsets = [1, 0, 0], sizes = [1, 2, 256], strides = [1, 1, 1]} : vector<8x2x256xf32> to vector<1x2x256xf32>
    %211 = vector.shape_cast %210 : vector<1x2x256xf32> to vector<2x256xf32>
    %212 = vector.extract_strided_slice %2 {offsets = [1, 1, 0], sizes = [1, 1, 256], strides = [1, 1, 1]} : vector<8x8x256xf32> to vector<1x1x256xf32>
    %213 = vector.shape_cast %212 : vector<1x1x256xf32> to vector<1x256xf32>
    %214 = vector.broadcast %213 : vector<1x256xf32> to vector<2x256xf32>
    %215 = arith.mulf %211, %214 : vector<2x256xf32>
    %216 = arith.addf %195, %215 : vector<2x256xf32>
    %217 = vector.extract_strided_slice %1 {offsets = [1, 0, 0], sizes = [1, 2, 256], strides = [1, 1, 1]} : vector<8x2x256xf32> to vector<1x2x256xf32>
    %218 = vector.shape_cast %217 : vector<1x2x256xf32> to vector<2x256xf32>
    %219 = vector.extract_strided_slice %3 {offsets = [1, 1, 0], sizes = [1, 1, 256], strides = [1, 1, 1]} : vector<8x8x256xf32> to vector<1x1x256xf32>
    %220 = vector.shape_cast %219 : vector<1x1x256xf32> to vector<1x256xf32>
    %221 = vector.broadcast %220 : vector<1x256xf32> to vector<2x256xf32>
    %222 = arith.mulf %218, %221 : vector<2x256xf32>
    %223 = arith.addf %202, %222 : vector<2x256xf32>
    %224 = vector.extract_strided_slice %4 {offsets = [1, 0, 0], sizes = [1, 2, 256], strides = [1, 1, 1]} : vector<8x2x256xf32> to vector<1x2x256xf32>
    %225 = vector.shape_cast %224 : vector<1x2x256xf32> to vector<2x256xf32>
    %226 = vector.extract_strided_slice %5 {offsets = [1, 1, 0], sizes = [1, 1, 256], strides = [1, 1, 1]} : vector<8x8x256xf32> to vector<1x1x256xf32>
    %227 = vector.shape_cast %226 : vector<1x1x256xf32> to vector<1x256xf32>
    %228 = vector.broadcast %227 : vector<1x256xf32> to vector<2x256xf32>
    %229 = arith.mulf %225, %228 : vector<2x256xf32>
    %230 = arith.addf %209, %229 : vector<2x256xf32>
    %231 = vector.extract_strided_slice %0 {offsets = [2, 0, 0], sizes = [1, 2, 256], strides = [1, 1, 1]} : vector<8x2x256xf32> to vector<1x2x256xf32>
    %232 = vector.shape_cast %231 : vector<1x2x256xf32> to vector<2x256xf32>
    %233 = vector.extract_strided_slice %2 {offsets = [2, 1, 0], sizes = [1, 1, 256], strides = [1, 1, 1]} : vector<8x8x256xf32> to vector<1x1x256xf32>
    %234 = vector.shape_cast %233 : vector<1x1x256xf32> to vector<1x256xf32>
    %235 = vector.broadcast %234 : vector<1x256xf32> to vector<2x256xf32>
    %236 = arith.mulf %232, %235 : vector<2x256xf32>
    %237 = arith.addf %216, %236 : vector<2x256xf32>
    %238 = vector.extract_strided_slice %1 {offsets = [2, 0, 0], sizes = [1, 2, 256], strides = [1, 1, 1]} : vector<8x2x256xf32> to vector<1x2x256xf32>
    %239 = vector.shape_cast %238 : vector<1x2x256xf32> to vector<2x256xf32>
    %240 = vector.extract_strided_slice %3 {offsets = [2, 1, 0], sizes = [1, 1, 256], strides = [1, 1, 1]} : vector<8x8x256xf32> to vector<1x1x256xf32>
    %241 = vector.shape_cast %240 : vector<1x1x256xf32> to vector<1x256xf32>
    %242 = vector.broadcast %241 : vector<1x256xf32> to vector<2x256xf32>
    %243 = arith.mulf %239, %242 : vector<2x256xf32>
    %244 = arith.addf %223, %243 : vector<2x256xf32>
    %245 = vector.extract_strided_slice %4 {offsets = [2, 0, 0], sizes = [1, 2, 256], strides = [1, 1, 1]} : vector<8x2x256xf32> to vector<1x2x256xf32>
    %246 = vector.shape_cast %245 : vector<1x2x256xf32> to vector<2x256xf32>
    %247 = vector.extract_strided_slice %5 {offsets = [2, 1, 0], sizes = [1, 1, 256], strides = [1, 1, 1]} : vector<8x8x256xf32> to vector<1x1x256xf32>
    %248 = vector.shape_cast %247 : vector<1x1x256xf32> to vector<1x256xf32>
    %249 = vector.broadcast %248 : vector<1x256xf32> to vector<2x256xf32>
    %250 = arith.mulf %246, %249 : vector<2x256xf32>
    %251 = arith.addf %230, %250 : vector<2x256xf32>
    %252 = vector.extract_strided_slice %0 {offsets = [3, 0, 0], sizes = [1, 2, 256], strides = [1, 1, 1]} : vector<8x2x256xf32> to vector<1x2x256xf32>
    %253 = vector.shape_cast %252 : vector<1x2x256xf32> to vector<2x256xf32>
    %254 = vector.extract_strided_slice %2 {offsets = [3, 1, 0], sizes = [1, 1, 256], strides = [1, 1, 1]} : vector<8x8x256xf32> to vector<1x1x256xf32>
    %255 = vector.shape_cast %254 : vector<1x1x256xf32> to vector<1x256xf32>
    %256 = vector.broadcast %255 : vector<1x256xf32> to vector<2x256xf32>
    %257 = arith.mulf %253, %256 : vector<2x256xf32>
    %258 = arith.addf %237, %257 : vector<2x256xf32>
    %259 = vector.extract_strided_slice %1 {offsets = [3, 0, 0], sizes = [1, 2, 256], strides = [1, 1, 1]} : vector<8x2x256xf32> to vector<1x2x256xf32>
    %260 = vector.shape_cast %259 : vector<1x2x256xf32> to vector<2x256xf32>
    %261 = vector.extract_strided_slice %3 {offsets = [3, 1, 0], sizes = [1, 1, 256], strides = [1, 1, 1]} : vector<8x8x256xf32> to vector<1x1x256xf32>
    %262 = vector.shape_cast %261 : vector<1x1x256xf32> to vector<1x256xf32>
    %263 = vector.broadcast %262 : vector<1x256xf32> to vector<2x256xf32>
    %264 = arith.mulf %260, %263 : vector<2x256xf32>
    %265 = arith.addf %244, %264 : vector<2x256xf32>
    %266 = vector.extract_strided_slice %4 {offsets = [3, 0, 0], sizes = [1, 2, 256], strides = [1, 1, 1]} : vector<8x2x256xf32> to vector<1x2x256xf32>
    %267 = vector.shape_cast %266 : vector<1x2x256xf32> to vector<2x256xf32>
    %268 = vector.extract_strided_slice %5 {offsets = [3, 1, 0], sizes = [1, 1, 256], strides = [1, 1, 1]} : vector<8x8x256xf32> to vector<1x1x256xf32>
    %269 = vector.shape_cast %268 : vector<1x1x256xf32> to vector<1x256xf32>
    %270 = vector.broadcast %269 : vector<1x256xf32> to vector<2x256xf32>
    %271 = arith.mulf %267, %270 : vector<2x256xf32>
    %272 = arith.addf %251, %271 : vector<2x256xf32>
    %273 = vector.extract_strided_slice %0 {offsets = [4, 0, 0], sizes = [1, 2, 256], strides = [1, 1, 1]} : vector<8x2x256xf32> to vector<1x2x256xf32>
    %274 = vector.shape_cast %273 : vector<1x2x256xf32> to vector<2x256xf32>
    %275 = vector.extract_strided_slice %2 {offsets = [4, 1, 0], sizes = [1, 1, 256], strides = [1, 1, 1]} : vector<8x8x256xf32> to vector<1x1x256xf32>
    %276 = vector.shape_cast %275 : vector<1x1x256xf32> to vector<1x256xf32>
    %277 = vector.broadcast %276 : vector<1x256xf32> to vector<2x256xf32>
    %278 = arith.mulf %274, %277 : vector<2x256xf32>
    %279 = arith.addf %258, %278 : vector<2x256xf32>
    %280 = vector.extract_strided_slice %1 {offsets = [4, 0, 0], sizes = [1, 2, 256], strides = [1, 1, 1]} : vector<8x2x256xf32> to vector<1x2x256xf32>
    %281 = vector.shape_cast %280 : vector<1x2x256xf32> to vector<2x256xf32>
    %282 = vector.extract_strided_slice %3 {offsets = [4, 1, 0], sizes = [1, 1, 256], strides = [1, 1, 1]} : vector<8x8x256xf32> to vector<1x1x256xf32>
    %283 = vector.shape_cast %282 : vector<1x1x256xf32> to vector<1x256xf32>
    %284 = vector.broadcast %283 : vector<1x256xf32> to vector<2x256xf32>
    %285 = arith.mulf %281, %284 : vector<2x256xf32>
    %286 = arith.addf %265, %285 : vector<2x256xf32>
    %287 = vector.extract_strided_slice %4 {offsets = [4, 0, 0], sizes = [1, 2, 256], strides = [1, 1, 1]} : vector<8x2x256xf32> to vector<1x2x256xf32>
    %288 = vector.shape_cast %287 : vector<1x2x256xf32> to vector<2x256xf32>
    %289 = vector.extract_strided_slice %5 {offsets = [4, 1, 0], sizes = [1, 1, 256], strides = [1, 1, 1]} : vector<8x8x256xf32> to vector<1x1x256xf32>
    %290 = vector.shape_cast %289 : vector<1x1x256xf32> to vector<1x256xf32>
    %291 = vector.broadcast %290 : vector<1x256xf32> to vector<2x256xf32>
    %292 = arith.mulf %288, %291 : vector<2x256xf32>
    %293 = arith.addf %272, %292 : vector<2x256xf32>
    %294 = vector.extract_strided_slice %0 {offsets = [5, 0, 0], sizes = [1, 2, 256], strides = [1, 1, 1]} : vector<8x2x256xf32> to vector<1x2x256xf32>
    %295 = vector.shape_cast %294 : vector<1x2x256xf32> to vector<2x256xf32>
    %296 = vector.extract_strided_slice %2 {offsets = [5, 1, 0], sizes = [1, 1, 256], strides = [1, 1, 1]} : vector<8x8x256xf32> to vector<1x1x256xf32>
    %297 = vector.shape_cast %296 : vector<1x1x256xf32> to vector<1x256xf32>
    %298 = vector.broadcast %297 : vector<1x256xf32> to vector<2x256xf32>
    %299 = arith.mulf %295, %298 : vector<2x256xf32>
    %300 = arith.addf %279, %299 : vector<2x256xf32>
    %301 = vector.extract_strided_slice %1 {offsets = [5, 0, 0], sizes = [1, 2, 256], strides = [1, 1, 1]} : vector<8x2x256xf32> to vector<1x2x256xf32>
    %302 = vector.shape_cast %301 : vector<1x2x256xf32> to vector<2x256xf32>
    %303 = vector.extract_strided_slice %3 {offsets = [5, 1, 0], sizes = [1, 1, 256], strides = [1, 1, 1]} : vector<8x8x256xf32> to vector<1x1x256xf32>
    %304 = vector.shape_cast %303 : vector<1x1x256xf32> to vector<1x256xf32>
    %305 = vector.broadcast %304 : vector<1x256xf32> to vector<2x256xf32>
    %306 = arith.mulf %302, %305 : vector<2x256xf32>
    %307 = arith.addf %286, %306 : vector<2x256xf32>
    %308 = vector.extract_strided_slice %4 {offsets = [5, 0, 0], sizes = [1, 2, 256], strides = [1, 1, 1]} : vector<8x2x256xf32> to vector<1x2x256xf32>
    %309 = vector.shape_cast %308 : vector<1x2x256xf32> to vector<2x256xf32>
    %310 = vector.extract_strided_slice %5 {offsets = [5, 1, 0], sizes = [1, 1, 256], strides = [1, 1, 1]} : vector<8x8x256xf32> to vector<1x1x256xf32>
    %311 = vector.shape_cast %310 : vector<1x1x256xf32> to vector<1x256xf32>
    %312 = vector.broadcast %311 : vector<1x256xf32> to vector<2x256xf32>
    %313 = arith.mulf %309, %312 : vector<2x256xf32>
    %314 = arith.addf %293, %313 : vector<2x256xf32>
    %315 = vector.extract_strided_slice %0 {offsets = [6, 0, 0], sizes = [1, 2, 256], strides = [1, 1, 1]} : vector<8x2x256xf32> to vector<1x2x256xf32>
    %316 = vector.shape_cast %315 : vector<1x2x256xf32> to vector<2x256xf32>
    %317 = vector.extract_strided_slice %2 {offsets = [6, 1, 0], sizes = [1, 1, 256], strides = [1, 1, 1]} : vector<8x8x256xf32> to vector<1x1x256xf32>
    %318 = vector.shape_cast %317 : vector<1x1x256xf32> to vector<1x256xf32>
    %319 = vector.broadcast %318 : vector<1x256xf32> to vector<2x256xf32>
    %320 = arith.mulf %316, %319 : vector<2x256xf32>
    %321 = arith.addf %300, %320 : vector<2x256xf32>
    %322 = vector.extract_strided_slice %1 {offsets = [6, 0, 0], sizes = [1, 2, 256], strides = [1, 1, 1]} : vector<8x2x256xf32> to vector<1x2x256xf32>
    %323 = vector.shape_cast %322 : vector<1x2x256xf32> to vector<2x256xf32>
    %324 = vector.extract_strided_slice %3 {offsets = [6, 1, 0], sizes = [1, 1, 256], strides = [1, 1, 1]} : vector<8x8x256xf32> to vector<1x1x256xf32>
    %325 = vector.shape_cast %324 : vector<1x1x256xf32> to vector<1x256xf32>
    %326 = vector.broadcast %325 : vector<1x256xf32> to vector<2x256xf32>
    %327 = arith.mulf %323, %326 : vector<2x256xf32>
    %328 = arith.addf %307, %327 : vector<2x256xf32>
    %329 = vector.extract_strided_slice %4 {offsets = [6, 0, 0], sizes = [1, 2, 256], strides = [1, 1, 1]} : vector<8x2x256xf32> to vector<1x2x256xf32>
    %330 = vector.shape_cast %329 : vector<1x2x256xf32> to vector<2x256xf32>
    %331 = vector.extract_strided_slice %5 {offsets = [6, 1, 0], sizes = [1, 1, 256], strides = [1, 1, 1]} : vector<8x8x256xf32> to vector<1x1x256xf32>
    %332 = vector.shape_cast %331 : vector<1x1x256xf32> to vector<1x256xf32>
    %333 = vector.broadcast %332 : vector<1x256xf32> to vector<2x256xf32>
    %334 = arith.mulf %330, %333 : vector<2x256xf32>
    %335 = arith.addf %314, %334 : vector<2x256xf32>
    %336 = vector.extract_strided_slice %0 {offsets = [7, 0, 0], sizes = [1, 2, 256], strides = [1, 1, 1]} : vector<8x2x256xf32> to vector<1x2x256xf32>
    %337 = vector.shape_cast %336 : vector<1x2x256xf32> to vector<2x256xf32>
    %338 = vector.extract_strided_slice %2 {offsets = [7, 1, 0], sizes = [1, 1, 256], strides = [1, 1, 1]} : vector<8x8x256xf32> to vector<1x1x256xf32>
    %339 = vector.shape_cast %338 : vector<1x1x256xf32> to vector<1x256xf32>
    %340 = vector.broadcast %339 : vector<1x256xf32> to vector<2x256xf32>
    %341 = arith.mulf %337, %340 : vector<2x256xf32>
    %342 = arith.addf %321, %341 : vector<2x256xf32>
    %343 = vector.extract_strided_slice %1 {offsets = [7, 0, 0], sizes = [1, 2, 256], strides = [1, 1, 1]} : vector<8x2x256xf32> to vector<1x2x256xf32>
    %344 = vector.shape_cast %343 : vector<1x2x256xf32> to vector<2x256xf32>
    %345 = vector.extract_strided_slice %3 {offsets = [7, 1, 0], sizes = [1, 1, 256], strides = [1, 1, 1]} : vector<8x8x256xf32> to vector<1x1x256xf32>
    %346 = vector.shape_cast %345 : vector<1x1x256xf32> to vector<1x256xf32>
    %347 = vector.broadcast %346 : vector<1x256xf32> to vector<2x256xf32>
    %348 = arith.mulf %344, %347 : vector<2x256xf32>
    %349 = arith.addf %328, %348 : vector<2x256xf32>
    %350 = vector.extract_strided_slice %4 {offsets = [7, 0, 0], sizes = [1, 2, 256], strides = [1, 1, 1]} : vector<8x2x256xf32> to vector<1x2x256xf32>
    %351 = vector.shape_cast %350 : vector<1x2x256xf32> to vector<2x256xf32>
    %352 = vector.extract_strided_slice %5 {offsets = [7, 1, 0], sizes = [1, 1, 256], strides = [1, 1, 1]} : vector<8x8x256xf32> to vector<1x1x256xf32>
    %353 = vector.shape_cast %352 : vector<1x1x256xf32> to vector<1x256xf32>
    %354 = vector.broadcast %353 : vector<1x256xf32> to vector<2x256xf32>
    %355 = arith.mulf %351, %354 : vector<2x256xf32>
    %356 = arith.addf %335, %355 : vector<2x256xf32>
    %357 = arith.subf %342, %349 : vector<2x256xf32>
    %c1 = arith.constant 1 : index
    %c0_22 = arith.constant 0 : index
    %c0_23 = arith.constant 0 : index
    %358 = vector.load %arg5[%c1, %c0_22, %c0_23] : memref<8x2x256xf32, #tpu.memory_space<vmem>>, vector<1x2x256xf32>
    %359 = vector.shape_cast %358 : vector<1x2x256xf32> to vector<2x256xf32>
    %360 = vector.shape_cast %357 : vector<2x256xf32> to vector<1x2x256xf32>
    tpu.vector_store %arg5[%c1, %c0_22, %c0_23], %360 {strides = array<i32>} : memref<8x2x256xf32, #tpu.memory_space<vmem>>, vector<1x2x256xf32>,
    %361 = arith.subf %356, %342 : vector<2x256xf32>
    %362 = arith.subf %361, %349 : vector<2x256xf32>
    %c1_24 = arith.constant 1 : index
    %c0_25 = arith.constant 0 : index
    %c0_26 = arith.constant 0 : index
    %363 = vector.load %arg6[%c1_24, %c0_25, %c0_26] : memref<8x2x256xf32, #tpu.memory_space<vmem>>, vector<1x2x256xf32>
    %364 = vector.shape_cast %363 : vector<1x2x256xf32> to vector<2x256xf32>
    %365 = vector.shape_cast %362 : vector<2x256xf32> to vector<1x2x256xf32>
    tpu.vector_store %arg6[%c1_24, %c0_25, %c0_26], %365 {strides = array<i32>} : memref<8x2x256xf32, #tpu.memory_space<vmem>>, vector<1x2x256xf32>,
    %cst_27 = arith.constant 0.000000e+00 : f32
    %366 = vector.broadcast %cst_27 : f32 to vector<2x256xf32>
    %cst_28 = arith.constant 0.000000e+00 : f32
    %367 = vector.broadcast %cst_28 : f32 to vector<2x256xf32>
    %cst_29 = arith.constant 0.000000e+00 : f32
    %368 = vector.broadcast %cst_29 : f32 to vector<2x256xf32>
    %369 = vector.extract_strided_slice %0 {offsets = [0, 0, 0], sizes = [1, 2, 256], strides = [1, 1, 1]} : vector<8x2x256xf32> to vector<1x2x256xf32>
    %370 = vector.shape_cast %369 : vector<1x2x256xf32> to vector<2x256xf32>
    %371 = vector.extract_strided_slice %2 {offsets = [0, 2, 0], sizes = [1, 1, 256], strides = [1, 1, 1]} : vector<8x8x256xf32> to vector<1x1x256xf32>
    %372 = vector.shape_cast %371 : vector<1x1x256xf32> to vector<1x256xf32>
    %373 = vector.broadcast %372 : vector<1x256xf32> to vector<2x256xf32>
    %374 = arith.mulf %370, %373 : vector<2x256xf32>
    %375 = arith.addf %366, %374 : vector<2x256xf32>
    %376 = vector.extract_strided_slice %1 {offsets = [0, 0, 0], sizes = [1, 2, 256], strides = [1, 1, 1]} : vector<8x2x256xf32> to vector<1x2x256xf32>
    %377 = vector.shape_cast %376 : vector<1x2x256xf32> to vector<2x256xf32>
    %378 = vector.extract_strided_slice %3 {offsets = [0, 2, 0], sizes = [1, 1, 256], strides = [1, 1, 1]} : vector<8x8x256xf32> to vector<1x1x256xf32>
    %379 = vector.shape_cast %378 : vector<1x1x256xf32> to vector<1x256xf32>
    %380 = vector.broadcast %379 : vector<1x256xf32> to vector<2x256xf32>
    %381 = arith.mulf %377, %380 : vector<2x256xf32>
    %382 = arith.addf %367, %381 : vector<2x256xf32>
    %383 = vector.extract_strided_slice %4 {offsets = [0, 0, 0], sizes = [1, 2, 256], strides = [1, 1, 1]} : vector<8x2x256xf32> to vector<1x2x256xf32>
    %384 = vector.shape_cast %383 : vector<1x2x256xf32> to vector<2x256xf32>
    %385 = vector.extract_strided_slice %5 {offsets = [0, 2, 0], sizes = [1, 1, 256], strides = [1, 1, 1]} : vector<8x8x256xf32> to vector<1x1x256xf32>
    %386 = vector.shape_cast %385 : vector<1x1x256xf32> to vector<1x256xf32>
    %387 = vector.broadcast %386 : vector<1x256xf32> to vector<2x256xf32>
    %388 = arith.mulf %384, %387 : vector<2x256xf32>
    %389 = arith.addf %368, %388 : vector<2x256xf32>
    %390 = vector.extract_strided_slice %0 {offsets = [1, 0, 0], sizes = [1, 2, 256], strides = [1, 1, 1]} : vector<8x2x256xf32> to vector<1x2x256xf32>
    %391 = vector.shape_cast %390 : vector<1x2x256xf32> to vector<2x256xf32>
    %392 = vector.extract_strided_slice %2 {offsets = [1, 2, 0], sizes = [1, 1, 256], strides = [1, 1, 1]} : vector<8x8x256xf32> to vector<1x1x256xf32>
    %393 = vector.shape_cast %392 : vector<1x1x256xf32> to vector<1x256xf32>
    %394 = vector.broadcast %393 : vector<1x256xf32> to vector<2x256xf32>
    %395 = arith.mulf %391, %394 : vector<2x256xf32>
    %396 = arith.addf %375, %395 : vector<2x256xf32>
    %397 = vector.extract_strided_slice %1 {offsets = [1, 0, 0], sizes = [1, 2, 256], strides = [1, 1, 1]} : vector<8x2x256xf32> to vector<1x2x256xf32>
    %398 = vector.shape_cast %397 : vector<1x2x256xf32> to vector<2x256xf32>
    %399 = vector.extract_strided_slice %3 {offsets = [1, 2, 0], sizes = [1, 1, 256], strides = [1, 1, 1]} : vector<8x8x256xf32> to vector<1x1x256xf32>
    %400 = vector.shape_cast %399 : vector<1x1x256xf32> to vector<1x256xf32>
    %401 = vector.broadcast %400 : vector<1x256xf32> to vector<2x256xf32>
    %402 = arith.mulf %398, %401 : vector<2x256xf32>
    %403 = arith.addf %382, %402 : vector<2x256xf32>
    %404 = vector.extract_strided_slice %4 {offsets = [1, 0, 0], sizes = [1, 2, 256], strides = [1, 1, 1]} : vector<8x2x256xf32> to vector<1x2x256xf32>
    %405 = vector.shape_cast %404 : vector<1x2x256xf32> to vector<2x256xf32>
    %406 = vector.extract_strided_slice %5 {offsets = [1, 2, 0], sizes = [1, 1, 256], strides = [1, 1, 1]} : vector<8x8x256xf32> to vector<1x1x256xf32>
    %407 = vector.shape_cast %406 : vector<1x1x256xf32> to vector<1x256xf32>
    %408 = vector.broadcast %407 : vector<1x256xf32> to vector<2x256xf32>
    %409 = arith.mulf %405, %408 : vector<2x256xf32>
    %410 = arith.addf %389, %409 : vector<2x256xf32>
    %411 = vector.extract_strided_slice %0 {offsets = [2, 0, 0], sizes = [1, 2, 256], strides = [1, 1, 1]} : vector<8x2x256xf32> to vector<1x2x256xf32>
    %412 = vector.shape_cast %411 : vector<1x2x256xf32> to vector<2x256xf32>
    %413 = vector.extract_strided_slice %2 {offsets = [2, 2, 0], sizes = [1, 1, 256], strides = [1, 1, 1]} : vector<8x8x256xf32> to vector<1x1x256xf32>
    %414 = vector.shape_cast %413 : vector<1x1x256xf32> to vector<1x256xf32>
    %415 = vector.broadcast %414 : vector<1x256xf32> to vector<2x256xf32>
    %416 = arith.mulf %412, %415 : vector<2x256xf32>
    %417 = arith.addf %396, %416 : vector<2x256xf32>
    %418 = vector.extract_strided_slice %1 {offsets = [2, 0, 0], sizes = [1, 2, 256], strides = [1, 1, 1]} : vector<8x2x256xf32> to vector<1x2x256xf32>
    %419 = vector.shape_cast %418 : vector<1x2x256xf32> to vector<2x256xf32>
    %420 = vector.extract_strided_slice %3 {offsets = [2, 2, 0], sizes = [1, 1, 256], strides = [1, 1, 1]} : vector<8x8x256xf32> to vector<1x1x256xf32>
    %421 = vector.shape_cast %420 : vector<1x1x256xf32> to vector<1x256xf32>
    %422 = vector.broadcast %421 : vector<1x256xf32> to vector<2x256xf32>
    %423 = arith.mulf %419, %422 : vector<2x256xf32>
    %424 = arith.addf %403, %423 : vector<2x256xf32>
    %425 = vector.extract_strided_slice %4 {offsets = [2, 0, 0], sizes = [1, 2, 256], strides = [1, 1, 1]} : vector<8x2x256xf32> to vector<1x2x256xf32>
    %426 = vector.shape_cast %425 : vector<1x2x256xf32> to vector<2x256xf32>
    %427 = vector.extract_strided_slice %5 {offsets = [2, 2, 0], sizes = [1, 1, 256], strides = [1, 1, 1]} : vector<8x8x256xf32> to vector<1x1x256xf32>
    %428 = vector.shape_cast %427 : vector<1x1x256xf32> to vector<1x256xf32>
    %429 = vector.broadcast %428 : vector<1x256xf32> to vector<2x256xf32>
    %430 = arith.mulf %426, %429 : vector<2x256xf32>
    %431 = arith.addf %410, %430 : vector<2x256xf32>
    %432 = vector.extract_strided_slice %0 {offsets = [3, 0, 0], sizes = [1, 2, 256], strides = [1, 1, 1]} : vector<8x2x256xf32> to vector<1x2x256xf32>
    %433 = vector.shape_cast %432 : vector<1x2x256xf32> to vector<2x256xf32>
    %434 = vector.extract_strided_slice %2 {offsets = [3, 2, 0], sizes = [1, 1, 256], strides = [1, 1, 1]} : vector<8x8x256xf32> to vector<1x1x256xf32>
    %435 = vector.shape_cast %434 : vector<1x1x256xf32> to vector<1x256xf32>
    %436 = vector.broadcast %435 : vector<1x256xf32> to vector<2x256xf32>
    %437 = arith.mulf %433, %436 : vector<2x256xf32>
    %438 = arith.addf %417, %437 : vector<2x256xf32>
    %439 = vector.extract_strided_slice %1 {offsets = [3, 0, 0], sizes = [1, 2, 256], strides = [1, 1, 1]} : vector<8x2x256xf32> to vector<1x2x256xf32>
    %440 = vector.shape_cast %439 : vector<1x2x256xf32> to vector<2x256xf32>
    %441 = vector.extract_strided_slice %3 {offsets = [3, 2, 0], sizes = [1, 1, 256], strides = [1, 1, 1]} : vector<8x8x256xf32> to vector<1x1x256xf32>
    %442 = vector.shape_cast %441 : vector<1x1x256xf32> to vector<1x256xf32>
    %443 = vector.broadcast %442 : vector<1x256xf32> to vector<2x256xf32>
    %444 = arith.mulf %440, %443 : vector<2x256xf32>
    %445 = arith.addf %424, %444 : vector<2x256xf32>
    %446 = vector.extract_strided_slice %4 {offsets = [3, 0, 0], sizes = [1, 2, 256], strides = [1, 1, 1]} : vector<8x2x256xf32> to vector<1x2x256xf32>
    %447 = vector.shape_cast %446 : vector<1x2x256xf32> to vector<2x256xf32>
    %448 = vector.extract_strided_slice %5 {offsets = [3, 2, 0], sizes = [1, 1, 256], strides = [1, 1, 1]} : vector<8x8x256xf32> to vector<1x1x256xf32>
    %449 = vector.shape_cast %448 : vector<1x1x256xf32> to vector<1x256xf32>
    %450 = vector.broadcast %449 : vector<1x256xf32> to vector<2x256xf32>
    %451 = arith.mulf %447, %450 : vector<2x256xf32>
    %452 = arith.addf %431, %451 : vector<2x256xf32>
    %453 = vector.extract_strided_slice %0 {offsets = [4, 0, 0], sizes = [1, 2, 256], strides = [1, 1, 1]} : vector<8x2x256xf32> to vector<1x2x256xf32>
    %454 = vector.shape_cast %453 : vector<1x2x256xf32> to vector<2x256xf32>
    %455 = vector.extract_strided_slice %2 {offsets = [4, 2, 0], sizes = [1, 1, 256], strides = [1, 1, 1]} : vector<8x8x256xf32> to vector<1x1x256xf32>
    %456 = vector.shape_cast %455 : vector<1x1x256xf32> to vector<1x256xf32>
    %457 = vector.broadcast %456 : vector<1x256xf32> to vector<2x256xf32>
    %458 = arith.mulf %454, %457 : vector<2x256xf32>
    %459 = arith.addf %438, %458 : vector<2x256xf32>
    %460 = vector.extract_strided_slice %1 {offsets = [4, 0, 0], sizes = [1, 2, 256], strides = [1, 1, 1]} : vector<8x2x256xf32> to vector<1x2x256xf32>
    %461 = vector.shape_cast %460 : vector<1x2x256xf32> to vector<2x256xf32>
    %462 = vector.extract_strided_slice %3 {offsets = [4, 2, 0], sizes = [1, 1, 256], strides = [1, 1, 1]} : vector<8x8x256xf32> to vector<1x1x256xf32>
    %463 = vector.shape_cast %462 : vector<1x1x256xf32> to vector<1x256xf32>
    %464 = vector.broadcast %463 : vector<1x256xf32> to vector<2x256xf32>
    %465 = arith.mulf %461, %464 : vector<2x256xf32>
    %466 = arith.addf %445, %465 : vector<2x256xf32>
    %467 = vector.extract_strided_slice %4 {offsets = [4, 0, 0], sizes = [1, 2, 256], strides = [1, 1, 1]} : vector<8x2x256xf32> to vector<1x2x256xf32>
    %468 = vector.shape_cast %467 : vector<1x2x256xf32> to vector<2x256xf32>
    %469 = vector.extract_strided_slice %5 {offsets = [4, 2, 0], sizes = [1, 1, 256], strides = [1, 1, 1]} : vector<8x8x256xf32> to vector<1x1x256xf32>
    %470 = vector.shape_cast %469 : vector<1x1x256xf32> to vector<1x256xf32>
    %471 = vector.broadcast %470 : vector<1x256xf32> to vector<2x256xf32>
    %472 = arith.mulf %468, %471 : vector<2x256xf32>
    %473 = arith.addf %452, %472 : vector<2x256xf32>
    %474 = vector.extract_strided_slice %0 {offsets = [5, 0, 0], sizes = [1, 2, 256], strides = [1, 1, 1]} : vector<8x2x256xf32> to vector<1x2x256xf32>
    %475 = vector.shape_cast %474 : vector<1x2x256xf32> to vector<2x256xf32>
    %476 = vector.extract_strided_slice %2 {offsets = [5, 2, 0], sizes = [1, 1, 256], strides = [1, 1, 1]} : vector<8x8x256xf32> to vector<1x1x256xf32>
    %477 = vector.shape_cast %476 : vector<1x1x256xf32> to vector<1x256xf32>
    %478 = vector.broadcast %477 : vector<1x256xf32> to vector<2x256xf32>
    %479 = arith.mulf %475, %478 : vector<2x256xf32>
    %480 = arith.addf %459, %479 : vector<2x256xf32>
    %481 = vector.extract_strided_slice %1 {offsets = [5, 0, 0], sizes = [1, 2, 256], strides = [1, 1, 1]} : vector<8x2x256xf32> to vector<1x2x256xf32>
    %482 = vector.shape_cast %481 : vector<1x2x256xf32> to vector<2x256xf32>
    %483 = vector.extract_strided_slice %3 {offsets = [5, 2, 0], sizes = [1, 1, 256], strides = [1, 1, 1]} : vector<8x8x256xf32> to vector<1x1x256xf32>
    %484 = vector.shape_cast %483 : vector<1x1x256xf32> to vector<1x256xf32>
    %485 = vector.broadcast %484 : vector<1x256xf32> to vector<2x256xf32>
    %486 = arith.mulf %482, %485 : vector<2x256xf32>
    %487 = arith.addf %466, %486 : vector<2x256xf32>
    %488 = vector.extract_strided_slice %4 {offsets = [5, 0, 0], sizes = [1, 2, 256], strides = [1, 1, 1]} : vector<8x2x256xf32> to vector<1x2x256xf32>
    %489 = vector.shape_cast %488 : vector<1x2x256xf32> to vector<2x256xf32>
    %490 = vector.extract_strided_slice %5 {offsets = [5, 2, 0], sizes = [1, 1, 256], strides = [1, 1, 1]} : vector<8x8x256xf32> to vector<1x1x256xf32>
    %491 = vector.shape_cast %490 : vector<1x1x256xf32> to vector<1x256xf32>
    %492 = vector.broadcast %491 : vector<1x256xf32> to vector<2x256xf32>
    %493 = arith.mulf %489, %492 : vector<2x256xf32>
    %494 = arith.addf %473, %493 : vector<2x256xf32>
    %495 = vector.extract_strided_slice %0 {offsets = [6, 0, 0], sizes = [1, 2, 256], strides = [1, 1, 1]} : vector<8x2x256xf32> to vector<1x2x256xf32>
    %496 = vector.shape_cast %495 : vector<1x2x256xf32> to vector<2x256xf32>
    %497 = vector.extract_strided_slice %2 {offsets = [6, 2, 0], sizes = [1, 1, 256], strides = [1, 1, 1]} : vector<8x8x256xf32> to vector<1x1x256xf32>
    %498 = vector.shape_cast %497 : vector<1x1x256xf32> to vector<1x256xf32>
    %499 = vector.broadcast %498 : vector<1x256xf32> to vector<2x256xf32>
    %500 = arith.mulf %496, %499 : vector<2x256xf32>
    %501 = arith.addf %480, %500 : vector<2x256xf32>
    %502 = vector.extract_strided_slice %1 {offsets = [6, 0, 0], sizes = [1, 2, 256], strides = [1, 1, 1]} : vector<8x2x256xf32> to vector<1x2x256xf32>
    %503 = vector.shape_cast %502 : vector<1x2x256xf32> to vector<2x256xf32>
    %504 = vector.extract_strided_slice %3 {offsets = [6, 2, 0], sizes = [1, 1, 256], strides = [1, 1, 1]} : vector<8x8x256xf32> to vector<1x1x256xf32>
    %505 = vector.shape_cast %504 : vector<1x1x256xf32> to vector<1x256xf32>
    %506 = vector.broadcast %505 : vector<1x256xf32> to vector<2x256xf32>
    %507 = arith.mulf %503, %506 : vector<2x256xf32>
    %508 = arith.addf %487, %507 : vector<2x256xf32>
    %509 = vector.extract_strided_slice %4 {offsets = [6, 0, 0], sizes = [1, 2, 256], strides = [1, 1, 1]} : vector<8x2x256xf32> to vector<1x2x256xf32>
    %510 = vector.shape_cast %509 : vector<1x2x256xf32> to vector<2x256xf32>
    %511 = vector.extract_strided_slice %5 {offsets = [6, 2, 0], sizes = [1, 1, 256], strides = [1, 1, 1]} : vector<8x8x256xf32> to vector<1x1x256xf32>
    %512 = vector.shape_cast %511 : vector<1x1x256xf32> to vector<1x256xf32>
    %513 = vector.broadcast %512 : vector<1x256xf32> to vector<2x256xf32>
    %514 = arith.mulf %510, %513 : vector<2x256xf32>
    %515 = arith.addf %494, %514 : vector<2x256xf32>
    %516 = vector.extract_strided_slice %0 {offsets = [7, 0, 0], sizes = [1, 2, 256], strides = [1, 1, 1]} : vector<8x2x256xf32> to vector<1x2x256xf32>
    %517 = vector.shape_cast %516 : vector<1x2x256xf32> to vector<2x256xf32>
    %518 = vector.extract_strided_slice %2 {offsets = [7, 2, 0], sizes = [1, 1, 256], strides = [1, 1, 1]} : vector<8x8x256xf32> to vector<1x1x256xf32>
    %519 = vector.shape_cast %518 : vector<1x1x256xf32> to vector<1x256xf32>
    %520 = vector.broadcast %519 : vector<1x256xf32> to vector<2x256xf32>
    %521 = arith.mulf %517, %520 : vector<2x256xf32>
    %522 = arith.addf %501, %521 : vector<2x256xf32>
    %523 = vector.extract_strided_slice %1 {offsets = [7, 0, 0], sizes = [1, 2, 256], strides = [1, 1, 1]} : vector<8x2x256xf32> to vector<1x2x256xf32>
    %524 = vector.shape_cast %523 : vector<1x2x256xf32> to vector<2x256xf32>
    %525 = vector.extract_strided_slice %3 {offsets = [7, 2, 0], sizes = [1, 1, 256], strides = [1, 1, 1]} : vector<8x8x256xf32> to vector<1x1x256xf32>
    %526 = vector.shape_cast %525 : vector<1x1x256xf32> to vector<1x256xf32>
    %527 = vector.broadcast %526 : vector<1x256xf32> to vector<2x256xf32>
    %528 = arith.mulf %524, %527 : vector<2x256xf32>
    %529 = arith.addf %508, %528 : vector<2x256xf32>
    %530 = vector.extract_strided_slice %4 {offsets = [7, 0, 0], sizes = [1, 2, 256], strides = [1, 1, 1]} : vector<8x2x256xf32> to vector<1x2x256xf32>
    %531 = vector.shape_cast %530 : vector<1x2x256xf32> to vector<2x256xf32>
    %532 = vector.extract_strided_slice %5 {offsets = [7, 2, 0], sizes = [1, 1, 256], strides = [1, 1, 1]} : vector<8x8x256xf32> to vector<1x1x256xf32>
    %533 = vector.shape_cast %532 : vector<1x1x256xf32> to vector<1x256xf32>
    %534 = vector.broadcast %533 : vector<1x256xf32> to vector<2x256xf32>
    %535 = arith.mulf %531, %534 : vector<2x256xf32>
    %536 = arith.addf %515, %535 : vector<2x256xf32>
    %537 = arith.subf %522, %529 : vector<2x256xf32>
    %c2 = arith.constant 2 : index
    %c0_30 = arith.constant 0 : index
    %c0_31 = arith.constant 0 : index
    %538 = vector.load %arg5[%c2, %c0_30, %c0_31] : memref<8x2x256xf32, #tpu.memory_space<vmem>>, vector<1x2x256xf32>
    %539 = vector.shape_cast %538 : vector<1x2x256xf32> to vector<2x256xf32>
    %540 = vector.shape_cast %537 : vector<2x256xf32> to vector<1x2x256xf32>
    tpu.vector_store %arg5[%c2, %c0_30, %c0_31], %540 {strides = array<i32>} : memref<8x2x256xf32, #tpu.memory_space<vmem>>, vector<1x2x256xf32>,
    %541 = arith.subf %536, %522 : vector<2x256xf32>
    %542 = arith.subf %541, %529 : vector<2x256xf32>
    %c2_32 = arith.constant 2 : index
    %c0_33 = arith.constant 0 : index
    %c0_34 = arith.constant 0 : index
    %543 = vector.load %arg6[%c2_32, %c0_33, %c0_34] : memref<8x2x256xf32, #tpu.memory_space<vmem>>, vector<1x2x256xf32>
    %544 = vector.shape_cast %543 : vector<1x2x256xf32> to vector<2x256xf32>
    %545 = vector.shape_cast %542 : vector<2x256xf32> to vector<1x2x256xf32>
    tpu.vector_store %arg6[%c2_32, %c0_33, %c0_34], %545 {strides = array<i32>} : memref<8x2x256xf32, #tpu.memory_space<vmem>>, vector<1x2x256xf32>,
    %cst_35 = arith.constant 0.000000e+00 : f32
    %546 = vector.broadcast %cst_35 : f32 to vector<2x256xf32>
    %cst_36 = arith.constant 0.000000e+00 : f32
    %547 = vector.broadcast %cst_36 : f32 to vector<2x256xf32>
    %cst_37 = arith.constant 0.000000e+00 : f32
    %548 = vector.broadcast %cst_37 : f32 to vector<2x256xf32>
    %549 = vector.extract_strided_slice %0 {offsets = [0, 0, 0], sizes = [1, 2, 256], strides = [1, 1, 1]} : vector<8x2x256xf32> to vector<1x2x256xf32>
    %550 = vector.shape_cast %549 : vector<1x2x256xf32> to vector<2x256xf32>
    %551 = vector.extract_strided_slice %2 {offsets = [0, 3, 0], sizes = [1, 1, 256], strides = [1, 1, 1]} : vector<8x8x256xf32> to vector<1x1x256xf32>
    %552 = vector.shape_cast %551 : vector<1x1x256xf32> to vector<1x256xf32>
    %553 = vector.broadcast %552 : vector<1x256xf32> to vector<2x256xf32>
    %554 = arith.mulf %550, %553 : vector<2x256xf32>
    %555 = arith.addf %546, %554 : vector<2x256xf32>
    %556 = vector.extract_strided_slice %1 {offsets = [0, 0, 0], sizes = [1, 2, 256], strides = [1, 1, 1]} : vector<8x2x256xf32> to vector<1x2x256xf32>
    %557 = vector.shape_cast %556 : vector<1x2x256xf32> to vector<2x256xf32>
    %558 = vector.extract_strided_slice %3 {offsets = [0, 3, 0], sizes = [1, 1, 256], strides = [1, 1, 1]} : vector<8x8x256xf32> to vector<1x1x256xf32>
    %559 = vector.shape_cast %558 : vector<1x1x256xf32> to vector<1x256xf32>
    %560 = vector.broadcast %559 : vector<1x256xf32> to vector<2x256xf32>
    %561 = arith.mulf %557, %560 : vector<2x256xf32>
    %562 = arith.addf %547, %561 : vector<2x256xf32>
    %563 = vector.extract_strided_slice %4 {offsets = [0, 0, 0], sizes = [1, 2, 256], strides = [1, 1, 1]} : vector<8x2x256xf32> to vector<1x2x256xf32>
    %564 = vector.shape_cast %563 : vector<1x2x256xf32> to vector<2x256xf32>
    %565 = vector.extract_strided_slice %5 {offsets = [0, 3, 0], sizes = [1, 1, 256], strides = [1, 1, 1]} : vector<8x8x256xf32> to vector<1x1x256xf32>
    %566 = vector.shape_cast %565 : vector<1x1x256xf32> to vector<1x256xf32>
    %567 = vector.broadcast %566 : vector<1x256xf32> to vector<2x256xf32>
    %568 = arith.mulf %564, %567 : vector<2x256xf32>
    %569 = arith.addf %548, %568 : vector<2x256xf32>
    %570 = vector.extract_strided_slice %0 {offsets = [1, 0, 0], sizes = [1, 2, 256], strides = [1, 1, 1]} : vector<8x2x256xf32> to vector<1x2x256xf32>
    %571 = vector.shape_cast %570 : vector<1x2x256xf32> to vector<2x256xf32>
    %572 = vector.extract_strided_slice %2 {offsets = [1, 3, 0], sizes = [1, 1, 256], strides = [1, 1, 1]} : vector<8x8x256xf32> to vector<1x1x256xf32>
    %573 = vector.shape_cast %572 : vector<1x1x256xf32> to vector<1x256xf32>
    %574 = vector.broadcast %573 : vector<1x256xf32> to vector<2x256xf32>
    %575 = arith.mulf %571, %574 : vector<2x256xf32>
    %576 = arith.addf %555, %575 : vector<2x256xf32>
    %577 = vector.extract_strided_slice %1 {offsets = [1, 0, 0], sizes = [1, 2, 256], strides = [1, 1, 1]} : vector<8x2x256xf32> to vector<1x2x256xf32>
    %578 = vector.shape_cast %577 : vector<1x2x256xf32> to vector<2x256xf32>
    %579 = vector.extract_strided_slice %3 {offsets = [1, 3, 0], sizes = [1, 1, 256], strides = [1, 1, 1]} : vector<8x8x256xf32> to vector<1x1x256xf32>
    %580 = vector.shape_cast %579 : vector<1x1x256xf32> to vector<1x256xf32>
    %581 = vector.broadcast %580 : vector<1x256xf32> to vector<2x256xf32>
    %582 = arith.mulf %578, %581 : vector<2x256xf32>
    %583 = arith.addf %562, %582 : vector<2x256xf32>
    %584 = vector.extract_strided_slice %4 {offsets = [1, 0, 0], sizes = [1, 2, 256], strides = [1, 1, 1]} : vector<8x2x256xf32> to vector<1x2x256xf32>
    %585 = vector.shape_cast %584 : vector<1x2x256xf32> to vector<2x256xf32>
    %586 = vector.extract_strided_slice %5 {offsets = [1, 3, 0], sizes = [1, 1, 256], strides = [1, 1, 1]} : vector<8x8x256xf32> to vector<1x1x256xf32>
    %587 = vector.shape_cast %586 : vector<1x1x256xf32> to vector<1x256xf32>
    %588 = vector.broadcast %587 : vector<1x256xf32> to vector<2x256xf32>
    %589 = arith.mulf %585, %588 : vector<2x256xf32>
    %590 = arith.addf %569, %589 : vector<2x256xf32>
    %591 = vector.extract_strided_slice %0 {offsets = [2, 0, 0], sizes = [1, 2, 256], strides = [1, 1, 1]} : vector<8x2x256xf32> to vector<1x2x256xf32>
    %592 = vector.shape_cast %591 : vector<1x2x256xf32> to vector<2x256xf32>
    %593 = vector.extract_strided_slice %2 {offsets = [2, 3, 0], sizes = [1, 1, 256], strides = [1, 1, 1]} : vector<8x8x256xf32> to vector<1x1x256xf32>
    %594 = vector.shape_cast %593 : vector<1x1x256xf32> to vector<1x256xf32>
    %595 = vector.broadcast %594 : vector<1x256xf32> to vector<2x256xf32>
    %596 = arith.mulf %592, %595 : vector<2x256xf32>
    %597 = arith.addf %576, %596 : vector<2x256xf32>
    %598 = vector.extract_strided_slice %1 {offsets = [2, 0, 0], sizes = [1, 2, 256], strides = [1, 1, 1]} : vector<8x2x256xf32> to vector<1x2x256xf32>
    %599 = vector.shape_cast %598 : vector<1x2x256xf32> to vector<2x256xf32>
    %600 = vector.extract_strided_slice %3 {offsets = [2, 3, 0], sizes = [1, 1, 256], strides = [1, 1, 1]} : vector<8x8x256xf32> to vector<1x1x256xf32>
    %601 = vector.shape_cast %600 : vector<1x1x256xf32> to vector<1x256xf32>
    %602 = vector.broadcast %601 : vector<1x256xf32> to vector<2x256xf32>
    %603 = arith.mulf %599, %602 : vector<2x256xf32>
    %604 = arith.addf %583, %603 : vector<2x256xf32>
    %605 = vector.extract_strided_slice %4 {offsets = [2, 0, 0], sizes = [1, 2, 256], strides = [1, 1, 1]} : vector<8x2x256xf32> to vector<1x2x256xf32>
    %606 = vector.shape_cast %605 : vector<1x2x256xf32> to vector<2x256xf32>
    %607 = vector.extract_strided_slice %5 {offsets = [2, 3, 0], sizes = [1, 1, 256], strides = [1, 1, 1]} : vector<8x8x256xf32> to vector<1x1x256xf32>
    %608 = vector.shape_cast %607 : vector<1x1x256xf32> to vector<1x256xf32>
    %609 = vector.broadcast %608 : vector<1x256xf32> to vector<2x256xf32>
    %610 = arith.mulf %606, %609 : vector<2x256xf32>
    %611 = arith.addf %590, %610 : vector<2x256xf32>
    %612 = vector.extract_strided_slice %0 {offsets = [3, 0, 0], sizes = [1, 2, 256], strides = [1, 1, 1]} : vector<8x2x256xf32> to vector<1x2x256xf32>
    %613 = vector.shape_cast %612 : vector<1x2x256xf32> to vector<2x256xf32>
    %614 = vector.extract_strided_slice %2 {offsets = [3, 3, 0], sizes = [1, 1, 256], strides = [1, 1, 1]} : vector<8x8x256xf32> to vector<1x1x256xf32>
    %615 = vector.shape_cast %614 : vector<1x1x256xf32> to vector<1x256xf32>
    %616 = vector.broadcast %615 : vector<1x256xf32> to vector<2x256xf32>
    %617 = arith.mulf %613, %616 : vector<2x256xf32>
    %618 = arith.addf %597, %617 : vector<2x256xf32>
    %619 = vector.extract_strided_slice %1 {offsets = [3, 0, 0], sizes = [1, 2, 256], strides = [1, 1, 1]} : vector<8x2x256xf32> to vector<1x2x256xf32>
    %620 = vector.shape_cast %619 : vector<1x2x256xf32> to vector<2x256xf32>
    %621 = vector.extract_strided_slice %3 {offsets = [3, 3, 0], sizes = [1, 1, 256], strides = [1, 1, 1]} : vector<8x8x256xf32> to vector<1x1x256xf32>
    %622 = vector.shape_cast %621 : vector<1x1x256xf32> to vector<1x256xf32>
    %623 = vector.broadcast %622 : vector<1x256xf32> to vector<2x256xf32>
    %624 = arith.mulf %620, %623 : vector<2x256xf32>
    %625 = arith.addf %604, %624 : vector<2x256xf32>
    %626 = vector.extract_strided_slice %4 {offsets = [3, 0, 0], sizes = [1, 2, 256], strides = [1, 1, 1]} : vector<8x2x256xf32> to vector<1x2x256xf32>
    %627 = vector.shape_cast %626 : vector<1x2x256xf32> to vector<2x256xf32>
    %628 = vector.extract_strided_slice %5 {offsets = [3, 3, 0], sizes = [1, 1, 256], strides = [1, 1, 1]} : vector<8x8x256xf32> to vector<1x1x256xf32>
    %629 = vector.shape_cast %628 : vector<1x1x256xf32> to vector<1x256xf32>
    %630 = vector.broadcast %629 : vector<1x256xf32> to vector<2x256xf32>
    %631 = arith.mulf %627, %630 : vector<2x256xf32>
    %632 = arith.addf %611, %631 : vector<2x256xf32>
    %633 = vector.extract_strided_slice %0 {offsets = [4, 0, 0], sizes = [1, 2, 256], strides = [1, 1, 1]} : vector<8x2x256xf32> to vector<1x2x256xf32>
    %634 = vector.shape_cast %633 : vector<1x2x256xf32> to vector<2x256xf32>
    %635 = vector.extract_strided_slice %2 {offsets = [4, 3, 0], sizes = [1, 1, 256], strides = [1, 1, 1]} : vector<8x8x256xf32> to vector<1x1x256xf32>
    %636 = vector.shape_cast %635 : vector<1x1x256xf32> to vector<1x256xf32>
    %637 = vector.broadcast %636 : vector<1x256xf32> to vector<2x256xf32>
    %638 = arith.mulf %634, %637 : vector<2x256xf32>
    %639 = arith.addf %618, %638 : vector<2x256xf32>
    %640 = vector.extract_strided_slice %1 {offsets = [4, 0, 0], sizes = [1, 2, 256], strides = [1, 1, 1]} : vector<8x2x256xf32> to vector<1x2x256xf32>
    %641 = vector.shape_cast %640 : vector<1x2x256xf32> to vector<2x256xf32>
    %642 = vector.extract_strided_slice %3 {offsets = [4, 3, 0], sizes = [1, 1, 256], strides = [1, 1, 1]} : vector<8x8x256xf32> to vector<1x1x256xf32>
    %643 = vector.shape_cast %642 : vector<1x1x256xf32> to vector<1x256xf32>
    %644 = vector.broadcast %643 : vector<1x256xf32> to vector<2x256xf32>
    %645 = arith.mulf %641, %644 : vector<2x256xf32>
    %646 = arith.addf %625, %645 : vector<2x256xf32>
    %647 = vector.extract_strided_slice %4 {offsets = [4, 0, 0], sizes = [1, 2, 256], strides = [1, 1, 1]} : vector<8x2x256xf32> to vector<1x2x256xf32>
    %648 = vector.shape_cast %647 : vector<1x2x256xf32> to vector<2x256xf32>
    %649 = vector.extract_strided_slice %5 {offsets = [4, 3, 0], sizes = [1, 1, 256], strides = [1, 1, 1]} : vector<8x8x256xf32> to vector<1x1x256xf32>
    %650 = vector.shape_cast %649 : vector<1x1x256xf32> to vector<1x256xf32>
    %651 = vector.broadcast %650 : vector<1x256xf32> to vector<2x256xf32>
    %652 = arith.mulf %648, %651 : vector<2x256xf32>
    %653 = arith.addf %632, %652 : vector<2x256xf32>
    %654 = vector.extract_strided_slice %0 {offsets = [5, 0, 0], sizes = [1, 2, 256], strides = [1, 1, 1]} : vector<8x2x256xf32> to vector<1x2x256xf32>
    %655 = vector.shape_cast %654 : vector<1x2x256xf32> to vector<2x256xf32>
    %656 = vector.extract_strided_slice %2 {offsets = [5, 3, 0], sizes = [1, 1, 256], strides = [1, 1, 1]} : vector<8x8x256xf32> to vector<1x1x256xf32>
    %657 = vector.shape_cast %656 : vector<1x1x256xf32> to vector<1x256xf32>
    %658 = vector.broadcast %657 : vector<1x256xf32> to vector<2x256xf32>
    %659 = arith.mulf %655, %658 : vector<2x256xf32>
    %660 = arith.addf %639, %659 : vector<2x256xf32>
    %661 = vector.extract_strided_slice %1 {offsets = [5, 0, 0], sizes = [1, 2, 256], strides = [1, 1, 1]} : vector<8x2x256xf32> to vector<1x2x256xf32>
    %662 = vector.shape_cast %661 : vector<1x2x256xf32> to vector<2x256xf32>
    %663 = vector.extract_strided_slice %3 {offsets = [5, 3, 0], sizes = [1, 1, 256], strides = [1, 1, 1]} : vector<8x8x256xf32> to vector<1x1x256xf32>
    %664 = vector.shape_cast %663 : vector<1x1x256xf32> to vector<1x256xf32>
    %665 = vector.broadcast %664 : vector<1x256xf32> to vector<2x256xf32>
    %666 = arith.mulf %662, %665 : vector<2x256xf32>
    %667 = arith.addf %646, %666 : vector<2x256xf32>
    %668 = vector.extract_strided_slice %4 {offsets = [5, 0, 0], sizes = [1, 2, 256], strides = [1, 1, 1]} : vector<8x2x256xf32> to vector<1x2x256xf32>
    %669 = vector.shape_cast %668 : vector<1x2x256xf32> to vector<2x256xf32>
    %670 = vector.extract_strided_slice %5 {offsets = [5, 3, 0], sizes = [1, 1, 256], strides = [1, 1, 1]} : vector<8x8x256xf32> to vector<1x1x256xf32>
    %671 = vector.shape_cast %670 : vector<1x1x256xf32> to vector<1x256xf32>
    %672 = vector.broadcast %671 : vector<1x256xf32> to vector<2x256xf32>
    %673 = arith.mulf %669, %672 : vector<2x256xf32>
    %674 = arith.addf %653, %673 : vector<2x256xf32>
    %675 = vector.extract_strided_slice %0 {offsets = [6, 0, 0], sizes = [1, 2, 256], strides = [1, 1, 1]} : vector<8x2x256xf32> to vector<1x2x256xf32>
    %676 = vector.shape_cast %675 : vector<1x2x256xf32> to vector<2x256xf32>
    %677 = vector.extract_strided_slice %2 {offsets = [6, 3, 0], sizes = [1, 1, 256], strides = [1, 1, 1]} : vector<8x8x256xf32> to vector<1x1x256xf32>
    %678 = vector.shape_cast %677 : vector<1x1x256xf32> to vector<1x256xf32>
    %679 = vector.broadcast %678 : vector<1x256xf32> to vector<2x256xf32>
    %680 = arith.mulf %676, %679 : vector<2x256xf32>
    %681 = arith.addf %660, %680 : vector<2x256xf32>
    %682 = vector.extract_strided_slice %1 {offsets = [6, 0, 0], sizes = [1, 2, 256], strides = [1, 1, 1]} : vector<8x2x256xf32> to vector<1x2x256xf32>
    %683 = vector.shape_cast %682 : vector<1x2x256xf32> to vector<2x256xf32>
    %684 = vector.extract_strided_slice %3 {offsets = [6, 3, 0], sizes = [1, 1, 256], strides = [1, 1, 1]} : vector<8x8x256xf32> to vector<1x1x256xf32>
    %685 = vector.shape_cast %684 : vector<1x1x256xf32> to vector<1x256xf32>
    %686 = vector.broadcast %685 : vector<1x256xf32> to vector<2x256xf32>
    %687 = arith.mulf %683, %686 : vector<2x256xf32>
    %688 = arith.addf %667, %687 : vector<2x256xf32>
    %689 = vector.extract_strided_slice %4 {offsets = [6, 0, 0], sizes = [1, 2, 256], strides = [1, 1, 1]} : vector<8x2x256xf32> to vector<1x2x256xf32>
    %690 = vector.shape_cast %689 : vector<1x2x256xf32> to vector<2x256xf32>
    %691 = vector.extract_strided_slice %5 {offsets = [6, 3, 0], sizes = [1, 1, 256], strides = [1, 1, 1]} : vector<8x8x256xf32> to vector<1x1x256xf32>
    %692 = vector.shape_cast %691 : vector<1x1x256xf32> to vector<1x256xf32>
    %693 = vector.broadcast %692 : vector<1x256xf32> to vector<2x256xf32>
    %694 = arith.mulf %690, %693 : vector<2x256xf32>
    %695 = arith.addf %674, %694 : vector<2x256xf32>
    %696 = vector.extract_strided_slice %0 {offsets = [7, 0, 0], sizes = [1, 2, 256], strides = [1, 1, 1]} : vector<8x2x256xf32> to vector<1x2x256xf32>
    %697 = vector.shape_cast %696 : vector<1x2x256xf32> to vector<2x256xf32>
    %698 = vector.extract_strided_slice %2 {offsets = [7, 3, 0], sizes = [1, 1, 256], strides = [1, 1, 1]} : vector<8x8x256xf32> to vector<1x1x256xf32>
    %699 = vector.shape_cast %698 : vector<1x1x256xf32> to vector<1x256xf32>
    %700 = vector.broadcast %699 : vector<1x256xf32> to vector<2x256xf32>
    %701 = arith.mulf %697, %700 : vector<2x256xf32>
    %702 = arith.addf %681, %701 : vector<2x256xf32>
    %703 = vector.extract_strided_slice %1 {offsets = [7, 0, 0], sizes = [1, 2, 256], strides = [1, 1, 1]} : vector<8x2x256xf32> to vector<1x2x256xf32>
    %704 = vector.shape_cast %703 : vector<1x2x256xf32> to vector<2x256xf32>
    %705 = vector.extract_strided_slice %3 {offsets = [7, 3, 0], sizes = [1, 1, 256], strides = [1, 1, 1]} : vector<8x8x256xf32> to vector<1x1x256xf32>
    %706 = vector.shape_cast %705 : vector<1x1x256xf32> to vector<1x256xf32>
    %707 = vector.broadcast %706 : vector<1x256xf32> to vector<2x256xf32>
    %708 = arith.mulf %704, %707 : vector<2x256xf32>
    %709 = arith.addf %688, %708 : vector<2x256xf32>
    %710 = vector.extract_strided_slice %4 {offsets = [7, 0, 0], sizes = [1, 2, 256], strides = [1, 1, 1]} : vector<8x2x256xf32> to vector<1x2x256xf32>
    %711 = vector.shape_cast %710 : vector<1x2x256xf32> to vector<2x256xf32>
    %712 = vector.extract_strided_slice %5 {offsets = [7, 3, 0], sizes = [1, 1, 256], strides = [1, 1, 1]} : vector<8x8x256xf32> to vector<1x1x256xf32>
    %713 = vector.shape_cast %712 : vector<1x1x256xf32> to vector<1x256xf32>
    %714 = vector.broadcast %713 : vector<1x256xf32> to vector<2x256xf32>
    %715 = arith.mulf %711, %714 : vector<2x256xf32>
    %716 = arith.addf %695, %715 : vector<2x256xf32>
    %717 = arith.subf %702, %709 : vector<2x256xf32>
    %c3 = arith.constant 3 : index
    %c0_38 = arith.constant 0 : index
    %c0_39 = arith.constant 0 : index
    %718 = vector.load %arg5[%c3, %c0_38, %c0_39] : memref<8x2x256xf32, #tpu.memory_space<vmem>>, vector<1x2x256xf32>
    %719 = vector.shape_cast %718 : vector<1x2x256xf32> to vector<2x256xf32>
    %720 = vector.shape_cast %717 : vector<2x256xf32> to vector<1x2x256xf32>
    tpu.vector_store %arg5[%c3, %c0_38, %c0_39], %720 {strides = array<i32>} : memref<8x2x256xf32, #tpu.memory_space<vmem>>, vector<1x2x256xf32>,
    %721 = arith.subf %716, %702 : vector<2x256xf32>
    %722 = arith.subf %721, %709 : vector<2x256xf32>
    %c3_40 = arith.constant 3 : index
    %c0_41 = arith.constant 0 : index
    %c0_42 = arith.constant 0 : index
    %723 = vector.load %arg6[%c3_40, %c0_41, %c0_42] : memref<8x2x256xf32, #tpu.memory_space<vmem>>, vector<1x2x256xf32>
    %724 = vector.shape_cast %723 : vector<1x2x256xf32> to vector<2x256xf32>
    %725 = vector.shape_cast %722 : vector<2x256xf32> to vector<1x2x256xf32>
    tpu.vector_store %arg6[%c3_40, %c0_41, %c0_42], %725 {strides = array<i32>} : memref<8x2x256xf32, #tpu.memory_space<vmem>>, vector<1x2x256xf32>,
    %cst_43 = arith.constant 0.000000e+00 : f32
    %726 = vector.broadcast %cst_43 : f32 to vector<2x256xf32>
    %cst_44 = arith.constant 0.000000e+00 : f32
    %727 = vector.broadcast %cst_44 : f32 to vector<2x256xf32>
    %cst_45 = arith.constant 0.000000e+00 : f32
    %728 = vector.broadcast %cst_45 : f32 to vector<2x256xf32>
    %729 = vector.extract_strided_slice %0 {offsets = [0, 0, 0], sizes = [1, 2, 256], strides = [1, 1, 1]} : vector<8x2x256xf32> to vector<1x2x256xf32>
    %730 = vector.shape_cast %729 : vector<1x2x256xf32> to vector<2x256xf32>
    %731 = vector.extract_strided_slice %2 {offsets = [0, 4, 0], sizes = [1, 1, 256], strides = [1, 1, 1]} : vector<8x8x256xf32> to vector<1x1x256xf32>
    %732 = vector.shape_cast %731 : vector<1x1x256xf32> to vector<1x256xf32>
    %733 = vector.broadcast %732 : vector<1x256xf32> to vector<2x256xf32>
    %734 = arith.mulf %730, %733 : vector<2x256xf32>
    %735 = arith.addf %726, %734 : vector<2x256xf32>
    %736 = vector.extract_strided_slice %1 {offsets = [0, 0, 0], sizes = [1, 2, 256], strides = [1, 1, 1]} : vector<8x2x256xf32> to vector<1x2x256xf32>
    %737 = vector.shape_cast %736 : vector<1x2x256xf32> to vector<2x256xf32>
    %738 = vector.extract_strided_slice %3 {offsets = [0, 4, 0], sizes = [1, 1, 256], strides = [1, 1, 1]} : vector<8x8x256xf32> to vector<1x1x256xf32>
    %739 = vector.shape_cast %738 : vector<1x1x256xf32> to vector<1x256xf32>
    %740 = vector.broadcast %739 : vector<1x256xf32> to vector<2x256xf32>
    %741 = arith.mulf %737, %740 : vector<2x256xf32>
    %742 = arith.addf %727, %741 : vector<2x256xf32>
    %743 = vector.extract_strided_slice %4 {offsets = [0, 0, 0], sizes = [1, 2, 256], strides = [1, 1, 1]} : vector<8x2x256xf32> to vector<1x2x256xf32>
    %744 = vector.shape_cast %743 : vector<1x2x256xf32> to vector<2x256xf32>
    %745 = vector.extract_strided_slice %5 {offsets = [0, 4, 0], sizes = [1, 1, 256], strides = [1, 1, 1]} : vector<8x8x256xf32> to vector<1x1x256xf32>
    %746 = vector.shape_cast %745 : vector<1x1x256xf32> to vector<1x256xf32>
    %747 = vector.broadcast %746 : vector<1x256xf32> to vector<2x256xf32>
    %748 = arith.mulf %744, %747 : vector<2x256xf32>
    %749 = arith.addf %728, %748 : vector<2x256xf32>
    %750 = vector.extract_strided_slice %0 {offsets = [1, 0, 0], sizes = [1, 2, 256], strides = [1, 1, 1]} : vector<8x2x256xf32> to vector<1x2x256xf32>
    %751 = vector.shape_cast %750 : vector<1x2x256xf32> to vector<2x256xf32>
    %752 = vector.extract_strided_slice %2 {offsets = [1, 4, 0], sizes = [1, 1, 256], strides = [1, 1, 1]} : vector<8x8x256xf32> to vector<1x1x256xf32>
    %753 = vector.shape_cast %752 : vector<1x1x256xf32> to vector<1x256xf32>
    %754 = vector.broadcast %753 : vector<1x256xf32> to vector<2x256xf32>
    %755 = arith.mulf %751, %754 : vector<2x256xf32>
    %756 = arith.addf %735, %755 : vector<2x256xf32>
    %757 = vector.extract_strided_slice %1 {offsets = [1, 0, 0], sizes = [1, 2, 256], strides = [1, 1, 1]} : vector<8x2x256xf32> to vector<1x2x256xf32>
    %758 = vector.shape_cast %757 : vector<1x2x256xf32> to vector<2x256xf32>
    %759 = vector.extract_strided_slice %3 {offsets = [1, 4, 0], sizes = [1, 1, 256], strides = [1, 1, 1]} : vector<8x8x256xf32> to vector<1x1x256xf32>
    %760 = vector.shape_cast %759 : vector<1x1x256xf32> to vector<1x256xf32>
    %761 = vector.broadcast %760 : vector<1x256xf32> to vector<2x256xf32>
    %762 = arith.mulf %758, %761 : vector<2x256xf32>
    %763 = arith.addf %742, %762 : vector<2x256xf32>
    %764 = vector.extract_strided_slice %4 {offsets = [1, 0, 0], sizes = [1, 2, 256], strides = [1, 1, 1]} : vector<8x2x256xf32> to vector<1x2x256xf32>
    %765 = vector.shape_cast %764 : vector<1x2x256xf32> to vector<2x256xf32>
    %766 = vector.extract_strided_slice %5 {offsets = [1, 4, 0], sizes = [1, 1, 256], strides = [1, 1, 1]} : vector<8x8x256xf32> to vector<1x1x256xf32>
    %767 = vector.shape_cast %766 : vector<1x1x256xf32> to vector<1x256xf32>
    %768 = vector.broadcast %767 : vector<1x256xf32> to vector<2x256xf32>
    %769 = arith.mulf %765, %768 : vector<2x256xf32>
    %770 = arith.addf %749, %769 : vector<2x256xf32>
    %771 = vector.extract_strided_slice %0 {offsets = [2, 0, 0], sizes = [1, 2, 256], strides = [1, 1, 1]} : vector<8x2x256xf32> to vector<1x2x256xf32>
    %772 = vector.shape_cast %771 : vector<1x2x256xf32> to vector<2x256xf32>
    %773 = vector.extract_strided_slice %2 {offsets = [2, 4, 0], sizes = [1, 1, 256], strides = [1, 1, 1]} : vector<8x8x256xf32> to vector<1x1x256xf32>
    %774 = vector.shape_cast %773 : vector<1x1x256xf32> to vector<1x256xf32>
    %775 = vector.broadcast %774 : vector<1x256xf32> to vector<2x256xf32>
    %776 = arith.mulf %772, %775 : vector<2x256xf32>
    %777 = arith.addf %756, %776 : vector<2x256xf32>
    %778 = vector.extract_strided_slice %1 {offsets = [2, 0, 0], sizes = [1, 2, 256], strides = [1, 1, 1]} : vector<8x2x256xf32> to vector<1x2x256xf32>
    %779 = vector.shape_cast %778 : vector<1x2x256xf32> to vector<2x256xf32>
    %780 = vector.extract_strided_slice %3 {offsets = [2, 4, 0], sizes = [1, 1, 256], strides = [1, 1, 1]} : vector<8x8x256xf32> to vector<1x1x256xf32>
    %781 = vector.shape_cast %780 : vector<1x1x256xf32> to vector<1x256xf32>
    %782 = vector.broadcast %781 : vector<1x256xf32> to vector<2x256xf32>
    %783 = arith.mulf %779, %782 : vector<2x256xf32>
    %784 = arith.addf %763, %783 : vector<2x256xf32>
    %785 = vector.extract_strided_slice %4 {offsets = [2, 0, 0], sizes = [1, 2, 256], strides = [1, 1, 1]} : vector<8x2x256xf32> to vector<1x2x256xf32>
    %786 = vector.shape_cast %785 : vector<1x2x256xf32> to vector<2x256xf32>
    %787 = vector.extract_strided_slice %5 {offsets = [2, 4, 0], sizes = [1, 1, 256], strides = [1, 1, 1]} : vector<8x8x256xf32> to vector<1x1x256xf32>
    %788 = vector.shape_cast %787 : vector<1x1x256xf32> to vector<1x256xf32>
    %789 = vector.broadcast %788 : vector<1x256xf32> to vector<2x256xf32>
    %790 = arith.mulf %786, %789 : vector<2x256xf32>
    %791 = arith.addf %770, %790 : vector<2x256xf32>
    %792 = vector.extract_strided_slice %0 {offsets = [3, 0, 0], sizes = [1, 2, 256], strides = [1, 1, 1]} : vector<8x2x256xf32> to vector<1x2x256xf32>
    %793 = vector.shape_cast %792 : vector<1x2x256xf32> to vector<2x256xf32>
    %794 = vector.extract_strided_slice %2 {offsets = [3, 4, 0], sizes = [1, 1, 256], strides = [1, 1, 1]} : vector<8x8x256xf32> to vector<1x1x256xf32>
    %795 = vector.shape_cast %794 : vector<1x1x256xf32> to vector<1x256xf32>
    %796 = vector.broadcast %795 : vector<1x256xf32> to vector<2x256xf32>
    %797 = arith.mulf %793, %796 : vector<2x256xf32>
    %798 = arith.addf %777, %797 : vector<2x256xf32>
    %799 = vector.extract_strided_slice %1 {offsets = [3, 0, 0], sizes = [1, 2, 256], strides = [1, 1, 1]} : vector<8x2x256xf32> to vector<1x2x256xf32>
    %800 = vector.shape_cast %799 : vector<1x2x256xf32> to vector<2x256xf32>
    %801 = vector.extract_strided_slice %3 {offsets = [3, 4, 0], sizes = [1, 1, 256], strides = [1, 1, 1]} : vector<8x8x256xf32> to vector<1x1x256xf32>
    %802 = vector.shape_cast %801 : vector<1x1x256xf32> to vector<1x256xf32>
    %803 = vector.broadcast %802 : vector<1x256xf32> to vector<2x256xf32>
    %804 = arith.mulf %800, %803 : vector<2x256xf32>
    %805 = arith.addf %784, %804 : vector<2x256xf32>
    %806 = vector.extract_strided_slice %4 {offsets = [3, 0, 0], sizes = [1, 2, 256], strides = [1, 1, 1]} : vector<8x2x256xf32> to vector<1x2x256xf32>
    %807 = vector.shape_cast %806 : vector<1x2x256xf32> to vector<2x256xf32>
    %808 = vector.extract_strided_slice %5 {offsets = [3, 4, 0], sizes = [1, 1, 256], strides = [1, 1, 1]} : vector<8x8x256xf32> to vector<1x1x256xf32>
    %809 = vector.shape_cast %808 : vector<1x1x256xf32> to vector<1x256xf32>
    %810 = vector.broadcast %809 : vector<1x256xf32> to vector<2x256xf32>
    %811 = arith.mulf %807, %810 : vector<2x256xf32>
    %812 = arith.addf %791, %811 : vector<2x256xf32>
    %813 = vector.extract_strided_slice %0 {offsets = [4, 0, 0], sizes = [1, 2, 256], strides = [1, 1, 1]} : vector<8x2x256xf32> to vector<1x2x256xf32>
    %814 = vector.shape_cast %813 : vector<1x2x256xf32> to vector<2x256xf32>
    %815 = vector.extract_strided_slice %2 {offsets = [4, 4, 0], sizes = [1, 1, 256], strides = [1, 1, 1]} : vector<8x8x256xf32> to vector<1x1x256xf32>
    %816 = vector.shape_cast %815 : vector<1x1x256xf32> to vector<1x256xf32>
    %817 = vector.broadcast %816 : vector<1x256xf32> to vector<2x256xf32>
    %818 = arith.mulf %814, %817 : vector<2x256xf32>
    %819 = arith.addf %798, %818 : vector<2x256xf32>
    %820 = vector.extract_strided_slice %1 {offsets = [4, 0, 0], sizes = [1, 2, 256], strides = [1, 1, 1]} : vector<8x2x256xf32> to vector<1x2x256xf32>
    %821 = vector.shape_cast %820 : vector<1x2x256xf32> to vector<2x256xf32>
    %822 = vector.extract_strided_slice %3 {offsets = [4, 4, 0], sizes = [1, 1, 256], strides = [1, 1, 1]} : vector<8x8x256xf32> to vector<1x1x256xf32>
    %823 = vector.shape_cast %822 : vector<1x1x256xf32> to vector<1x256xf32>
    %824 = vector.broadcast %823 : vector<1x256xf32> to vector<2x256xf32>
    %825 = arith.mulf %821, %824 : vector<2x256xf32>
    %826 = arith.addf %805, %825 : vector<2x256xf32>
    %827 = vector.extract_strided_slice %4 {offsets = [4, 0, 0], sizes = [1, 2, 256], strides = [1, 1, 1]} : vector<8x2x256xf32> to vector<1x2x256xf32>
    %828 = vector.shape_cast %827 : vector<1x2x256xf32> to vector<2x256xf32>
    %829 = vector.extract_strided_slice %5 {offsets = [4, 4, 0], sizes = [1, 1, 256], strides = [1, 1, 1]} : vector<8x8x256xf32> to vector<1x1x256xf32>
    %830 = vector.shape_cast %829 : vector<1x1x256xf32> to vector<1x256xf32>
    %831 = vector.broadcast %830 : vector<1x256xf32> to vector<2x256xf32>
    %832 = arith.mulf %828, %831 : vector<2x256xf32>
    %833 = arith.addf %812, %832 : vector<2x256xf32>
    %834 = vector.extract_strided_slice %0 {offsets = [5, 0, 0], sizes = [1, 2, 256], strides = [1, 1, 1]} : vector<8x2x256xf32> to vector<1x2x256xf32>
    %835 = vector.shape_cast %834 : vector<1x2x256xf32> to vector<2x256xf32>
    %836 = vector.extract_strided_slice %2 {offsets = [5, 4, 0], sizes = [1, 1, 256], strides = [1, 1, 1]} : vector<8x8x256xf32> to vector<1x1x256xf32>
    %837 = vector.shape_cast %836 : vector<1x1x256xf32> to vector<1x256xf32>
    %838 = vector.broadcast %837 : vector<1x256xf32> to vector<2x256xf32>
    %839 = arith.mulf %835, %838 : vector<2x256xf32>
    %840 = arith.addf %819, %839 : vector<2x256xf32>
    %841 = vector.extract_strided_slice %1 {offsets = [5, 0, 0], sizes = [1, 2, 256], strides = [1, 1, 1]} : vector<8x2x256xf32> to vector<1x2x256xf32>
    %842 = vector.shape_cast %841 : vector<1x2x256xf32> to vector<2x256xf32>
    %843 = vector.extract_strided_slice %3 {offsets = [5, 4, 0], sizes = [1, 1, 256], strides = [1, 1, 1]} : vector<8x8x256xf32> to vector<1x1x256xf32>
    %844 = vector.shape_cast %843 : vector<1x1x256xf32> to vector<1x256xf32>
    %845 = vector.broadcast %844 : vector<1x256xf32> to vector<2x256xf32>
    %846 = arith.mulf %842, %845 : vector<2x256xf32>
    %847 = arith.addf %826, %846 : vector<2x256xf32>
    %848 = vector.extract_strided_slice %4 {offsets = [5, 0, 0], sizes = [1, 2, 256], strides = [1, 1, 1]} : vector<8x2x256xf32> to vector<1x2x256xf32>
    %849 = vector.shape_cast %848 : vector<1x2x256xf32> to vector<2x256xf32>
    %850 = vector.extract_strided_slice %5 {offsets = [5, 4, 0], sizes = [1, 1, 256], strides = [1, 1, 1]} : vector<8x8x256xf32> to vector<1x1x256xf32>
    %851 = vector.shape_cast %850 : vector<1x1x256xf32> to vector<1x256xf32>
    %852 = vector.broadcast %851 : vector<1x256xf32> to vector<2x256xf32>
    %853 = arith.mulf %849, %852 : vector<2x256xf32>
    %854 = arith.addf %833, %853 : vector<2x256xf32>
    %855 = vector.extract_strided_slice %0 {offsets = [6, 0, 0], sizes = [1, 2, 256], strides = [1, 1, 1]} : vector<8x2x256xf32> to vector<1x2x256xf32>
    %856 = vector.shape_cast %855 : vector<1x2x256xf32> to vector<2x256xf32>
    %857 = vector.extract_strided_slice %2 {offsets = [6, 4, 0], sizes = [1, 1, 256], strides = [1, 1, 1]} : vector<8x8x256xf32> to vector<1x1x256xf32>
    %858 = vector.shape_cast %857 : vector<1x1x256xf32> to vector<1x256xf32>
    %859 = vector.broadcast %858 : vector<1x256xf32> to vector<2x256xf32>
    %860 = arith.mulf %856, %859 : vector<2x256xf32>
    %861 = arith.addf %840, %860 : vector<2x256xf32>
    %862 = vector.extract_strided_slice %1 {offsets = [6, 0, 0], sizes = [1, 2, 256], strides = [1, 1, 1]} : vector<8x2x256xf32> to vector<1x2x256xf32>
    %863 = vector.shape_cast %862 : vector<1x2x256xf32> to vector<2x256xf32>
    %864 = vector.extract_strided_slice %3 {offsets = [6, 4, 0], sizes = [1, 1, 256], strides = [1, 1, 1]} : vector<8x8x256xf32> to vector<1x1x256xf32>
    %865 = vector.shape_cast %864 : vector<1x1x256xf32> to vector<1x256xf32>
    %866 = vector.broadcast %865 : vector<1x256xf32> to vector<2x256xf32>
    %867 = arith.mulf %863, %866 : vector<2x256xf32>
    %868 = arith.addf %847, %867 : vector<2x256xf32>
    %869 = vector.extract_strided_slice %4 {offsets = [6, 0, 0], sizes = [1, 2, 256], strides = [1, 1, 1]} : vector<8x2x256xf32> to vector<1x2x256xf32>
    %870 = vector.shape_cast %869 : vector<1x2x256xf32> to vector<2x256xf32>
    %871 = vector.extract_strided_slice %5 {offsets = [6, 4, 0], sizes = [1, 1, 256], strides = [1, 1, 1]} : vector<8x8x256xf32> to vector<1x1x256xf32>
    %872 = vector.shape_cast %871 : vector<1x1x256xf32> to vector<1x256xf32>
    %873 = vector.broadcast %872 : vector<1x256xf32> to vector<2x256xf32>
    %874 = arith.mulf %870, %873 : vector<2x256xf32>
    %875 = arith.addf %854, %874 : vector<2x256xf32>
    %876 = vector.extract_strided_slice %0 {offsets = [7, 0, 0], sizes = [1, 2, 256], strides = [1, 1, 1]} : vector<8x2x256xf32> to vector<1x2x256xf32>
    %877 = vector.shape_cast %876 : vector<1x2x256xf32> to vector<2x256xf32>
    %878 = vector.extract_strided_slice %2 {offsets = [7, 4, 0], sizes = [1, 1, 256], strides = [1, 1, 1]} : vector<8x8x256xf32> to vector<1x1x256xf32>
    %879 = vector.shape_cast %878 : vector<1x1x256xf32> to vector<1x256xf32>
    %880 = vector.broadcast %879 : vector<1x256xf32> to vector<2x256xf32>
    %881 = arith.mulf %877, %880 : vector<2x256xf32>
    %882 = arith.addf %861, %881 : vector<2x256xf32>
    %883 = vector.extract_strided_slice %1 {offsets = [7, 0, 0], sizes = [1, 2, 256], strides = [1, 1, 1]} : vector<8x2x256xf32> to vector<1x2x256xf32>
    %884 = vector.shape_cast %883 : vector<1x2x256xf32> to vector<2x256xf32>
    %885 = vector.extract_strided_slice %3 {offsets = [7, 4, 0], sizes = [1, 1, 256], strides = [1, 1, 1]} : vector<8x8x256xf32> to vector<1x1x256xf32>
    %886 = vector.shape_cast %885 : vector<1x1x256xf32> to vector<1x256xf32>
    %887 = vector.broadcast %886 : vector<1x256xf32> to vector<2x256xf32>
    %888 = arith.mulf %884, %887 : vector<2x256xf32>
    %889 = arith.addf %868, %888 : vector<2x256xf32>
    %890 = vector.extract_strided_slice %4 {offsets = [7, 0, 0], sizes = [1, 2, 256], strides = [1, 1, 1]} : vector<8x2x256xf32> to vector<1x2x256xf32>
    %891 = vector.shape_cast %890 : vector<1x2x256xf32> to vector<2x256xf32>
    %892 = vector.extract_strided_slice %5 {offsets = [7, 4, 0], sizes = [1, 1, 256], strides = [1, 1, 1]} : vector<8x8x256xf32> to vector<1x1x256xf32>
    %893 = vector.shape_cast %892 : vector<1x1x256xf32> to vector<1x256xf32>
    %894 = vector.broadcast %893 : vector<1x256xf32> to vector<2x256xf32>
    %895 = arith.mulf %891, %894 : vector<2x256xf32>
    %896 = arith.addf %875, %895 : vector<2x256xf32>
    %897 = arith.subf %882, %889 : vector<2x256xf32>
    %c4 = arith.constant 4 : index
    %c0_46 = arith.constant 0 : index
    %c0_47 = arith.constant 0 : index
    %898 = vector.load %arg5[%c4, %c0_46, %c0_47] : memref<8x2x256xf32, #tpu.memory_space<vmem>>, vector<1x2x256xf32>
    %899 = vector.shape_cast %898 : vector<1x2x256xf32> to vector<2x256xf32>
    %900 = vector.shape_cast %897 : vector<2x256xf32> to vector<1x2x256xf32>
    tpu.vector_store %arg5[%c4, %c0_46, %c0_47], %900 {strides = array<i32>} : memref<8x2x256xf32, #tpu.memory_space<vmem>>, vector<1x2x256xf32>,
    %901 = arith.subf %896, %882 : vector<2x256xf32>
    %902 = arith.subf %901, %889 : vector<2x256xf32>
    %c4_48 = arith.constant 4 : index
    %c0_49 = arith.constant 0 : index
    %c0_50 = arith.constant 0 : index
    %903 = vector.load %arg6[%c4_48, %c0_49, %c0_50] : memref<8x2x256xf32, #tpu.memory_space<vmem>>, vector<1x2x256xf32>
    %904 = vector.shape_cast %903 : vector<1x2x256xf32> to vector<2x256xf32>
    %905 = vector.shape_cast %902 : vector<2x256xf32> to vector<1x2x256xf32>
    tpu.vector_store %arg6[%c4_48, %c0_49, %c0_50], %905 {strides = array<i32>} : memref<8x2x256xf32, #tpu.memory_space<vmem>>, vector<1x2x256xf32>,
    %cst_51 = arith.constant 0.000000e+00 : f32
    %906 = vector.broadcast %cst_51 : f32 to vector<2x256xf32>
    %cst_52 = arith.constant 0.000000e+00 : f32
    %907 = vector.broadcast %cst_52 : f32 to vector<2x256xf32>
    %cst_53 = arith.constant 0.000000e+00 : f32
    %908 = vector.broadcast %cst_53 : f32 to vector<2x256xf32>
    %909 = vector.extract_strided_slice %0 {offsets = [0, 0, 0], sizes = [1, 2, 256], strides = [1, 1, 1]} : vector<8x2x256xf32> to vector<1x2x256xf32>
    %910 = vector.shape_cast %909 : vector<1x2x256xf32> to vector<2x256xf32>
    %911 = vector.extract_strided_slice %2 {offsets = [0, 5, 0], sizes = [1, 1, 256], strides = [1, 1, 1]} : vector<8x8x256xf32> to vector<1x1x256xf32>
    %912 = vector.shape_cast %911 : vector<1x1x256xf32> to vector<1x256xf32>
    %913 = vector.broadcast %912 : vector<1x256xf32> to vector<2x256xf32>
    %914 = arith.mulf %910, %913 : vector<2x256xf32>
    %915 = arith.addf %906, %914 : vector<2x256xf32>
    %916 = vector.extract_strided_slice %1 {offsets = [0, 0, 0], sizes = [1, 2, 256], strides = [1, 1, 1]} : vector<8x2x256xf32> to vector<1x2x256xf32>
    %917 = vector.shape_cast %916 : vector<1x2x256xf32> to vector<2x256xf32>
    %918 = vector.extract_strided_slice %3 {offsets = [0, 5, 0], sizes = [1, 1, 256], strides = [1, 1, 1]} : vector<8x8x256xf32> to vector<1x1x256xf32>
    %919 = vector.shape_cast %918 : vector<1x1x256xf32> to vector<1x256xf32>
    %920 = vector.broadcast %919 : vector<1x256xf32> to vector<2x256xf32>
    %921 = arith.mulf %917, %920 : vector<2x256xf32>
    %922 = arith.addf %907, %921 : vector<2x256xf32>
    %923 = vector.extract_strided_slice %4 {offsets = [0, 0, 0], sizes = [1, 2, 256], strides = [1, 1, 1]} : vector<8x2x256xf32> to vector<1x2x256xf32>
    %924 = vector.shape_cast %923 : vector<1x2x256xf32> to vector<2x256xf32>
    %925 = vector.extract_strided_slice %5 {offsets = [0, 5, 0], sizes = [1, 1, 256], strides = [1, 1, 1]} : vector<8x8x256xf32> to vector<1x1x256xf32>
    %926 = vector.shape_cast %925 : vector<1x1x256xf32> to vector<1x256xf32>
    %927 = vector.broadcast %926 : vector<1x256xf32> to vector<2x256xf32>
    %928 = arith.mulf %924, %927 : vector<2x256xf32>
    %929 = arith.addf %908, %928 : vector<2x256xf32>
    %930 = vector.extract_strided_slice %0 {offsets = [1, 0, 0], sizes = [1, 2, 256], strides = [1, 1, 1]} : vector<8x2x256xf32> to vector<1x2x256xf32>
    %931 = vector.shape_cast %930 : vector<1x2x256xf32> to vector<2x256xf32>
    %932 = vector.extract_strided_slice %2 {offsets = [1, 5, 0], sizes = [1, 1, 256], strides = [1, 1, 1]} : vector<8x8x256xf32> to vector<1x1x256xf32>
    %933 = vector.shape_cast %932 : vector<1x1x256xf32> to vector<1x256xf32>
    %934 = vector.broadcast %933 : vector<1x256xf32> to vector<2x256xf32>
    %935 = arith.mulf %931, %934 : vector<2x256xf32>
    %936 = arith.addf %915, %935 : vector<2x256xf32>
    %937 = vector.extract_strided_slice %1 {offsets = [1, 0, 0], sizes = [1, 2, 256], strides = [1, 1, 1]} : vector<8x2x256xf32> to vector<1x2x256xf32>
    %938 = vector.shape_cast %937 : vector<1x2x256xf32> to vector<2x256xf32>
    %939 = vector.extract_strided_slice %3 {offsets = [1, 5, 0], sizes = [1, 1, 256], strides = [1, 1, 1]} : vector<8x8x256xf32> to vector<1x1x256xf32>
    %940 = vector.shape_cast %939 : vector<1x1x256xf32> to vector<1x256xf32>
    %941 = vector.broadcast %940 : vector<1x256xf32> to vector<2x256xf32>
    %942 = arith.mulf %938, %941 : vector<2x256xf32>
    %943 = arith.addf %922, %942 : vector<2x256xf32>
    %944 = vector.extract_strided_slice %4 {offsets = [1, 0, 0], sizes = [1, 2, 256], strides = [1, 1, 1]} : vector<8x2x256xf32> to vector<1x2x256xf32>
    %945 = vector.shape_cast %944 : vector<1x2x256xf32> to vector<2x256xf32>
    %946 = vector.extract_strided_slice %5 {offsets = [1, 5, 0], sizes = [1, 1, 256], strides = [1, 1, 1]} : vector<8x8x256xf32> to vector<1x1x256xf32>
    %947 = vector.shape_cast %946 : vector<1x1x256xf32> to vector<1x256xf32>
    %948 = vector.broadcast %947 : vector<1x256xf32> to vector<2x256xf32>
    %949 = arith.mulf %945, %948 : vector<2x256xf32>
    %950 = arith.addf %929, %949 : vector<2x256xf32>
    %951 = vector.extract_strided_slice %0 {offsets = [2, 0, 0], sizes = [1, 2, 256], strides = [1, 1, 1]} : vector<8x2x256xf32> to vector<1x2x256xf32>
    %952 = vector.shape_cast %951 : vector<1x2x256xf32> to vector<2x256xf32>
    %953 = vector.extract_strided_slice %2 {offsets = [2, 5, 0], sizes = [1, 1, 256], strides = [1, 1, 1]} : vector<8x8x256xf32> to vector<1x1x256xf32>
    %954 = vector.shape_cast %953 : vector<1x1x256xf32> to vector<1x256xf32>
    %955 = vector.broadcast %954 : vector<1x256xf32> to vector<2x256xf32>
    %956 = arith.mulf %952, %955 : vector<2x256xf32>
    %957 = arith.addf %936, %956 : vector<2x256xf32>
    %958 = vector.extract_strided_slice %1 {offsets = [2, 0, 0], sizes = [1, 2, 256], strides = [1, 1, 1]} : vector<8x2x256xf32> to vector<1x2x256xf32>
    %959 = vector.shape_cast %958 : vector<1x2x256xf32> to vector<2x256xf32>
    %960 = vector.extract_strided_slice %3 {offsets = [2, 5, 0], sizes = [1, 1, 256], strides = [1, 1, 1]} : vector<8x8x256xf32> to vector<1x1x256xf32>
    %961 = vector.shape_cast %960 : vector<1x1x256xf32> to vector<1x256xf32>
    %962 = vector.broadcast %961 : vector<1x256xf32> to vector<2x256xf32>
    %963 = arith.mulf %959, %962 : vector<2x256xf32>
    %964 = arith.addf %943, %963 : vector<2x256xf32>
    %965 = vector.extract_strided_slice %4 {offsets = [2, 0, 0], sizes = [1, 2, 256], strides = [1, 1, 1]} : vector<8x2x256xf32> to vector<1x2x256xf32>
    %966 = vector.shape_cast %965 : vector<1x2x256xf32> to vector<2x256xf32>
    %967 = vector.extract_strided_slice %5 {offsets = [2, 5, 0], sizes = [1, 1, 256], strides = [1, 1, 1]} : vector<8x8x256xf32> to vector<1x1x256xf32>
    %968 = vector.shape_cast %967 : vector<1x1x256xf32> to vector<1x256xf32>
    %969 = vector.broadcast %968 : vector<1x256xf32> to vector<2x256xf32>
    %970 = arith.mulf %966, %969 : vector<2x256xf32>
    %971 = arith.addf %950, %970 : vector<2x256xf32>
    %972 = vector.extract_strided_slice %0 {offsets = [3, 0, 0], sizes = [1, 2, 256], strides = [1, 1, 1]} : vector<8x2x256xf32> to vector<1x2x256xf32>
    %973 = vector.shape_cast %972 : vector<1x2x256xf32> to vector<2x256xf32>
    %974 = vector.extract_strided_slice %2 {offsets = [3, 5, 0], sizes = [1, 1, 256], strides = [1, 1, 1]} : vector<8x8x256xf32> to vector<1x1x256xf32>
    %975 = vector.shape_cast %974 : vector<1x1x256xf32> to vector<1x256xf32>
    %976 = vector.broadcast %975 : vector<1x256xf32> to vector<2x256xf32>
    %977 = arith.mulf %973, %976 : vector<2x256xf32>
    %978 = arith.addf %957, %977 : vector<2x256xf32>
    %979 = vector.extract_strided_slice %1 {offsets = [3, 0, 0], sizes = [1, 2, 256], strides = [1, 1, 1]} : vector<8x2x256xf32> to vector<1x2x256xf32>
    %980 = vector.shape_cast %979 : vector<1x2x256xf32> to vector<2x256xf32>
    %981 = vector.extract_strided_slice %3 {offsets = [3, 5, 0], sizes = [1, 1, 256], strides = [1, 1, 1]} : vector<8x8x256xf32> to vector<1x1x256xf32>
    %982 = vector.shape_cast %981 : vector<1x1x256xf32> to vector<1x256xf32>
    %983 = vector.broadcast %982 : vector<1x256xf32> to vector<2x256xf32>
    %984 = arith.mulf %980, %983 : vector<2x256xf32>
    %985 = arith.addf %964, %984 : vector<2x256xf32>
    %986 = vector.extract_strided_slice %4 {offsets = [3, 0, 0], sizes = [1, 2, 256], strides = [1, 1, 1]} : vector<8x2x256xf32> to vector<1x2x256xf32>
    %987 = vector.shape_cast %986 : vector<1x2x256xf32> to vector<2x256xf32>
    %988 = vector.extract_strided_slice %5 {offsets = [3, 5, 0], sizes = [1, 1, 256], strides = [1, 1, 1]} : vector<8x8x256xf32> to vector<1x1x256xf32>
    %989 = vector.shape_cast %988 : vector<1x1x256xf32> to vector<1x256xf32>
    %990 = vector.broadcast %989 : vector<1x256xf32> to vector<2x256xf32>
    %991 = arith.mulf %987, %990 : vector<2x256xf32>
    %992 = arith.addf %971, %991 : vector<2x256xf32>
    %993 = vector.extract_strided_slice %0 {offsets = [4, 0, 0], sizes = [1, 2, 256], strides = [1, 1, 1]} : vector<8x2x256xf32> to vector<1x2x256xf32>
    %994 = vector.shape_cast %993 : vector<1x2x256xf32> to vector<2x256xf32>
    %995 = vector.extract_strided_slice %2 {offsets = [4, 5, 0], sizes = [1, 1, 256], strides = [1, 1, 1]} : vector<8x8x256xf32> to vector<1x1x256xf32>
    %996 = vector.shape_cast %995 : vector<1x1x256xf32> to vector<1x256xf32>
    %997 = vector.broadcast %996 : vector<1x256xf32> to vector<2x256xf32>
    %998 = arith.mulf %994, %997 : vector<2x256xf32>
    %999 = arith.addf %978, %998 : vector<2x256xf32>
    %1000 = vector.extract_strided_slice %1 {offsets = [4, 0, 0], sizes = [1, 2, 256], strides = [1, 1, 1]} : vector<8x2x256xf32> to vector<1x2x256xf32>
    %1001 = vector.shape_cast %1000 : vector<1x2x256xf32> to vector<2x256xf32>
    %1002 = vector.extract_strided_slice %3 {offsets = [4, 5, 0], sizes = [1, 1, 256], strides = [1, 1, 1]} : vector<8x8x256xf32> to vector<1x1x256xf32>
    %1003 = vector.shape_cast %1002 : vector<1x1x256xf32> to vector<1x256xf32>
    %1004 = vector.broadcast %1003 : vector<1x256xf32> to vector<2x256xf32>
    %1005 = arith.mulf %1001, %1004 : vector<2x256xf32>
    %1006 = arith.addf %985, %1005 : vector<2x256xf32>
    %1007 = vector.extract_strided_slice %4 {offsets = [4, 0, 0], sizes = [1, 2, 256], strides = [1, 1, 1]} : vector<8x2x256xf32> to vector<1x2x256xf32>
    %1008 = vector.shape_cast %1007 : vector<1x2x256xf32> to vector<2x256xf32>
    %1009 = vector.extract_strided_slice %5 {offsets = [4, 5, 0], sizes = [1, 1, 256], strides = [1, 1, 1]} : vector<8x8x256xf32> to vector<1x1x256xf32>
    %1010 = vector.shape_cast %1009 : vector<1x1x256xf32> to vector<1x256xf32>
    %1011 = vector.broadcast %1010 : vector<1x256xf32> to vector<2x256xf32>
    %1012 = arith.mulf %1008, %1011 : vector<2x256xf32>
    %1013 = arith.addf %992, %1012 : vector<2x256xf32>
    %1014 = vector.extract_strided_slice %0 {offsets = [5, 0, 0], sizes = [1, 2, 256], strides = [1, 1, 1]} : vector<8x2x256xf32> to vector<1x2x256xf32>
    %1015 = vector.shape_cast %1014 : vector<1x2x256xf32> to vector<2x256xf32>
    %1016 = vector.extract_strided_slice %2 {offsets = [5, 5, 0], sizes = [1, 1, 256], strides = [1, 1, 1]} : vector<8x8x256xf32> to vector<1x1x256xf32>
    %1017 = vector.shape_cast %1016 : vector<1x1x256xf32> to vector<1x256xf32>
    %1018 = vector.broadcast %1017 : vector<1x256xf32> to vector<2x256xf32>
    %1019 = arith.mulf %1015, %1018 : vector<2x256xf32>
    %1020 = arith.addf %999, %1019 : vector<2x256xf32>
    %1021 = vector.extract_strided_slice %1 {offsets = [5, 0, 0], sizes = [1, 2, 256], strides = [1, 1, 1]} : vector<8x2x256xf32> to vector<1x2x256xf32>
    %1022 = vector.shape_cast %1021 : vector<1x2x256xf32> to vector<2x256xf32>
    %1023 = vector.extract_strided_slice %3 {offsets = [5, 5, 0], sizes = [1, 1, 256], strides = [1, 1, 1]} : vector<8x8x256xf32> to vector<1x1x256xf32>
    %1024 = vector.shape_cast %1023 : vector<1x1x256xf32> to vector<1x256xf32>
    %1025 = vector.broadcast %1024 : vector<1x256xf32> to vector<2x256xf32>
    %1026 = arith.mulf %1022, %1025 : vector<2x256xf32>
    %1027 = arith.addf %1006, %1026 : vector<2x256xf32>
    %1028 = vector.extract_strided_slice %4 {offsets = [5, 0, 0], sizes = [1, 2, 256], strides = [1, 1, 1]} : vector<8x2x256xf32> to vector<1x2x256xf32>
    %1029 = vector.shape_cast %1028 : vector<1x2x256xf32> to vector<2x256xf32>
    %1030 = vector.extract_strided_slice %5 {offsets = [5, 5, 0], sizes = [1, 1, 256], strides = [1, 1, 1]} : vector<8x8x256xf32> to vector<1x1x256xf32>
    %1031 = vector.shape_cast %1030 : vector<1x1x256xf32> to vector<1x256xf32>
    %1032 = vector.broadcast %1031 : vector<1x256xf32> to vector<2x256xf32>
    %1033 = arith.mulf %1029, %1032 : vector<2x256xf32>
    %1034 = arith.addf %1013, %1033 : vector<2x256xf32>
    %1035 = vector.extract_strided_slice %0 {offsets = [6, 0, 0], sizes = [1, 2, 256], strides = [1, 1, 1]} : vector<8x2x256xf32> to vector<1x2x256xf32>
    %1036 = vector.shape_cast %1035 : vector<1x2x256xf32> to vector<2x256xf32>
    %1037 = vector.extract_strided_slice %2 {offsets = [6, 5, 0], sizes = [1, 1, 256], strides = [1, 1, 1]} : vector<8x8x256xf32> to vector<1x1x256xf32>
    %1038 = vector.shape_cast %1037 : vector<1x1x256xf32> to vector<1x256xf32>
    %1039 = vector.broadcast %1038 : vector<1x256xf32> to vector<2x256xf32>
    %1040 = arith.mulf %1036, %1039 : vector<2x256xf32>
    %1041 = arith.addf %1020, %1040 : vector<2x256xf32>
    %1042 = vector.extract_strided_slice %1 {offsets = [6, 0, 0], sizes = [1, 2, 256], strides = [1, 1, 1]} : vector<8x2x256xf32> to vector<1x2x256xf32>
    %1043 = vector.shape_cast %1042 : vector<1x2x256xf32> to vector<2x256xf32>
    %1044 = vector.extract_strided_slice %3 {offsets = [6, 5, 0], sizes = [1, 1, 256], strides = [1, 1, 1]} : vector<8x8x256xf32> to vector<1x1x256xf32>
    %1045 = vector.shape_cast %1044 : vector<1x1x256xf32> to vector<1x256xf32>
    %1046 = vector.broadcast %1045 : vector<1x256xf32> to vector<2x256xf32>
    %1047 = arith.mulf %1043, %1046 : vector<2x256xf32>
    %1048 = arith.addf %1027, %1047 : vector<2x256xf32>
    %1049 = vector.extract_strided_slice %4 {offsets = [6, 0, 0], sizes = [1, 2, 256], strides = [1, 1, 1]} : vector<8x2x256xf32> to vector<1x2x256xf32>
    %1050 = vector.shape_cast %1049 : vector<1x2x256xf32> to vector<2x256xf32>
    %1051 = vector.extract_strided_slice %5 {offsets = [6, 5, 0], sizes = [1, 1, 256], strides = [1, 1, 1]} : vector<8x8x256xf32> to vector<1x1x256xf32>
    %1052 = vector.shape_cast %1051 : vector<1x1x256xf32> to vector<1x256xf32>
    %1053 = vector.broadcast %1052 : vector<1x256xf32> to vector<2x256xf32>
    %1054 = arith.mulf %1050, %1053 : vector<2x256xf32>
    %1055 = arith.addf %1034, %1054 : vector<2x256xf32>
    %1056 = vector.extract_strided_slice %0 {offsets = [7, 0, 0], sizes = [1, 2, 256], strides = [1, 1, 1]} : vector<8x2x256xf32> to vector<1x2x256xf32>
    %1057 = vector.shape_cast %1056 : vector<1x2x256xf32> to vector<2x256xf32>
    %1058 = vector.extract_strided_slice %2 {offsets = [7, 5, 0], sizes = [1, 1, 256], strides = [1, 1, 1]} : vector<8x8x256xf32> to vector<1x1x256xf32>
    %1059 = vector.shape_cast %1058 : vector<1x1x256xf32> to vector<1x256xf32>
    %1060 = vector.broadcast %1059 : vector<1x256xf32> to vector<2x256xf32>
    %1061 = arith.mulf %1057, %1060 : vector<2x256xf32>
    %1062 = arith.addf %1041, %1061 : vector<2x256xf32>
    %1063 = vector.extract_strided_slice %1 {offsets = [7, 0, 0], sizes = [1, 2, 256], strides = [1, 1, 1]} : vector<8x2x256xf32> to vector<1x2x256xf32>
    %1064 = vector.shape_cast %1063 : vector<1x2x256xf32> to vector<2x256xf32>
    %1065 = vector.extract_strided_slice %3 {offsets = [7, 5, 0], sizes = [1, 1, 256], strides = [1, 1, 1]} : vector<8x8x256xf32> to vector<1x1x256xf32>
    %1066 = vector.shape_cast %1065 : vector<1x1x256xf32> to vector<1x256xf32>
    %1067 = vector.broadcast %1066 : vector<1x256xf32> to vector<2x256xf32>
    %1068 = arith.mulf %1064, %1067 : vector<2x256xf32>
    %1069 = arith.addf %1048, %1068 : vector<2x256xf32>
    %1070 = vector.extract_strided_slice %4 {offsets = [7, 0, 0], sizes = [1, 2, 256], strides = [1, 1, 1]} : vector<8x2x256xf32> to vector<1x2x256xf32>
    %1071 = vector.shape_cast %1070 : vector<1x2x256xf32> to vector<2x256xf32>
    %1072 = vector.extract_strided_slice %5 {offsets = [7, 5, 0], sizes = [1, 1, 256], strides = [1, 1, 1]} : vector<8x8x256xf32> to vector<1x1x256xf32>
    %1073 = vector.shape_cast %1072 : vector<1x1x256xf32> to vector<1x256xf32>
    %1074 = vector.broadcast %1073 : vector<1x256xf32> to vector<2x256xf32>
    %1075 = arith.mulf %1071, %1074 : vector<2x256xf32>
    %1076 = arith.addf %1055, %1075 : vector<2x256xf32>
    %1077 = arith.subf %1062, %1069 : vector<2x256xf32>
    %c5 = arith.constant 5 : index
    %c0_54 = arith.constant 0 : index
    %c0_55 = arith.constant 0 : index
    %1078 = vector.load %arg5[%c5, %c0_54, %c0_55] : memref<8x2x256xf32, #tpu.memory_space<vmem>>, vector<1x2x256xf32>
    %1079 = vector.shape_cast %1078 : vector<1x2x256xf32> to vector<2x256xf32>
    %1080 = vector.shape_cast %1077 : vector<2x256xf32> to vector<1x2x256xf32>
    tpu.vector_store %arg5[%c5, %c0_54, %c0_55], %1080 {strides = array<i32>} : memref<8x2x256xf32, #tpu.memory_space<vmem>>, vector<1x2x256xf32>,
    %1081 = arith.subf %1076, %1062 : vector<2x256xf32>
    %1082 = arith.subf %1081, %1069 : vector<2x256xf32>
    %c5_56 = arith.constant 5 : index
    %c0_57 = arith.constant 0 : index
    %c0_58 = arith.constant 0 : index
    %1083 = vector.load %arg6[%c5_56, %c0_57, %c0_58] : memref<8x2x256xf32, #tpu.memory_space<vmem>>, vector<1x2x256xf32>
    %1084 = vector.shape_cast %1083 : vector<1x2x256xf32> to vector<2x256xf32>
    %1085 = vector.shape_cast %1082 : vector<2x256xf32> to vector<1x2x256xf32>
    tpu.vector_store %arg6[%c5_56, %c0_57, %c0_58], %1085 {strides = array<i32>} : memref<8x2x256xf32, #tpu.memory_space<vmem>>, vector<1x2x256xf32>,
    %cst_59 = arith.constant 0.000000e+00 : f32
    %1086 = vector.broadcast %cst_59 : f32 to vector<2x256xf32>
    %cst_60 = arith.constant 0.000000e+00 : f32
    %1087 = vector.broadcast %cst_60 : f32 to vector<2x256xf32>
    %cst_61 = arith.constant 0.000000e+00 : f32
    %1088 = vector.broadcast %cst_61 : f32 to vector<2x256xf32>
    %1089 = vector.extract_strided_slice %0 {offsets = [0, 0, 0], sizes = [1, 2, 256], strides = [1, 1, 1]} : vector<8x2x256xf32> to vector<1x2x256xf32>
    %1090 = vector.shape_cast %1089 : vector<1x2x256xf32> to vector<2x256xf32>
    %1091 = vector.extract_strided_slice %2 {offsets = [0, 6, 0], sizes = [1, 1, 256], strides = [1, 1, 1]} : vector<8x8x256xf32> to vector<1x1x256xf32>
    %1092 = vector.shape_cast %1091 : vector<1x1x256xf32> to vector<1x256xf32>
    %1093 = vector.broadcast %1092 : vector<1x256xf32> to vector<2x256xf32>
    %1094 = arith.mulf %1090, %1093 : vector<2x256xf32>
    %1095 = arith.addf %1086, %1094 : vector<2x256xf32>
    %1096 = vector.extract_strided_slice %1 {offsets = [0, 0, 0], sizes = [1, 2, 256], strides = [1, 1, 1]} : vector<8x2x256xf32> to vector<1x2x256xf32>
    %1097 = vector.shape_cast %1096 : vector<1x2x256xf32> to vector<2x256xf32>
    %1098 = vector.extract_strided_slice %3 {offsets = [0, 6, 0], sizes = [1, 1, 256], strides = [1, 1, 1]} : vector<8x8x256xf32> to vector<1x1x256xf32>
    %1099 = vector.shape_cast %1098 : vector<1x1x256xf32> to vector<1x256xf32>
    %1100 = vector.broadcast %1099 : vector<1x256xf32> to vector<2x256xf32>
    %1101 = arith.mulf %1097, %1100 : vector<2x256xf32>
    %1102 = arith.addf %1087, %1101 : vector<2x256xf32>
    %1103 = vector.extract_strided_slice %4 {offsets = [0, 0, 0], sizes = [1, 2, 256], strides = [1, 1, 1]} : vector<8x2x256xf32> to vector<1x2x256xf32>
    %1104 = vector.shape_cast %1103 : vector<1x2x256xf32> to vector<2x256xf32>
    %1105 = vector.extract_strided_slice %5 {offsets = [0, 6, 0], sizes = [1, 1, 256], strides = [1, 1, 1]} : vector<8x8x256xf32> to vector<1x1x256xf32>
    %1106 = vector.shape_cast %1105 : vector<1x1x256xf32> to vector<1x256xf32>
    %1107 = vector.broadcast %1106 : vector<1x256xf32> to vector<2x256xf32>
    %1108 = arith.mulf %1104, %1107 : vector<2x256xf32>
    %1109 = arith.addf %1088, %1108 : vector<2x256xf32>
    %1110 = vector.extract_strided_slice %0 {offsets = [1, 0, 0], sizes = [1, 2, 256], strides = [1, 1, 1]} : vector<8x2x256xf32> to vector<1x2x256xf32>
    %1111 = vector.shape_cast %1110 : vector<1x2x256xf32> to vector<2x256xf32>
    %1112 = vector.extract_strided_slice %2 {offsets = [1, 6, 0], sizes = [1, 1, 256], strides = [1, 1, 1]} : vector<8x8x256xf32> to vector<1x1x256xf32>
    %1113 = vector.shape_cast %1112 : vector<1x1x256xf32> to vector<1x256xf32>
    %1114 = vector.broadcast %1113 : vector<1x256xf32> to vector<2x256xf32>
    %1115 = arith.mulf %1111, %1114 : vector<2x256xf32>
    %1116 = arith.addf %1095, %1115 : vector<2x256xf32>
    %1117 = vector.extract_strided_slice %1 {offsets = [1, 0, 0], sizes = [1, 2, 256], strides = [1, 1, 1]} : vector<8x2x256xf32> to vector<1x2x256xf32>
    %1118 = vector.shape_cast %1117 : vector<1x2x256xf32> to vector<2x256xf32>
    %1119 = vector.extract_strided_slice %3 {offsets = [1, 6, 0], sizes = [1, 1, 256], strides = [1, 1, 1]} : vector<8x8x256xf32> to vector<1x1x256xf32>
    %1120 = vector.shape_cast %1119 : vector<1x1x256xf32> to vector<1x256xf32>
    %1121 = vector.broadcast %1120 : vector<1x256xf32> to vector<2x256xf32>
    %1122 = arith.mulf %1118, %1121 : vector<2x256xf32>
    %1123 = arith.addf %1102, %1122 : vector<2x256xf32>
    %1124 = vector.extract_strided_slice %4 {offsets = [1, 0, 0], sizes = [1, 2, 256], strides = [1, 1, 1]} : vector<8x2x256xf32> to vector<1x2x256xf32>
    %1125 = vector.shape_cast %1124 : vector<1x2x256xf32> to vector<2x256xf32>
    %1126 = vector.extract_strided_slice %5 {offsets = [1, 6, 0], sizes = [1, 1, 256], strides = [1, 1, 1]} : vector<8x8x256xf32> to vector<1x1x256xf32>
    %1127 = vector.shape_cast %1126 : vector<1x1x256xf32> to vector<1x256xf32>
    %1128 = vector.broadcast %1127 : vector<1x256xf32> to vector<2x256xf32>
    %1129 = arith.mulf %1125, %1128 : vector<2x256xf32>
    %1130 = arith.addf %1109, %1129 : vector<2x256xf32>
    %1131 = vector.extract_strided_slice %0 {offsets = [2, 0, 0], sizes = [1, 2, 256], strides = [1, 1, 1]} : vector<8x2x256xf32> to vector<1x2x256xf32>
    %1132 = vector.shape_cast %1131 : vector<1x2x256xf32> to vector<2x256xf32>
    %1133 = vector.extract_strided_slice %2 {offsets = [2, 6, 0], sizes = [1, 1, 256], strides = [1, 1, 1]} : vector<8x8x256xf32> to vector<1x1x256xf32>
    %1134 = vector.shape_cast %1133 : vector<1x1x256xf32> to vector<1x256xf32>
    %1135 = vector.broadcast %1134 : vector<1x256xf32> to vector<2x256xf32>
    %1136 = arith.mulf %1132, %1135 : vector<2x256xf32>
    %1137 = arith.addf %1116, %1136 : vector<2x256xf32>
    %1138 = vector.extract_strided_slice %1 {offsets = [2, 0, 0], sizes = [1, 2, 256], strides = [1, 1, 1]} : vector<8x2x256xf32> to vector<1x2x256xf32>
    %1139 = vector.shape_cast %1138 : vector<1x2x256xf32> to vector<2x256xf32>
    %1140 = vector.extract_strided_slice %3 {offsets = [2, 6, 0], sizes = [1, 1, 256], strides = [1, 1, 1]} : vector<8x8x256xf32> to vector<1x1x256xf32>
    %1141 = vector.shape_cast %1140 : vector<1x1x256xf32> to vector<1x256xf32>
    %1142 = vector.broadcast %1141 : vector<1x256xf32> to vector<2x256xf32>
    %1143 = arith.mulf %1139, %1142 : vector<2x256xf32>
    %1144 = arith.addf %1123, %1143 : vector<2x256xf32>
    %1145 = vector.extract_strided_slice %4 {offsets = [2, 0, 0], sizes = [1, 2, 256], strides = [1, 1, 1]} : vector<8x2x256xf32> to vector<1x2x256xf32>
    %1146 = vector.shape_cast %1145 : vector<1x2x256xf32> to vector<2x256xf32>
    %1147 = vector.extract_strided_slice %5 {offsets = [2, 6, 0], sizes = [1, 1, 256], strides = [1, 1, 1]} : vector<8x8x256xf32> to vector<1x1x256xf32>
    %1148 = vector.shape_cast %1147 : vector<1x1x256xf32> to vector<1x256xf32>
    %1149 = vector.broadcast %1148 : vector<1x256xf32> to vector<2x256xf32>
    %1150 = arith.mulf %1146, %1149 : vector<2x256xf32>
    %1151 = arith.addf %1130, %1150 : vector<2x256xf32>
    %1152 = vector.extract_strided_slice %0 {offsets = [3, 0, 0], sizes = [1, 2, 256], strides = [1, 1, 1]} : vector<8x2x256xf32> to vector<1x2x256xf32>
    %1153 = vector.shape_cast %1152 : vector<1x2x256xf32> to vector<2x256xf32>
    %1154 = vector.extract_strided_slice %2 {offsets = [3, 6, 0], sizes = [1, 1, 256], strides = [1, 1, 1]} : vector<8x8x256xf32> to vector<1x1x256xf32>
    %1155 = vector.shape_cast %1154 : vector<1x1x256xf32> to vector<1x256xf32>
    %1156 = vector.broadcast %1155 : vector<1x256xf32> to vector<2x256xf32>
    %1157 = arith.mulf %1153, %1156 : vector<2x256xf32>
    %1158 = arith.addf %1137, %1157 : vector<2x256xf32>
    %1159 = vector.extract_strided_slice %1 {offsets = [3, 0, 0], sizes = [1, 2, 256], strides = [1, 1, 1]} : vector<8x2x256xf32> to vector<1x2x256xf32>
    %1160 = vector.shape_cast %1159 : vector<1x2x256xf32> to vector<2x256xf32>
    %1161 = vector.extract_strided_slice %3 {offsets = [3, 6, 0], sizes = [1, 1, 256], strides = [1, 1, 1]} : vector<8x8x256xf32> to vector<1x1x256xf32>
    %1162 = vector.shape_cast %1161 : vector<1x1x256xf32> to vector<1x256xf32>
    %1163 = vector.broadcast %1162 : vector<1x256xf32> to vector<2x256xf32>
    %1164 = arith.mulf %1160, %1163 : vector<2x256xf32>
    %1165 = arith.addf %1144, %1164 : vector<2x256xf32>
    %1166 = vector.extract_strided_slice %4 {offsets = [3, 0, 0], sizes = [1, 2, 256], strides = [1, 1, 1]} : vector<8x2x256xf32> to vector<1x2x256xf32>
    %1167 = vector.shape_cast %1166 : vector<1x2x256xf32> to vector<2x256xf32>
    %1168 = vector.extract_strided_slice %5 {offsets = [3, 6, 0], sizes = [1, 1, 256], strides = [1, 1, 1]} : vector<8x8x256xf32> to vector<1x1x256xf32>
    %1169 = vector.shape_cast %1168 : vector<1x1x256xf32> to vector<1x256xf32>
    %1170 = vector.broadcast %1169 : vector<1x256xf32> to vector<2x256xf32>
    %1171 = arith.mulf %1167, %1170 : vector<2x256xf32>
    %1172 = arith.addf %1151, %1171 : vector<2x256xf32>
    %1173 = vector.extract_strided_slice %0 {offsets = [4, 0, 0], sizes = [1, 2, 256], strides = [1, 1, 1]} : vector<8x2x256xf32> to vector<1x2x256xf32>
    %1174 = vector.shape_cast %1173 : vector<1x2x256xf32> to vector<2x256xf32>
    %1175 = vector.extract_strided_slice %2 {offsets = [4, 6, 0], sizes = [1, 1, 256], strides = [1, 1, 1]} : vector<8x8x256xf32> to vector<1x1x256xf32>
    %1176 = vector.shape_cast %1175 : vector<1x1x256xf32> to vector<1x256xf32>
    %1177 = vector.broadcast %1176 : vector<1x256xf32> to vector<2x256xf32>
    %1178 = arith.mulf %1174, %1177 : vector<2x256xf32>
    %1179 = arith.addf %1158, %1178 : vector<2x256xf32>
    %1180 = vector.extract_strided_slice %1 {offsets = [4, 0, 0], sizes = [1, 2, 256], strides = [1, 1, 1]} : vector<8x2x256xf32> to vector<1x2x256xf32>
    %1181 = vector.shape_cast %1180 : vector<1x2x256xf32> to vector<2x256xf32>
    %1182 = vector.extract_strided_slice %3 {offsets = [4, 6, 0], sizes = [1, 1, 256], strides = [1, 1, 1]} : vector<8x8x256xf32> to vector<1x1x256xf32>
    %1183 = vector.shape_cast %1182 : vector<1x1x256xf32> to vector<1x256xf32>
    %1184 = vector.broadcast %1183 : vector<1x256xf32> to vector<2x256xf32>
    %1185 = arith.mulf %1181, %1184 : vector<2x256xf32>
    %1186 = arith.addf %1165, %1185 : vector<2x256xf32>
    %1187 = vector.extract_strided_slice %4 {offsets = [4, 0, 0], sizes = [1, 2, 256], strides = [1, 1, 1]} : vector<8x2x256xf32> to vector<1x2x256xf32>
    %1188 = vector.shape_cast %1187 : vector<1x2x256xf32> to vector<2x256xf32>
    %1189 = vector.extract_strided_slice %5 {offsets = [4, 6, 0], sizes = [1, 1, 256], strides = [1, 1, 1]} : vector<8x8x256xf32> to vector<1x1x256xf32>
    %1190 = vector.shape_cast %1189 : vector<1x1x256xf32> to vector<1x256xf32>
    %1191 = vector.broadcast %1190 : vector<1x256xf32> to vector<2x256xf32>
    %1192 = arith.mulf %1188, %1191 : vector<2x256xf32>
    %1193 = arith.addf %1172, %1192 : vector<2x256xf32>
    %1194 = vector.extract_strided_slice %0 {offsets = [5, 0, 0], sizes = [1, 2, 256], strides = [1, 1, 1]} : vector<8x2x256xf32> to vector<1x2x256xf32>
    %1195 = vector.shape_cast %1194 : vector<1x2x256xf32> to vector<2x256xf32>
    %1196 = vector.extract_strided_slice %2 {offsets = [5, 6, 0], sizes = [1, 1, 256], strides = [1, 1, 1]} : vector<8x8x256xf32> to vector<1x1x256xf32>
    %1197 = vector.shape_cast %1196 : vector<1x1x256xf32> to vector<1x256xf32>
    %1198 = vector.broadcast %1197 : vector<1x256xf32> to vector<2x256xf32>
    %1199 = arith.mulf %1195, %1198 : vector<2x256xf32>
    %1200 = arith.addf %1179, %1199 : vector<2x256xf32>
    %1201 = vector.extract_strided_slice %1 {offsets = [5, 0, 0], sizes = [1, 2, 256], strides = [1, 1, 1]} : vector<8x2x256xf32> to vector<1x2x256xf32>
    %1202 = vector.shape_cast %1201 : vector<1x2x256xf32> to vector<2x256xf32>
    %1203 = vector.extract_strided_slice %3 {offsets = [5, 6, 0], sizes = [1, 1, 256], strides = [1, 1, 1]} : vector<8x8x256xf32> to vector<1x1x256xf32>
    %1204 = vector.shape_cast %1203 : vector<1x1x256xf32> to vector<1x256xf32>
    %1205 = vector.broadcast %1204 : vector<1x256xf32> to vector<2x256xf32>
    %1206 = arith.mulf %1202, %1205 : vector<2x256xf32>
    %1207 = arith.addf %1186, %1206 : vector<2x256xf32>
    %1208 = vector.extract_strided_slice %4 {offsets = [5, 0, 0], sizes = [1, 2, 256], strides = [1, 1, 1]} : vector<8x2x256xf32> to vector<1x2x256xf32>
    %1209 = vector.shape_cast %1208 : vector<1x2x256xf32> to vector<2x256xf32>
    %1210 = vector.extract_strided_slice %5 {offsets = [5, 6, 0], sizes = [1, 1, 256], strides = [1, 1, 1]} : vector<8x8x256xf32> to vector<1x1x256xf32>
    %1211 = vector.shape_cast %1210 : vector<1x1x256xf32> to vector<1x256xf32>
    %1212 = vector.broadcast %1211 : vector<1x256xf32> to vector<2x256xf32>
    %1213 = arith.mulf %1209, %1212 : vector<2x256xf32>
    %1214 = arith.addf %1193, %1213 : vector<2x256xf32>
    %1215 = vector.extract_strided_slice %0 {offsets = [6, 0, 0], sizes = [1, 2, 256], strides = [1, 1, 1]} : vector<8x2x256xf32> to vector<1x2x256xf32>
    %1216 = vector.shape_cast %1215 : vector<1x2x256xf32> to vector<2x256xf32>
    %1217 = vector.extract_strided_slice %2 {offsets = [6, 6, 0], sizes = [1, 1, 256], strides = [1, 1, 1]} : vector<8x8x256xf32> to vector<1x1x256xf32>
    %1218 = vector.shape_cast %1217 : vector<1x1x256xf32> to vector<1x256xf32>
    %1219 = vector.broadcast %1218 : vector<1x256xf32> to vector<2x256xf32>
    %1220 = arith.mulf %1216, %1219 : vector<2x256xf32>
    %1221 = arith.addf %1200, %1220 : vector<2x256xf32>
    %1222 = vector.extract_strided_slice %1 {offsets = [6, 0, 0], sizes = [1, 2, 256], strides = [1, 1, 1]} : vector<8x2x256xf32> to vector<1x2x256xf32>
    %1223 = vector.shape_cast %1222 : vector<1x2x256xf32> to vector<2x256xf32>
    %1224 = vector.extract_strided_slice %3 {offsets = [6, 6, 0], sizes = [1, 1, 256], strides = [1, 1, 1]} : vector<8x8x256xf32> to vector<1x1x256xf32>
    %1225 = vector.shape_cast %1224 : vector<1x1x256xf32> to vector<1x256xf32>
    %1226 = vector.broadcast %1225 : vector<1x256xf32> to vector<2x256xf32>
    %1227 = arith.mulf %1223, %1226 : vector<2x256xf32>
    %1228 = arith.addf %1207, %1227 : vector<2x256xf32>
    %1229 = vector.extract_strided_slice %4 {offsets = [6, 0, 0], sizes = [1, 2, 256], strides = [1, 1, 1]} : vector<8x2x256xf32> to vector<1x2x256xf32>
    %1230 = vector.shape_cast %1229 : vector<1x2x256xf32> to vector<2x256xf32>
    %1231 = vector.extract_strided_slice %5 {offsets = [6, 6, 0], sizes = [1, 1, 256], strides = [1, 1, 1]} : vector<8x8x256xf32> to vector<1x1x256xf32>
    %1232 = vector.shape_cast %1231 : vector<1x1x256xf32> to vector<1x256xf32>
    %1233 = vector.broadcast %1232 : vector<1x256xf32> to vector<2x256xf32>
    %1234 = arith.mulf %1230, %1233 : vector<2x256xf32>
    %1235 = arith.addf %1214, %1234 : vector<2x256xf32>
    %1236 = vector.extract_strided_slice %0 {offsets = [7, 0, 0], sizes = [1, 2, 256], strides = [1, 1, 1]} : vector<8x2x256xf32> to vector<1x2x256xf32>
    %1237 = vector.shape_cast %1236 : vector<1x2x256xf32> to vector<2x256xf32>
    %1238 = vector.extract_strided_slice %2 {offsets = [7, 6, 0], sizes = [1, 1, 256], strides = [1, 1, 1]} : vector<8x8x256xf32> to vector<1x1x256xf32>
    %1239 = vector.shape_cast %1238 : vector<1x1x256xf32> to vector<1x256xf32>
    %1240 = vector.broadcast %1239 : vector<1x256xf32> to vector<2x256xf32>
    %1241 = arith.mulf %1237, %1240 : vector<2x256xf32>
    %1242 = arith.addf %1221, %1241 : vector<2x256xf32>
    %1243 = vector.extract_strided_slice %1 {offsets = [7, 0, 0], sizes = [1, 2, 256], strides = [1, 1, 1]} : vector<8x2x256xf32> to vector<1x2x256xf32>
    %1244 = vector.shape_cast %1243 : vector<1x2x256xf32> to vector<2x256xf32>
    %1245 = vector.extract_strided_slice %3 {offsets = [7, 6, 0], sizes = [1, 1, 256], strides = [1, 1, 1]} : vector<8x8x256xf32> to vector<1x1x256xf32>
    %1246 = vector.shape_cast %1245 : vector<1x1x256xf32> to vector<1x256xf32>
    %1247 = vector.broadcast %1246 : vector<1x256xf32> to vector<2x256xf32>
    %1248 = arith.mulf %1244, %1247 : vector<2x256xf32>
    %1249 = arith.addf %1228, %1248 : vector<2x256xf32>
    %1250 = vector.extract_strided_slice %4 {offsets = [7, 0, 0], sizes = [1, 2, 256], strides = [1, 1, 1]} : vector<8x2x256xf32> to vector<1x2x256xf32>
    %1251 = vector.shape_cast %1250 : vector<1x2x256xf32> to vector<2x256xf32>
    %1252 = vector.extract_strided_slice %5 {offsets = [7, 6, 0], sizes = [1, 1, 256], strides = [1, 1, 1]} : vector<8x8x256xf32> to vector<1x1x256xf32>
    %1253 = vector.shape_cast %1252 : vector<1x1x256xf32> to vector<1x256xf32>
    %1254 = vector.broadcast %1253 : vector<1x256xf32> to vector<2x256xf32>
    %1255 = arith.mulf %1251, %1254 : vector<2x256xf32>
    %1256 = arith.addf %1235, %1255 : vector<2x256xf32>
    %1257 = arith.subf %1242, %1249 : vector<2x256xf32>
    %c6 = arith.constant 6 : index
    %c0_62 = arith.constant 0 : index
    %c0_63 = arith.constant 0 : index
    %1258 = vector.load %arg5[%c6, %c0_62, %c0_63] : memref<8x2x256xf32, #tpu.memory_space<vmem>>, vector<1x2x256xf32>
    %1259 = vector.shape_cast %1258 : vector<1x2x256xf32> to vector<2x256xf32>
    %1260 = vector.shape_cast %1257 : vector<2x256xf32> to vector<1x2x256xf32>
    tpu.vector_store %arg5[%c6, %c0_62, %c0_63], %1260 {strides = array<i32>} : memref<8x2x256xf32, #tpu.memory_space<vmem>>, vector<1x2x256xf32>,
    %1261 = arith.subf %1256, %1242 : vector<2x256xf32>
    %1262 = arith.subf %1261, %1249 : vector<2x256xf32>
    %c6_64 = arith.constant 6 : index
    %c0_65 = arith.constant 0 : index
    %c0_66 = arith.constant 0 : index
    %1263 = vector.load %arg6[%c6_64, %c0_65, %c0_66] : memref<8x2x256xf32, #tpu.memory_space<vmem>>, vector<1x2x256xf32>
    %1264 = vector.shape_cast %1263 : vector<1x2x256xf32> to vector<2x256xf32>
    %1265 = vector.shape_cast %1262 : vector<2x256xf32> to vector<1x2x256xf32>
    tpu.vector_store %arg6[%c6_64, %c0_65, %c0_66], %1265 {strides = array<i32>} : memref<8x2x256xf32, #tpu.memory_space<vmem>>, vector<1x2x256xf32>,
    %cst_67 = arith.constant 0.000000e+00 : f32
    %1266 = vector.broadcast %cst_67 : f32 to vector<2x256xf32>
    %cst_68 = arith.constant 0.000000e+00 : f32
    %1267 = vector.broadcast %cst_68 : f32 to vector<2x256xf32>
    %cst_69 = arith.constant 0.000000e+00 : f32
    %1268 = vector.broadcast %cst_69 : f32 to vector<2x256xf32>
    %1269 = vector.extract_strided_slice %0 {offsets = [0, 0, 0], sizes = [1, 2, 256], strides = [1, 1, 1]} : vector<8x2x256xf32> to vector<1x2x256xf32>
    %1270 = vector.shape_cast %1269 : vector<1x2x256xf32> to vector<2x256xf32>
    %1271 = vector.extract_strided_slice %2 {offsets = [0, 7, 0], sizes = [1, 1, 256], strides = [1, 1, 1]} : vector<8x8x256xf32> to vector<1x1x256xf32>
    %1272 = vector.shape_cast %1271 : vector<1x1x256xf32> to vector<1x256xf32>
    %1273 = vector.broadcast %1272 : vector<1x256xf32> to vector<2x256xf32>
    %1274 = arith.mulf %1270, %1273 : vector<2x256xf32>
    %1275 = arith.addf %1266, %1274 : vector<2x256xf32>
    %1276 = vector.extract_strided_slice %1 {offsets = [0, 0, 0], sizes = [1, 2, 256], strides = [1, 1, 1]} : vector<8x2x256xf32> to vector<1x2x256xf32>
    %1277 = vector.shape_cast %1276 : vector<1x2x256xf32> to vector<2x256xf32>
    %1278 = vector.extract_strided_slice %3 {offsets = [0, 7, 0], sizes = [1, 1, 256], strides = [1, 1, 1]} : vector<8x8x256xf32> to vector<1x1x256xf32>
    %1279 = vector.shape_cast %1278 : vector<1x1x256xf32> to vector<1x256xf32>
    %1280 = vector.broadcast %1279 : vector<1x256xf32> to vector<2x256xf32>
    %1281 = arith.mulf %1277, %1280 : vector<2x256xf32>
    %1282 = arith.addf %1267, %1281 : vector<2x256xf32>
    %1283 = vector.extract_strided_slice %4 {offsets = [0, 0, 0], sizes = [1, 2, 256], strides = [1, 1, 1]} : vector<8x2x256xf32> to vector<1x2x256xf32>
    %1284 = vector.shape_cast %1283 : vector<1x2x256xf32> to vector<2x256xf32>
    %1285 = vector.extract_strided_slice %5 {offsets = [0, 7, 0], sizes = [1, 1, 256], strides = [1, 1, 1]} : vector<8x8x256xf32> to vector<1x1x256xf32>
    %1286 = vector.shape_cast %1285 : vector<1x1x256xf32> to vector<1x256xf32>
    %1287 = vector.broadcast %1286 : vector<1x256xf32> to vector<2x256xf32>
    %1288 = arith.mulf %1284, %1287 : vector<2x256xf32>
    %1289 = arith.addf %1268, %1288 : vector<2x256xf32>
    %1290 = vector.extract_strided_slice %0 {offsets = [1, 0, 0], sizes = [1, 2, 256], strides = [1, 1, 1]} : vector<8x2x256xf32> to vector<1x2x256xf32>
    %1291 = vector.shape_cast %1290 : vector<1x2x256xf32> to vector<2x256xf32>
    %1292 = vector.extract_strided_slice %2 {offsets = [1, 7, 0], sizes = [1, 1, 256], strides = [1, 1, 1]} : vector<8x8x256xf32> to vector<1x1x256xf32>
    %1293 = vector.shape_cast %1292 : vector<1x1x256xf32> to vector<1x256xf32>
    %1294 = vector.broadcast %1293 : vector<1x256xf32> to vector<2x256xf32>
    %1295 = arith.mulf %1291, %1294 : vector<2x256xf32>
    %1296 = arith.addf %1275, %1295 : vector<2x256xf32>
    %1297 = vector.extract_strided_slice %1 {offsets = [1, 0, 0], sizes = [1, 2, 256], strides = [1, 1, 1]} : vector<8x2x256xf32> to vector<1x2x256xf32>
    %1298 = vector.shape_cast %1297 : vector<1x2x256xf32> to vector<2x256xf32>
    %1299 = vector.extract_strided_slice %3 {offsets = [1, 7, 0], sizes = [1, 1, 256], strides = [1, 1, 1]} : vector<8x8x256xf32> to vector<1x1x256xf32>
    %1300 = vector.shape_cast %1299 : vector<1x1x256xf32> to vector<1x256xf32>
    %1301 = vector.broadcast %1300 : vector<1x256xf32> to vector<2x256xf32>
    %1302 = arith.mulf %1298, %1301 : vector<2x256xf32>
    %1303 = arith.addf %1282, %1302 : vector<2x256xf32>
    %1304 = vector.extract_strided_slice %4 {offsets = [1, 0, 0], sizes = [1, 2, 256], strides = [1, 1, 1]} : vector<8x2x256xf32> to vector<1x2x256xf32>
    %1305 = vector.shape_cast %1304 : vector<1x2x256xf32> to vector<2x256xf32>
    %1306 = vector.extract_strided_slice %5 {offsets = [1, 7, 0], sizes = [1, 1, 256], strides = [1, 1, 1]} : vector<8x8x256xf32> to vector<1x1x256xf32>
    %1307 = vector.shape_cast %1306 : vector<1x1x256xf32> to vector<1x256xf32>
    %1308 = vector.broadcast %1307 : vector<1x256xf32> to vector<2x256xf32>
    %1309 = arith.mulf %1305, %1308 : vector<2x256xf32>
    %1310 = arith.addf %1289, %1309 : vector<2x256xf32>
    %1311 = vector.extract_strided_slice %0 {offsets = [2, 0, 0], sizes = [1, 2, 256], strides = [1, 1, 1]} : vector<8x2x256xf32> to vector<1x2x256xf32>
    %1312 = vector.shape_cast %1311 : vector<1x2x256xf32> to vector<2x256xf32>
    %1313 = vector.extract_strided_slice %2 {offsets = [2, 7, 0], sizes = [1, 1, 256], strides = [1, 1, 1]} : vector<8x8x256xf32> to vector<1x1x256xf32>
    %1314 = vector.shape_cast %1313 : vector<1x1x256xf32> to vector<1x256xf32>
    %1315 = vector.broadcast %1314 : vector<1x256xf32> to vector<2x256xf32>
    %1316 = arith.mulf %1312, %1315 : vector<2x256xf32>
    %1317 = arith.addf %1296, %1316 : vector<2x256xf32>
    %1318 = vector.extract_strided_slice %1 {offsets = [2, 0, 0], sizes = [1, 2, 256], strides = [1, 1, 1]} : vector<8x2x256xf32> to vector<1x2x256xf32>
    %1319 = vector.shape_cast %1318 : vector<1x2x256xf32> to vector<2x256xf32>
    %1320 = vector.extract_strided_slice %3 {offsets = [2, 7, 0], sizes = [1, 1, 256], strides = [1, 1, 1]} : vector<8x8x256xf32> to vector<1x1x256xf32>
    %1321 = vector.shape_cast %1320 : vector<1x1x256xf32> to vector<1x256xf32>
    %1322 = vector.broadcast %1321 : vector<1x256xf32> to vector<2x256xf32>
    %1323 = arith.mulf %1319, %1322 : vector<2x256xf32>
    %1324 = arith.addf %1303, %1323 : vector<2x256xf32>
    %1325 = vector.extract_strided_slice %4 {offsets = [2, 0, 0], sizes = [1, 2, 256], strides = [1, 1, 1]} : vector<8x2x256xf32> to vector<1x2x256xf32>
    %1326 = vector.shape_cast %1325 : vector<1x2x256xf32> to vector<2x256xf32>
    %1327 = vector.extract_strided_slice %5 {offsets = [2, 7, 0], sizes = [1, 1, 256], strides = [1, 1, 1]} : vector<8x8x256xf32> to vector<1x1x256xf32>
    %1328 = vector.shape_cast %1327 : vector<1x1x256xf32> to vector<1x256xf32>
    %1329 = vector.broadcast %1328 : vector<1x256xf32> to vector<2x256xf32>
    %1330 = arith.mulf %1326, %1329 : vector<2x256xf32>
    %1331 = arith.addf %1310, %1330 : vector<2x256xf32>
    %1332 = vector.extract_strided_slice %0 {offsets = [3, 0, 0], sizes = [1, 2, 256], strides = [1, 1, 1]} : vector<8x2x256xf32> to vector<1x2x256xf32>
    %1333 = vector.shape_cast %1332 : vector<1x2x256xf32> to vector<2x256xf32>
    %1334 = vector.extract_strided_slice %2 {offsets = [3, 7, 0], sizes = [1, 1, 256], strides = [1, 1, 1]} : vector<8x8x256xf32> to vector<1x1x256xf32>
    %1335 = vector.shape_cast %1334 : vector<1x1x256xf32> to vector<1x256xf32>
    %1336 = vector.broadcast %1335 : vector<1x256xf32> to vector<2x256xf32>
    %1337 = arith.mulf %1333, %1336 : vector<2x256xf32>
    %1338 = arith.addf %1317, %1337 : vector<2x256xf32>
    %1339 = vector.extract_strided_slice %1 {offsets = [3, 0, 0], sizes = [1, 2, 256], strides = [1, 1, 1]} : vector<8x2x256xf32> to vector<1x2x256xf32>
    %1340 = vector.shape_cast %1339 : vector<1x2x256xf32> to vector<2x256xf32>
    %1341 = vector.extract_strided_slice %3 {offsets = [3, 7, 0], sizes = [1, 1, 256], strides = [1, 1, 1]} : vector<8x8x256xf32> to vector<1x1x256xf32>
    %1342 = vector.shape_cast %1341 : vector<1x1x256xf32> to vector<1x256xf32>
    %1343 = vector.broadcast %1342 : vector<1x256xf32> to vector<2x256xf32>
    %1344 = arith.mulf %1340, %1343 : vector<2x256xf32>
    %1345 = arith.addf %1324, %1344 : vector<2x256xf32>
    %1346 = vector.extract_strided_slice %4 {offsets = [3, 0, 0], sizes = [1, 2, 256], strides = [1, 1, 1]} : vector<8x2x256xf32> to vector<1x2x256xf32>
    %1347 = vector.shape_cast %1346 : vector<1x2x256xf32> to vector<2x256xf32>
    %1348 = vector.extract_strided_slice %5 {offsets = [3, 7, 0], sizes = [1, 1, 256], strides = [1, 1, 1]} : vector<8x8x256xf32> to vector<1x1x256xf32>
    %1349 = vector.shape_cast %1348 : vector<1x1x256xf32> to vector<1x256xf32>
    %1350 = vector.broadcast %1349 : vector<1x256xf32> to vector<2x256xf32>
    %1351 = arith.mulf %1347, %1350 : vector<2x256xf32>
    %1352 = arith.addf %1331, %1351 : vector<2x256xf32>
    %1353 = vector.extract_strided_slice %0 {offsets = [4, 0, 0], sizes = [1, 2, 256], strides = [1, 1, 1]} : vector<8x2x256xf32> to vector<1x2x256xf32>
    %1354 = vector.shape_cast %1353 : vector<1x2x256xf32> to vector<2x256xf32>
    %1355 = vector.extract_strided_slice %2 {offsets = [4, 7, 0], sizes = [1, 1, 256], strides = [1, 1, 1]} : vector<8x8x256xf32> to vector<1x1x256xf32>
    %1356 = vector.shape_cast %1355 : vector<1x1x256xf32> to vector<1x256xf32>
    %1357 = vector.broadcast %1356 : vector<1x256xf32> to vector<2x256xf32>
    %1358 = arith.mulf %1354, %1357 : vector<2x256xf32>
    %1359 = arith.addf %1338, %1358 : vector<2x256xf32>
    %1360 = vector.extract_strided_slice %1 {offsets = [4, 0, 0], sizes = [1, 2, 256], strides = [1, 1, 1]} : vector<8x2x256xf32> to vector<1x2x256xf32>
    %1361 = vector.shape_cast %1360 : vector<1x2x256xf32> to vector<2x256xf32>
    %1362 = vector.extract_strided_slice %3 {offsets = [4, 7, 0], sizes = [1, 1, 256], strides = [1, 1, 1]} : vector<8x8x256xf32> to vector<1x1x256xf32>
    %1363 = vector.shape_cast %1362 : vector<1x1x256xf32> to vector<1x256xf32>
    %1364 = vector.broadcast %1363 : vector<1x256xf32> to vector<2x256xf32>
    %1365 = arith.mulf %1361, %1364 : vector<2x256xf32>
    %1366 = arith.addf %1345, %1365 : vector<2x256xf32>
    %1367 = vector.extract_strided_slice %4 {offsets = [4, 0, 0], sizes = [1, 2, 256], strides = [1, 1, 1]} : vector<8x2x256xf32> to vector<1x2x256xf32>
    %1368 = vector.shape_cast %1367 : vector<1x2x256xf32> to vector<2x256xf32>
    %1369 = vector.extract_strided_slice %5 {offsets = [4, 7, 0], sizes = [1, 1, 256], strides = [1, 1, 1]} : vector<8x8x256xf32> to vector<1x1x256xf32>
    %1370 = vector.shape_cast %1369 : vector<1x1x256xf32> to vector<1x256xf32>
    %1371 = vector.broadcast %1370 : vector<1x256xf32> to vector<2x256xf32>
    %1372 = arith.mulf %1368, %1371 : vector<2x256xf32>
    %1373 = arith.addf %1352, %1372 : vector<2x256xf32>
    %1374 = vector.extract_strided_slice %0 {offsets = [5, 0, 0], sizes = [1, 2, 256], strides = [1, 1, 1]} : vector<8x2x256xf32> to vector<1x2x256xf32>
    %1375 = vector.shape_cast %1374 : vector<1x2x256xf32> to vector<2x256xf32>
    %1376 = vector.extract_strided_slice %2 {offsets = [5, 7, 0], sizes = [1, 1, 256], strides = [1, 1, 1]} : vector<8x8x256xf32> to vector<1x1x256xf32>
    %1377 = vector.shape_cast %1376 : vector<1x1x256xf32> to vector<1x256xf32>
    %1378 = vector.broadcast %1377 : vector<1x256xf32> to vector<2x256xf32>
    %1379 = arith.mulf %1375, %1378 : vector<2x256xf32>
    %1380 = arith.addf %1359, %1379 : vector<2x256xf32>
    %1381 = vector.extract_strided_slice %1 {offsets = [5, 0, 0], sizes = [1, 2, 256], strides = [1, 1, 1]} : vector<8x2x256xf32> to vector<1x2x256xf32>
    %1382 = vector.shape_cast %1381 : vector<1x2x256xf32> to vector<2x256xf32>
    %1383 = vector.extract_strided_slice %3 {offsets = [5, 7, 0], sizes = [1, 1, 256], strides = [1, 1, 1]} : vector<8x8x256xf32> to vector<1x1x256xf32>
    %1384 = vector.shape_cast %1383 : vector<1x1x256xf32> to vector<1x256xf32>
    %1385 = vector.broadcast %1384 : vector<1x256xf32> to vector<2x256xf32>
    %1386 = arith.mulf %1382, %1385 : vector<2x256xf32>
    %1387 = arith.addf %1366, %1386 : vector<2x256xf32>
    %1388 = vector.extract_strided_slice %4 {offsets = [5, 0, 0], sizes = [1, 2, 256], strides = [1, 1, 1]} : vector<8x2x256xf32> to vector<1x2x256xf32>
    %1389 = vector.shape_cast %1388 : vector<1x2x256xf32> to vector<2x256xf32>
    %1390 = vector.extract_strided_slice %5 {offsets = [5, 7, 0], sizes = [1, 1, 256], strides = [1, 1, 1]} : vector<8x8x256xf32> to vector<1x1x256xf32>
    %1391 = vector.shape_cast %1390 : vector<1x1x256xf32> to vector<1x256xf32>
    %1392 = vector.broadcast %1391 : vector<1x256xf32> to vector<2x256xf32>
    %1393 = arith.mulf %1389, %1392 : vector<2x256xf32>
    %1394 = arith.addf %1373, %1393 : vector<2x256xf32>
    %1395 = vector.extract_strided_slice %0 {offsets = [6, 0, 0], sizes = [1, 2, 256], strides = [1, 1, 1]} : vector<8x2x256xf32> to vector<1x2x256xf32>
    %1396 = vector.shape_cast %1395 : vector<1x2x256xf32> to vector<2x256xf32>
    %1397 = vector.extract_strided_slice %2 {offsets = [6, 7, 0], sizes = [1, 1, 256], strides = [1, 1, 1]} : vector<8x8x256xf32> to vector<1x1x256xf32>
    %1398 = vector.shape_cast %1397 : vector<1x1x256xf32> to vector<1x256xf32>
    %1399 = vector.broadcast %1398 : vector<1x256xf32> to vector<2x256xf32>
    %1400 = arith.mulf %1396, %1399 : vector<2x256xf32>
    %1401 = arith.addf %1380, %1400 : vector<2x256xf32>
    %1402 = vector.extract_strided_slice %1 {offsets = [6, 0, 0], sizes = [1, 2, 256], strides = [1, 1, 1]} : vector<8x2x256xf32> to vector<1x2x256xf32>
    %1403 = vector.shape_cast %1402 : vector<1x2x256xf32> to vector<2x256xf32>
    %1404 = vector.extract_strided_slice %3 {offsets = [6, 7, 0], sizes = [1, 1, 256], strides = [1, 1, 1]} : vector<8x8x256xf32> to vector<1x1x256xf32>
    %1405 = vector.shape_cast %1404 : vector<1x1x256xf32> to vector<1x256xf32>
    %1406 = vector.broadcast %1405 : vector<1x256xf32> to vector<2x256xf32>
    %1407 = arith.mulf %1403, %1406 : vector<2x256xf32>
    %1408 = arith.addf %1387, %1407 : vector<2x256xf32>
    %1409 = vector.extract_strided_slice %4 {offsets = [6, 0, 0], sizes = [1, 2, 256], strides = [1, 1, 1]} : vector<8x2x256xf32> to vector<1x2x256xf32>
    %1410 = vector.shape_cast %1409 : vector<1x2x256xf32> to vector<2x256xf32>
    %1411 = vector.extract_strided_slice %5 {offsets = [6, 7, 0], sizes = [1, 1, 256], strides = [1, 1, 1]} : vector<8x8x256xf32> to vector<1x1x256xf32>
    %1412 = vector.shape_cast %1411 : vector<1x1x256xf32> to vector<1x256xf32>
    %1413 = vector.broadcast %1412 : vector<1x256xf32> to vector<2x256xf32>
    %1414 = arith.mulf %1410, %1413 : vector<2x256xf32>
    %1415 = arith.addf %1394, %1414 : vector<2x256xf32>
    %1416 = vector.extract_strided_slice %0 {offsets = [7, 0, 0], sizes = [1, 2, 256], strides = [1, 1, 1]} : vector<8x2x256xf32> to vector<1x2x256xf32>
    %1417 = vector.shape_cast %1416 : vector<1x2x256xf32> to vector<2x256xf32>
    %1418 = vector.extract_strided_slice %2 {offsets = [7, 7, 0], sizes = [1, 1, 256], strides = [1, 1, 1]} : vector<8x8x256xf32> to vector<1x1x256xf32>
    %1419 = vector.shape_cast %1418 : vector<1x1x256xf32> to vector<1x256xf32>
    %1420 = vector.broadcast %1419 : vector<1x256xf32> to vector<2x256xf32>
    %1421 = arith.mulf %1417, %1420 : vector<2x256xf32>
    %1422 = arith.addf %1401, %1421 : vector<2x256xf32>
    %1423 = vector.extract_strided_slice %1 {offsets = [7, 0, 0], sizes = [1, 2, 256], strides = [1, 1, 1]} : vector<8x2x256xf32> to vector<1x2x256xf32>
    %1424 = vector.shape_cast %1423 : vector<1x2x256xf32> to vector<2x256xf32>
    %1425 = vector.extract_strided_slice %3 {offsets = [7, 7, 0], sizes = [1, 1, 256], strides = [1, 1, 1]} : vector<8x8x256xf32> to vector<1x1x256xf32>
    %1426 = vector.shape_cast %1425 : vector<1x1x256xf32> to vector<1x256xf32>
    %1427 = vector.broadcast %1426 : vector<1x256xf32> to vector<2x256xf32>
    %1428 = arith.mulf %1424, %1427 : vector<2x256xf32>
    %1429 = arith.addf %1408, %1428 : vector<2x256xf32>
    %1430 = vector.extract_strided_slice %4 {offsets = [7, 0, 0], sizes = [1, 2, 256], strides = [1, 1, 1]} : vector<8x2x256xf32> to vector<1x2x256xf32>
    %1431 = vector.shape_cast %1430 : vector<1x2x256xf32> to vector<2x256xf32>
    %1432 = vector.extract_strided_slice %5 {offsets = [7, 7, 0], sizes = [1, 1, 256], strides = [1, 1, 1]} : vector<8x8x256xf32> to vector<1x1x256xf32>
    %1433 = vector.shape_cast %1432 : vector<1x1x256xf32> to vector<1x256xf32>
    %1434 = vector.broadcast %1433 : vector<1x256xf32> to vector<2x256xf32>
    %1435 = arith.mulf %1431, %1434 : vector<2x256xf32>
    %1436 = arith.addf %1415, %1435 : vector<2x256xf32>
    %1437 = arith.subf %1422, %1429 : vector<2x256xf32>
    %c7 = arith.constant 7 : index
    %c0_70 = arith.constant 0 : index
    %c0_71 = arith.constant 0 : index
    %1438 = vector.load %arg5[%c7, %c0_70, %c0_71] : memref<8x2x256xf32, #tpu.memory_space<vmem>>, vector<1x2x256xf32>
    %1439 = vector.shape_cast %1438 : vector<1x2x256xf32> to vector<2x256xf32>
    %1440 = vector.shape_cast %1437 : vector<2x256xf32> to vector<1x2x256xf32>
    tpu.vector_store %arg5[%c7, %c0_70, %c0_71], %1440 {strides = array<i32>} : memref<8x2x256xf32, #tpu.memory_space<vmem>>, vector<1x2x256xf32>,
    %1441 = arith.subf %1436, %1422 : vector<2x256xf32>
    %1442 = arith.subf %1441, %1429 : vector<2x256xf32>
    %c7_72 = arith.constant 7 : index
    %c0_73 = arith.constant 0 : index
    %c0_74 = arith.constant 0 : index
    %1443 = vector.load %arg6[%c7_72, %c0_73, %c0_74] : memref<8x2x256xf32, #tpu.memory_space<vmem>>, vector<1x2x256xf32>
    %1444 = vector.shape_cast %1443 : vector<1x2x256xf32> to vector<2x256xf32>
    %1445 = vector.shape_cast %1442 : vector<2x256xf32> to vector<1x2x256xf32>
    tpu.vector_store %arg6[%c7_72, %c0_73, %c0_74], %1445 {strides = array<i32>} : memref<8x2x256xf32, #tpu.memory_space<vmem>>, vector<1x2x256xf32>,
    return
  }
  func.func @transform_0(%arg0: i32) -> (i32, i32, i32) {
    %c0_i32 = arith.constant 0 : i32
    %c0_i32_0 = arith.constant 0 : i32
    %c0_i32_1 = arith.constant 0 : i32
    return %c0_i32, %c0_i32_0, %arg0 : i32, i32, i32
  }
  func.func @transform_1(%arg0: i32) -> (i32, i32, i32) {
    %c0_i32 = arith.constant 0 : i32
    %c0_i32_0 = arith.constant 0 : i32
    %c0_i32_1 = arith.constant 0 : i32
    return %c0_i32, %c0_i32_0, %arg0 : i32, i32, i32
  }
  func.func @transform_2(%arg0: i32) -> (i32, i32, i32) {
    %c0_i32 = arith.constant 0 : i32
    %c0_i32_0 = arith.constant 0 : i32
    %c0_i32_1 = arith.constant 0 : i32
    return %c0_i32, %c0_i32_0, %arg0 : i32, i32, i32
  }
  func.func @transform_3(%arg0: i32) -> (i32, i32, i32) {
    %c0_i32 = arith.constant 0 : i32
    %c0_i32_0 = arith.constant 0 : i32
    %c0_i32_1 = arith.constant 0 : i32
    return %c0_i32, %c0_i32_0, %arg0 : i32, i32, i32
  }
  func.func @transform_4(%arg0: i32) -> (i32, i32, i32) {
    %c0_i32 = arith.constant 0 : i32
    %c0_i32_0 = arith.constant 0 : i32
    %c0_i32_1 = arith.constant 0 : i32
    return %c0_i32, %c0_i32_0, %arg0 : i32, i32, i32
  }
  func.func @transform_5(%arg0: i32) -> (i32, i32, i32) {
    %c0_i32 = arith.constant 0 : i32
    %c0_i32_0 = arith.constant 0 : i32
    %c0_i32_1 = arith.constant 0 : i32
    return %c0_i32, %c0_i32_0, %arg0 : i32, i32, i32
  }
}

module attributes {stable_mosaic.version = 11 : i64} {
  func.func @_linear_t_add_kernel(%arg0: i32, %arg1: memref<8x1024xbf16, #tpu.memory_space<vmem>>, %arg2: memref<8x8xbf16, #tpu.memory_space<vmem>>, %arg3: memref<8x1xf32, #tpu.memory_space<vmem>>, %arg4: memref<8x1024xbf16, #tpu.memory_space<vmem>>, %arg5: memref<8x1024xbf16, #tpu.memory_space<vmem>>) attributes {dimension_semantics = [#tpu.dimension_semantics<parallel>], iteration_bounds = array<i64: 1>, scalar_prefetch = 0 : i64, scratch_operands = 0 : i64, tpu.core_type = #tpu.core_type<tc>, window_params = [{transform_indices = @transform_0, window_bounds = array<i64: 8, 1024>}, {pipeline_mode = #tpu.pipeline_mode<synchronous>, transform_indices = @transform_1, window_bounds = array<i64: 8, 8>}, {pipeline_mode = #tpu.pipeline_mode<synchronous>, transform_indices = @transform_2, window_bounds = array<i64: 8, 1>}, {transform_indices = @transform_3, window_bounds = array<i64: 8, 1024>}, {transform_indices = @transform_4, window_bounds = array<i64: 8, 1024>}]} {
    %c0 = arith.constant 0 : index
    %c0_0 = arith.constant 0 : index
    %0 = vector.load %arg2[%c0, %c0_0] : memref<8x8xbf16, #tpu.memory_space<vmem>>, vector<8x8xbf16>
    %c0_1 = arith.constant 0 : index
    %c0_2 = arith.constant 0 : index
    %1 = vector.load %arg1[%c0_1, %c0_2] : memref<8x1024xbf16, #tpu.memory_space<vmem>>, vector<8x1024xbf16>
    %cst = arith.constant dense<0.000000e+00> : vector<8x1024xf32>
    %2 = tpu.matmul %0, %1, %cst {dimension_numbers = #tpu.dot_dimension_numbers<[1], [0], [0], [1], [0, 0, 1, 1], [], []>} : vector<8x8xbf16>, vector<8x1024xbf16>, vector<8x1024xf32> -> vector<8x1024xf32>
    %c0_3 = arith.constant 0 : index
    %c0_4 = arith.constant 0 : index
    %3 = vector.load %arg3[%c0_3, %c0_4] : memref<8x1xf32, #tpu.memory_space<vmem>>, vector<8x1xf32>
    %4 = vector.broadcast %3 : vector<8x1xf32> to vector<8x1024xf32>
    %5 = arith.addf %2, %4 : vector<8x1024xf32>
    %c0_5 = arith.constant 0 : index
    %c0_6 = arith.constant 0 : index
    %6 = vector.load %arg4[%c0_5, %c0_6] : memref<8x1024xbf16, #tpu.memory_space<vmem>>, vector<8x1024xbf16>
    %7 = arith.extf %6 : vector<8x1024xbf16> to vector<8x1024xf32>
    %8 = arith.addf %5, %7 : vector<8x1024xf32>
    %cst_7 = arith.constant 5.000000e-01 : f32
    %9 = vector.broadcast %cst_7 : f32 to vector<8x1024xf32>
    %10 = arith.mulf %9, %8 : vector<8x1024xf32>
    %cst_8 = arith.constant 4.471500e-02 : f32
    %11 = vector.broadcast %cst_8 : f32 to vector<8x1024xf32>
    %12 = arith.mulf %11, %8 : vector<8x1024xf32>
    %13 = arith.mulf %12, %8 : vector<8x1024xf32>
    %14 = arith.mulf %13, %8 : vector<8x1024xf32>
    %15 = arith.addf %8, %14 : vector<8x1024xf32>
    %cst_9 = arith.constant 0.797884583 : f32
    %16 = vector.broadcast %cst_9 : f32 to vector<8x1024xf32>
    %17 = arith.mulf %16, %15 : vector<8x1024xf32>
    %18 = math.tanh %17 : vector<8x1024xf32>
    %cst_10 = arith.constant 1.000000e+00 : f32
    %19 = vector.broadcast %cst_10 : f32 to vector<8x1024xf32>
    %20 = arith.addf %19, %18 : vector<8x1024xf32>
    %21 = arith.mulf %10, %20 : vector<8x1024xf32>
    %22 = arith.truncf %21 : vector<8x1024xf32> to vector<8x1024xbf16>
    %c0_11 = arith.constant 0 : index
    %c0_12 = arith.constant 0 : index
    %23 = vector.load %arg5[%c0_11, %c0_12] : memref<8x1024xbf16, #tpu.memory_space<vmem>>, vector<8x1024xbf16>
    tpu.vector_store %arg5[%c0_11, %c0_12], %22 {strides = array<i32>} : memref<8x1024xbf16, #tpu.memory_space<vmem>>, vector<8x1024xbf16>,
    return
  }
  func.func @transform_0(%arg0: i32) -> (i32, i32) {
    %c0_i32 = arith.constant 0 : i32
    %c0_i32_0 = arith.constant 0 : i32
    return %c0_i32, %arg0 : i32, i32
  }
  func.func @transform_1(%arg0: i32) -> (i32, i32) {
    %c0_i32 = arith.constant 0 : i32
    %c0_i32_0 = arith.constant 0 : i32
    %c0_i32_1 = arith.constant 0 : i32
    return %c0_i32, %c0_i32_0 : i32, i32
  }
  func.func @transform_2(%arg0: i32) -> (i32, i32) {
    %c0_i32 = arith.constant 0 : i32
    %c0_i32_0 = arith.constant 0 : i32
    %c0_i32_1 = arith.constant 0 : i32
    return %c0_i32, %c0_i32_0 : i32, i32
  }
  func.func @transform_3(%arg0: i32) -> (i32, i32) {
    %c0_i32 = arith.constant 0 : i32
    %c0_i32_0 = arith.constant 0 : i32
    return %c0_i32, %arg0 : i32, i32
  }
  func.func @transform_4(%arg0: i32) -> (i32, i32) {
    %c0_i32 = arith.constant 0 : i32
    %c0_i32_0 = arith.constant 0 : i32
    return %c0_i32, %arg0 : i32, i32
  }
}

module attributes {stable_mosaic.version = 11 : i64} {
  func.func @_linear_t_add_kernel(%arg0: i32, %arg1: memref<8x1024xbf16, #tpu.memory_space<vmem>>, %arg2: memref<8x8xbf16, #tpu.memory_space<vmem>>, %arg3: memref<8x1xf32, #tpu.memory_space<vmem>>, %arg4: memref<8x1024xbf16, #tpu.memory_space<vmem>>, %arg5: memref<8x1024xbf16, #tpu.memory_space<vmem>>) attributes {dimension_semantics = [#tpu.dimension_semantics<parallel>], iteration_bounds = array<i64: 1>, scalar_prefetch = 0 : i64, scratch_operands = 0 : i64, tpu.core_type = #tpu.core_type<tc>, window_params = [{transform_indices = @transform_0, window_bounds = array<i64: 8, 1024>}, {pipeline_mode = #tpu.pipeline_mode<synchronous>, transform_indices = @transform_1, window_bounds = array<i64: 8, 8>}, {pipeline_mode = #tpu.pipeline_mode<synchronous>, transform_indices = @transform_2, window_bounds = array<i64: 8, 1>}, {transform_indices = @transform_3, window_bounds = array<i64: 8, 1024>}, {transform_indices = @transform_4, window_bounds = array<i64: 8, 1024>}]} {
    %c0 = arith.constant 0 : index
    %c0_0 = arith.constant 0 : index
    %0 = vector.load %arg2[%c0, %c0_0] : memref<8x8xbf16, #tpu.memory_space<vmem>>, vector<8x8xbf16>
    %c0_1 = arith.constant 0 : index
    %c0_2 = arith.constant 0 : index
    %1 = vector.load %arg1[%c0_1, %c0_2] : memref<8x1024xbf16, #tpu.memory_space<vmem>>, vector<8x1024xbf16>
    %cst = arith.constant dense<0.000000e+00> : vector<8x1024xf32>
    %2 = tpu.matmul %0, %1, %cst {dimension_numbers = #tpu.dot_dimension_numbers<[1], [0], [0], [1], [0, 0, 1, 1], [], []>} : vector<8x8xbf16>, vector<8x1024xbf16>, vector<8x1024xf32> -> vector<8x1024xf32>
    %c0_3 = arith.constant 0 : index
    %c0_4 = arith.constant 0 : index
    %3 = vector.load %arg3[%c0_3, %c0_4] : memref<8x1xf32, #tpu.memory_space<vmem>>, vector<8x1xf32>
    %4 = vector.broadcast %3 : vector<8x1xf32> to vector<8x1024xf32>
    %5 = arith.addf %2, %4 : vector<8x1024xf32>
    %c0_5 = arith.constant 0 : index
    %c0_6 = arith.constant 0 : index
    %6 = vector.load %arg4[%c0_5, %c0_6] : memref<8x1024xbf16, #tpu.memory_space<vmem>>, vector<8x1024xbf16>
    %7 = arith.extf %6 : vector<8x1024xbf16> to vector<8x1024xf32>
    %8 = arith.addf %5, %7 : vector<8x1024xf32>
    %9 = arith.truncf %8 : vector<8x1024xf32> to vector<8x1024xbf16>
    %c0_7 = arith.constant 0 : index
    %c0_8 = arith.constant 0 : index
    %10 = vector.load %arg5[%c0_7, %c0_8] : memref<8x1024xbf16, #tpu.memory_space<vmem>>, vector<8x1024xbf16>
    tpu.vector_store %arg5[%c0_7, %c0_8], %9 {strides = array<i32>} : memref<8x1024xbf16, #tpu.memory_space<vmem>>, vector<8x1024xbf16>,
    return
  }
  func.func @transform_0(%arg0: i32) -> (i32, i32) {
    %c0_i32 = arith.constant 0 : i32
    %c0_i32_0 = arith.constant 0 : i32
    return %c0_i32, %arg0 : i32, i32
  }
  func.func @transform_1(%arg0: i32) -> (i32, i32) {
    %c0_i32 = arith.constant 0 : i32
    %c0_i32_0 = arith.constant 0 : i32
    %c0_i32_1 = arith.constant 0 : i32
    return %c0_i32, %c0_i32_0 : i32, i32
  }
  func.func @transform_2(%arg0: i32) -> (i32, i32) {
    %c0_i32 = arith.constant 0 : i32
    %c0_i32_0 = arith.constant 0 : i32
    %c0_i32_1 = arith.constant 0 : i32
    return %c0_i32, %c0_i32_0 : i32, i32
  }
  func.func @transform_3(%arg0: i32) -> (i32, i32) {
    %c0_i32 = arith.constant 0 : i32
    %c0_i32_0 = arith.constant 0 : i32
    return %c0_i32, %arg0 : i32, i32
  }
  func.func @transform_4(%arg0: i32) -> (i32, i32) {
    %c0_i32 = arith.constant 0 : i32
    %c0_i32_0 = arith.constant 0 : i32
    return %c0_i32, %arg0 : i32, i32
  }
}

module attributes {stable_mosaic.version = 11 : i64} {
  func.func @_tail_kernel(%arg0: i32, %arg1: memref<8x2x512xbf16, #tpu.memory_space<vmem>>, %arg2: memref<8x8xf32, #tpu.memory_space<vmem>>, %arg3: memref<8x1xf32, #tpu.memory_space<vmem>>, %arg4: memref<128x8xf32, #tpu.memory_space<vmem>>, %arg5: memref<128x1xf32, #tpu.memory_space<vmem>>, %arg6: memref<64x128xf32, #tpu.memory_space<vmem>>, %arg7: memref<64x1xf32, #tpu.memory_space<vmem>>, %arg8: memref<3x64xf32, #tpu.memory_space<vmem>>, %arg9: memref<3x1xf32, #tpu.memory_space<vmem>>, %arg10: memref<3x2xf32, #tpu.memory_space<vmem>>, %arg11: memref<8x2xf32, #tpu.memory_space<vmem>>) attributes {dimension_semantics = [#tpu.dimension_semantics<arbitrary>], iteration_bounds = array<i64: 1>, scalar_prefetch = 0 : i64, scratch_operands = 1 : i64, tpu.core_type = #tpu.core_type<tc>, window_params = [{transform_indices = @transform_0, window_bounds = array<i64: 8, 2, 512>}, {pipeline_mode = #tpu.pipeline_mode<synchronous>, transform_indices = @transform_1, window_bounds = array<i64: 8, 8>}, {pipeline_mode = #tpu.pipeline_mode<synchronous>, transform_indices = @transform_2, window_bounds = array<i64: 8, 1>}, {pipeline_mode = #tpu.pipeline_mode<synchronous>, transform_indices = @transform_3, window_bounds = array<i64: 128, 8>}, {pipeline_mode = #tpu.pipeline_mode<synchronous>, transform_indices = @transform_4, window_bounds = array<i64: 128, 1>}, {pipeline_mode = #tpu.pipeline_mode<synchronous>, transform_indices = @transform_5, window_bounds = array<i64: 64, 128>}, {pipeline_mode = #tpu.pipeline_mode<synchronous>, transform_indices = @transform_6, window_bounds = array<i64: 64, 1>}, {pipeline_mode = #tpu.pipeline_mode<synchronous>, transform_indices = @transform_7, window_bounds = array<i64: 3, 64>}, {pipeline_mode = #tpu.pipeline_mode<synchronous>, transform_indices = @transform_8, window_bounds = array<i64: 3, 1>}, {pipeline_mode = #tpu.pipeline_mode<synchronous>, transform_indices = @transform_9, window_bounds = array<i64: 3, 2>}]} {
    %c0_i32 = arith.constant 0 : i32
    %0 = arith.cmpi eq, %arg0, %c0_i32 : i32
    %1 = arith.extui %0 : i1 to i32
    %c0_i32_0 = arith.constant 0 : i32
    %2 = arith.cmpi ne, %1, %c0_i32_0 : i32
    scf.if %2 {
      %cst_11 = arith.constant 0.000000e+00 : f32
      %20 = vector.broadcast %cst_11 : f32 to vector<8x2xf32>
      %c0_12 = arith.constant 0 : index
      %c0_13 = arith.constant 0 : index
      %21 = vector.load %arg11[%c0_12, %c0_13] : memref<8x2xf32, #tpu.memory_space<vmem>>, vector<8x2xf32>
      tpu.vector_store %arg11[%c0_12, %c0_13], %20 {strides = array<i32>} : memref<8x2xf32, #tpu.memory_space<vmem>>, vector<8x2xf32>,
    } else {
    }
    %c0 = arith.constant 0 : index
    %c0_1 = arith.constant 0 : index
    %c0_2 = arith.constant 0 : index
    %3 = vector.load %arg1[%c0, %c0_1, %c0_2] : memref<8x2x512xbf16, #tpu.memory_space<vmem>>, vector<8x2x512xbf16>
    %4 = arith.extf %3 : vector<8x2x512xbf16> to vector<8x2x512xf32>
    %5 = tpu.iota {dimensions = array<i32: 2>} : vector<8x2x512xi32>
    %c512_i32 = arith.constant 512 : i32
    %6 = arith.muli %arg0, %c512_i32 : i32
    %7 = vector.broadcast %6 : i32 to vector<8x2x512xi32>
    %8 = arith.addi %5, %7 : vector<8x2x512xi32>
    %c512_i32_3 = arith.constant 512 : i32
    %9 = vector.broadcast %c512_i32_3 : i32 to vector<8x2x512xi32>
    %10 = arith.cmpi slt, %8, %9 : vector<8x2x512xi32>
    %cst = arith.constant 0.000000e+00 : f32
    %11 = vector.broadcast %cst : f32 to vector<8x2x512xf32>
    %12 = arith.select %10, %4, %11 : vector<8x2x512xi1>, vector<8x2x512xf32>
    %c0_4 = arith.constant 0 : index
    %c0_5 = arith.constant 0 : index
    %13 = vector.load %arg11[%c0_4, %c0_5] : memref<8x2xf32, #tpu.memory_space<vmem>>, vector<8x2xf32>
    %cst_6 = arith.constant dense<0.000000e+00> : vector<8x2xf32>
    %14 = vector.multi_reduction <add>, %12, %cst_6 [2] : vector<8x2x512xf32> to vector<8x2xf32>
    %15 = arith.addf %13, %14 : vector<8x2xf32>
    %c0_7 = arith.constant 0 : index
    %c0_8 = arith.constant 0 : index
    %16 = vector.load %arg11[%c0_7, %c0_8] : memref<8x2xf32, #tpu.memory_space<vmem>>, vector<8x2xf32>
    tpu.vector_store %arg11[%c0_7, %c0_8], %15 {strides = array<i32>} : memref<8x2xf32, #tpu.memory_space<vmem>>, vector<8x2xf32>,
    %c0_i32_9 = arith.constant 0 : i32
    %17 = arith.cmpi eq, %arg0, %c0_i32_9 : i32
    %18 = arith.extui %17 : i1 to i32
    %c0_i32_10 = arith.constant 0 : i32
    %19 = arith.cmpi ne, %18, %c0_i32_10 : i32
    scf.if %19 {
      %c0_11 = arith.constant 0 : index
      %c0_12 = arith.constant 0 : index
      %20 = vector.load %arg11[%c0_11, %c0_12] : memref<8x2xf32, #tpu.memory_space<vmem>>, vector<8x2xf32>
      %cst_13 = arith.constant 0.001953125 : f32
      %21 = vector.broadcast %cst_13 : f32 to vector<8x2xf32>
      %22 = arith.mulf %20, %21 : vector<8x2xf32>
      %c0_14 = arith.constant 0 : index
      %c0_15 = arith.constant 0 : index
      %23 = vector.load %arg2[%c0_14, %c0_15] : memref<8x8xf32, #tpu.memory_space<vmem>>, vector<8x8xf32>
      %cst_16 = arith.constant dense<0.000000e+00> : vector<8x2xf32>
      %24 = tpu.matmul %23, %22, %cst_16 {dimension_numbers = #tpu.dot_dimension_numbers<[1], [0], [0], [1], [0, 0, 1, 1], [], []>} : vector<8x8xf32>, vector<8x2xf32>, vector<8x2xf32> -> vector<8x2xf32>
      %c0_17 = arith.constant 0 : index
      %c0_18 = arith.constant 0 : index
      %25 = vector.load %arg3[%c0_17, %c0_18] : memref<8x1xf32, #tpu.memory_space<vmem>>, vector<8x1xf32>
      %26 = vector.broadcast %25 : vector<8x1xf32> to vector<8x2xf32>
      %27 = arith.addf %24, %26 : vector<8x2xf32>
      %c0_19 = arith.constant 0 : index
      %c0_20 = arith.constant 0 : index
      %28 = vector.load %arg4[%c0_19, %c0_20] : memref<128x8xf32, #tpu.memory_space<vmem>>, vector<128x8xf32>
      %cst_21 = arith.constant dense<0.000000e+00> : vector<128x2xf32>
      %29 = tpu.matmul %28, %27, %cst_21 {dimension_numbers = #tpu.dot_dimension_numbers<[1], [0], [0], [1], [0, 0, 1, 1], [], []>} : vector<128x8xf32>, vector<8x2xf32>, vector<128x2xf32> -> vector<128x2xf32>
      %c0_22 = arith.constant 0 : index
      %c0_23 = arith.constant 0 : index
      %30 = vector.load %arg5[%c0_22, %c0_23] : memref<128x1xf32, #tpu.memory_space<vmem>>, vector<128x1xf32>
      %31 = vector.broadcast %30 : vector<128x1xf32> to vector<128x2xf32>
      %32 = arith.addf %29, %31 : vector<128x2xf32>
      %cst_24 = arith.constant 0.000000e+00 : f32
      %33 = vector.broadcast %cst_24 : f32 to vector<128x2xf32>
      %34 = arith.maximumf %32, %33 : vector<128x2xf32>
      %c0_25 = arith.constant 0 : index
      %c0_26 = arith.constant 0 : index
      %35 = vector.load %arg6[%c0_25, %c0_26] : memref<64x128xf32, #tpu.memory_space<vmem>>, vector<64x128xf32>
      %cst_27 = arith.constant dense<0.000000e+00> : vector<64x2xf32>
      %36 = tpu.matmul %35, %34, %cst_27 {dimension_numbers = #tpu.dot_dimension_numbers<[1], [0], [0], [1], [0, 0, 1, 1], [], []>} : vector<64x128xf32>, vector<128x2xf32>, vector<64x2xf32> -> vector<64x2xf32>
      %c0_28 = arith.constant 0 : index
      %c0_29 = arith.constant 0 : index
      %37 = vector.load %arg7[%c0_28, %c0_29] : memref<64x1xf32, #tpu.memory_space<vmem>>, vector<64x1xf32>
      %38 = vector.broadcast %37 : vector<64x1xf32> to vector<64x2xf32>
      %39 = arith.addf %36, %38 : vector<64x2xf32>
      %cst_30 = arith.constant 0.000000e+00 : f32
      %40 = vector.broadcast %cst_30 : f32 to vector<64x2xf32>
      %41 = arith.maximumf %39, %40 : vector<64x2xf32>
      %c0_31 = arith.constant 0 : index
      %c0_32 = arith.constant 0 : index
      %42 = vector.load %arg8[%c0_31, %c0_32] : memref<3x64xf32, #tpu.memory_space<vmem>>, vector<3x64xf32>
      %cst_33 = arith.constant dense<0.000000e+00> : vector<3x2xf32>
      %43 = tpu.matmul %42, %41, %cst_33 {dimension_numbers = #tpu.dot_dimension_numbers<[1], [0], [0], [1], [0, 0, 1, 1], [], []>} : vector<3x64xf32>, vector<64x2xf32>, vector<3x2xf32> -> vector<3x2xf32>
      %c0_34 = arith.constant 0 : index
      %c0_35 = arith.constant 0 : index
      %44 = vector.load %arg9[%c0_34, %c0_35] : memref<3x1xf32, #tpu.memory_space<vmem>>, vector<3x1xf32>
      %45 = vector.broadcast %44 : vector<3x1xf32> to vector<3x2xf32>
      %46 = arith.addf %43, %45 : vector<3x2xf32>
      %c0_36 = arith.constant 0 : index
      %c0_37 = arith.constant 0 : index
      %47 = vector.load %arg10[%c0_36, %c0_37] : memref<3x2xf32, #tpu.memory_space<vmem>>, vector<3x2xf32>
      tpu.vector_store %arg10[%c0_36, %c0_37], %46 {strides = array<i32>} : memref<3x2xf32, #tpu.memory_space<vmem>>, vector<3x2xf32>,
    } else {
    }
    return
  }
  func.func @transform_0(%arg0: i32) -> (i32, i32, i32) {
    %c0_i32 = arith.constant 0 : i32
    %c0_i32_0 = arith.constant 0 : i32
    %c0_i32_1 = arith.constant 0 : i32
    return %c0_i32, %c0_i32_0, %arg0 : i32, i32, i32
  }
  func.func @transform_1(%arg0: i32) -> (i32, i32) {
    %c0_i32 = arith.constant 0 : i32
    %c0_i32_0 = arith.constant 0 : i32
    %c0_i32_1 = arith.constant 0 : i32
    return %c0_i32, %c0_i32_0 : i32, i32
  }
  func.func @transform_2(%arg0: i32) -> (i32, i32) {
    %c0_i32 = arith.constant 0 : i32
    %c0_i32_0 = arith.constant 0 : i32
    %c0_i32_1 = arith.constant 0 : i32
    return %c0_i32, %c0_i32_0 : i32, i32
  }
  func.func @transform_3(%arg0: i32) -> (i32, i32) {
    %c0_i32 = arith.constant 0 : i32
    %c0_i32_0 = arith.constant 0 : i32
    %c0_i32_1 = arith.constant 0 : i32
    return %c0_i32, %c0_i32_0 : i32, i32
  }
  func.func @transform_4(%arg0: i32) -> (i32, i32) {
    %c0_i32 = arith.constant 0 : i32
    %c0_i32_0 = arith.constant 0 : i32
    %c0_i32_1 = arith.constant 0 : i32
    return %c0_i32, %c0_i32_0 : i32, i32
  }
  func.func @transform_5(%arg0: i32) -> (i32, i32) {
    %c0_i32 = arith.constant 0 : i32
    %c0_i32_0 = arith.constant 0 : i32
    %c0_i32_1 = arith.constant 0 : i32
    return %c0_i32, %c0_i32_0 : i32, i32
  }
  func.func @transform_6(%arg0: i32) -> (i32, i32) {
    %c0_i32 = arith.constant 0 : i32
    %c0_i32_0 = arith.constant 0 : i32
    %c0_i32_1 = arith.constant 0 : i32
    return %c0_i32, %c0_i32_0 : i32, i32
  }
  func.func @transform_7(%arg0: i32) -> (i32, i32) {
    %c0_i32 = arith.constant 0 : i32
    %c0_i32_0 = arith.constant 0 : i32
    %c0_i32_1 = arith.constant 0 : i32
    return %c0_i32, %c0_i32_0 : i32, i32
  }
  func.func @transform_8(%arg0: i32) -> (i32, i32) {
    %c0_i32 = arith.constant 0 : i32
    %c0_i32_0 = arith.constant 0 : i32
    %c0_i32_1 = arith.constant 0 : i32
    return %c0_i32, %c0_i32_0 : i32, i32
  }
  func.func @transform_9(%arg0: i32) -> (i32, i32) {
    %c0_i32 = arith.constant 0 : i32
    %c0_i32_0 = arith.constant 0 : i32
    %c0_i32_1 = arith.constant 0 : i32
    return %c0_i32, %c0_i32_0 : i32, i32
  }
}

</mosaic_0001>

<llo_original>
// kernel: inverse_pino_forward.10
$region0: #{inverse_pino_forward.10}
  #allocation0 [shape = 'u32[]', space=smem, size = 0x4, offset = 0x4, fixed_abs, tag = 'smem constant byte address 0x4 - core index']
  #allocation1 [shape = 'u32[144,128]{1,0:T(1,128)}', space=vmem, size = 0x12000, scoped, tag = 'internal scratch']
  %s0 = inlined_call_operand.vmem [shape: bf16[2,1024], index: 0, kind: input, shape index: {}]
  %s1 = inlined_call_operand.vmem [shape: bf16[8,2], index: 1, kind: input, shape index: {}]
  %s2 = inlined_call_operand.vmem [shape: f32[8,1], index: 2, kind: input, shape index: {}]
  %s3 = inlined_call_operand.vmem [shape: bf16[8,1024], index: 3, kind: output, shape index: {}]
  %s4 = sld [smem:[#allocation0]]
  $region22: #{inverse_pino_forward.10} parent=0
    _
  %s6 = ssub.s32 1, %s4
  %s7 = scalar_select 0, %s6, %s4
  // Predicated region
  $region2: #{inverse_pino_forward.10} parent=0 // pred_check
    _
  $region3: #{inverse_pino_forward.10} parent=0 // pred_check_branch
    %9 = sbr.rel (0) target = $region5
  $region4: #{inverse_pino_forward.10} parent=0 // pred_region
    _
  $region5: #{inverse_pino_forward.10} parent=0 // pred_fallthru
    _
  // Predicated region
  $region6: #{inverse_pino_forward.10} parent=0 // pred_check
    _
  $region7: #{inverse_pino_forward.10} parent=0 // pred_check_branch
    %11 = sbr.rel (0) target = $region9
  $region8: #{inverse_pino_forward.10} parent=0 // pred_region
    _
  $region9: #{inverse_pino_forward.10} parent=0 // pred_fallthru
    _
  // Predicated region
  $region10: #{inverse_pino_forward.10} parent=0 // pred_check
    _
  $region11: #{inverse_pino_forward.10} parent=0 // pred_check_branch
    %13 = sbr.rel (0) target = $region13
  $region12: #{inverse_pino_forward.10} parent=0 // pred_region
    _
  $region13: #{inverse_pino_forward.10} parent=0 // pred_fallthru
    _
  %v15 = vld [vmem:[%s1] sm:$0xf]
  %v16 = vld [vmem:[%s0] sm:$0xff]
  %v17 = vld [vmem:[%s2] sm:$0xff]
  %19 = vset.pattern.permute.xlu0 0
  %20 = vperm.xlu0 %19, %v17
  %v21 = vpop.permute.xlu0 %20
  %v24 = vcombine.high %v16, %v16
  %v26 = vunpack.c.l.s4 1966171168
  %v27 = vunpack.c.0.s8 %v26
  %v28 = vlaneseq
  %v29 = vshrl.u32 %v28, 7
  %v30 = vsub.s32 %v27, %v29
  %v31 = vrot.slane %v16, %v30
  %v33 = vunpack.c.l.s4 1966171168
  %v34 = vunpack.c.0.s8 %v33
  %v35 = vlaneseq
  %v36 = vshrl.u32 %v35, 7
  %v37 = vsub.s32 %v34, %v36
  %v38 = vrot.slane %v24, %v37
  %v39 = vcombine.high %v31, %v31
  %v40 = vcombine.high %v38, %v38
  %v42 = vunpack.c.l.s4 1966171168
  %v43 = vunpack.c.0.s8 %v42
  %v44 = vlaneseq
  %v45 = vshrl.u32 %v44, 7
  %v46 = vsub.s32 %v43, %v45
  %v47 = vrot.slane %v31, %v46
  %v49 = vunpack.c.l.s4 1966171168
  %v50 = vunpack.c.0.s8 %v49
  %v51 = vlaneseq
  %v52 = vshrl.u32 %v51, 7
  %v53 = vsub.s32 %v50, %v52
  %v54 = vrot.slane %v38, %v53
  %v56 = vunpack.c.l.s4 1966171168
  %v57 = vunpack.c.0.s8 %v56
  %v58 = vlaneseq
  %v59 = vshrl.u32 %v58, 7
  %v60 = vsub.s32 %v57, %v59
  %v61 = vrot.slane %v39, %v60
  %v63 = vunpack.c.l.s4 1966171168
  %v64 = vunpack.c.0.s8 %v63
  %v65 = vlaneseq
  %v66 = vshrl.u32 %v65, 7
  %v67 = vsub.s32 %v64, %v66
  %v68 = vrot.slane %v40, %v67
  %v69 = vcombine.high %v47, %v47
  %v70 = vcombine.high %v54, %v54
  %v71 = vcombine.high %v61, %v61
  %v72 = vcombine.high %v68, %v68
  %vm73 = vcmask 15360
  %v75 = vsel %vm73, %v15, 0
  %vm77 = vcmask 1040384
  %v79 = vsel %vm77, %v47, 0
  %v82 = vsel %vm77, %v61, 0
  %v85 = vsel %vm77, %v69, 0
  %v88 = vsel %vm77, %v71, 0
  %v91 = vsel %vm77, %v54, 0
  %v94 = vsel %vm77, %v68, 0
  %v97 = vsel %vm77, %v70, 0
  %v100 = vsel %vm77, %v72, 0
  %102 = vmatprep.subr.bf16.mxu0 0
  %103 = vmatpush1.bf16.msra.mxu0 0
  %104 = vmatprep.subr.bf16.mxu0 0
  %105 = vmatpush1.bf16.msra.mxu0 0
  %106 = vmatprep.subr.bf16.mxu0 0
  %107 = vmatpush1.bf16.msra.mxu0 0
  %108 = vmatprep.subr.bf16.mxu0 0
  %109 = vmatpush1.bf16.msra.mxu0 0
  %110 = vmatprep.subr.bf16.mxu0 0
  %111 = vmatpush1.bf16.msra.mxu0 0
  %112 = vmatprep.subr.bf16.mxu0 0
  %113 = vmatpush1.bf16.msra.mxu0 0
  %114 = vmatprep.subr.bf16.mxu0 0
  %115 = vmatpush1.bf16.msra.mxu0 0
  %116 = vmatprep.subr.bf16.mxu0 %v82
  %117 = vmatpush1.bf16.msra.mxu0 %v79
  %118 = vmatprep.subr.bf16.mxu0 0
  %119 = vmatpush2.bf16.msra.mxu0 0
  %120 = vmatprep.subr.bf16.mxu0 0
  %121 = vmatpush2.bf16.msra.mxu0 0
  %122 = vmatprep.subr.bf16.mxu0 0
  %123 = vmatpush2.bf16.msra.mxu0 0
  %124 = vmatprep.subr.bf16.mxu0 0
  %125 = vmatpush2.bf16.msra.mxu0 0
  %126 = vmatprep.subr.bf16.mxu0 0
  %127 = vmatpush2.bf16.msra.mxu0 0
  %128 = vmatprep.subr.bf16.mxu0 0
  %129 = vmatpush2.bf16.msra.mxu0 0
  %130 = vmatprep.subr.bf16.mxu0 0
  %131 = vmatpush2.bf16.msra.mxu0 0
  %132 = vmatprep.subr.bf16.mxu0 0
  %133 = vmatpush2.bf16.msra.mxu0 0
  %134 = vmatprep.mubr.bf16.mxu0 0
  %135 = vmatmul.mubr.bf16.gmra.mxu0 %v75
  %v136 = vpop.f32.mrf.mxu0
  %v137 = vadd.f32 %v21, %v136
  %v138 = vpop.f32.mrf.mxu0
  %v139 = vadd.f32 %v21, %v138
  %v140 = vpop.f32.mrf.mxu0
  %v141 = vpop.f32.mrf.mxu0
  %142 = vdwg.mxu0
  %143 = vmatprep.subr.bf16.mxu0 0
  %144 = vmatpush1.bf16.msra.mxu0 0
  %145 = vmatprep.subr.bf16.mxu0 0
  %146 = vmatpush1.bf16.msra.mxu0 0
  %147 = vmatprep.subr.bf16.mxu0 0
  %148 = vmatpush1.bf16.msra.mxu0 0
  %149 = vmatprep.subr.bf16.mxu0 0
  %150 = vmatpush1.bf16.msra.mxu0 0
  %151 = vmatprep.subr.bf16.mxu0 0
  %152 = vmatpush1.bf16.msra.mxu0 0
  %153 = vmatprep.subr.bf16.mxu0 0
  %154 = vmatpush1.bf16.msra.mxu0 0
  %155 = vmatprep.subr.bf16.mxu0 0
  %156 = vmatpush1.bf16.msra.mxu0 0
  %157 = vmatprep.subr.bf16.mxu0 %v88
  %158 = vmatpush1.bf16.msra.mxu0 %v85
  %159 = vmatprep.subr.bf16.mxu0 0
  %160 = vmatpush2.bf16.msra.mxu0 0
  %161 = vmatprep.subr.bf16.mxu0 0
  %162 = vmatpush2.bf16.msra.mxu0 0
  %163 = vmatprep.subr.bf16.mxu0 0
  %164 = vmatpush2.bf16.msra.mxu0 0
  %165 = vmatprep.subr.bf16.mxu0 0
  %166 = vmatpush2.bf16.msra.mxu0 0
  %167 = vmatprep.subr.bf16.mxu0 0
  %168 = vmatpush2.bf16.msra.mxu0 0
  %169 = vmatprep.subr.bf16.mxu0 0
  %170 = vmatpush2.bf16.msra.mxu0 0
  %171 = vmatprep.subr.bf16.mxu0 0
  %172 = vmatpush2.bf16.msra.mxu0 0
  %173 = vmatprep.subr.bf16.mxu0 0
  %174 = vmatpush2.bf16.msra.mxu0 0
  %175 = vmatprep.mubr.bf16.mxu0 0
  %176 = vmatmul.mubr.bf16.gmra.mxu0 %v75
  %v177 = vpop.f32.mrf.mxu0
  %v178 = vadd.f32 %v21, %v177
  %v179 = vpop.f32.mrf.mxu0
  %v180 = vadd.f32 %v21, %v179
  %v181 = vpop.f32.mrf.mxu0
  %v182 = vpop.f32.mrf.mxu0
  %183 = vdwg.mxu0
  %184 = vmatprep.subr.bf16.mxu0 0
  %185 = vmatpush1.bf16.msra.mxu0 0
  %186 = vmatprep.subr.bf16.mxu0 0
  %187 = vmatpush1.bf16.msra.mxu0 0
  %188 = vmatprep.subr.bf16.mxu0 0
  %189 = vmatpush1.bf16.msra.mxu0 0
  %190 = vmatprep.subr.bf16.mxu0 0
  %191 = vmatpush1.bf16.msra.mxu0 0
  %192 = vmatprep.subr.bf16.mxu0 0
  %193 = vmatpush1.bf16.msra.mxu0 0
  %194 = vmatprep.subr.bf16.mxu0 0
  %195 = vmatpush1.bf16.msra.mxu0 0
  %196 = vmatprep.subr.bf16.mxu0 0
  %197 = vmatpush1.bf16.msra.mxu0 0
  %198 = vmatprep.subr.bf16.mxu0 %v94
  %199 = vmatpush1.bf16.msra.mxu0 %v91
  %200 = vmatprep.subr.bf16.mxu0 0
  %201 = vmatpush2.bf16.msra.mxu0 0
  %202 = vmatprep.subr.bf16.mxu0 0
  %203 = vmatpush2.bf16.msra.mxu0 0
  %204 = vmatprep.subr.bf16.mxu0 0
  %205 = vmatpush2.bf16.msra.mxu0 0
  %206 = vmatprep.subr.bf16.mxu0 0
  %207 = vmatpush2.bf16.msra.mxu0 0
  %208 = vmatprep.subr.bf16.mxu0 0
  %209 = vmatpush2.bf16.msra.mxu0 0
  %210 = vmatprep.subr.bf16.mxu0 0
  %211 = vmatpush2.bf16.msra.mxu0 0
  %212 = vmatprep.subr.bf16.mxu0 0
  %213 = vmatpush2.bf16.msra.mxu0 0
  %214 = vmatprep.subr.bf16.mxu0 0
  %215 = vmatpush2.bf16.msra.mxu0 0
  %216 = vmatprep.mubr.bf16.mxu0 0
  %217 = vmatmul.mubr.bf16.gmra.mxu0 %v75
  %v218 = vpop.f32.mrf.mxu0
  %v219 = vadd.f32 %v21, %v218
  %v220 = vpop.f32.mrf.mxu0
  %v221 = vadd.f32 %v21, %v220
  %v222 = vpop.f32.mrf.mxu0
  %v223 = vpop.f32.mrf.mxu0
  %224 = vdwg.mxu0
  %225 = vmatprep.subr.bf16.mxu0 0
  %226 = vmatpush1.bf16.msra.mxu0 0
  %227 = vmatprep.subr.bf16.mxu0 0
  %228 = vmatpush1.bf16.msra.mxu0 0
  %229 = vmatprep.subr.bf16.mxu0 0
  %230 = vmatpush1.bf16.msra.mxu0 0
  %231 = vmatprep.subr.bf16.mxu0 0
  %232 = vmatpush1.bf16.msra.mxu0 0
  %233 = vmatprep.subr.bf16.mxu0 0
  %234 = vmatpush1.bf16.msra.mxu0 0
  %235 = vmatprep.subr.bf16.mxu0 0
  %236 = vmatpush1.bf16.msra.mxu0 0
  %237 = vmatprep.subr.bf16.mxu0 0
  %238 = vmatpush1.bf16.msra.mxu0 0
  %239 = vmatprep.subr.bf16.mxu0 %v100
  %240 = vmatpush1.bf16.msra.mxu0 %v97
  %241 = vmatprep.subr.bf16.mxu0 0
  %242 = vmatpush2.bf16.msra.mxu0 0
  %243 = vmatprep.subr.bf16.mxu0 0
  %244 = vmatpush2.bf16.msra.mxu0 0
  %245 = vmatprep.subr.bf16.mxu0 0
  %246 = vmatpush2.bf16.msra.mxu0 0
  %247 = vmatprep.subr.bf16.mxu0 0
  %248 = vmatpush2.bf16.msra.mxu0 0
  %249 = vmatprep.subr.bf16.mxu0 0
  %250 = vmatpush2.bf16.msra.mxu0 0
  %251 = vmatprep.subr.bf16.mxu0 0
  %252 = vmatpush2.bf16.msra.mxu0 0
  %253 = vmatprep.subr.bf16.mxu0 0
  %254 = vmatpush2.bf16.msra.mxu0 0
  %255 = vmatprep.subr.bf16.mxu0 0
  %256 = vmatpush2.bf16.msra.mxu0 0
  %257 = vmatprep.mubr.bf16.mxu0 0
  %258 = vmatmul.mubr.bf16.gmra.mxu0 %v75
  %v259 = vpop.f32.mrf.mxu0
  %v260 = vadd.f32 %v21, %v259
  %v261 = vpop.f32.mrf.mxu0
  %v262 = vadd.f32 %v21, %v261
  %v263 = vpop.f32.mrf.mxu0
  %v264 = vpop.f32.mrf.mxu0
  %265 = vdwg.mxu0
  %v266 = vpack.c.bf16 %v137, %v137
  %v267 = vpack.c.bf16 %v139, %v139
  %v268 = vpack.c.bf16 %v178, %v178
  %v269 = vpack.c.bf16 %v180, %v180
  %v270 = vpack.c.bf16 %v219, %v219
  %v271 = vpack.c.bf16 %v221, %v221
  %v272 = vpack.c.bf16 %v260, %v260
  %v273 = vpack.c.bf16 %v262, %v262
  %v282 = vunpack.c.l.b16 %v266
  %v283 = vunpack.c.l.b16 %v267
  %v284 = vunpack.c.l.b16 %v268
  %v285 = vunpack.c.l.b16 %v269
  %v286 = vunpack.c.l.b16 %v270
  %v287 = vunpack.c.l.b16 %v271
  %v288 = vunpack.c.l.b16 %v272
  %v289 = vunpack.c.l.b16 %v273
  %v290 = vpack.c.b16 %v283, %v282
  %v291 = vpack.c.b16 %v285, %v284
  %v292 = vpack.c.b16 %v287, %v286
  %v293 = vpack.c.b16 %v289, %v288
  %298 = vst [vmem:[%s3] sm:$0xff] %v290
  %299 = vst [vmem:[%s3 + $0x8] sm:$0xff] %v291
  %300 = vst [vmem:[%s3 + $0x10] sm:$0xff] %v292
  %301 = vst [vmem:[%s3 + $0x18] sm:$0xff] %v293
  // Predicated region
  $region14: #{inverse_pino_forward.10} parent=0 // pred_check
    _
  $region15: #{inverse_pino_forward.10} parent=0 // pred_check_branch
    %303 = sbr.rel (0) target = $region17
  $region16: #{inverse_pino_forward.10} parent=0 // pred_region
    _
  $region17: #{inverse_pino_forward.10} parent=0 // pred_fallthru
    _
  // Predicated region
  $region18: #{inverse_pino_forward.10} parent=0 // pred_check
    _
  $region19: #{inverse_pino_forward.10} parent=0 // pred_check_branch
    %305 = sbr.rel (0) target = $region21
  $region20: #{inverse_pino_forward.10} parent=0 // pred_region
    _
  $region21: #{inverse_pino_forward.10} parent=0 // pred_fallthru
    _

// kernel: inverse_pino_forward.11
$region0: #{inverse_pino_forward.11}
  #allocation0 [shape = 'u32[]', space=smem, size = 0x4, offset = 0x4, fixed_abs, tag = 'smem constant byte address 0x4 - core index']
  #allocation1 [shape = 'u32[144,128]{1,0:T(1,128)}', space=vmem, size = 0x12000, scoped, tag = 'internal scratch']
  %s0 = inlined_call_operand.vmem [shape: f32[8,2,256], index: 0, kind: input, shape index: {}]
  %s1 = inlined_call_operand.vmem [shape: f32[8,2,256], index: 1, kind: input, shape index: {}]
  %s2 = inlined_call_operand.vmem [shape: f32[8,8,256], index: 2, kind: input, shape index: {}]
  %s3 = inlined_call_operand.vmem [shape: f32[8,8,256], index: 3, kind: input, shape index: {}]
  %s4 = inlined_call_operand.vmem [shape: f32[8,2,256], index: 4, kind: output, shape index: {0}]
  %s5 = inlined_call_operand.vmem [shape: f32[8,2,256], index: 5, kind: output, shape index: {1}]
  %6 = xla_tuple %s4, %s5
  %s7 = sld [smem:[#allocation0]]
  $region34: #{inverse_pino_forward.11} parent=0
    _
  %s9 = ssub.s32 1, %s7
  %s10 = scalar_select 0, %s9, %s7
  // Predicated region
  $region2: #{inverse_pino_forward.11} parent=0 // pred_check
    _
  $region3: #{inverse_pino_forward.11} parent=0 // pred_check_branch
    %12 = sbr.rel (0) target = $region5
  $region4: #{inverse_pino_forward.11} parent=0 // pred_region
    _
  $region5: #{inverse_pino_forward.11} parent=0 // pred_fallthru
    _
  // Predicated region
  $region6: #{inverse_pino_forward.11} parent=0 // pred_check
    _
  $region7: #{inverse_pino_forward.11} parent=0 // pred_check_branch
    %14 = sbr.rel (0) target = $region9
  $region8: #{inverse_pino_forward.11} parent=0 // pred_region
    _
  $region9: #{inverse_pino_forward.11} parent=0 // pred_fallthru
    _
  // Predicated region
  $region10: #{inverse_pino_forward.11} parent=0 // pred_check
    _
  $region11: #{inverse_pino_forward.11} parent=0 // pred_check_branch
    %16 = sbr.rel (0) target = $region13
  $region12: #{inverse_pino_forward.11} parent=0 // pred_region
    _
  $region13: #{inverse_pino_forward.11} parent=0 // pred_fallthru
    _
  // Predicated region
  $region14: #{inverse_pino_forward.11} parent=0 // pred_check
    _
  $region15: #{inverse_pino_forward.11} parent=0 // pred_check_branch
    %18 = sbr.rel (0) target = $region17
  $region16: #{inverse_pino_forward.11} parent=0 // pred_region
    _
  $region17: #{inverse_pino_forward.11} parent=0 // pred_fallthru
    _
  %v19 = vld [vmem:[%s0] sm:$0xf]
  %v20 = vld [vmem:[%s0 + $0x4] sm:$0xf]
  %v21 = vld [vmem:[%s0 + $0x8] sm:$0xf]
  %v22 = vld [vmem:[%s0 + $0xc] sm:$0xf]
  %v23 = vld [vmem:[%s0 + $0x10] sm:$0xf]
  %v24 = vld [vmem:[%s0 + $0x14] sm:$0xf]
  %v25 = vld [vmem:[%s0 + $0x18] sm:$0xf]
  %v26 = vld [vmem:[%s0 + $0x1c] sm:$0xf]
  %v27 = vld [vmem:[%s1] sm:$0xf]
  %v28 = vld [vmem:[%s1 + $0x4] sm:$0xf]
  %v29 = vld [vmem:[%s1 + $0x8] sm:$0xf]
  %v30 = vld [vmem:[%s1 + $0xc] sm:$0xf]
  %v31 = vld [vmem:[%s1 + $0x10] sm:$0xf]
  %v32 = vld [vmem:[%s1 + $0x14] sm:$0xf]
  %v33 = vld [vmem:[%s1 + $0x18] sm:$0xf]
  %v34 = vld [vmem:[%s1 + $0x1c] sm:$0xf]
  %v35 = vld [vmem:[%s2] sm:$0xff]
  %v36 = vld [vmem:[%s2 + $0x8] sm:$0xff]
  %v37 = vld [vmem:[%s2 + $0x10] sm:$0xff]
  %v38 = vld [vmem:[%s2 + $0x18] sm:$0xff]
  %v39 = vld [vmem:[%s2 + $0x20] sm:$0xff]
  %v40 = vld [vmem:[%s2 + $0x28] sm:$0xff]
  %v41 = vld [vmem:[%s2 + $0x30] sm:$0xff]
  %v42 = vld [vmem:[%s2 + $0x38] sm:$0xff]
  %v43 = vld [vmem:[%s2 + $0x40] sm:$0xff]
  %v44 = vld [vmem:[%s2 + $0x48] sm:$0xff]
  %v45 = vld [vmem:[%s2 + $0x50] sm:$0xff]
  %v46 = vld [vmem:[%s2 + $0x58] sm:$0xff]
  %v47 = vld [vmem:[%s2 + $0x60] sm:$0xff]
  %v48 = vld [vmem:[%s2 + $0x68] sm:$0xff]
  %v49 = vld [vmem:[%s2 + $0x70] sm:$0xff]
  %v50 = vld [vmem:[%s2 + $0x78] sm:$0xff]
  %v51 = vld [vmem:[%s3] sm:$0xff]
  %v52 = vld [vmem:[%s3 + $0x8] sm:$0xff]
  %v53 = vld [vmem:[%s3 + $0x10] sm:$0xff]
  %v54 = vld [vmem:[%s3 + $0x18] sm:$0xff]
  %v55 = vld [vmem:[%s3 + $0x20] sm:$0xff]
  %v56 = vld [vmem:[%s3 + $0x28] sm:$0xff]
  %v57 = vld [vmem:[%s3 + $0x30] sm:$0xff]
  %v58 = vld [vmem:[%s3 + $0x38] sm:$0xff]
  %v59 = vld [vmem:[%s3 + $0x40] sm:$0xff]
  %v60 = vld [vmem:[%s3 + $0x48] sm:$0xff]
  %v61 = vld [vmem:[%s3 + $0x50] sm:$0xff]
  %v62 = vld [vmem:[%s3 + $0x58] sm:$0xff]
  %v63 = vld [vmem:[%s3 + $0x60] sm:$0xff]
  %v64 = vld [vmem:[%s3 + $0x68] sm:$0xff]
  %v65 = vld [vmem:[%s3 + $0x70] sm:$0xff]
  %v66 = vld [vmem:[%s3 + $0x78] sm:$0xff]
  %v67 = vadd.f32 %v19, %v27
  %v68 = vadd.f32 %v20, %v28
  %v69 = vadd.f32 %v21, %v29
  %v70 = vadd.f32 %v22, %v30
  %v71 = vadd.f32 %v23, %v31
  %v72 = vadd.f32 %v24, %v32
  %v73 = vadd.f32 %v25, %v33
  %v74 = vadd.f32 %v26, %v34
  %v75 = vadd.f32 %v35, %v51
  %v76 = vadd.f32 %v36, %v52
  %v77 = vadd.f32 %v37, %v53
  %v78 = vadd.f32 %v38, %v54
  %v79 = vadd.f32 %v39, %v55
  %v80 = vadd.f32 %v40, %v56
  %v81 = vadd.f32 %v41, %v57
  %v82 = vadd.f32 %v42, %v58
  %v83 = vadd.f32 %v43, %v59
  %v84 = vadd.f32 %v44, %v60
  %v85 = vadd.f32 %v45, %v61
  %v86 = vadd.f32 %v46, %v62
  %v87 = vadd.f32 %v47, %v63
  %v88 = vadd.f32 %v48, %v64
  %v89 = vadd.f32 %v49, %v65
  %v90 = vadd.f32 %v50, %v66
  %v91 = vlaneseq
  %v92 = vshrl.u32 %v91, 7
  %v93 = vsub.s32 0, %v92
  %v94 = vrot.slane %v35, %v93
  %v95 = vlaneseq
  %v96 = vshrl.u32 %v95, 7
  %v97 = vsub.s32 0, %v96
  %v98 = vrot.slane %v36, %v97
  %v101 = vcombine.low %v94, %v98
  %v103 = vunpack.c.l.s4 1983009808
  %v104 = vunpack.c.0.s8 %v103
  %v105 = vlaneseq
  %v106 = vshrl.u32 %v105, 7
  %v107 = vsub.s32 %v104, %v106
  %v108 = vrot.slane %v101, %v107
  %v110 = vmul.f32 %v19, %v108
  %v111 = vadd.f32 %v110, 0.0
  %v112 = vlaneseq
  %v113 = vshrl.u32 %v112, 7
  %v114 = vsub.s32 0, %v113
  %v115 = vrot.slane %v51, %v114
  %v116 = vlaneseq
  %v117 = vshrl.u32 %v116, 7
  %v118 = vsub.s32 0, %v117
  %v119 = vrot.slane %v52, %v118
  %v122 = vcombine.low %v115, %v119
  %v124 = vunpack.c.l.s4 1983009808
  %v125 = vunpack.c.0.s8 %v124
  %v126 = vlaneseq
  %v127 = vshrl.u32 %v126, 7
  %v128 = vsub.s32 %v125, %v127
  %v129 = vrot.slane %v122, %v128
  %v131 = vmul.f32 %v27, %v129
  %v132 = vadd.f32 %v131, 0.0
  %v133 = vlaneseq
  %v134 = vshrl.u32 %v133, 7
  %v135 = vsub.s32 0, %v134
  %v136 = vrot.slane %v75, %v135
  %v137 = vlaneseq
  %v138 = vshrl.u32 %v137, 7
  %v139 = vsub.s32 0, %v138
  %v140 = vrot.slane %v76, %v139
  %v143 = vcombine.low %v136, %v140
  %v145 = vunpack.c.l.s4 1983009808
  %v146 = vunpack.c.0.s8 %v145
  %v147 = vlaneseq
  %v148 = vshrl.u32 %v147, 7
  %v149 = vsub.s32 %v146, %v148
  %v150 = vrot.slane %v143, %v149
  %v152 = vmul.f32 %v67, %v150
  %v153 = vadd.f32 %v152, 0.0
  %v154 = vlaneseq
  %v155 = vshrl.u32 %v154, 7
  %v156 = vsub.s32 0, %v155
  %v157 = vrot.slane %v37, %v156
  %v158 = vlaneseq
  %v159 = vshrl.u32 %v158, 7
  %v160 = vsub.s32 0, %v159
  %v161 = vrot.slane %v38, %v160
  %v164 = vcombine.low %v157, %v161
  %v166 = vunpack.c.l.s4 1983009808
  %v167 = vunpack.c.0.s8 %v166
  %v168 = vlaneseq
  %v169 = vshrl.u32 %v168, 7
  %v170 = vsub.s32 %v167, %v169
  %v171 = vrot.slane %v164, %v170
  %v173 = vmul.f32 %v20, %v171
  %v174 = vadd.f32 %v111, %v173
  %v175 = vlaneseq
  %v176 = vshrl.u32 %v175, 7
  %v177 = vsub.s32 0, %v176
  %v178 = vrot.slane %v53, %v177
  %v179 = vlaneseq
  %v180 = vshrl.u32 %v179, 7
  %v181 = vsub.s32 0, %v180
  %v182 = vrot.slane %v54, %v181
  %v185 = vcombine.low %v178, %v182
  %v187 = vunpack.c.l.s4 1983009808
  %v188 = vunpack.c.0.s8 %v187
  %v189 = vlaneseq
  %v190 = vshrl.u32 %v189, 7
  %v191 = vsub.s32 %v188, %v190
  %v192 = vrot.slane %v185, %v191
  %v194 = vmul.f32 %v28, %v192
  %v195 = vadd.f32 %v132, %v194
  %v196 = vlaneseq
  %v197 = vshrl.u32 %v196, 7
  %v198 = vsub.s32 0, %v197
  %v199 = vrot.slane %v77, %v198
  %v200 = vlaneseq
  %v201 = vshrl.u32 %v200, 7
  %v202 = vsub.s32 0, %v201
  %v203 = vrot.slane %v78, %v202
  %v206 = vcombine.low %v199, %v203
  %v208 = vunpack.c.l.s4 1983009808
  %v209 = vunpack.c.0.s8 %v208
  %v210 = vlaneseq
  %v211 = vshrl.u32 %v210, 7
  %v212 = vsub.s32 %v209, %v211
  %v213 = vrot.slane %v206, %v212
  %v215 = vmul.f32 %v68, %v213
  %v216 = vadd.f32 %v153, %v215
  %v217 = vlaneseq
  %v218 = vshrl.u32 %v217, 7
  %v219 = vsub.s32 0, %v218
  %v220 = vrot.slane %v39, %v219
  %v221 = vlaneseq
  %v222 = vshrl.u32 %v221, 7
  %v223 = vsub.s32 0, %v222
  %v224 = vrot.slane %v40, %v223
  %v227 = vcombine.low %v220, %v224
  %v229 = vunpack.c.l.s4 1983009808
  %v230 = vunpack.c.0.s8 %v229
  %v231 = vlaneseq
  %v232 = vshrl.u32 %v231, 7
  %v233 = vsub.s32 %v230, %v232
  %v234 = vrot.slane %v227, %v233
  %v236 = vmul.f32 %v21, %v234
  %v237 = vadd.f32 %v174, %v236
  %v238 = vlaneseq
  %v239 = vshrl.u32 %v238, 7
  %v240 = vsub.s32 0, %v239
  %v241 = vrot.slane %v55, %v240
  %v242 = vlaneseq
  %v243 = vshrl.u32 %v242, 7
  %v244 = vsub.s32 0, %v243
  %v245 = vrot.slane %v56, %v244
  %v248 = vcombine.low %v241, %v245
  %v250 = vunpack.c.l.s4 1983009808
  %v251 = vunpack.c.0.s8 %v250
  %v252 = vlaneseq
  %v253 = vshrl.u32 %v252, 7
  %v254 = vsub.s32 %v251, %v253
  %v255 = vrot.slane %v248, %v254
  %v257 = vmul.f32 %v29, %v255
  %v258 = vadd.f32 %v195, %v257
  %v259 = vlaneseq
  %v260 = vshrl.u32 %v259, 7
  %v261 = vsub.s32 0, %v260
  %v262 = vrot.slane %v79, %v261
  %v263 = vlaneseq
  %v264 = vshrl.u32 %v263, 7
  %v265 = vsub.s32 0, %v264
  %v266 = vrot.slane %v80, %v265
  %v269 = vcombine.low %v262, %v266
  %v271 = vunpack.c.l.s4 1983009808
  %v272 = vunpack.c.0.s8 %v271
  %v273 = vlaneseq
  %v274 = vshrl.u32 %v273, 7
  %v275 = vsub.s32 %v272, %v274
  %v276 = vrot.slane %v269, %v275
  %v278 = vmul.f32 %v69, %v276
  %v279 = vadd.f32 %v216, %v278
  %v280 = vlaneseq
  %v281 = vshrl.u32 %v280, 7
  %v282 = vsub.s32 0, %v281
  %v283 = vrot.slane %v41, %v282
  %v284 = vlaneseq
  %v285 = vshrl.u32 %v284, 7
  %v286 = vsub.s32 0, %v285
  %v287 = vrot.slane %v42, %v286
  %v290 = vcombine.low %v283, %v287
  %v292 = vunpack.c.l.s4 1983009808
  %v293 = vunpack.c.0.s8 %v292
  %v294 = vlaneseq
  %v295 = vshrl.u32 %v294, 7
  %v296 = vsub.s32 %v293, %v295
  %v297 = vrot.slane %v290, %v296
  %v299 = vmul.f32 %v22, %v297
  %v300 = vadd.f32 %v237, %v299
  %v301 = vlaneseq
  %v302 = vshrl.u32 %v301, 7
  %v303 = vsub.s32 0, %v302
  %v304 = vrot.slane %v57, %v303
  %v305 = vlaneseq
  %v306 = vshrl.u32 %v305, 7
  %v307 = vsub.s32 0, %v306
  %v308 = vrot.slane %v58, %v307
  %v311 = vcombine.low %v304, %v308
  %v313 = vunpack.c.l.s4 1983009808
  %v314 = vunpack.c.0.s8 %v313
  %v315 = vlaneseq
  %v316 = vshrl.u32 %v315, 7
  %v317 = vsub.s32 %v314, %v316
  %v318 = vrot.slane %v311, %v317
  %v320 = vmul.f32 %v30, %v318
  %v321 = vadd.f32 %v258, %v320
  %v322 = vlaneseq
  %v323 = vshrl.u32 %v322, 7
  %v324 = vsub.s32 0, %v323
  %v325 = vrot.slane %v81, %v324
  %v326 = vlaneseq
  %v327 = vshrl.u32 %v326, 7
  %v328 = vsub.s32 0, %v327
  %v329 = vrot.slane %v82, %v328
  %v332 = vcombine.low %v325, %v329
  %v334 = vunpack.c.l.s4 1983009808
  %v335 = vunpack.c.0.s8 %v334
  %v336 = vlaneseq
  %v337 = vshrl.u32 %v336, 7
  %v338 = vsub.s32 %v335, %v337
  %v339 = vrot.slane %v332, %v338
  %v341 = vmul.f32 %v70, %v339
  %v342 = vadd.f32 %v279, %v341
  %v343 = vlaneseq
  %v344 = vshrl.u32 %v343, 7
  %v345 = vsub.s32 0, %v344
  %v346 = vrot.slane %v43, %v345
  %v347 = vlaneseq
  %v348 = vshrl.u32 %v347, 7
  %v349 = vsub.s32 0, %v348
  %v350 = vrot.slane %v44, %v349
  %v353 = vcombine.low %v346, %v350
  %v355 = vunpack.c.l.s4 1983009808
  %v356 = vunpack.c.0.s8 %v355
  %v357 = vlaneseq
  %v358 = vshrl.u32 %v357, 7
  %v359 = vsub.s32 %v356, %v358
  %v360 = vrot.slane %v353, %v359
  %v362 = vmul.f32 %v23, %v360
  %v363 = vadd.f32 %v300, %v362
  %v364 = vlaneseq
  %v365 = vshrl.u32 %v364, 7
  %v366 = vsub.s32 0, %v365
  %v367 = vrot.slane %v59, %v366
  %v368 = vlaneseq
  %v369 = vshrl.u32 %v368, 7
  %v370 = vsub.s32 0, %v369
  %v371 = vrot.slane %v60, %v370
  %v374 = vcombine.low %v367, %v371
  %v376 = vunpack.c.l.s4 1983009808
  %v377 = vunpack.c.0.s8 %v376
  %v378 = vlaneseq
  %v379 = vshrl.u32 %v378, 7
  %v380 = vsub.s32 %v377, %v379
  %v381 = vrot.slane %v374, %v380
  %v383 = vmul.f32 %v31, %v381
  %v384 = vadd.f32 %v321, %v383
  %v385 = vlaneseq
  %v386 = vshrl.u32 %v385, 7
  %v387 = vsub.s32 0, %v386
  %v388 = vrot.slane %v83, %v387
  %v389 = vlaneseq
  %v390 = vshrl.u32 %v389, 7
  %v391 = vsub.s32 0, %v390
  %v392 = vrot.slane %v84, %v391
  %v395 = vcombine.low %v388, %v392
  %v397 = vunpack.c.l.s4 1983009808
  %v398 = vunpack.c.0.s8 %v397
  %v399 = vlaneseq
  %v400 = vshrl.u32 %v399, 7
  %v401 = vsub.s32 %v398, %v400
  %v402 = vrot.slane %v395, %v401
  %v404 = vmul.f32 %v71, %v402
  %v405 = vadd.f32 %v342, %v404
  %v406 = vlaneseq
  %v407 = vshrl.u32 %v406, 7
  %v408 = vsub.s32 0, %v407
  %v409 = vrot.slane %v45, %v408
  %v410 = vlaneseq
  %v411 = vshrl.u32 %v410, 7
  %v412 = vsub.s32 0, %v411
  %v413 = vrot.slane %v46, %v412
  %v416 = vcombine.low %v409, %v413
  %v418 = vunpack.c.l.s4 1983009808
  %v419 = vunpack.c.0.s8 %v418
  %v420 = vlaneseq
  %v421 = vshrl.u32 %v420, 7
  %v422 = vsub.s32 %v419, %v421
  %v423 = vrot.slane %v416, %v422
  %v425 = vmul.f32 %v24, %v423
  %v426 = vadd.f32 %v363, %v425
  %v427 = vlaneseq
  %v428 = vshrl.u32 %v427, 7
  %v429 = vsub.s32 0, %v428
  %v430 = vrot.slane %v61, %v429
  %v431 = vlaneseq
  %v432 = vshrl.u32 %v431, 7
  %v433 = vsub.s32 0, %v432
  %v434 = vrot.slane %v62, %v433
  %v437 = vcombine.low %v430, %v434
  %v439 = vunpack.c.l.s4 1983009808
  %v440 = vunpack.c.0.s8 %v439
  %v441 = vlaneseq
  %v442 = vshrl.u32 %v441, 7
  %v443 = vsub.s32 %v440, %v442
  %v444 = vrot.slane %v437, %v443
  %v446 = vmul.f32 %v32, %v444
  %v447 = vadd.f32 %v384, %v446
  %v448 = vlaneseq
  %v449 = vshrl.u32 %v448, 7
  %v450 = vsub.s32 0, %v449
  %v451 = vrot.slane %v85, %v450
  %v452 = vlaneseq
  %v453 = vshrl.u32 %v452, 7
  %v454 = vsub.s32 0, %v453
  %v455 = vrot.slane %v86, %v454
  %v458 = vcombine.low %v451, %v455
  %v460 = vunpack.c.l.s4 1983009808
  %v461 = vunpack.c.0.s8 %v460
  %v462 = vlaneseq
  %v463 = vshrl.u32 %v462, 7
  %v464 = vsub.s32 %v461, %v463
  %v465 = vrot.slane %v458, %v464
  %v467 = vmul.f32 %v72, %v465
  %v468 = vadd.f32 %v405, %v467
  %v469 = vlaneseq
  %v470 = vshrl.u32 %v469, 7
  %v471 = vsub.s32 0, %v470
  %v472 = vrot.slane %v47, %v471
  %v473 = vlaneseq
  %v474 = vshrl.u32 %v473, 7
  %v475 = vsub.s32 0, %v474
  %v476 = vrot.slane %v48, %v475
  %v479 = vcombine.low %v472, %v476
  %v481 = vunpack.c.l.s4 1983009808
  %v482 = vunpack.c.0.s8 %v481
  %v483 = vlaneseq
  %v484 = vshrl.u32 %v483, 7
  %v485 = vsub.s32 %v482, %v484
  %v486 = vrot.slane %v479, %v485
  %v488 = vmul.f32 %v25, %v486
  %v489 = vadd.f32 %v426, %v488
  %v490 = vlaneseq
  %v491 = vshrl.u32 %v490, 7
  %v492 = vsub.s32 0, %v491
  %v493 = vrot.slane %v63, %v492
  %v494 = vlaneseq
  %v495 = vshrl.u32 %v494, 7
  %v496 = vsub.s32 0, %v495
  %v497 = vrot.slane %v64, %v496
  %v500 = vcombine.low %v493, %v497
  %v502 = vunpack.c.l.s4 1983009808
  %v503 = vunpack.c.0.s8 %v502
  %v504 = vlaneseq
  %v505 = vshrl.u32 %v504, 7
  %v506 = vsub.s32 %v503, %v505
  %v507 = vrot.slane %v500, %v506
  %v509 = vmul.f32 %v33, %v507
  %v510 = vadd.f32 %v447, %v509
  %v511 = vlaneseq
  %v512 = vshrl.u32 %v511, 7
  %v513 = vsub.s32 0, %v512
  %v514 = vrot.slane %v87, %v513
  %v515 = vlaneseq
  %v516 = vshrl.u32 %v515, 7
  %v517 = vsub.s32 0, %v516
  %v518 = vrot.slane %v88, %v517
  %v521 = vcombine.low %v514, %v518
  %v523 = vunpack.c.l.s4 1983009808
  %v524 = vunpack.c.0.s8 %v523
  %v525 = vlaneseq
  %v526 = vshrl.u32 %v525, 7
  %v527 = vsub.s32 %v524, %v526
  %v528 = vrot.slane %v521, %v527
  %v530 = vmul.f32 %v73, %v528
  %v531 = vadd.f32 %v468, %v530
  %v532 = vlaneseq
  %v533 = vshrl.u32 %v532, 7
  %v534 = vsub.s32 0, %v533
  %v535 = vrot.slane %v49, %v534
  %v536 = vlaneseq
  %v537 = vshrl.u32 %v536, 7
  %v538 = vsub.s32 0, %v537
  %v539 = vrot.slane %v50, %v538
  %v542 = vcombine.low %v535, %v539
  %v544 = vunpack.c.l.s4 1983009808
  %v545 = vunpack.c.0.s8 %v544
  %v546 = vlaneseq
  %v547 = vshrl.u32 %v546, 7
  %v548 = vsub.s32 %v545, %v547
  %v549 = vrot.slane %v542, %v548
  %v551 = vmul.f32 %v26, %v549
  %v552 = vadd.f32 %v489, %v551
  %v553 = vlaneseq
  %v554 = vshrl.u32 %v553, 7
  %v555 = vsub.s32 0, %v554
  %v556 = vrot.slane %v65, %v555
  %v557 = vlaneseq
  %v558 = vshrl.u32 %v557, 7
  %v559 = vsub.s32 0, %v558
  %v560 = vrot.slane %v66, %v559
  %v563 = vcombine.low %v556, %v560
  %v565 = vunpack.c.l.s4 1983009808
  %v566 = vunpack.c.0.s8 %v565
  %v567 = vlaneseq
  %v568 = vshrl.u32 %v567, 7
  %v569 = vsub.s32 %v566, %v568
  %v570 = vrot.slane %v563, %v569
  %v572 = vmul.f32 %v34, %v570
  %v573 = vadd.f32 %v510, %v572
  %v574 = vlaneseq
  %v575 = vshrl.u32 %v574, 7
  %v576 = vsub.s32 0, %v575
  %v577 = vrot.slane %v89, %v576
  %v578 = vlaneseq
  %v579 = vshrl.u32 %v578, 7
  %v580 = vsub.s32 0, %v579
  %v581 = vrot.slane %v90, %v580
  %v584 = vcombine.low %v577, %v581
  %v586 = vunpack.c.l.s4 1983009808
  %v587 = vunpack.c.0.s8 %v586
  %v588 = vlaneseq
  %v589 = vshrl.u32 %v588, 7
  %v590 = vsub.s32 %v587, %v589
  %v591 = vrot.slane %v584, %v590
  %v593 = vmul.f32 %v74, %v591
  %v594 = vadd.f32 %v531, %v593
  %v595 = vsub.f32 %v552, %v573
  %596 = vst [vmem:[%s4] sm:$0xf] %v595
  %v597 = vsub.f32 %v594, %v552
  %v598 = vsub.f32 %v597, %v573
  %599 = vst [vmem:[%s5] sm:$0xf] %v598
  %v600 = vlaneseq
  %v601 = vshrl.u32 %v600, 7
  %v602 = vsub.s32 1, %v601
  %v603 = vrot.slane %v35, %v602
  %v604 = vlaneseq
  %v605 = vshrl.u32 %v604, 7
  %v606 = vsub.s32 1, %v605
  %v607 = vrot.slane %v36, %v606
  %v610 = vcombine.low %v603, %v607
  %v612 = vunpack.c.l.s4 1983009808
  %v613 = vunpack.c.0.s8 %v612
  %v614 = vlaneseq
  %v615 = vshrl.u32 %v614, 7
  %v616 = vsub.s32 %v613, %v615
  %v617 = vrot.slane %v610, %v616
  %v619 = vmul.f32 %v19, %v617
  %v620 = vadd.f32 %v619, 0.0
  %v621 = vlaneseq
  %v622 = vshrl.u32 %v621, 7
  %v623 = vsub.s32 1, %v622
  %v624 = vrot.slane %v51, %v623
  %v625 = vlaneseq
  %v626 = vshrl.u32 %v625, 7
  %v627 = vsub.s32 1, %v626
  %v628 = vrot.slane %v52, %v627
  %v631 = vcombine.low %v624, %v628
  %v633 = vunpack.c.l.s4 1983009808
  %v634 = vunpack.c.0.s8 %v633
  %v635 = vlaneseq
  %v636 = vshrl.u32 %v635, 7
  %v637 = vsub.s32 %v634, %v636
  %v638 = vrot.slane %v631, %v637
  %v640 = vmul.f32 %v27, %v638
  %v641 = vadd.f32 %v640, 0.0
  %v642 = vlaneseq
  %v643 = vshrl.u32 %v642, 7
  %v644 = vsub.s32 1, %v643
  %v645 = vrot.slane %v75, %v644
  %v646 = vlaneseq
  %v647 = vshrl.u32 %v646, 7
  %v648 = vsub.s32 1, %v647
  %v649 = vrot.slane %v76, %v648
  %v652 = vcombine.low %v645, %v649
  %v654 = vunpack.c.l.s4 1983009808
  %v655 = vunpack.c.0.s8 %v654
  %v656 = vlaneseq
  %v657 = vshrl.u32 %v656, 7
  %v658 = vsub.s32 %v655, %v657
  %v659 = vrot.slane %v652, %v658
  %v661 = vmul.f32 %v67, %v659
  %v662 = vadd.f32 %v661, 0.0
  %v663 = vlaneseq
  %v664 = vshrl.u32 %v663, 7
  %v665 = vsub.s32 1, %v664
  %v666 = vrot.slane %v37, %v665
  %v667 = vlaneseq
  %v668 = vshrl.u32 %v667, 7
  %v669 = vsub.s32 1, %v668
  %v670 = vrot.slane %v38, %v669
  %v673 = vcombine.low %v666, %v670
  %v675 = vunpack.c.l.s4 1983009808
  %v676 = vunpack.c.0.s8 %v675
  %v677 = vlaneseq
  %v678 = vshrl.u32 %v677, 7
  %v679 = vsub.s32 %v676, %v678
  %v680 = vrot.slane %v673, %v679
  %v682 = vmul.f32 %v20, %v680
  %v683 = vadd.f32 %v620, %v682
  %v684 = vlaneseq
  %v685 = vshrl.u32 %v684, 7
  %v686 = vsub.s32 1, %v685
  %v687 = vrot.slane %v53, %v686
  %v688 = vlaneseq
  %v689 = vshrl.u32 %v688, 7
  %v690 = vsub.s32 1, %v689
  %v691 = vrot.slane %v54, %v690
  %v694 = vcombine.low %v687, %v691
  %v696 = vunpack.c.l.s4 1983009808
  %v697 = vunpack.c.0.s8 %v696
  %v698 = vlaneseq
  %v699 = vshrl.u32 %v698, 7
  %v700 = vsub.s32 %v697, %v699
  %v701 = vrot.slane %v694, %v700
  %v703 = vmul.f32 %v28, %v701
  %v704 = vadd.f32 %v641, %v703
  %v705 = vlaneseq
  %v706 = vshrl.u32 %v705, 7
  %v707 = vsub.s32 1, %v706
  %v708 = vrot.slane %v77, %v707
  %v709 = vlaneseq
  %v710 = vshrl.u32 %v709, 7
  %v711 = vsub.s32 1, %v710
  %v712 = vrot.slane %v78, %v711
  %v715 = vcombine.low %v708, %v712
  %v717 = vunpack.c.l.s4 1983009808
  %v718 = vunpack.c.0.s8 %v717
  %v719 = vlaneseq
  %v720 = vshrl.u32 %v719, 7
  %v721 = vsub.s32 %v718, %v720
  %v722 = vrot.slane %v715, %v721
  %v724 = vmul.f32 %v68, %v722
  %v725 = vadd.f32 %v662, %v724
  %v726 = vlaneseq
  %v727 = vshrl.u32 %v726, 7
  %v728 = vsub.s32 1, %v727
  %v729 = vrot.slane %v39, %v728
  %v730 = vlaneseq
  %v731 = vshrl.u32 %v730, 7
  %v732 = vsub.s32 1, %v731
  %v733 = vrot.slane %v40, %v732
  %v736 = vcombine.low %v729, %v733
  %v738 = vunpack.c.l.s4 1983009808
  %v739 = vunpack.c.0.s8 %v738
  %v740 = vlaneseq
  %v741 = vshrl.u32 %v740, 7
  %v742 = vsub.s32 %v739, %v741
  %v743 = vrot.slane %v736, %v742
  %v745 = vmul.f32 %v21, %v743
  %v746 = vadd.f32 %v683, %v745
  %v747 = vlaneseq
  %v748 = vshrl.u32 %v747, 7
  %v749 = vsub.s32 1, %v748
  %v750 = vrot.slane %v55, %v749
  %v751 = vlaneseq
  %v752 = vshrl.u32 %v751, 7
  %v753 = vsub.s32 1, %v752
  %v754 = vrot.slane %v56, %v753
  %v757 = vcombine.low %v750, %v754
  %v759 = vunpack.c.l.s4 1983009808
  %v760 = vunpack.c.0.s8 %v759
  %v761 = vlaneseq
  %v762 = vshrl.u32 %v761, 7
  %v763 = vsub.s32 %v760, %v762
  %v764 = vrot.slane %v757, %v763
  %v766 = vmul.f32 %v29, %v764
  %v767 = vadd.f32 %v704, %v766
  %v768 = vlaneseq
  %v769 = vshrl.u32 %v768, 7
  %v770 = vsub.s32 1, %v769
  %v771 = vrot.slane %v79, %v770
  %v772 = vlaneseq
  %v773 = vshrl.u32 %v772, 7
  %v774 = vsub.s32 1, %v773
  %v775 = vrot.slane %v80, %v774
  %v778 = vcombine.low %v771, %v775
  %v780 = vunpack.c.l.s4 1983009808
  %v781 = vunpack.c.0.s8 %v780
  %v782 = vlaneseq
  %v783 = vshrl.u32 %v782, 7
  %v784 = vsub.s32 %v781, %v783
  %v785 = vrot.slane %v778, %v784
  %v787 = vmul.f32 %v69, %v785
  %v788 = vadd.f32 %v725, %v787
  %v789 = vlaneseq
  %v790 = vshrl.u32 %v789, 7
  %v791 = vsub.s32 1, %v790
  %v792 = vrot.slane %v41, %v791
  %v793 = vlaneseq
  %v794 = vshrl.u32 %v793, 7
  %v795 = vsub.s32 1, %v794
  %v796 = vrot.slane %v42, %v795
  %v799 = vcombine.low %v792, %v796
  %v801 = vunpack.c.l.s4 1983009808
  %v802 = vunpack.c.0.s8 %v801
  %v803 = vlaneseq
  %v804 = vshrl.u32 %v803, 7
  %v805 = vsub.s32 %v802, %v804
  %v806 = vrot.slane %v799, %v805
  %v808 = vmul.f32 %v22, %v806
  %v809 = vadd.f32 %v746, %v808
  %v810 = vlaneseq
  %v811 = vshrl.u32 %v810, 7
  %v812 = vsub.s32 1, %v811
  %v813 = vrot.slane %v57, %v812
  %v814 = vlaneseq
  %v815 = vshrl.u32 %v814, 7
  %v816 = vsub.s32 1, %v815
  %v817 = vrot.slane %v58, %v816
  %v820 = vcombine.low %v813, %v817
  %v822 = vunpack.c.l.s4 1983009808
  %v823 = vunpack.c.0.s8 %v822
  %v824 = vlaneseq
  %v825 = vshrl.u32 %v824, 7
  %v826 = vsub.s32 %v823, %v825
  %v827 = vrot.slane %v820, %v826
  %v829 = vmul.f32 %v30, %v827
  %v830 = vadd.f32 %v767, %v829
  %v831 = vlaneseq
  %v832 = vshrl.u32 %v831, 7
  %v833 = vsub.s32 1, %v832
  %v834 = vrot.slane %v81, %v833
  %v835 = vlaneseq
  %v836 = vshrl.u32 %v835, 7
  %v837 = vsub.s32 1, %v836
  %v838 = vrot.slane %v82, %v837
  %v841 = vcombine.low %v834, %v838
  %v843 = vunpack.c.l.s4 1983009808
  %v844 = vunpack.c.0.s8 %v843
  %v845 = vlaneseq
  %v846 = vshrl.u32 %v845, 7
  %v847 = vsub.s32 %v844, %v846
  %v848 = vrot.slane %v841, %v847
  %v850 = vmul.f32 %v70, %v848
  %v851 = vadd.f32 %v788, %v850
  %v852 = vlaneseq
  %v853 = vshrl.u32 %v852, 7
  %v854 = vsub.s32 1, %v853
  %v855 = vrot.slane %v43, %v854
  %v856 = vlaneseq
  %v857 = vshrl.u32 %v856, 7
  %v858 = vsub.s32 1, %v857
  %v859 = vrot.slane %v44, %v858
  %v862 = vcombine.low %v855, %v859
  %v864 = vunpack.c.l.s4 1983009808
  %v865 = vunpack.c.0.s8 %v864
  %v866 = vlaneseq
  %v867 = vshrl.u32 %v866, 7
  %v868 = vsub.s32 %v865, %v867
  %v869 = vrot.slane %v862, %v868
  %v871 = vmul.f32 %v23, %v869
  %v872 = vadd.f32 %v809, %v871
  %v873 = vlaneseq
  %v874 = vshrl.u32 %v873, 7
  %v875 = vsub.s32 1, %v874
  %v876 = vrot.slane %v59, %v875
  %v877 = vlaneseq
  %v878 = vshrl.u32 %v877, 7
  %v879 = vsub.s32 1, %v878
  %v880 = vrot.slane %v60, %v879
  %v883 = vcombine.low %v876, %v880
  %v885 = vunpack.c.l.s4 1983009808
  %v886 = vunpack.c.0.s8 %v885
  %v887 = vlaneseq
  %v888 = vshrl.u32 %v887, 7
  %v889 = vsub.s32 %v886, %v888
  %v890 = vrot.slane %v883, %v889
  %v892 = vmul.f32 %v31, %v890
  %v893 = vadd.f32 %v830, %v892
  %v894 = vlaneseq
  %v895 = vshrl.u32 %v894, 7
  %v896 = vsub.s32 1, %v895
  %v897 = vrot.slane %v83, %v896
  %v898 = vlaneseq
  %v899 = vshrl.u32 %v898, 7
  %v900 = vsub.s32 1, %v899
  %v901 = vrot.slane %v84, %v900
  %v904 = vcombine.low %v897, %v901
  %v906 = vunpack.c.l.s4 1983009808
  %v907 = vunpack.c.0.s8 %v906
  %v908 = vlaneseq
  %v909 = vshrl.u32 %v908, 7
  %v910 = vsub.s32 %v907, %v909
  %v911 = vrot.slane %v904, %v910
  %v913 = vmul.f32 %v71, %v911
  %v914 = vadd.f32 %v851, %v913
  %v915 = vlaneseq
  %v916 = vshrl.u32 %v915, 7
  %v917 = vsub.s32 1, %v916
  %v918 = vrot.slane %v45, %v917
  %v919 = vlaneseq
  %v920 = vshrl.u32 %v919, 7
  %v921 = vsub.s32 1, %v920
  %v922 = vrot.slane %v46, %v921
  %v925 = vcombine.low %v918, %v922
  %v927 = vunpack.c.l.s4 1983009808
  %v928 = vunpack.c.0.s8 %v927
  %v929 = vlaneseq
  %v930 = vshrl.u32 %v929, 7
  %v931 = vsub.s32 %v928, %v930
  %v932 = vrot.slane %v925, %v931
  %v934 = vmul.f32 %v24, %v932
  %v935 = vadd.f32 %v872, %v934
  %v936 = vlaneseq
  %v937 = vshrl.u32 %v936, 7
  %v938 = vsub.s32 1, %v937
  %v939 = vrot.slane %v61, %v938
  %v940 = vlaneseq
  %v941 = vshrl.u32 %v940, 7
  %v942 = vsub.s32 1, %v941
  %v943 = vrot.slane %v62, %v942
  %v946 = vcombine.low %v939, %v943
  %v948 = vunpack.c.l.s4 1983009808
  %v949 = vunpack.c.0.s8 %v948
  %v950 = vlaneseq
  %v951 = vshrl.u32 %v950, 7
  %v952 = vsub.s32 %v949, %v951
  %v953 = vrot.slane %v946, %v952
  %v955 = vmul.f32 %v32, %v953
  %v956 = vadd.f32 %v893, %v955
  %v957 = vlaneseq
  %v958 = vshrl.u32 %v957, 7
  %v959 = vsub.s32 1, %v958
  %v960 = vrot.slane %v85, %v959
  %v961 = vlaneseq
  %v962 = vshrl.u32 %v961, 7
  %v963 = vsub.s32 1, %v962
  %v964 = vrot.slane %v86, %v963
  %v967 = vcombine.low %v960, %v964
  %v969 = vunpack.c.l.s4 1983009808
  %v970 = vunpack.c.0.s8 %v969
  %v971 = vlaneseq
  %v972 = vshrl.u32 %v971, 7
  %v973 = vsub.s32 %v970, %v972
  %v974 = vrot.slane %v967, %v973
  %v976 = vmul.f32 %v72, %v974
  %v977 = vadd.f32 %v914, %v976
  %v978 = vlaneseq
  %v979 = vshrl.u32 %v978, 7
  %v980 = vsub.s32 1, %v979
  %v981 = vrot.slane %v47, %v980
  %v982 = vlaneseq
  %v983 = vshrl.u32 %v982, 7
  %v984 = vsub.s32 1, %v983
  %v985 = vrot.slane %v48, %v984
  %v988 = vcombine.low %v981, %v985
  %v990 = vunpack.c.l.s4 1983009808
  %v991 = vunpack.c.0.s8 %v990
  %v992 = vlaneseq
  %v993 = vshrl.u32 %v992, 7
  %v994 = vsub.s32 %v991, %v993
  %v995 = vrot.slane %v988, %v994
  %v997 = vmul.f32 %v25, %v995
  %v998 = vadd.f32 %v935, %v997
  %v999 = vlaneseq
  %v1000 = vshrl.u32 %v999, 7
  %v1001 = vsub.s32 1, %v1000
  %v1002 = vrot.slane %v63, %v1001
  %v1003 = vlaneseq
  %v1004 = vshrl.u32 %v1003, 7
  %v1005 = vsub.s32 1, %v1004
  %v1006 = vrot.slane %v64, %v1005
  %v1009 = vcombine.low %v1002, %v1006
  %v1011 = vunpack.c.l.s4 1983009808
  %v1012 = vunpack.c.0.s8 %v1011
  %v1013 = vlaneseq
  %v1014 = vshrl.u32 %v1013, 7
  %v1015 = vsub.s32 %v1012, %v1014
  %v1016 = vrot.slane %v1009, %v1015
  %v1018 = vmul.f32 %v33, %v1016
  %v1019 = vadd.f32 %v956, %v1018
  %v1020 = vlaneseq
  %v1021 = vshrl.u32 %v1020, 7
  %v1022 = vsub.s32 1, %v1021
  %v1023 = vrot.slane %v87, %v1022
  %v1024 = vlaneseq
  %v1025 = vshrl.u32 %v1024, 7
  %v1026 = vsub.s32 1, %v1025
  %v1027 = vrot.slane %v88, %v1026
  %v1030 = vcombine.low %v1023, %v1027
  %v1032 = vunpack.c.l.s4 1983009808
  %v1033 = vunpack.c.0.s8 %v1032
  %v1034 = vlaneseq
  %v1035 = vshrl.u32 %v1034, 7
  %v1036 = vsub.s32 %v1033, %v1035
  %v1037 = vrot.slane %v1030, %v1036
  %v1039 = vmul.f32 %v73, %v1037
  %v1040 = vadd.f32 %v977, %v1039
  %v1041 = vlaneseq
  %v1042 = vshrl.u32 %v1041, 7
  %v1043 = vsub.s32 1, %v1042
  %v1044 = vrot.slane %v49, %v1043
  %v1045 = vlaneseq
  %v1046 = vshrl.u32 %v1045, 7
  %v1047 = vsub.s32 1, %v1046
  %v1048 = vrot.slane %v50, %v1047
  %v1051 = vcombine.low %v1044, %v1048
  %v1053 = vunpack.c.l.s4 1983009808
  %v1054 = vunpack.c.0.s8 %v1053
  %v1055 = vlaneseq
  %v1056 = vshrl.u32 %v1055, 7
  %v1057 = vsub.s32 %v1054, %v1056
  %v1058 = vrot.slane %v1051, %v1057
  %v1060 = vmul.f32 %v26, %v1058
  %v1061 = vadd.f32 %v998, %v1060
  %v1062 = vlaneseq
  %v1063 = vshrl.u32 %v1062, 7
  %v1064 = vsub.s32 1, %v1063
  %v1065 = vrot.slane %v65, %v1064
  %v1066 = vlaneseq
  %v1067 = vshrl.u32 %v1066, 7
  %v1068 = vsub.s32 1, %v1067
  %v1069 = vrot.slane %v66, %v1068
  %v1072 = vcombine.low %v1065, %v1069
  %v1074 = vunpack.c.l.s4 1983009808
  %v1075 = vunpack.c.0.s8 %v1074
  %v1076 = vlaneseq
  %v1077 = vshrl.u32 %v1076, 7
  %v1078 = vsub.s32 %v1075, %v1077
  %v1079 = vrot.slane %v1072, %v1078
  %v1081 = vmul.f32 %v34, %v1079
  %v1082 = vadd.f32 %v1019, %v1081
  %v1083 = vlaneseq
  %v1084 = vshrl.u32 %v1083, 7
  %v1085 = vsub.s32 1, %v1084
  %v1086 = vrot.slane %v89, %v1085
  %v1087 = vlaneseq
  %v1088 = vshrl.u32 %v1087, 7
  %v1089 = vsub.s32 1, %v1088
  %v1090 = vrot.slane %v90, %v1089
  %v1093 = vcombine.low %v1086, %v1090
  %v1095 = vunpack.c.l.s4 1983009808
  %v1096 = vunpack.c.0.s8 %v1095
  %v1097 = vlaneseq
  %v1098 = vshrl.u32 %v1097, 7
  %v1099 = vsub.s32 %v1096, %v1098
  %v1100 = vrot.slane %v1093, %v1099
  %v1102 = vmul.f32 %v74, %v1100
  %v1103 = vadd.f32 %v1040, %v1102
  %v1104 = vsub.f32 %v1061, %v1082
  %s1105 = scalar_lea.vmem %s4, 4
  %1106 = vst [vmem:[%s1105] sm:$0xf] %v1104
  %v1107 = vsub.f32 %v1103, %v1061
  %v1108 = vsub.f32 %v1107, %v1082
  %s1109 = scalar_lea.vmem %s5, 4
  %1110 = vst [vmem:[%s1109] sm:$0xf] %v1108
  %v1111 = vlaneseq
  %v1112 = vshrl.u32 %v1111, 7
  %v1113 = vsub.s32 2, %v1112
  %v1114 = vrot.slane %v35, %v1113
  %v1115 = vlaneseq
  %v1116 = vshrl.u32 %v1115, 7
  %v1117 = vsub.s32 2, %v1116
  %v1118 = vrot.slane %v36, %v1117
  %v1121 = vcombine.low %v1114, %v1118
  %v1123 = vunpack.c.l.s4 1983009808
  %v1124 = vunpack.c.0.s8 %v1123
  %v1125 = vlaneseq
  %v1126 = vshrl.u32 %v1125, 7
  %v1127 = vsub.s32 %v1124, %v1126
  %v1128 = vrot.slane %v1121, %v1127
  %v1130 = vmul.f32 %v19, %v1128
  %v1131 = vadd.f32 %v1130, 0.0
  %v1132 = vlaneseq
  %v1133 = vshrl.u32 %v1132, 7
  %v1134 = vsub.s32 2, %v1133
  %v1135 = vrot.slane %v51, %v1134
  %v1136 = vlaneseq
  %v1137 = vshrl.u32 %v1136, 7
  %v1138 = vsub.s32 2, %v1137
  %v1139 = vrot.slane %v52, %v1138
  %v1142 = vcombine.low %v1135, %v1139
  %v1144 = vunpack.c.l.s4 1983009808
  %v1145 = vunpack.c.0.s8 %v1144
  %v1146 = vlaneseq
  %v1147 = vshrl.u32 %v1146, 7
  %v1148 = vsub.s32 %v1145, %v1147
  %v1149 = vrot.slane %v1142, %v1148
  %v1151 = vmul.f32 %v27, %v1149
  %v1152 = vadd.f32 %v1151, 0.0
  %v1153 = vlaneseq
  %v1154 = vshrl.u32 %v1153, 7
  %v1155 = vsub.s32 2, %v1154
  %v1156 = vrot.slane %v75, %v1155
  %v1157 = vlaneseq
  %v1158 = vshrl.u32 %v1157, 7
  %v1159 = vsub.s32 2, %v1158
  %v1160 = vrot.slane %v76, %v1159
  %v1163 = vcombine.low %v1156, %v1160
  %v1165 = vunpack.c.l.s4 1983009808
  %v1166 = vunpack.c.0.s8 %v1165
  %v1167 = vlaneseq
  %v1168 = vshrl.u32 %v1167, 7
  %v1169 = vsub.s32 %v1166, %v1168
  %v1170 = vrot.slane %v1163, %v1169
  %v1172 = vmul.f32 %v67, %v1170
  %v1173 = vadd.f32 %v1172, 0.0
  %v1174 = vlaneseq
  %v1175 = vshrl.u32 %v1174, 7
  %v1176 = vsub.s32 2, %v1175
  %v1177 = vrot.slane %v37, %v1176
  %v1178 = vlaneseq
  %v1179 = vshrl.u32 %v1178, 7
  %v1180 = vsub.s32 2, %v1179
  %v1181 = vrot.slane %v38, %v1180
  %v1184 = vcombine.low %v1177, %v1181
  %v1186 = vunpack.c.l.s4 1983009808
  %v1187 = vunpack.c.0.s8 %v1186
  %v1188 = vlaneseq
  %v1189 = vshrl.u32 %v1188, 7
  %v1190 = vsub.s32 %v1187, %v1189
  %v1191 = vrot.slane %v1184, %v1190
  %v1193 = vmul.f32 %v20, %v1191
  %v1194 = vadd.f32 %v1131, %v1193
  %v1195 = vlaneseq
  %v1196 = vshrl.u32 %v1195, 7
  %v1197 = vsub.s32 2, %v1196
  %v1198 = vrot.slane %v53, %v1197
  %v1199 = vlaneseq
  %v1200 = vshrl.u32 %v1199, 7
  %v1201 = vsub.s32 2, %v1200
  %v1202 = vrot.slane %v54, %v1201
  %v1205 = vcombine.low %v1198, %v1202
  %v1207 = vunpack.c.l.s4 1983009808
  %v1208 = vunpack.c.0.s8 %v1207
  %v1209 = vlaneseq
  %v1210 = vshrl.u32 %v1209, 7
  %v1211 = vsub.s32 %v1208, %v1210
  %v1212 = vrot.slane %v1205, %v1211
  %v1214 = vmul.f32 %v28, %v1212
  %v1215 = vadd.f32 %v1152, %v1214
  %v1216 = vlaneseq
  %v1217 = vshrl.u32 %v1216, 7
  %v1218 = vsub.s32 2, %v1217
  %v1219 = vrot.slane %v77, %v1218
  %v1220 = vlaneseq
  %v1221 = vshrl.u32 %v1220, 7
  %v1222 = vsub.s32 2, %v1221
  %v1223 = vrot.slane %v78, %v1222
  %v1226 = vcombine.low %v1219, %v1223
  %v1228 = vunpack.c.l.s4 1983009808
  %v1229 = vunpack.c.0.s8 %v1228
  %v1230 = vlaneseq
  %v1231 = vshrl.u32 %v1230, 7
  %v1232 = vsub.s32 %v1229, %v1231
  %v1233 = vrot.slane %v1226, %v1232
  %v1235 = vmul.f32 %v68, %v1233
  %v1236 = vadd.f32 %v1173, %v1235
  %v1237 = vlaneseq
  %v1238 = vshrl.u32 %v1237, 7
  %v1239 = vsub.s32 2, %v1238
  %v1240 = vrot.slane %v39, %v1239
  %v1241 = vlaneseq
  %v1242 = vshrl.u32 %v1241, 7
  %v1243 = vsub.s32 2, %v1242
  %v1244 = vrot.slane %v40, %v1243
  %v1247 = vcombine.low %v1240, %v1244
  %v1249 = vunpack.c.l.s4 1983009808
  %v1250 = vunpack.c.0.s8 %v1249
  %v1251 = vlaneseq
  %v1252 = vshrl.u32 %v1251, 7
  %v1253 = vsub.s32 %v1250, %v1252
  %v1254 = vrot.slane %v1247, %v1253
  %v1256 = vmul.f32 %v21, %v1254
  %v1257 = vadd.f32 %v1194, %v1256
  %v1258 = vlaneseq
  %v1259 = vshrl.u32 %v1258, 7
  %v1260 = vsub.s32 2, %v1259
  %v1261 = vrot.slane %v55, %v1260
  %v1262 = vlaneseq
  %v1263 = vshrl.u32 %v1262, 7
  %v1264 = vsub.s32 2, %v1263
  %v1265 = vrot.slane %v56, %v1264
  %v1268 = vcombine.low %v1261, %v1265
  %v1270 = vunpack.c.l.s4 1983009808
  %v1271 = vunpack.c.0.s8 %v1270
  %v1272 = vlaneseq
  %v1273 = vshrl.u32 %v1272, 7
  %v1274 = vsub.s32 %v1271, %v1273
  %v1275 = vrot.slane %v1268, %v1274
  %v1277 = vmul.f32 %v29, %v1275
  %v1278 = vadd.f32 %v1215, %v1277
  %v1279 = vlaneseq
  %v1280 = vshrl.u32 %v1279, 7
  %v1281 = vsub.s32 2, %v1280
  %v1282 = vrot.slane %v79, %v1281
  %v1283 = vlaneseq
  %v1284 = vshrl.u32 %v1283, 7
  %v1285 = vsub.s32 2, %v1284
  %v1286 = vrot.slane %v80, %v1285
  %v1289 = vcombine.low %v1282, %v1286
  %v1291 = vunpack.c.l.s4 1983009808
  %v1292 = vunpack.c.0.s8 %v1291
  %v1293 = vlaneseq
  %v1294 = vshrl.u32 %v1293, 7
  %v1295 = vsub.s32 %v1292, %v1294
  %v1296 = vrot.slane %v1289, %v1295
  %v1298 = vmul.f32 %v69, %v1296
  %v1299 = vadd.f32 %v1236, %v1298
  %v1300 = vlaneseq
  %v1301 = vshrl.u32 %v1300, 7
  %v1302 = vsub.s32 2, %v1301
  %v1303 = vrot.slane %v41, %v1302
  %v1304 = vlaneseq
  %v1305 = vshrl.u32 %v1304, 7
  %v1306 = vsub.s32 2, %v1305
  %v1307 = vrot.slane %v42, %v1306
  %v1310 = vcombine.low %v1303, %v1307
  %v1312 = vunpack.c.l.s4 1983009808
  %v1313 = vunpack.c.0.s8 %v1312
  %v1314 = vlaneseq
  %v1315 = vshrl.u32 %v1314, 7
  %v1316 = vsub.s32 %v1313, %v1315
  %v1317 = vrot.slane %v1310, %v1316
  %v1319 = vmul.f32 %v22, %v1317
  %v1320 = vadd.f32 %v1257, %v1319
  %v1321 = vlaneseq
  %v1322 = vshrl.u32 %v1321, 7
  %v1323 = vsub.s32 2, %v1322
  %v1324 = vrot.slane %v57, %v1323
  %v1325 = vlaneseq
  %v1326 = vshrl.u32 %v1325, 7
  %v1327 = vsub.s32 2, %v1326
  %v1328 = vrot.slane %v58, %v1327
  %v1331 = vcombine.low %v1324, %v1328
  %v1333 = vunpack.c.l.s4 1983009808
  %v1334 = vunpack.c.0.s8 %v1333
  %v1335 = vlaneseq
  %v1336 = vshrl.u32 %v1335, 7
  %v1337 = vsub.s32 %v1334, %v1336
  %v1338 = vrot.slane %v1331, %v1337
  %v1340 = vmul.f32 %v30, %v1338
  %v1341 = vadd.f32 %v1278, %v1340
  %v1342 = vlaneseq
  %v1343 = vshrl.u32 %v1342, 7
  %v1344 = vsub.s32 2, %v1343
  %v1345 = vrot.slane %v81, %v1344
  %v1346 = vlaneseq
  %v1347 = vshrl.u32 %v1346, 7
  %v1348 = vsub.s32 2, %v1347
  %v1349 = vrot.slane %v82, %v1348
  %v1352 = vcombine.low %v1345, %v1349
  %v1354 = vunpack.c.l.s4 1983009808
  %v1355 = vunpack.c.0.s8 %v1354
  %v1356 = vlaneseq
  %v1357 = vshrl.u32 %v1356, 7
  %v1358 = vsub.s32 %v1355, %v1357
  %v1359 = vrot.slane %v1352, %v1358
  %v1361 = vmul.f32 %v70, %v1359
  %v1362 = vadd.f32 %v1299, %v1361
  %v1363 = vlaneseq
  %v1364 = vshrl.u32 %v1363, 7
  %v1365 = vsub.s32 2, %v1364
  %v1366 = vrot.slane %v43, %v1365
  %v1367 = vlaneseq
  %v1368 = vshrl.u32 %v1367, 7
  %v1369 = vsub.s32 2, %v1368
  %v1370 = vrot.slane %v44, %v1369
  %v1373 = vcombine.low %v1366, %v1370
  %v1375 = vunpack.c.l.s4 1983009808
  %v1376 = vunpack.c.0.s8 %v1375
  %v1377 = vlaneseq
  %v1378 = vshrl.u32 %v1377, 7
  %v1379 = vsub.s32 %v1376, %v1378
  %v1380 = vrot.slane %v1373, %v1379
  %v1382 = vmul.f32 %v23, %v1380
  %v1383 = vadd.f32 %v1320, %v1382
  %v1384 = vlaneseq
  %v1385 = vshrl.u32 %v1384, 7
  %v1386 = vsub.s32 2, %v1385
  %v1387 = vrot.slane %v59, %v1386
  %v1388 = vlaneseq
  %v1389 = vshrl.u32 %v1388, 7
  %v1390 = vsub.s32 2, %v1389
  %v1391 = vrot.slane %v60, %v1390
  %v1394 = vcombine.low %v1387, %v1391
  %v1396 = vunpack.c.l.s4 1983009808
  %v1397 = vunpack.c.0.s8 %v1396
  %v1398 = vlaneseq
  %v1399 = vshrl.u32 %v1398, 7
  %v1400 = vsub.s32 %v1397, %v1399
  %v1401 = vrot.slane %v1394, %v1400
  %v1403 = vmul.f32 %v31, %v1401
  %v1404 = vadd.f32 %v1341, %v1403
  %v1405 = vlaneseq
  %v1406 = vshrl.u32 %v1405, 7
  %v1407 = vsub.s32 2, %v1406
  %v1408 = vrot.slane %v83, %v1407
  %v1409 = vlaneseq
  %v1410 = vshrl.u32 %v1409, 7
  %v1411 = vsub.s32 2, %v1410
  %v1412 = vrot.slane %v84, %v1411
  %v1415 = vcombine.low %v1408, %v1412
  %v1417 = vunpack.c.l.s4 1983009808
  %v1418 = vunpack.c.0.s8 %v1417
  %v1419 = vlaneseq
  %v1420 = vshrl.u32 %v1419, 7
  %v1421 = vsub.s32 %v1418, %v1420
  %v1422 = vrot.slane %v1415, %v1421
  %v1424 = vmul.f32 %v71, %v1422
  %v1425 = vadd.f32 %v1362, %v1424
  %v1426 = vlaneseq
  %v1427 = vshrl.u32 %v1426, 7
  %v1428 = vsub.s32 2, %v1427
  %v1429 = vrot.slane %v45, %v1428
  %v1430 = vlaneseq
  %v1431 = vshrl.u32 %v1430, 7
  %v1432 = vsub.s32 2, %v1431
  %v1433 = vrot.slane %v46, %v1432
  %v1436 = vcombine.low %v1429, %v1433
  %v1438 = vunpack.c.l.s4 1983009808
  %v1439 = vunpack.c.0.s8 %v1438
  %v1440 = vlaneseq
  %v1441 = vshrl.u32 %v1440, 7
  %v1442 = vsub.s32 %v1439, %v1441
  %v1443 = vrot.slane %v1436, %v1442
  %v1445 = vmul.f32 %v24, %v1443
  %v1446 = vadd.f32 %v1383, %v1445
  %v1447 = vlaneseq
  %v1448 = vshrl.u32 %v1447, 7
  %v1449 = vsub.s32 2, %v1448
  %v1450 = vrot.slane %v61, %v1449
  %v1451 = vlaneseq
  %v1452 = vshrl.u32 %v1451, 7
  %v1453 = vsub.s32 2, %v1452
  %v1454 = vrot.slane %v62, %v1453
  %v1457 = vcombine.low %v1450, %v1454
  %v1459 = vunpack.c.l.s4 1983009808
  %v1460 = vunpack.c.0.s8 %v1459
  %v1461 = vlaneseq
  %v1462 = vshrl.u32 %v1461, 7
  %v1463 = vsub.s32 %v1460, %v1462
  %v1464 = vrot.slane %v1457, %v1463
  %v1466 = vmul.f32 %v32, %v1464
  %v1467 = vadd.f32 %v1404, %v1466
  %v1468 = vlaneseq
  %v1469 = vshrl.u32 %v1468, 7
  %v1470 = vsub.s32 2, %v1469
  %v1471 = vrot.slane %v85, %v1470
  %v1472 = vlaneseq
  %v1473 = vshrl.u32 %v1472, 7
  %v1474 = vsub.s32 2, %v1473
  %v1475 = vrot.slane %v86, %v1474
  %v1478 = vcombine.low %v1471, %v1475
  %v1480 = vunpack.c.l.s4 1983009808
  %v1481 = vunpack.c.0.s8 %v1480
  %v1482 = vlaneseq
  %v1483 = vshrl.u32 %v1482, 7
  %v1484 = vsub.s32 %v1481, %v1483
  %v1485 = vrot.slane %v1478, %v1484
  %v1487 = vmul.f32 %v72, %v1485
  %v1488 = vadd.f32 %v1425, %v1487
  %v1489 = vlaneseq
  %v1490 = vshrl.u32 %v1489, 7
  %v1491 = vsub.s32 2, %v1490
  %v1492 = vrot.slane %v47, %v1491
  %v1493 = vlaneseq
  %v1494 = vshrl.u32 %v1493, 7
  %v1495 = vsub.s32 2, %v1494
  %v1496 = vrot.slane %v48, %v1495
  %v1499 = vcombine.low %v1492, %v1496
  %v1501 = vunpack.c.l.s4 1983009808
  %v1502 = vunpack.c.0.s8 %v1501
  %v1503 = vlaneseq
  %v1504 = vshrl.u32 %v1503, 7
  %v1505 = vsub.s32 %v1502, %v1504
  %v1506 = vrot.slane %v1499, %v1505
  %v1508 = vmul.f32 %v25, %v1506
  %v1509 = vadd.f32 %v1446, %v1508
  %v1510 = vlaneseq
  %v1511 = vshrl.u32 %v1510, 7
  %v1512 = vsub.s32 2, %v1511
  %v1513 = vrot.slane %v63, %v1512
  %v1514 = vlaneseq
  %v1515 = vshrl.u32 %v1514, 7
  %v1516 = vsub.s32 2, %v1515
  %v1517 = vrot.slane %v64, %v1516
  %v1520 = vcombine.low %v1513, %v1517
  %v1522 = vunpack.c.l.s4 1983009808
  %v1523 = vunpack.c.0.s8 %v1522
  %v1524 = vlaneseq
  %v1525 = vshrl.u32 %v1524, 7
  %v1526 = vsub.s32 %v1523, %v1525
  %v1527 = vrot.slane %v1520, %v1526
  %v1529 = vmul.f32 %v33, %v1527
  %v1530 = vadd.f32 %v1467, %v1529
  %v1531 = vlaneseq
  %v1532 = vshrl.u32 %v1531, 7
  %v1533 = vsub.s32 2, %v1532
  %v1534 = vrot.slane %v87, %v1533
  %v1535 = vlaneseq
  %v1536 = vshrl.u32 %v1535, 7
  %v1537 = vsub.s32 2, %v1536
  %v1538 = vrot.slane %v88, %v1537
  %v1541 = vcombine.low %v1534, %v1538
  %v1543 = vunpack.c.l.s4 1983009808
  %v1544 = vunpack.c.0.s8 %v1543
  %v1545 = vlaneseq
  %v1546 = vshrl.u32 %v1545, 7
  %v1547 = vsub.s32 %v1544, %v1546
  %v1548 = vrot.slane %v1541, %v1547
  %v1550 = vmul.f32 %v73, %v1548
  %v1551 = vadd.f32 %v1488, %v1550
  %v1552 = vlaneseq
  %v1553 = vshrl.u32 %v1552, 7
  %v1554 = vsub.s32 2, %v1553
  %v1555 = vrot.slane %v49, %v1554
  %v1556 = vlaneseq
  %v1557 = vshrl.u32 %v1556, 7
  %v1558 = vsub.s32 2, %v1557
  %v1559 = vrot.slane %v50, %v1558
  %v1562 = vcombine.low %v1555, %v1559
  %v1564 = vunpack.c.l.s4 1983009808
  %v1565 = vunpack.c.0.s8 %v1564
  %v1566 = vlaneseq
  %v1567 = vshrl.u32 %v1566, 7
  %v1568 = vsub.s32 %v1565, %v1567
  %v1569 = vrot.slane %v1562, %v1568
  %v1571 = vmul.f32 %v26, %v1569
  %v1572 = vadd.f32 %v1509, %v1571
  %v1573 = vlaneseq
  %v1574 = vshrl.u32 %v1573, 7
  %v1575 = vsub.s32 2, %v1574
  %v1576 = vrot.slane %v65, %v1575
  %v1577 = vlaneseq
  %v1578 = vshrl.u32 %v1577, 7
  %v1579 = vsub.s32 2, %v1578
  %v1580 = vrot.slane %v66, %v1579
  %v1583 = vcombine.low %v1576, %v1580
  %v1585 = vunpack.c.l.s4 1983009808
  %v1586 = vunpack.c.0.s8 %v1585
  %v1587 = vlaneseq
  %v1588 = vshrl.u32 %v1587, 7
  %v1589 = vsub.s32 %v1586, %v1588
  %v1590 = vrot.slane %v1583, %v1589
  %v1592 = vmul.f32 %v34, %v1590
  %v1593 = vadd.f32 %v1530, %v1592
  %v1594 = vlaneseq
  %v1595 = vshrl.u32 %v1594, 7
  %v1596 = vsub.s32 2, %v1595
  %v1597 = vrot.slane %v89, %v1596
  %v1598 = vlaneseq
  %v1599 = vshrl.u32 %v1598, 7
  %v1600 = vsub.s32 2, %v1599
  %v1601 = vrot.slane %v90, %v1600
  %v1604 = vcombine.low %v1597, %v1601
  %v1606 = vunpack.c.l.s4 1983009808
  %v1607 = vunpack.c.0.s8 %v1606
  %v1608 = vlaneseq
  %v1609 = vshrl.u32 %v1608, 7
  %v1610 = vsub.s32 %v1607, %v1609
  %v1611 = vrot.slane %v1604, %v1610
  %v1613 = vmul.f32 %v74, %v1611
  %v1614 = vadd.f32 %v1551, %v1613
  %v1615 = vsub.f32 %v1572, %v1593
  %s1616 = scalar_lea.vmem %s4, 8
  %1617 = vst [vmem:[%s1616] sm:$0xf] %v1615
  %v1618 = vsub.f32 %v1614, %v1572
  %v1619 = vsub.f32 %v1618, %v1593
  %s1620 = scalar_lea.vmem %s5, 8
  %1621 = vst [vmem:[%s1620] sm:$0xf] %v1619
  %v1622 = vlaneseq
  %v1623 = vshrl.u32 %v1622, 7
  %v1624 = vsub.s32 3, %v1623
  %v1625 = vrot.slane %v35, %v1624
  %v1626 = vlaneseq
  %v1627 = vshrl.u32 %v1626, 7
  %v1628 = vsub.s32 3, %v1627
  %v1629 = vrot.slane %v36, %v1628
  %v1632 = vcombine.low %v1625, %v1629
  %v1634 = vunpack.c.l.s4 1983009808
  %v1635 = vunpack.c.0.s8 %v1634
  %v1636 = vlaneseq
  %v1637 = vshrl.u32 %v1636, 7
  %v1638 = vsub.s32 %v1635, %v1637
  %v1639 = vrot.slane %v1632, %v1638
  %v1641 = vmul.f32 %v19, %v1639
  %v1642 = vadd.f32 %v1641, 0.0
  %v1643 = vlaneseq
  %v1644 = vshrl.u32 %v1643, 7
  %v1645 = vsub.s32 3, %v1644
  %v1646 = vrot.slane %v51, %v1645
  %v1647 = vlaneseq
  %v1648 = vshrl.u32 %v1647, 7
  %v1649 = vsub.s32 3, %v1648
  %v1650 = vrot.slane %v52, %v1649
  %v1653 = vcombine.low %v1646, %v1650
  %v1655 = vunpack.c.l.s4 1983009808
  %v1656 = vunpack.c.0.s8 %v1655
  %v1657 = vlaneseq
  %v1658 = vshrl.u32 %v1657, 7
  %v1659 = vsub.s32 %v1656, %v1658
  %v1660 = vrot.slane %v1653, %v1659
  %v1662 = vmul.f32 %v27, %v1660
  %v1663 = vadd.f32 %v1662, 0.0
  %v1664 = vlaneseq
  %v1665 = vshrl.u32 %v1664, 7
  %v1666 = vsub.s32 3, %v1665
  %v1667 = vrot.slane %v75, %v1666
  %v1668 = vlaneseq
  %v1669 = vshrl.u32 %v1668, 7
  %v1670 = vsub.s32 3, %v1669
  %v1671 = vrot.slane %v76, %v1670
  %v1674 = vcombine.low %v1667, %v1671
  %v1676 = vunpack.c.l.s4 1983009808
  %v1677 = vunpack.c.0.s8 %v1676
  %v1678 = vlaneseq
  %v1679 = vshrl.u32 %v1678, 7
  %v1680 = vsub.s32 %v1677, %v1679
  %v1681 = vrot.slane %v1674, %v1680
  %v1683 = vmul.f32 %v67, %v1681
  %v1684 = vadd.f32 %v1683, 0.0
  %v1685 = vlaneseq
  %v1686 = vshrl.u32 %v1685, 7
  %v1687 = vsub.s32 3, %v1686
  %v1688 = vrot.slane %v37, %v1687
  %v1689 = vlaneseq
  %v1690 = vshrl.u32 %v1689, 7
  %v1691 = vsub.s32 3, %v1690
  %v1692 = vrot.slane %v38, %v1691
  %v1695 = vcombine.low %v1688, %v1692
  %v1697 = vunpack.c.l.s4 1983009808
  %v1698 = vunpack.c.0.s8 %v1697
  %v1699 = vlaneseq
  %v1700 = vshrl.u32 %v1699, 7
  %v1701 = vsub.s32 %v1698, %v1700
  %v1702 = vrot.slane %v1695, %v1701
  %v1704 = vmul.f32 %v20, %v1702
  %v1705 = vadd.f32 %v1642, %v1704
  %v1706 = vlaneseq
  %v1707 = vshrl.u32 %v1706, 7
  %v1708 = vsub.s32 3, %v1707
  %v1709 = vrot.slane %v53, %v1708
  %v1710 = vlaneseq
  %v1711 = vshrl.u32 %v1710, 7
  %v1712 = vsub.s32 3, %v1711
  %v1713 = vrot.slane %v54, %v1712
  %v1716 = vcombine.low %v1709, %v1713
  %v1718 = vunpack.c.l.s4 1983009808
  %v1719 = vunpack.c.0.s8 %v1718
  %v1720 = vlaneseq
  %v1721 = vshrl.u32 %v1720, 7
  %v1722 = vsub.s32 %v1719, %v1721
  %v1723 = vrot.slane %v1716, %v1722
  %v1725 = vmul.f32 %v28, %v1723
  %v1726 = vadd.f32 %v1663, %v1725
  %v1727 = vlaneseq
  %v1728 = vshrl.u32 %v1727, 7
  %v1729 = vsub.s32 3, %v1728
  %v1730 = vrot.slane %v77, %v1729
  %v1731 = vlaneseq
  %v1732 = vshrl.u32 %v1731, 7
  %v1733 = vsub.s32 3, %v1732
  %v1734 = vrot.slane %v78, %v1733
  %v1737 = vcombine.low %v1730, %v1734
  %v1739 = vunpack.c.l.s4 1983009808
  %v1740 = vunpack.c.0.s8 %v1739
  %v1741 = vlaneseq
  %v1742 = vshrl.u32 %v1741, 7
  %v1743 = vsub.s32 %v1740, %v1742
  %v1744 = vrot.slane %v1737, %v1743
  %v1746 = vmul.f32 %v68, %v1744
  %v1747 = vadd.f32 %v1684, %v1746
  %v1748 = vlaneseq
  %v1749 = vshrl.u32 %v1748, 7
  %v1750 = vsub.s32 3, %v1749
  %v1751 = vrot.slane %v39, %v1750
  %v1752 = vlaneseq
  %v1753 = vshrl.u32 %v1752, 7
  %v1754 = vsub.s32 3, %v1753
  %v1755 = vrot.slane %v40, %v1754
  %v1758 = vcombine.low %v1751, %v1755
  %v1760 = vunpack.c.l.s4 1983009808
  %v1761 = vunpack.c.0.s8 %v1760
  %v1762 = vlaneseq
  %v1763 = vshrl.u32 %v1762, 7
  %v1764 = vsub.s32 %v1761, %v1763
  %v1765 = vrot.slane %v1758, %v1764
  %v1767 = vmul.f32 %v21, %v1765
  %v1768 = vadd.f32 %v1705, %v1767
  %v1769 = vlaneseq
  %v1770 = vshrl.u32 %v1769, 7
  %v1771 = vsub.s32 3, %v1770
  %v1772 = vrot.slane %v55, %v1771
  %v1773 = vlaneseq
  %v1774 = vshrl.u32 %v1773, 7
  %v1775 = vsub.s32 3, %v1774
  %v1776 = vrot.slane %v56, %v1775
  %v1779 = vcombine.low %v1772, %v1776
  %v1781 = vunpack.c.l.s4 1983009808
  %v1782 = vunpack.c.0.s8 %v1781
  %v1783 = vlaneseq
  %v1784 = vshrl.u32 %v1783, 7
  %v1785 = vsub.s32 %v1782, %v1784
  %v1786 = vrot.slane %v1779, %v1785
  %v1788 = vmul.f32 %v29, %v1786
  %v1789 = vadd.f32 %v1726, %v1788
  %v1790 = vlaneseq
  %v1791 = vshrl.u32 %v1790, 7
  %v1792 = vsub.s32 3, %v1791
  %v1793 = vrot.slane %v79, %v1792
  %v1794 = vlaneseq
  %v1795 = vshrl.u32 %v1794, 7
  %v1796 = vsub.s32 3, %v1795
  %v1797 = vrot.slane %v80, %v1796
  %v1800 = vcombine.low %v1793, %v1797
  %v1802 = vunpack.c.l.s4 1983009808
  %v1803 = vunpack.c.0.s8 %v1802
  %v1804 = vlaneseq
  %v1805 = vshrl.u32 %v1804, 7
  %v1806 = vsub.s32 %v1803, %v1805
  %v1807 = vrot.slane %v1800, %v1806
  %v1809 = vmul.f32 %v69, %v1807
  %v1810 = vadd.f32 %v1747, %v1809
  %v1811 = vlaneseq
  %v1812 = vshrl.u32 %v1811, 7
  %v1813 = vsub.s32 3, %v1812
  %v1814 = vrot.slane %v41, %v1813
  %v1815 = vlaneseq
  %v1816 = vshrl.u32 %v1815, 7
  %v1817 = vsub.s32 3, %v1816
  %v1818 = vrot.slane %v42, %v1817
  %v1821 = vcombine.low %v1814, %v1818
  %v1823 = vunpack.c.l.s4 1983009808
  %v1824 = vunpack.c.0.s8 %v1823
  %v1825 = vlaneseq
  %v1826 = vshrl.u32 %v1825, 7
  %v1827 = vsub.s32 %v1824, %v1826
  %v1828 = vrot.slane %v1821, %v1827
  %v1830 = vmul.f32 %v22, %v1828
  %v1831 = vadd.f32 %v1768, %v1830
  %v1832 = vlaneseq
  %v1833 = vshrl.u32 %v1832, 7
  %v1834 = vsub.s32 3, %v1833
  %v1835 = vrot.slane %v57, %v1834
  %v1836 = vlaneseq
  %v1837 = vshrl.u32 %v1836, 7
  %v1838 = vsub.s32 3, %v1837
  %v1839 = vrot.slane %v58, %v1838
  %v1842 = vcombine.low %v1835, %v1839
  %v1844 = vunpack.c.l.s4 1983009808
  %v1845 = vunpack.c.0.s8 %v1844
  %v1846 = vlaneseq
  %v1847 = vshrl.u32 %v1846, 7
  %v1848 = vsub.s32 %v1845, %v1847
  %v1849 = vrot.slane %v1842, %v1848
  %v1851 = vmul.f32 %v30, %v1849
  %v1852 = vadd.f32 %v1789, %v1851
  %v1853 = vlaneseq
  %v1854 = vshrl.u32 %v1853, 7
  %v1855 = vsub.s32 3, %v1854
  %v1856 = vrot.slane %v81, %v1855
  %v1857 = vlaneseq
  %v1858 = vshrl.u32 %v1857, 7
  %v1859 = vsub.s32 3, %v1858
  %v1860 = vrot.slane %v82, %v1859
  %v1863 = vcombine.low %v1856, %v1860
  %v1865 = vunpack.c.l.s4 1983009808
  %v1866 = vunpack.c.0.s8 %v1865
  %v1867 = vlaneseq
  %v1868 = vshrl.u32 %v1867, 7
  %v1869 = vsub.s32 %v1866, %v1868
  %v1870 = vrot.slane %v1863, %v1869
  %v1872 = vmul.f32 %v70, %v1870
  %v1873 = vadd.f32 %v1810, %v1872
  %v1874 = vlaneseq
  %v1875 = vshrl.u32 %v1874, 7
  %v1876 = vsub.s32 3, %v1875
  %v1877 = vrot.slane %v43, %v1876
  %v1878 = vlaneseq
  %v1879 = vshrl.u32 %v1878, 7
  %v1880 = vsub.s32 3, %v1879
  %v1881 = vrot.slane %v44, %v1880
  %v1884 = vcombine.low %v1877, %v1881
  %v1886 = vunpack.c.l.s4 1983009808
  %v1887 = vunpack.c.0.s8 %v1886
  %v1888 = vlaneseq
  %v1889 = vshrl.u32 %v1888, 7
  %v1890 = vsub.s32 %v1887, %v1889
  %v1891 = vrot.slane %v1884, %v1890
  %v1893 = vmul.f32 %v23, %v1891
  %v1894 = vadd.f32 %v1831, %v1893
  %v1895 = vlaneseq
  %v1896 = vshrl.u32 %v1895, 7
  %v1897 = vsub.s32 3, %v1896
  %v1898 = vrot.slane %v59, %v1897
  %v1899 = vlaneseq
  %v1900 = vshrl.u32 %v1899, 7
  %v1901 = vsub.s32 3, %v1900
  %v1902 = vrot.slane %v60, %v1901
  %v1905 = vcombine.low %v1898, %v1902
  %v1907 = vunpack.c.l.s4 1983009808
  %v1908 = vunpack.c.0.s8 %v1907
  %v1909 = vlaneseq
  %v1910 = vshrl.u32 %v1909, 7
  %v1911 = vsub.s32 %v1908, %v1910
  %v1912 = vrot.slane %v1905, %v1911
  %v1914 = vmul.f32 %v31, %v1912
  %v1915 = vadd.f32 %v1852, %v1914
  %v1916 = vlaneseq
  %v1917 = vshrl.u32 %v1916, 7
  %v1918 = vsub.s32 3, %v1917
  %v1919 = vrot.slane %v83, %v1918
  %v1920 = vlaneseq
  %v1921 = vshrl.u32 %v1920, 7
  %v1922 = vsub.s32 3, %v1921
  %v1923 = vrot.slane %v84, %v1922
  %v1926 = vcombine.low %v1919, %v1923
  %v1928 = vunpack.c.l.s4 1983009808
  %v1929 = vunpack.c.0.s8 %v1928
  %v1930 = vlaneseq
  %v1931 = vshrl.u32 %v1930, 7
  %v1932 = vsub.s32 %v1929, %v1931
  %v1933 = vrot.slane %v1926, %v1932
  %v1935 = vmul.f32 %v71, %v1933
  %v1936 = vadd.f32 %v1873, %v1935
  %v1937 = vlaneseq
  %v1938 = vshrl.u32 %v1937, 7
  %v1939 = vsub.s32 3, %v1938
  %v1940 = vrot.slane %v45, %v1939
  %v1941 = vlaneseq
  %v1942 = vshrl.u32 %v1941, 7
  %v1943 = vsub.s32 3, %v1942
  %v1944 = vrot.slane %v46, %v1943
  %v1947 = vcombine.low %v1940, %v1944
  %v1949 = vunpack.c.l.s4 1983009808
  %v1950 = vunpack.c.0.s8 %v1949
  %v1951 = vlaneseq
  %v1952 = vshrl.u32 %v1951, 7
  %v1953 = vsub.s32 %v1950, %v1952
  %v1954 = vrot.slane %v1947, %v1953
  %v1956 = vmul.f32 %v24, %v1954
  %v1957 = vadd.f32 %v1894, %v1956
  %v1958 = vlaneseq
  %v1959 = vshrl.u32 %v1958, 7
  %v1960 = vsub.s32 3, %v1959
  %v1961 = vrot.slane %v61, %v1960
  %v1962 = vlaneseq
  %v1963 = vshrl.u32 %v1962, 7
  %v1964 = vsub.s32 3, %v1963
  %v1965 = vrot.slane %v62, %v1964
  %v1968 = vcombine.low %v1961, %v1965
  %v1970 = vunpack.c.l.s4 1983009808
  %v1971 = vunpack.c.0.s8 %v1970
  %v1972 = vlaneseq
  %v1973 = vshrl.u32 %v1972, 7
  %v1974 = vsub.s32 %v1971, %v1973
  %v1975 = vrot.slane %v1968, %v1974
  %v1977 = vmul.f32 %v32, %v1975
  %v1978 = vadd.f32 %v1915, %v1977
  %v1979 = vlaneseq
  %v1980 = vshrl.u32 %v1979, 7
  %v1981 = vsub.s32 3, %v1980
  %v1982 = vrot.slane %v85, %v1981
  %v1983 = vlaneseq
  %v1984 = vshrl.u32 %v1983, 7
  %v1985 = vsub.s32 3, %v1984
  %v1986 = vrot.slane %v86, %v1985
  %v1989 = vcombine.low %v1982, %v1986
  %v1991 = vunpack.c.l.s4 1983009808
  %v1992 = vunpack.c.0.s8 %v1991
  %v1993 = vlaneseq
  %v1994 = vshrl.u32 %v1993, 7
  %v1995 = vsub.s32 %v1992, %v1994
  %v1996 = vrot.slane %v1989, %v1995
  %v1998 = vmul.f32 %v72, %v1996
  %v1999 = vadd.f32 %v1936, %v1998
  %v2000 = vlaneseq
  %v2001 = vshrl.u32 %v2000, 7
  %v2002 = vsub.s32 3, %v2001
  %v2003 = vrot.slane %v47, %v2002
  %v2004 = vlaneseq
  %v2005 = vshrl.u32 %v2004, 7
  %v2006 = vsub.s32 3, %v2005
  %v2007 = vrot.slane %v48, %v2006
  %v2010 = vcombine.low %v2003, %v2007
  %v2012 = vunpack.c.l.s4 1983009808
  %v2013 = vunpack.c.0.s8 %v2012
  %v2014 = vlaneseq
  %v2015 = vshrl.u32 %v2014, 7
  %v2016 = vsub.s32 %v2013, %v2015
  %v2017 = vrot.slane %v2010, %v2016
  %v2019 = vmul.f32 %v25, %v2017
  %v2020 = vadd.f32 %v1957, %v2019
  %v2021 = vlaneseq
  %v2022 = vshrl.u32 %v2021, 7
  %v2023 = vsub.s32 3, %v2022
  %v2024 = vrot.slane %v63, %v2023
  %v2025 = vlaneseq
  %v2026 = vshrl.u32 %v2025, 7
  %v2027 = vsub.s32 3, %v2026
  %v2028 = vrot.slane %v64, %v2027
  %v2031 = vcombine.low %v2024, %v2028
  %v2033 = vunpack.c.l.s4 1983009808
  %v2034 = vunpack.c.0.s8 %v2033
  %v2035 = vlaneseq
  %v2036 = vshrl.u32 %v2035, 7
  %v2037 = vsub.s32 %v2034, %v2036
  %v2038 = vrot.slane %v2031, %v2037
  %v2040 = vmul.f32 %v33, %v2038
  %v2041 = vadd.f32 %v1978, %v2040
  %v2042 = vlaneseq
  %v2043 = vshrl.u32 %v2042, 7
  %v2044 = vsub.s32 3, %v2043
  %v2045 = vrot.slane %v87, %v2044
  %v2046 = vlaneseq
  %v2047 = vshrl.u32 %v2046, 7
  %v2048 = vsub.s32 3, %v2047
  %v2049 = vrot.slane %v88, %v2048
  %v2052 = vcombine.low %v2045, %v2049
  %v2054 = vunpack.c.l.s4 1983009808
  %v2055 = vunpack.c.0.s8 %v2054
  %v2056 = vlaneseq
  %v2057 = vshrl.u32 %v2056, 7
  %v2058 = vsub.s32 %v2055, %v2057
  %v2059 = vrot.slane %v2052, %v2058
  %v2061 = vmul.f32 %v73, %v2059
  %v2062 = vadd.f32 %v1999, %v2061
  %v2063 = vlaneseq
  %v2064 = vshrl.u32 %v2063, 7
  %v2065 = vsub.s32 3, %v2064
  %v2066 = vrot.slane %v49, %v2065
  %v2067 = vlaneseq
  %v2068 = vshrl.u32 %v2067, 7
  %v2069 = vsub.s32 3, %v2068
  %v2070 = vrot.slane %v50, %v2069
  %v2073 = vcombine.low %v2066, %v2070
  %v2075 = vunpack.c.l.s4 1983009808
  %v2076 = vunpack.c.0.s8 %v2075
  %v2077 = vlaneseq
  %v2078 = vshrl.u32 %v2077, 7
  %v2079 = vsub.s32 %v2076, %v2078
  %v2080 = vrot.slane %v2073, %v2079
  %v2082 = vmul.f32 %v26, %v2080
  %v2083 = vadd.f32 %v2020, %v2082
  %v2084 = vlaneseq
  %v2085 = vshrl.u32 %v2084, 7
  %v2086 = vsub.s32 3, %v2085
  %v2087 = vrot.slane %v65, %v2086
  %v2088 = vlaneseq
  %v2089 = vshrl.u32 %v2088, 7
  %v2090 = vsub.s32 3, %v2089
  %v2091 = vrot.slane %v66, %v2090
  %v2094 = vcombine.low %v2087, %v2091
  %v2096 = vunpack.c.l.s4 1983009808
  %v2097 = vunpack.c.0.s8 %v2096
  %v2098 = vlaneseq
  %v2099 = vshrl.u32 %v2098, 7
  %v2100 = vsub.s32 %v2097, %v2099
  %v2101 = vrot.slane %v2094, %v2100
  %v2103 = vmul.f32 %v34, %v2101
  %v2104 = vadd.f32 %v2041, %v2103
  %v2105 = vlaneseq
  %v2106 = vshrl.u32 %v2105, 7
  %v2107 = vsub.s32 3, %v2106
  %v2108 = vrot.slane %v89, %v2107
  %v2109 = vlaneseq
  %v2110 = vshrl.u32 %v2109, 7
  %v2111 = vsub.s32 3, %v2110
  %v2112 = vrot.slane %v90, %v2111
  %v2115 = vcombine.low %v2108, %v2112
  %v2117 = vunpack.c.l.s4 1983009808
  %v2118 = vunpack.c.0.s8 %v2117
  %v2119 = vlaneseq
  %v2120 = vshrl.u32 %v2119, 7
  %v2121 = vsub.s32 %v2118, %v2120
  %v2122 = vrot.slane %v2115, %v2121
  %v2124 = vmul.f32 %v74, %v2122
  %v2125 = vadd.f32 %v2062, %v2124
  %v2126 = vsub.f32 %v2083, %v2104
  %s2127 = scalar_lea.vmem %s4, 12
  %2128 = vst [vmem:[%s2127] sm:$0xf] %v2126
  %v2129 = vsub.f32 %v2125, %v2083
  %v2130 = vsub.f32 %v2129, %v2104
  %s2131 = scalar_lea.vmem %s5, 12
  %2132 = vst [vmem:[%s2131] sm:$0xf] %v2130
  %v2133 = vlaneseq
  %v2134 = vshrl.u32 %v2133, 7
  %v2135 = vsub.s32 4, %v2134
  %v2136 = vrot.slane %v35, %v2135
  %v2137 = vlaneseq
  %v2138 = vshrl.u32 %v2137, 7
  %v2139 = vsub.s32 4, %v2138
  %v2140 = vrot.slane %v36, %v2139
  %v2143 = vcombine.low %v2136, %v2140
  %v2145 = vunpack.c.l.s4 1983009808
  %v2146 = vunpack.c.0.s8 %v2145
  %v2147 = vlaneseq
  %v2148 = vshrl.u32 %v2147, 7
  %v2149 = vsub.s32 %v2146, %v2148
  %v2150 = vrot.slane %v2143, %v2149
  %v2152 = vmul.f32 %v19, %v2150
  %v2153 = vadd.f32 %v2152, 0.0
  %v2154 = vlaneseq
  %v2155 = vshrl.u32 %v2154, 7
  %v2156 = vsub.s32 4, %v2155
  %v2157 = vrot.slane %v51, %v2156
  %v2158 = vlaneseq
  %v2159 = vshrl.u32 %v2158, 7
  %v2160 = vsub.s32 4, %v2159
  %v2161 = vrot.slane %v52, %v2160
  %v2164 = vcombine.low %v2157, %v2161
  %v2166 = vunpack.c.l.s4 1983009808
  %v2167 = vunpack.c.0.s8 %v2166
  %v2168 = vlaneseq
  %v2169 = vshrl.u32 %v2168, 7
  %v2170 = vsub.s32 %v2167, %v2169
  %v2171 = vrot.slane %v2164, %v2170
  %v2173 = vmul.f32 %v27, %v2171
  %v2174 = vadd.f32 %v2173, 0.0
  %v2175 = vlaneseq
  %v2176 = vshrl.u32 %v2175, 7
  %v2177 = vsub.s32 4, %v2176
  %v2178 = vrot.slane %v75, %v2177
  %v2179 = vlaneseq
  %v2180 = vshrl.u32 %v2179, 7
  %v2181 = vsub.s32 4, %v2180
  %v2182 = vrot.slane %v76, %v2181
  %v2185 = vcombine.low %v2178, %v2182
  %v2187 = vunpack.c.l.s4 1983009808
  %v2188 = vunpack.c.0.s8 %v2187
  %v2189 = vlaneseq
  %v2190 = vshrl.u32 %v2189, 7
  %v2191 = vsub.s32 %v2188, %v2190
  %v2192 = vrot.slane %v2185, %v2191
  %v2194 = vmul.f32 %v67, %v2192
  %v2195 = vadd.f32 %v2194, 0.0
  %v2196 = vlaneseq
  %v2197 = vshrl.u32 %v2196, 7
  %v2198 = vsub.s32 4, %v2197
  %v2199 = vrot.slane %v37, %v2198
  %v2200 = vlaneseq
  %v2201 = vshrl.u32 %v2200, 7
  %v2202 = vsub.s32 4, %v2201
  %v2203 = vrot.slane %v38, %v2202
  %v2206 = vcombine.low %v2199, %v2203
  %v2208 = vunpack.c.l.s4 1983009808
  %v2209 = vunpack.c.0.s8 %v2208
  %v2210 = vlaneseq
  %v2211 = vshrl.u32 %v2210, 7
  %v2212 = vsub.s32 %v2209, %v2211
  %v2213 = vrot.slane %v2206, %v2212
  %v2215 = vmul.f32 %v20, %v2213
  %v2216 = vadd.f32 %v2153, %v2215
  %v2217 = vlaneseq
  %v2218 = vshrl.u32 %v2217, 7
  %v2219 = vsub.s32 4, %v2218
  %v2220 = vrot.slane %v53, %v2219
  %v2221 = vlaneseq
  %v2222 = vshrl.u32 %v2221, 7
  %v2223 = vsub.s32 4, %v2222
  %v2224 = vrot.slane %v54, %v2223
  %v2227 = vcombine.low %v2220, %v2224
  %v2229 = vunpack.c.l.s4 1983009808
  %v2230 = vunpack.c.0.s8 %v2229
  %v2231 = vlaneseq
  %v2232 = vshrl.u32 %v2231, 7
  %v2233 = vsub.s32 %v2230, %v2232
  %v2234 = vrot.slane %v2227, %v2233
  %v2236 = vmul.f32 %v28, %v2234
  %v2237 = vadd.f32 %v2174, %v2236
  %v2238 = vlaneseq
  %v2239 = vshrl.u32 %v2238, 7
  %v2240 = vsub.s32 4, %v2239
  %v2241 = vrot.slane %v77, %v2240
  %v2242 = vlaneseq
  %v2243 = vshrl.u32 %v2242, 7
  %v2244 = vsub.s32 4, %v2243
  %v2245 = vrot.slane %v78, %v2244
  %v2248 = vcombine.low %v2241, %v2245
  %v2250 = vunpack.c.l.s4 1983009808
  %v2251 = vunpack.c.0.s8 %v2250
  %v2252 = vlaneseq
  %v2253 = vshrl.u32 %v2252, 7
  %v2254 = vsub.s32 %v2251, %v2253
  %v2255 = vrot.slane %v2248, %v2254
  %v2257 = vmul.f32 %v68, %v2255
  %v2258 = vadd.f32 %v2195, %v2257
  %v2259 = vlaneseq
  %v2260 = vshrl.u32 %v2259, 7
  %v2261 = vsub.s32 4, %v2260
  %v2262 = vrot.slane %v39, %v2261
  %v2263 = vlaneseq
  %v2264 = vshrl.u32 %v2263, 7
  %v2265 = vsub.s32 4, %v2264
  %v2266 = vrot.slane %v40, %v2265
  %v2269 = vcombine.low %v2262, %v2266
  %v2271 = vunpack.c.l.s4 1983009808
  %v2272 = vunpack.c.0.s8 %v2271
  %v2273 = vlaneseq
  %v2274 = vshrl.u32 %v2273, 7
  %v2275 = vsub.s32 %v2272, %v2274
  %v2276 = vrot.slane %v2269, %v2275
  %v2278 = vmul.f32 %v21, %v2276
  %v2279 = vadd.f32 %v2216, %v2278
  %v2280 = vlaneseq
  %v2281 = vshrl.u32 %v2280, 7
  %v2282 = vsub.s32 4, %v2281
  %v2283 = vrot.slane %v55, %v2282
  %v2284 = vlaneseq
  %v2285 = vshrl.u32 %v2284, 7
  %v2286 = vsub.s32 4, %v2285
  %v2287 = vrot.slane %v56, %v2286
  %v2290 = vcombine.low %v2283, %v2287
  %v2292 = vunpack.c.l.s4 1983009808
  %v2293 = vunpack.c.0.s8 %v2292
  %v2294 = vlaneseq
  %v2295 = vshrl.u32 %v2294, 7
  %v2296 = vsub.s32 %v2293, %v2295
  %v2297 = vrot.slane %v2290, %v2296
  %v2299 = vmul.f32 %v29, %v2297
  %v2300 = vadd.f32 %v2237, %v2299
  %v2301 = vlaneseq
  %v2302 = vshrl.u32 %v2301, 7
  %v2303 = vsub.s32 4, %v2302
  %v2304 = vrot.slane %v79, %v2303
  %v2305 = vlaneseq
  %v2306 = vshrl.u32 %v2305, 7
  %v2307 = vsub.s32 4, %v2306
  %v2308 = vrot.slane %v80, %v2307
  %v2311 = vcombine.low %v2304, %v2308
  %v2313 = vunpack.c.l.s4 1983009808
  %v2314 = vunpack.c.0.s8 %v2313
  %v2315 = vlaneseq
  %v2316 = vshrl.u32 %v2315, 7
  %v2317 = vsub.s32 %v2314, %v2316
  %v2318 = vrot.slane %v2311, %v2317
  %v2320 = vmul.f32 %v69, %v2318
  %v2321 = vadd.f32 %v2258, %v2320
  %v2322 = vlaneseq
  %v2323 = vshrl.u32 %v2322, 7
  %v2324 = vsub.s32 4, %v2323
  %v2325 = vrot.slane %v41, %v2324
  %v2326 = vlaneseq
  %v2327 = vshrl.u32 %v2326, 7
  %v2328 = vsub.s32 4, %v2327
  %v2329 = vrot.slane %v42, %v2328
  %v2332 = vcombine.low %v2325, %v2329
  %v2334 = vunpack.c.l.s4 1983009808
  %v2335 = vunpack.c.0.s8 %v2334
  %v2336 = vlaneseq
  %v2337 = vshrl.u32 %v2336, 7
  %v2338 = vsub.s32 %v2335, %v2337
  %v2339 = vrot.slane %v2332, %v2338
  %v2341 = vmul.f32 %v22, %v2339
  %v2342 = vadd.f32 %v2279, %v2341
  %v2343 = vlaneseq
  %v2344 = vshrl.u32 %v2343, 7
  %v2345 = vsub.s32 4, %v2344
  %v2346 = vrot.slane %v57, %v2345
  %v2347 = vlaneseq
  %v2348 = vshrl.u32 %v2347, 7
  %v2349 = vsub.s32 4, %v2348
  %v2350 = vrot.slane %v58, %v2349
  %v2353 = vcombine.low %v2346, %v2350
  %v2355 = vunpack.c.l.s4 1983009808
  %v2356 = vunpack.c.0.s8 %v2355
  %v2357 = vlaneseq
  %v2358 = vshrl.u32 %v2357, 7
  %v2359 = vsub.s32 %v2356, %v2358
  %v2360 = vrot.slane %v2353, %v2359
  %v2362 = vmul.f32 %v30, %v2360
  %v2363 = vadd.f32 %v2300, %v2362
  %v2364 = vlaneseq
  %v2365 = vshrl.u32 %v2364, 7
  %v2366 = vsub.s32 4, %v2365
  %v2367 = vrot.slane %v81, %v2366
  %v2368 = vlaneseq
  %v2369 = vshrl.u32 %v2368, 7
  %v2370 = vsub.s32 4, %v2369
  %v2371 = vrot.slane %v82, %v2370
  %v2374 = vcombine.low %v2367, %v2371
  %v2376 = vunpack.c.l.s4 1983009808
  %v2377 = vunpack.c.0.s8 %v2376
  %v2378 = vlaneseq
  %v2379 = vshrl.u32 %v2378, 7
  %v2380 = vsub.s32 %v2377, %v2379
  %v2381 = vrot.slane %v2374, %v2380
  %v2383 = vmul.f32 %v70, %v2381
  %v2384 = vadd.f32 %v2321, %v2383
  %v2385 = vlaneseq
  %v2386 = vshrl.u32 %v2385, 7
  %v2387 = vsub.s32 4, %v2386
  %v2388 = vrot.slane %v43, %v2387
  %v2389 = vlaneseq
  %v2390 = vshrl.u32 %v2389, 7
  %v2391 = vsub.s32 4, %v2390
  %v2392 = vrot.slane %v44, %v2391
  %v2395 = vcombine.low %v2388, %v2392
  %v2397 = vunpack.c.l.s4 1983009808
  %v2398 = vunpack.c.0.s8 %v2397
  %v2399 = vlaneseq
  %v2400 = vshrl.u32 %v2399, 7
  %v2401 = vsub.s32 %v2398, %v2400
  %v2402 = vrot.slane %v2395, %v2401
  %v2404 = vmul.f32 %v23, %v2402
  %v2405 = vadd.f32 %v2342, %v2404
  %v2406 = vlaneseq
  %v2407 = vshrl.u32 %v2406, 7
  %v2408 = vsub.s32 4, %v2407
  %v2409 = vrot.slane %v59, %v2408
  %v2410 = vlaneseq
  %v2411 = vshrl.u32 %v2410, 7
  %v2412 = vsub.s32 4, %v2411
  %v2413 = vrot.slane %v60, %v2412
  %v2416 = vcombine.low %v2409, %v2413
  %v2418 = vunpack.c.l.s4 1983009808
  %v2419 = vunpack.c.0.s8 %v2418
  %v2420 = vlaneseq
  %v2421 = vshrl.u32 %v2420, 7
  %v2422 = vsub.s32 %v2419, %v2421
  %v2423 = vrot.slane %v2416, %v2422
  %v2425 = vmul.f32 %v31, %v2423
  %v2426 = vadd.f32 %v2363, %v2425
  %v2427 = vlaneseq
  %v2428 = vshrl.u32 %v2427, 7
  %v2429 = vsub.s32 4, %v2428
  %v2430 = vrot.slane %v83, %v2429
  %v2431 = vlaneseq
  %v2432 = vshrl.u32 %v2431, 7
  %v2433 = vsub.s32 4, %v2432
  %v2434 = vrot.slane %v84, %v2433
  %v2437 = vcombine.low %v2430, %v2434
  %v2439 = vunpack.c.l.s4 1983009808
  %v2440 = vunpack.c.0.s8 %v2439
  %v2441 = vlaneseq
  %v2442 = vshrl.u32 %v2441, 7
  %v2443 = vsub.s32 %v2440, %v2442
  %v2444 = vrot.slane %v2437, %v2443
  %v2446 = vmul.f32 %v71, %v2444
  %v2447 = vadd.f32 %v2384, %v2446
  %v2448 = vlaneseq
  %v2449 = vshrl.u32 %v2448, 7
  %v2450 = vsub.s32 4, %v2449
  %v2451 = vrot.slane %v45, %v2450
  %v2452 = vlaneseq
  %v2453 = vshrl.u32 %v2452, 7
  %v2454 = vsub.s32 4, %v2453
  %v2455 = vrot.slane %v46, %v2454
  %v2458 = vcombine.low %v2451, %v2455
  %v2460 = vunpack.c.l.s4 1983009808
  %v2461 = vunpack.c.0.s8 %v2460
  %v2462 = vlaneseq
  %v2463 = vshrl.u32 %v2462, 7
  %v2464 = vsub.s32 %v2461, %v2463
  %v2465 = vrot.slane %v2458, %v2464
  %v2467 = vmul.f32 %v24, %v2465
  %v2468 = vadd.f32 %v2405, %v2467
  %v2469 = vlaneseq
  %v2470 = vshrl.u32 %v2469, 7
  %v2471 = vsub.s32 4, %v2470
  %v2472 = vrot.slane %v61, %v2471
  %v2473 = vlaneseq
  %v2474 = vshrl.u32 %v2473, 7
  %v2475 = vsub.s32 4, %v2474
  %v2476 = vrot.slane %v62, %v2475
  %v2479 = vcombine.low %v2472, %v2476
  %v2481 = vunpack.c.l.s4 1983009808
  %v2482 = vunpack.c.0.s8 %v2481
  %v2483 = vlaneseq
  %v2484 = vshrl.u32 %v2483, 7
  %v2485 = vsub.s32 %v2482, %v2484
  %v2486 = vrot.slane %v2479, %v2485
  %v2488 = vmul.f32 %v32, %v2486
  %v2489 = vadd.f32 %v2426, %v2488
  %v2490 = vlaneseq
  %v2491 = vshrl.u32 %v2490, 7
  %v2492 = vsub.s32 4, %v2491
  %v2493 = vrot.slane %v85, %v2492
  %v2494 = vlaneseq
  %v2495 = vshrl.u32 %v2494, 7
  %v2496 = vsub.s32 4, %v2495
  %v2497 = vrot.slane %v86, %v2496
  %v2500 = vcombine.low %v2493, %v2497
  %v2502 = vunpack.c.l.s4 1983009808
  %v2503 = vunpack.c.0.s8 %v2502
  %v2504 = vlaneseq
  %v2505 = vshrl.u32 %v2504, 7
  %v2506 = vsub.s32 %v2503, %v2505
  %v2507 = vrot.slane %v2500, %v2506
  %v2509 = vmul.f32 %v72, %v2507
  %v2510 = vadd.f32 %v2447, %v2509
  %v2511 = vlaneseq
  %v2512 = vshrl.u32 %v2511, 7
  %v2513 = vsub.s32 4, %v2512
  %v2514 = vrot.slane %v47, %v2513
  %v2515 = vlaneseq
  %v2516 = vshrl.u32 %v2515, 7
  %v2517 = vsub.s32 4, %v2516
  %v2518 = vrot.slane %v48, %v2517
  %v2521 = vcombine.low %v2514, %v2518
  %v2523 = vunpack.c.l.s4 1983009808
  %v2524 = vunpack.c.0.s8 %v2523
  %v2525 = vlaneseq
  %v2526 = vshrl.u32 %v2525, 7
  %v2527 = vsub.s32 %v2524, %v2526
  %v2528 = vrot.slane %v2521, %v2527
  %v2530 = vmul.f32 %v25, %v2528
  %v2531 = vadd.f32 %v2468, %v2530
  %v2532 = vlaneseq
  %v2533 = vshrl.u32 %v2532, 7
  %v2534 = vsub.s32 4, %v2533
  %v2535 = vrot.slane %v63, %v2534
  %v2536 = vlaneseq
  %v2537 = vshrl.u32 %v2536, 7
  %v2538 = vsub.s32 4, %v2537
  %v2539 = vrot.slane %v64, %v2538
  %v2542 = vcombine.low %v2535, %v2539
  %v2544 = vunpack.c.l.s4 1983009808
  %v2545 = vunpack.c.0.s8 %v2544
  %v2546 = vlaneseq
  %v2547 = vshrl.u32 %v2546, 7
  %v2548 = vsub.s32 %v2545, %v2547
  %v2549 = vrot.slane %v2542, %v2548
  %v2551 = vmul.f32 %v33, %v2549
  %v2552 = vadd.f32 %v2489, %v2551
  %v2553 = vlaneseq
  %v2554 = vshrl.u32 %v2553, 7
  %v2555 = vsub.s32 4, %v2554
  %v2556 = vrot.slane %v87, %v2555
  %v2557 = vlaneseq
  %v2558 = vshrl.u32 %v2557, 7
  %v2559 = vsub.s32 4, %v2558
  %v2560 = vrot.slane %v88, %v2559
  %v2563 = vcombine.low %v2556, %v2560
  %v2565 = vunpack.c.l.s4 1983009808
  %v2566 = vunpack.c.0.s8 %v2565
  %v2567 = vlaneseq
  %v2568 = vshrl.u32 %v2567, 7
  %v2569 = vsub.s32 %v2566, %v2568
  %v2570 = vrot.slane %v2563, %v2569
  %v2572 = vmul.f32 %v73, %v2570
  %v2573 = vadd.f32 %v2510, %v2572
  %v2574 = vlaneseq
  %v2575 = vshrl.u32 %v2574, 7
  %v2576 = vsub.s32 4, %v2575
  %v2577 = vrot.slane %v49, %v2576
  %v2578 = vlaneseq
  %v2579 = vshrl.u32 %v2578, 7
  %v2580 = vsub.s32 4, %v2579
  %v2581 = vrot.slane %v50, %v2580
  %v2584 = vcombine.low %v2577, %v2581
  %v2586 = vunpack.c.l.s4 1983009808
  %v2587 = vunpack.c.0.s8 %v2586
  %v2588 = vlaneseq
  %v2589 = vshrl.u32 %v2588, 7
  %v2590 = vsub.s32 %v2587, %v2589
  %v2591 = vrot.slane %v2584, %v2590
  %v2593 = vmul.f32 %v26, %v2591
  %v2594 = vadd.f32 %v2531, %v2593
  %v2595 = vlaneseq
  %v2596 = vshrl.u32 %v2595, 7
  %v2597 = vsub.s32 4, %v2596
  %v2598 = vrot.slane %v65, %v2597
  %v2599 = vlaneseq
  %v2600 = vshrl.u32 %v2599, 7
  %v2601 = vsub.s32 4, %v2600
  %v2602 = vrot.slane %v66, %v2601
  %v2605 = vcombine.low %v2598, %v2602
  %v2607 = vunpack.c.l.s4 1983009808
  %v2608 = vunpack.c.0.s8 %v2607
  %v2609 = vlaneseq
  %v2610 = vshrl.u32 %v2609, 7
  %v2611 = vsub.s32 %v2608, %v2610
  %v2612 = vrot.slane %v2605, %v2611
  %v2614 = vmul.f32 %v34, %v2612
  %v2615 = vadd.f32 %v2552, %v2614
  %v2616 = vlaneseq
  %v2617 = vshrl.u32 %v2616, 7
  %v2618 = vsub.s32 4, %v2617
  %v2619 = vrot.slane %v89, %v2618
  %v2620 = vlaneseq
  %v2621 = vshrl.u32 %v2620, 7
  %v2622 = vsub.s32 4, %v2621
  %v2623 = vrot.slane %v90, %v2622
  %v2626 = vcombine.low %v2619, %v2623
  %v2628 = vunpack.c.l.s4 1983009808
  %v2629 = vunpack.c.0.s8 %v2628
  %v2630 = vlaneseq
  %v2631 = vshrl.u32 %v2630, 7
  %v2632 = vsub.s32 %v2629, %v2631
  %v2633 = vrot.slane %v2626, %v2632
  %v2635 = vmul.f32 %v74, %v2633
  %v2636 = vadd.f32 %v2573, %v2635
  %v2637 = vsub.f32 %v2594, %v2615
  %s2638 = scalar_lea.vmem %s4, 16
  %2639 = vst [vmem:[%s2638] sm:$0xf] %v2637
  %v2640 = vsub.f32 %v2636, %v2594
  %v2641 = vsub.f32 %v2640, %v2615
  %s2642 = scalar_lea.vmem %s5, 16
  %2643 = vst [vmem:[%s2642] sm:$0xf] %v2641
  %v2644 = vlaneseq
  %v2645 = vshrl.u32 %v2644, 7
  %v2646 = vsub.s32 5, %v2645
  %v2647 = vrot.slane %v35, %v2646
  %v2648 = vlaneseq
  %v2649 = vshrl.u32 %v2648, 7
  %v2650 = vsub.s32 5, %v2649
  %v2651 = vrot.slane %v36, %v2650
  %v2654 = vcombine.low %v2647, %v2651
  %v2656 = vunpack.c.l.s4 1983009808
  %v2657 = vunpack.c.0.s8 %v2656
  %v2658 = vlaneseq
  %v2659 = vshrl.u32 %v2658, 7
  %v2660 = vsub.s32 %v2657, %v2659
  %v2661 = vrot.slane %v2654, %v2660
  %v2663 = vmul.f32 %v19, %v2661
  %v2664 = vadd.f32 %v2663, 0.0
  %v2665 = vlaneseq
  %v2666 = vshrl.u32 %v2665, 7
  %v2667 = vsub.s32 5, %v2666
  %v2668 = vrot.slane %v51, %v2667
  %v2669 = vlaneseq
  %v2670 = vshrl.u32 %v2669, 7
  %v2671 = vsub.s32 5, %v2670
  %v2672 = vrot.slane %v52, %v2671
  %v2675 = vcombine.low %v2668, %v2672
  %v2677 = vunpack.c.l.s4 1983009808
  %v2678 = vunpack.c.0.s8 %v2677
  %v2679 = vlaneseq
  %v2680 = vshrl.u32 %v2679, 7
  %v2681 = vsub.s32 %v2678, %v2680
  %v2682 = vrot.slane %v2675, %v2681
  %v2684 = vmul.f32 %v27, %v2682
  %v2685 = vadd.f32 %v2684, 0.0
  %v2686 = vlaneseq
  %v2687 = vshrl.u32 %v2686, 7
  %v2688 = vsub.s32 5, %v2687
  %v2689 = vrot.slane %v75, %v2688
  %v2690 = vlaneseq
  %v2691 = vshrl.u32 %v2690, 7
  %v2692 = vsub.s32 5, %v2691
  %v2693 = vrot.slane %v76, %v2692
  %v2696 = vcombine.low %v2689, %v2693
  %v2698 = vunpack.c.l.s4 1983009808
  %v2699 = vunpack.c.0.s8 %v2698
  %v2700 = vlaneseq
  %v2701 = vshrl.u32 %v2700, 7
  %v2702 = vsub.s32 %v2699, %v2701
  %v2703 = vrot.slane %v2696, %v2702
  %v2705 = vmul.f32 %v67, %v2703
  %v2706 = vadd.f32 %v2705, 0.0
  %v2707 = vlaneseq
  %v2708 = vshrl.u32 %v2707, 7
  %v2709 = vsub.s32 5, %v2708
  %v2710 = vrot.slane %v37, %v2709
  %v2711 = vlaneseq
  %v2712 = vshrl.u32 %v2711, 7
  %v2713 = vsub.s32 5, %v2712
  %v2714 = vrot.slane %v38, %v2713
  %v2717 = vcombine.low %v2710, %v2714
  %v2719 = vunpack.c.l.s4 1983009808
  %v2720 = vunpack.c.0.s8 %v2719
  %v2721 = vlaneseq
  %v2722 = vshrl.u32 %v2721, 7
  %v2723 = vsub.s32 %v2720, %v2722
  %v2724 = vrot.slane %v2717, %v2723
  %v2726 = vmul.f32 %v20, %v2724
  %v2727 = vadd.f32 %v2664, %v2726
  %v2728 = vlaneseq
  %v2729 = vshrl.u32 %v2728, 7
  %v2730 = vsub.s32 5, %v2729
  %v2731 = vrot.slane %v53, %v2730
  %v2732 = vlaneseq
  %v2733 = vshrl.u32 %v2732, 7
  %v2734 = vsub.s32 5, %v2733
  %v2735 = vrot.slane %v54, %v2734
  %v2738 = vcombine.low %v2731, %v2735
  %v2740 = vunpack.c.l.s4 1983009808
  %v2741 = vunpack.c.0.s8 %v2740
  %v2742 = vlaneseq
  %v2743 = vshrl.u32 %v2742, 7
  %v2744 = vsub.s32 %v2741, %v2743
  %v2745 = vrot.slane %v2738, %v2744
  %v2747 = vmul.f32 %v28, %v2745
  %v2748 = vadd.f32 %v2685, %v2747
  %v2749 = vlaneseq
  %v2750 = vshrl.u32 %v2749, 7
  %v2751 = vsub.s32 5, %v2750
  %v2752 = vrot.slane %v77, %v2751
  %v2753 = vlaneseq
  %v2754 = vshrl.u32 %v2753, 7
  %v2755 = vsub.s32 5, %v2754
  %v2756 = vrot.slane %v78, %v2755
  %v2759 = vcombine.low %v2752, %v2756
  %v2761 = vunpack.c.l.s4 1983009808
  %v2762 = vunpack.c.0.s8 %v2761
  %v2763 = vlaneseq
  %v2764 = vshrl.u32 %v2763, 7
  %v2765 = vsub.s32 %v2762, %v2764
  %v2766 = vrot.slane %v2759, %v2765
  %v2768 = vmul.f32 %v68, %v2766
  %v2769 = vadd.f32 %v2706, %v2768
  %v2770 = vlaneseq
  %v2771 = vshrl.u32 %v2770, 7
  %v2772 = vsub.s32 5, %v2771
  %v2773 = vrot.slane %v39, %v2772
  %v2774 = vlaneseq
  %v2775 = vshrl.u32 %v2774, 7
  %v2776 = vsub.s32 5, %v2775
  %v2777 = vrot.slane %v40, %v2776
  %v2780 = vcombine.low %v2773, %v2777
  %v2782 = vunpack.c.l.s4 1983009808
  %v2783 = vunpack.c.0.s8 %v2782
  %v2784 = vlaneseq
  %v2785 = vshrl.u32 %v2784, 7
  %v2786 = vsub.s32 %v2783, %v2785
  %v2787 = vrot.slane %v2780, %v2786
  %v2789 = vmul.f32 %v21, %v2787
  %v2790 = vadd.f32 %v2727, %v2789
  %v2791 = vlaneseq
  %v2792 = vshrl.u32 %v2791, 7
  %v2793 = vsub.s32 5, %v2792
  %v2794 = vrot.slane %v55, %v2793
  %v2795 = vlaneseq
  %v2796 = vshrl.u32 %v2795, 7
  %v2797 = vsub.s32 5, %v2796
  %v2798 = vrot.slane %v56, %v2797
  %v2801 = vcombine.low %v2794, %v2798
  %v2803 = vunpack.c.l.s4 1983009808
  %v2804 = vunpack.c.0.s8 %v2803
  %v2805 = vlaneseq
  %v2806 = vshrl.u32 %v2805, 7
  %v2807 = vsub.s32 %v2804, %v2806
  %v2808 = vrot.slane %v2801, %v2807
  %v2810 = vmul.f32 %v29, %v2808
  %v2811 = vadd.f32 %v2748, %v2810
  %v2812 = vlaneseq
  %v2813 = vshrl.u32 %v2812, 7
  %v2814 = vsub.s32 5, %v2813
  %v2815 = vrot.slane %v79, %v2814
  %v2816 = vlaneseq
  %v2817 = vshrl.u32 %v2816, 7
  %v2818 = vsub.s32 5, %v2817
  %v2819 = vrot.slane %v80, %v2818
  %v2822 = vcombine.low %v2815, %v2819
  %v2824 = vunpack.c.l.s4 1983009808
  %v2825 = vunpack.c.0.s8 %v2824
  %v2826 = vlaneseq
  %v2827 = vshrl.u32 %v2826, 7
  %v2828 = vsub.s32 %v2825, %v2827
  %v2829 = vrot.slane %v2822, %v2828
  %v2831 = vmul.f32 %v69, %v2829
  %v2832 = vadd.f32 %v2769, %v2831
  %v2833 = vlaneseq
  %v2834 = vshrl.u32 %v2833, 7
  %v2835 = vsub.s32 5, %v2834
  %v2836 = vrot.slane %v41, %v2835
  %v2837 = vlaneseq
  %v2838 = vshrl.u32 %v2837, 7
  %v2839 = vsub.s32 5, %v2838
  %v2840 = vrot.slane %v42, %v2839
  %v2843 = vcombine.low %v2836, %v2840
  %v2845 = vunpack.c.l.s4 1983009808
  %v2846 = vunpack.c.0.s8 %v2845
  %v2847 = vlaneseq
  %v2848 = vshrl.u32 %v2847, 7
  %v2849 = vsub.s32 %v2846, %v2848
  %v2850 = vrot.slane %v2843, %v2849
  %v2852 = vmul.f32 %v22, %v2850
  %v2853 = vadd.f32 %v2790, %v2852
  %v2854 = vlaneseq
  %v2855 = vshrl.u32 %v2854, 7
  %v2856 = vsub.s32 5, %v2855
  %v2857 = vrot.slane %v57, %v2856
  %v2858 = vlaneseq
  %v2859 = vshrl.u32 %v2858, 7
  %v2860 = vsub.s32 5, %v2859
  %v2861 = vrot.slane %v58, %v2860
  %v2864 = vcombine.low %v2857, %v2861
  %v2866 = vunpack.c.l.s4 1983009808
  %v2867 = vunpack.c.0.s8 %v2866
  %v2868 = vlaneseq
  %v2869 = vshrl.u32 %v2868, 7
  %v2870 = vsub.s32 %v2867, %v2869
  %v2871 = vrot.slane %v2864, %v2870
  %v2873 = vmul.f32 %v30, %v2871
  %v2874 = vadd.f32 %v2811, %v2873
  %v2875 = vlaneseq
  %v2876 = vshrl.u32 %v2875, 7
  %v2877 = vsub.s32 5, %v2876
  %v2878 = vrot.slane %v81, %v2877
  %v2879 = vlaneseq
  %v2880 = vshrl.u32 %v2879, 7
  %v2881 = vsub.s32 5, %v2880
  %v2882 = vrot.slane %v82, %v2881
  %v2885 = vcombine.low %v2878, %v2882
  %v2887 = vunpack.c.l.s4 1983009808
  %v2888 = vunpack.c.0.s8 %v2887
  %v2889 = vlaneseq
  %v2890 = vshrl.u32 %v2889, 7
  %v2891 = vsub.s32 %v2888, %v2890
  %v2892 = vrot.slane %v2885, %v2891
  %v2894 = vmul.f32 %v70, %v2892
  %v2895 = vadd.f32 %v2832, %v2894
  %v2896 = vlaneseq
  %v2897 = vshrl.u32 %v2896, 7
  %v2898 = vsub.s32 5, %v2897
  %v2899 = vrot.slane %v43, %v2898
  %v2900 = vlaneseq
  %v2901 = vshrl.u32 %v2900, 7
  %v2902 = vsub.s32 5, %v2901
  %v2903 = vrot.slane %v44, %v2902
  %v2906 = vcombine.low %v2899, %v2903
  %v2908 = vunpack.c.l.s4 1983009808
  %v2909 = vunpack.c.0.s8 %v2908
  %v2910 = vlaneseq
  %v2911 = vshrl.u32 %v2910, 7
  %v2912 = vsub.s32 %v2909, %v2911
  %v2913 = vrot.slane %v2906, %v2912
  %v2915 = vmul.f32 %v23, %v2913
  %v2916 = vadd.f32 %v2853, %v2915
  %v2917 = vlaneseq
  %v2918 = vshrl.u32 %v2917, 7
  %v2919 = vsub.s32 5, %v2918
  %v2920 = vrot.slane %v59, %v2919
  %v2921 = vlaneseq
  %v2922 = vshrl.u32 %v2921, 7
  %v2923 = vsub.s32 5, %v2922
  %v2924 = vrot.slane %v60, %v2923
  %v2927 = vcombine.low %v2920, %v2924
  %v2929 = vunpack.c.l.s4 1983009808
  %v2930 = vunpack.c.0.s8 %v2929
  %v2931 = vlaneseq
  %v2932 = vshrl.u32 %v2931, 7
  %v2933 = vsub.s32 %v2930, %v2932
  %v2934 = vrot.slane %v2927, %v2933
  %v2936 = vmul.f32 %v31, %v2934
  %v2937 = vadd.f32 %v2874, %v2936
  %v2938 = vlaneseq
  %v2939 = vshrl.u32 %v2938, 7
  %v2940 = vsub.s32 5, %v2939
  %v2941 = vrot.slane %v83, %v2940
  %v2942 = vlaneseq
  %v2943 = vshrl.u32 %v2942, 7
  %v2944 = vsub.s32 5, %v2943
  %v2945 = vrot.slane %v84, %v2944
  %v2948 = vcombine.low %v2941, %v2945
  %v2950 = vunpack.c.l.s4 1983009808
  %v2951 = vunpack.c.0.s8 %v2950
  %v2952 = vlaneseq
  %v2953 = vshrl.u32 %v2952, 7
  %v2954 = vsub.s32 %v2951, %v2953
  %v2955 = vrot.slane %v2948, %v2954
  %v2957 = vmul.f32 %v71, %v2955
  %v2958 = vadd.f32 %v2895, %v2957
  %v2959 = vlaneseq
  %v2960 = vshrl.u32 %v2959, 7
  %v2961 = vsub.s32 5, %v2960
  %v2962 = vrot.slane %v45, %v2961
  %v2963 = vlaneseq
  %v2964 = vshrl.u32 %v2963, 7
  %v2965 = vsub.s32 5, %v2964
  %v2966 = vrot.slane %v46, %v2965
  %v2969 = vcombine.low %v2962, %v2966
  %v2971 = vunpack.c.l.s4 1983009808
  %v2972 = vunpack.c.0.s8 %v2971
  %v2973 = vlaneseq
  %v2974 = vshrl.u32 %v2973, 7
  %v2975 = vsub.s32 %v2972, %v2974
  %v2976 = vrot.slane %v2969, %v2975
  %v2978 = vmul.f32 %v24, %v2976
  %v2979 = vadd.f32 %v2916, %v2978
  %v2980 = vlaneseq
  %v2981 = vshrl.u32 %v2980, 7
  %v2982 = vsub.s32 5, %v2981
  %v2983 = vrot.slane %v61, %v2982
  %v2984 = vlaneseq
  %v2985 = vshrl.u32 %v2984, 7
  %v2986 = vsub.s32 5, %v2985
  %v2987 = vrot.slane %v62, %v2986
  %v2990 = vcombine.low %v2983, %v2987
  %v2992 = vunpack.c.l.s4 1983009808
  %v2993 = vunpack.c.0.s8 %v2992
  %v2994 = vlaneseq
  %v2995 = vshrl.u32 %v2994, 7
  %v2996 = vsub.s32 %v2993, %v2995
  %v2997 = vrot.slane %v2990, %v2996
  %v2999 = vmul.f32 %v32, %v2997
  %v3000 = vadd.f32 %v2937, %v2999
  %v3001 = vlaneseq
  %v3002 = vshrl.u32 %v3001, 7
  %v3003 = vsub.s32 5, %v3002
  %v3004 = vrot.slane %v85, %v3003
  %v3005 = vlaneseq
  %v3006 = vshrl.u32 %v3005, 7
  %v3007 = vsub.s32 5, %v3006
  %v3008 = vrot.slane %v86, %v3007
  %v3011 = vcombine.low %v3004, %v3008
  %v3013 = vunpack.c.l.s4 1983009808
  %v3014 = vunpack.c.0.s8 %v3013
  %v3015 = vlaneseq
  %v3016 = vshrl.u32 %v3015, 7
  %v3017 = vsub.s32 %v3014, %v3016
  %v3018 = vrot.slane %v3011, %v3017
  %v3020 = vmul.f32 %v72, %v3018
  %v3021 = vadd.f32 %v2958, %v3020
  %v3022 = vlaneseq
  %v3023 = vshrl.u32 %v3022, 7
  %v3024 = vsub.s32 5, %v3023
  %v3025 = vrot.slane %v47, %v3024
  %v3026 = vlaneseq
  %v3027 = vshrl.u32 %v3026, 7
  %v3028 = vsub.s32 5, %v3027
  %v3029 = vrot.slane %v48, %v3028
  %v3032 = vcombine.low %v3025, %v3029
  %v3034 = vunpack.c.l.s4 1983009808
  %v3035 = vunpack.c.0.s8 %v3034
  %v3036 = vlaneseq
  %v3037 = vshrl.u32 %v3036, 7
  %v3038 = vsub.s32 %v3035, %v3037
  %v3039 = vrot.slane %v3032, %v3038
  %v3041 = vmul.f32 %v25, %v3039
  %v3042 = vadd.f32 %v2979, %v3041
  %v3043 = vlaneseq
  %v3044 = vshrl.u32 %v3043, 7
  %v3045 = vsub.s32 5, %v3044
  %v3046 = vrot.slane %v63, %v3045
  %v3047 = vlaneseq
  %v3048 = vshrl.u32 %v3047, 7
  %v3049 = vsub.s32 5, %v3048
  %v3050 = vrot.slane %v64, %v3049
  %v3053 = vcombine.low %v3046, %v3050
  %v3055 = vunpack.c.l.s4 1983009808
  %v3056 = vunpack.c.0.s8 %v3055
  %v3057 = vlaneseq
  %v3058 = vshrl.u32 %v3057, 7
  %v3059 = vsub.s32 %v3056, %v3058
  %v3060 = vrot.slane %v3053, %v3059
  %v3062 = vmul.f32 %v33, %v3060
  %v3063 = vadd.f32 %v3000, %v3062
  %v3064 = vlaneseq
  %v3065 = vshrl.u32 %v3064, 7
  %v3066 = vsub.s32 5, %v3065
  %v3067 = vrot.slane %v87, %v3066
  %v3068 = vlaneseq
  %v3069 = vshrl.u32 %v3068, 7
  %v3070 = vsub.s32 5, %v3069
  %v3071 = vrot.slane %v88, %v3070
  %v3074 = vcombine.low %v3067, %v3071
  %v3076 = vunpack.c.l.s4 1983009808
  %v3077 = vunpack.c.0.s8 %v3076
  %v3078 = vlaneseq
  %v3079 = vshrl.u32 %v3078, 7
  %v3080 = vsub.s32 %v3077, %v3079
  %v3081 = vrot.slane %v3074, %v3080
  %v3083 = vmul.f32 %v73, %v3081
  %v3084 = vadd.f32 %v3021, %v3083
  %v3085 = vlaneseq
  %v3086 = vshrl.u32 %v3085, 7
  %v3087 = vsub.s32 5, %v3086
  %v3088 = vrot.slane %v49, %v3087
  %v3089 = vlaneseq
  %v3090 = vshrl.u32 %v3089, 7
  %v3091 = vsub.s32 5, %v3090
  %v3092 = vrot.slane %v50, %v3091
  %v3095 = vcombine.low %v3088, %v3092
  %v3097 = vunpack.c.l.s4 1983009808
  %v3098 = vunpack.c.0.s8 %v3097
  %v3099 = vlaneseq
  %v3100 = vshrl.u32 %v3099, 7
  %v3101 = vsub.s32 %v3098, %v3100
  %v3102 = vrot.slane %v3095, %v3101
  %v3104 = vmul.f32 %v26, %v3102
  %v3105 = vadd.f32 %v3042, %v3104
  %v3106 = vlaneseq
  %v3107 = vshrl.u32 %v3106, 7
  %v3108 = vsub.s32 5, %v3107
  %v3109 = vrot.slane %v65, %v3108
  %v3110 = vlaneseq
  %v3111 = vshrl.u32 %v3110, 7
  %v3112 = vsub.s32 5, %v3111
  %v3113 = vrot.slane %v66, %v3112
  %v3116 = vcombine.low %v3109, %v3113
  %v3118 = vunpack.c.l.s4 1983009808
  %v3119 = vunpack.c.0.s8 %v3118
  %v3120 = vlaneseq
  %v3121 = vshrl.u32 %v3120, 7
  %v3122 = vsub.s32 %v3119, %v3121
  %v3123 = vrot.slane %v3116, %v3122
  %v3125 = vmul.f32 %v34, %v3123
  %v3126 = vadd.f32 %v3063, %v3125
  %v3127 = vlaneseq
  %v3128 = vshrl.u32 %v3127, 7
  %v3129 = vsub.s32 5, %v3128
  %v3130 = vrot.slane %v89, %v3129
  %v3131 = vlaneseq
  %v3132 = vshrl.u32 %v3131, 7
  %v3133 = vsub.s32 5, %v3132
  %v3134 = vrot.slane %v90, %v3133
  %v3137 = vcombine.low %v3130, %v3134
  %v3139 = vunpack.c.l.s4 1983009808
  %v3140 = vunpack.c.0.s8 %v3139
  %v3141 = vlaneseq
  %v3142 = vshrl.u32 %v3141, 7
  %v3143 = vsub.s32 %v3140, %v3142
  %v3144 = vrot.slane %v3137, %v3143
  %v3146 = vmul.f32 %v74, %v3144
  %v3147 = vadd.f32 %v3084, %v3146
  %v3148 = vsub.f32 %v3105, %v3126
  %s3149 = scalar_lea.vmem %s4, 20
  %3150 = vst [vmem:[%s3149] sm:$0xf] %v3148
  %v3151 = vsub.f32 %v3147, %v3105
  %v3152 = vsub.f32 %v3151, %v3126
  %s3153 = scalar_lea.vmem %s5, 20
  %3154 = vst [vmem:[%s3153] sm:$0xf] %v3152
  %v3155 = vlaneseq
  %v3156 = vshrl.u32 %v3155, 7
  %v3157 = vsub.s32 6, %v3156
  %v3158 = vrot.slane %v35, %v3157
  %v3159 = vlaneseq
  %v3160 = vshrl.u32 %v3159, 7
  %v3161 = vsub.s32 6, %v3160
  %v3162 = vrot.slane %v36, %v3161
  %v3165 = vcombine.low %v3158, %v3162
  %v3167 = vunpack.c.l.s4 1983009808
  %v3168 = vunpack.c.0.s8 %v3167
  %v3169 = vlaneseq
  %v3170 = vshrl.u32 %v3169, 7
  %v3171 = vsub.s32 %v3168, %v3170
  %v3172 = vrot.slane %v3165, %v3171
  %v3174 = vmul.f32 %v19, %v3172
  %v3175 = vadd.f32 %v3174, 0.0
  %v3176 = vlaneseq
  %v3177 = vshrl.u32 %v3176, 7
  %v3178 = vsub.s32 6, %v3177
  %v3179 = vrot.slane %v51, %v3178
  %v3180 = vlaneseq
  %v3181 = vshrl.u32 %v3180, 7
  %v3182 = vsub.s32 6, %v3181
  %v3183 = vrot.slane %v52, %v3182
  %v3186 = vcombine.low %v3179, %v3183
  %v3188 = vunpack.c.l.s4 1983009808
  %v3189 = vunpack.c.0.s8 %v3188
  %v3190 = vlaneseq
  %v3191 = vshrl.u32 %v3190, 7
  %v3192 = vsub.s32 %v3189, %v3191
  %v3193 = vrot.slane %v3186, %v3192
  %v3195 = vmul.f32 %v27, %v3193
  %v3196 = vadd.f32 %v3195, 0.0
  %v3197 = vlaneseq
  %v3198 = vshrl.u32 %v3197, 7
  %v3199 = vsub.s32 6, %v3198
  %v3200 = vrot.slane %v75, %v3199
  %v3201 = vlaneseq
  %v3202 = vshrl.u32 %v3201, 7
  %v3203 = vsub.s32 6, %v3202
  %v3204 = vrot.slane %v76, %v3203
  %v3207 = vcombine.low %v3200, %v3204
  %v3209 = vunpack.c.l.s4 1983009808
  %v3210 = vunpack.c.0.s8 %v3209
  %v3211 = vlaneseq
  %v3212 = vshrl.u32 %v3211, 7
  %v3213 = vsub.s32 %v3210, %v3212
  %v3214 = vrot.slane %v3207, %v3213
  %v3216 = vmul.f32 %v67, %v3214
  %v3217 = vadd.f32 %v3216, 0.0
  %v3218 = vlaneseq
  %v3219 = vshrl.u32 %v3218, 7
  %v3220 = vsub.s32 6, %v3219
  %v3221 = vrot.slane %v37, %v3220
  %v3222 = vlaneseq
  %v3223 = vshrl.u32 %v3222, 7
  %v3224 = vsub.s32 6, %v3223
  %v3225 = vrot.slane %v38, %v3224
  %v3228 = vcombine.low %v3221, %v3225
  %v3230 = vunpack.c.l.s4 1983009808
  %v3231 = vunpack.c.0.s8 %v3230
  %v3232 = vlaneseq
  %v3233 = vshrl.u32 %v3232, 7
  %v3234 = vsub.s32 %v3231, %v3233
  %v3235 = vrot.slane %v3228, %v3234
  %v3237 = vmul.f32 %v20, %v3235
  %v3238 = vadd.f32 %v3175, %v3237
  %v3239 = vlaneseq
  %v3240 = vshrl.u32 %v3239, 7
  %v3241 = vsub.s32 6, %v3240
  %v3242 = vrot.slane %v53, %v3241
  %v3243 = vlaneseq
  %v3244 = vshrl.u32 %v3243, 7
  %v3245 = vsub.s32 6, %v3244
  %v3246 = vrot.slane %v54, %v3245
  %v3249 = vcombine.low %v3242, %v3246
  %v3251 = vunpack.c.l.s4 1983009808
  %v3252 = vunpack.c.0.s8 %v3251
  %v3253 = vlaneseq
  %v3254 = vshrl.u32 %v3253, 7
  %v3255 = vsub.s32 %v3252, %v3254
  %v3256 = vrot.slane %v3249, %v3255
  %v3258 = vmul.f32 %v28, %v3256
  %v3259 = vadd.f32 %v3196, %v3258
  %v3260 = vlaneseq
  %v3261 = vshrl.u32 %v3260, 7
  %v3262 = vsub.s32 6, %v3261
  %v3263 = vrot.slane %v77, %v3262
  %v3264 = vlaneseq
  %v3265 = vshrl.u32 %v3264, 7
  %v3266 = vsub.s32 6, %v3265
  %v3267 = vrot.slane %v78, %v3266
  %v3270 = vcombine.low %v3263, %v3267
  %v3272 = vunpack.c.l.s4 1983009808
  %v3273 = vunpack.c.0.s8 %v3272
  %v3274 = vlaneseq
  %v3275 = vshrl.u32 %v3274, 7
  %v3276 = vsub.s32 %v3273, %v3275
  %v3277 = vrot.slane %v3270, %v3276
  %v3279 = vmul.f32 %v68, %v3277
  %v3280 = vadd.f32 %v3217, %v3279
  %v3281 = vlaneseq
  %v3282 = vshrl.u32 %v3281, 7
  %v3283 = vsub.s32 6, %v3282
  %v3284 = vrot.slane %v39, %v3283
  %v3285 = vlaneseq
  %v3286 = vshrl.u32 %v3285, 7
  %v3287 = vsub.s32 6, %v3286
  %v3288 = vrot.slane %v40, %v3287
  %v3291 = vcombine.low %v3284, %v3288
  %v3293 = vunpack.c.l.s4 1983009808
  %v3294 = vunpack.c.0.s8 %v3293
  %v3295 = vlaneseq
  %v3296 = vshrl.u32 %v3295, 7
  %v3297 = vsub.s32 %v3294, %v3296
  %v3298 = vrot.slane %v3291, %v3297
  %v3300 = vmul.f32 %v21, %v3298
  %v3301 = vadd.f32 %v3238, %v3300
  %v3302 = vlaneseq
  %v3303 = vshrl.u32 %v3302, 7
  %v3304 = vsub.s32 6, %v3303
  %v3305 = vrot.slane %v55, %v3304
  %v3306 = vlaneseq
  %v3307 = vshrl.u32 %v3306, 7
  %v3308 = vsub.s32 6, %v3307
  %v3309 = vrot.slane %v56, %v3308
  %v3312 = vcombine.low %v3305, %v3309
  %v3314 = vunpack.c.l.s4 1983009808
  %v3315 = vunpack.c.0.s8 %v3314
  %v3316 = vlaneseq
  %v3317 = vshrl.u32 %v3316, 7
  %v3318 = vsub.s32 %v3315, %v3317
  %v3319 = vrot.slane %v3312, %v3318
  %v3321 = vmul.f32 %v29, %v3319
  %v3322 = vadd.f32 %v3259, %v3321
  %v3323 = vlaneseq
  %v3324 = vshrl.u32 %v3323, 7
  %v3325 = vsub.s32 6, %v3324
  %v3326 = vrot.slane %v79, %v3325
  %v3327 = vlaneseq
  %v3328 = vshrl.u32 %v3327, 7
  %v3329 = vsub.s32 6, %v3328
  %v3330 = vrot.slane %v80, %v3329
  %v3333 = vcombine.low %v3326, %v3330
  %v3335 = vunpack.c.l.s4 1983009808
  %v3336 = vunpack.c.0.s8 %v3335
  %v3337 = vlaneseq
  %v3338 = vshrl.u32 %v3337, 7
  %v3339 = vsub.s32 %v3336, %v3338
  %v3340 = vrot.slane %v3333, %v3339
  %v3342 = vmul.f32 %v69, %v3340
  %v3343 = vadd.f32 %v3280, %v3342
  %v3344 = vlaneseq
  %v3345 = vshrl.u32 %v3344, 7
  %v3346 = vsub.s32 6, %v3345
  %v3347 = vrot.slane %v41, %v3346
  %v3348 = vlaneseq
  %v3349 = vshrl.u32 %v3348, 7
  %v3350 = vsub.s32 6, %v3349
  %v3351 = vrot.slane %v42, %v3350
  %v3354 = vcombine.low %v3347, %v3351
  %v3356 = vunpack.c.l.s4 1983009808
  %v3357 = vunpack.c.0.s8 %v3356
  %v3358 = vlaneseq
  %v3359 = vshrl.u32 %v3358, 7
  %v3360 = vsub.s32 %v3357, %v3359
  %v3361 = vrot.slane %v3354, %v3360
  %v3363 = vmul.f32 %v22, %v3361
  %v3364 = vadd.f32 %v3301, %v3363
  %v3365 = vlaneseq
  %v3366 = vshrl.u32 %v3365, 7
  %v3367 = vsub.s32 6, %v3366
  %v3368 = vrot.slane %v57, %v3367
  %v3369 = vlaneseq
  %v3370 = vshrl.u32 %v3369, 7
  %v3371 = vsub.s32 6, %v3370
  %v3372 = vrot.slane %v58, %v3371
  %v3375 = vcombine.low %v3368, %v3372
  %v3377 = vunpack.c.l.s4 1983009808
  %v3378 = vunpack.c.0.s8 %v3377
  %v3379 = vlaneseq
  %v3380 = vshrl.u32 %v3379, 7
  %v3381 = vsub.s32 %v3378, %v3380
  %v3382 = vrot.slane %v3375, %v3381
  %v3384 = vmul.f32 %v30, %v3382
  %v3385 = vadd.f32 %v3322, %v3384
  %v3386 = vlaneseq
  %v3387 = vshrl.u32 %v3386, 7
  %v3388 = vsub.s32 6, %v3387
  %v3389 = vrot.slane %v81, %v3388
  %v3390 = vlaneseq
  %v3391 = vshrl.u32 %v3390, 7
  %v3392 = vsub.s32 6, %v3391
  %v3393 = vrot.slane %v82, %v3392
  %v3396 = vcombine.low %v3389, %v3393
  %v3398 = vunpack.c.l.s4 1983009808
  %v3399 = vunpack.c.0.s8 %v3398
  %v3400 = vlaneseq
  %v3401 = vshrl.u32 %v3400, 7
  %v3402 = vsub.s32 %v3399, %v3401
  %v3403 = vrot.slane %v3396, %v3402
  %v3405 = vmul.f32 %v70, %v3403
  %v3406 = vadd.f32 %v3343, %v3405
  %v3407 = vlaneseq
  %v3408 = vshrl.u32 %v3407, 7
  %v3409 = vsub.s32 6, %v3408
  %v3410 = vrot.slane %v43, %v3409
  %v3411 = vlaneseq
  %v3412 = vshrl.u32 %v3411, 7
  %v3413 = vsub.s32 6, %v3412
  %v3414 = vrot.slane %v44, %v3413
  %v3417 = vcombine.low %v3410, %v3414
  %v3419 = vunpack.c.l.s4 1983009808
  %v3420 = vunpack.c.0.s8 %v3419
  %v3421 = vlaneseq
  %v3422 = vshrl.u32 %v3421, 7
  %v3423 = vsub.s32 %v3420, %v3422
  %v3424 = vrot.slane %v3417, %v3423
  %v3426 = vmul.f32 %v23, %v3424
  %v3427 = vadd.f32 %v3364, %v3426
  %v3428 = vlaneseq
  %v3429 = vshrl.u32 %v3428, 7
  %v3430 = vsub.s32 6, %v3429
  %v3431 = vrot.slane %v59, %v3430
  %v3432 = vlaneseq
  %v3433 = vshrl.u32 %v3432, 7
  %v3434 = vsub.s32 6, %v3433
  %v3435 = vrot.slane %v60, %v3434
  %v3438 = vcombine.low %v3431, %v3435
  %v3440 = vunpack.c.l.s4 1983009808
  %v3441 = vunpack.c.0.s8 %v3440
  %v3442 = vlaneseq
  %v3443 = vshrl.u32 %v3442, 7
  %v3444 = vsub.s32 %v3441, %v3443
  %v3445 = vrot.slane %v3438, %v3444
  %v3447 = vmul.f32 %v31, %v3445
  %v3448 = vadd.f32 %v3385, %v3447
  %v3449 = vlaneseq
  %v3450 = vshrl.u32 %v3449, 7
  %v3451 = vsub.s32 6, %v3450
  %v3452 = vrot.slane %v83, %v3451
  %v3453 = vlaneseq
  %v3454 = vshrl.u32 %v3453, 7
  %v3455 = vsub.s32 6, %v3454
  %v3456 = vrot.slane %v84, %v3455
  %v3459 = vcombine.low %v3452, %v3456
  %v3461 = vunpack.c.l.s4 1983009808
  %v3462 = vunpack.c.0.s8 %v3461
  %v3463 = vlaneseq
  %v3464 = vshrl.u32 %v3463, 7
  %v3465 = vsub.s32 %v3462, %v3464
  %v3466 = vrot.slane %v3459, %v3465
  %v3468 = vmul.f32 %v71, %v3466
  %v3469 = vadd.f32 %v3406, %v3468
  %v3470 = vlaneseq
  %v3471 = vshrl.u32 %v3470, 7
  %v3472 = vsub.s32 6, %v3471
  %v3473 = vrot.slane %v45, %v3472
  %v3474 = vlaneseq
  %v3475 = vshrl.u32 %v3474, 7
  %v3476 = vsub.s32 6, %v3475
  %v3477 = vrot.slane %v46, %v3476
  %v3480 = vcombine.low %v3473, %v3477
  %v3482 = vunpack.c.l.s4 1983009808
  %v3483 = vunpack.c.0.s8 %v3482
  %v3484 = vlaneseq
  %v3485 = vshrl.u32 %v3484, 7
  %v3486 = vsub.s32 %v3483, %v3485
  %v3487 = vrot.slane %v3480, %v3486
  %v3489 = vmul.f32 %v24, %v3487
  %v3490 = vadd.f32 %v3427, %v3489
  %v3491 = vlaneseq
  %v3492 = vshrl.u32 %v3491, 7
  %v3493 = vsub.s32 6, %v3492
  %v3494 = vrot.slane %v61, %v3493
  %v3495 = vlaneseq
  %v3496 = vshrl.u32 %v3495, 7
  %v3497 = vsub.s32 6, %v3496
  %v3498 = vrot.slane %v62, %v3497
  %v3501 = vcombine.low %v3494, %v3498
  %v3503 = vunpack.c.l.s4 1983009808
  %v3504 = vunpack.c.0.s8 %v3503
  %v3505 = vlaneseq
  %v3506 = vshrl.u32 %v3505, 7
  %v3507 = vsub.s32 %v3504, %v3506
  %v3508 = vrot.slane %v3501, %v3507
  %v3510 = vmul.f32 %v32, %v3508
  %v3511 = vadd.f32 %v3448, %v3510
  %v3512 = vlaneseq
  %v3513 = vshrl.u32 %v3512, 7
  %v3514 = vsub.s32 6, %v3513
  %v3515 = vrot.slane %v85, %v3514
  %v3516 = vlaneseq
  %v3517 = vshrl.u32 %v3516, 7
  %v3518 = vsub.s32 6, %v3517
  %v3519 = vrot.slane %v86, %v3518
  %v3522 = vcombine.low %v3515, %v3519
  %v3524 = vunpack.c.l.s4 1983009808
  %v3525 = vunpack.c.0.s8 %v3524
  %v3526 = vlaneseq
  %v3527 = vshrl.u32 %v3526, 7
  %v3528 = vsub.s32 %v3525, %v3527
  %v3529 = vrot.slane %v3522, %v3528
  %v3531 = vmul.f32 %v72, %v3529
  %v3532 = vadd.f32 %v3469, %v3531
  %v3533 = vlaneseq
  %v3534 = vshrl.u32 %v3533, 7
  %v3535 = vsub.s32 6, %v3534
  %v3536 = vrot.slane %v47, %v3535
  %v3537 = vlaneseq
  %v3538 = vshrl.u32 %v3537, 7
  %v3539 = vsub.s32 6, %v3538
  %v3540 = vrot.slane %v48, %v3539
  %v3543 = vcombine.low %v3536, %v3540
  %v3545 = vunpack.c.l.s4 1983009808
  %v3546 = vunpack.c.0.s8 %v3545
  %v3547 = vlaneseq
  %v3548 = vshrl.u32 %v3547, 7
  %v3549 = vsub.s32 %v3546, %v3548
  %v3550 = vrot.slane %v3543, %v3549
  %v3552 = vmul.f32 %v25, %v3550
  %v3553 = vadd.f32 %v3490, %v3552
  %v3554 = vlaneseq
  %v3555 = vshrl.u32 %v3554, 7
  %v3556 = vsub.s32 6, %v3555
  %v3557 = vrot.slane %v63, %v3556
  %v3558 = vlaneseq
  %v3559 = vshrl.u32 %v3558, 7
  %v3560 = vsub.s32 6, %v3559
  %v3561 = vrot.slane %v64, %v3560
  %v3564 = vcombine.low %v3557, %v3561
  %v3566 = vunpack.c.l.s4 1983009808
  %v3567 = vunpack.c.0.s8 %v3566
  %v3568 = vlaneseq
  %v3569 = vshrl.u32 %v3568, 7
  %v3570 = vsub.s32 %v3567, %v3569
  %v3571 = vrot.slane %v3564, %v3570
  %v3573 = vmul.f32 %v33, %v3571
  %v3574 = vadd.f32 %v3511, %v3573
  %v3575 = vlaneseq
  %v3576 = vshrl.u32 %v3575, 7
  %v3577 = vsub.s32 6, %v3576
  %v3578 = vrot.slane %v87, %v3577
  %v3579 = vlaneseq
  %v3580 = vshrl.u32 %v3579, 7
  %v3581 = vsub.s32 6, %v3580
  %v3582 = vrot.slane %v88, %v3581
  %v3585 = vcombine.low %v3578, %v3582
  %v3587 = vunpack.c.l.s4 1983009808
  %v3588 = vunpack.c.0.s8 %v3587
  %v3589 = vlaneseq
  %v3590 = vshrl.u32 %v3589, 7
  %v3591 = vsub.s32 %v3588, %v3590
  %v3592 = vrot.slane %v3585, %v3591
  %v3594 = vmul.f32 %v73, %v3592
  %v3595 = vadd.f32 %v3532, %v3594
  %v3596 = vlaneseq
  %v3597 = vshrl.u32 %v3596, 7
  %v3598 = vsub.s32 6, %v3597
  %v3599 = vrot.slane %v49, %v3598
  %v3600 = vlaneseq
  %v3601 = vshrl.u32 %v3600, 7
  %v3602 = vsub.s32 6, %v3601
  %v3603 = vrot.slane %v50, %v3602
  %v3606 = vcombine.low %v3599, %v3603
  %v3608 = vunpack.c.l.s4 1983009808
  %v3609 = vunpack.c.0.s8 %v3608
  %v3610 = vlaneseq
  %v3611 = vshrl.u32 %v3610, 7
  %v3612 = vsub.s32 %v3609, %v3611
  %v3613 = vrot.slane %v3606, %v3612
  %v3615 = vmul.f32 %v26, %v3613
  %v3616 = vadd.f32 %v3553, %v3615
  %v3617 = vlaneseq
  %v3618 = vshrl.u32 %v3617, 7
  %v3619 = vsub.s32 6, %v3618
  %v3620 = vrot.slane %v65, %v3619
  %v3621 = vlaneseq
  %v3622 = vshrl.u32 %v3621, 7
  %v3623 = vsub.s32 6, %v3622
  %v3624 = vrot.slane %v66, %v3623
  %v3627 = vcombine.low %v3620, %v3624
  %v3629 = vunpack.c.l.s4 1983009808
  %v3630 = vunpack.c.0.s8 %v3629
  %v3631 = vlaneseq
  %v3632 = vshrl.u32 %v3631, 7
  %v3633 = vsub.s32 %v3630, %v3632
  %v3634 = vrot.slane %v3627, %v3633
  %v3636 = vmul.f32 %v34, %v3634
  %v3637 = vadd.f32 %v3574, %v3636
  %v3638 = vlaneseq
  %v3639 = vshrl.u32 %v3638, 7
  %v3640 = vsub.s32 6, %v3639
  %v3641 = vrot.slane %v89, %v3640
  %v3642 = vlaneseq
  %v3643 = vshrl.u32 %v3642, 7
  %v3644 = vsub.s32 6, %v3643
  %v3645 = vrot.slane %v90, %v3644
  %v3648 = vcombine.low %v3641, %v3645
  %v3650 = vunpack.c.l.s4 1983009808
  %v3651 = vunpack.c.0.s8 %v3650
  %v3652 = vlaneseq
  %v3653 = vshrl.u32 %v3652, 7
  %v3654 = vsub.s32 %v3651, %v3653
  %v3655 = vrot.slane %v3648, %v3654
  %v3657 = vmul.f32 %v74, %v3655
  %v3658 = vadd.f32 %v3595, %v3657
  %v3659 = vsub.f32 %v3616, %v3637
  %s3660 = scalar_lea.vmem %s4, 24
  %3661 = vst [vmem:[%s3660] sm:$0xf] %v3659
  %v3662 = vsub.f32 %v3658, %v3616
  %v3663 = vsub.f32 %v3662, %v3637
  %s3664 = scalar_lea.vmem %s5, 24
  %3665 = vst [vmem:[%s3664] sm:$0xf] %v3663
  %v3666 = vlaneseq
  %v3667 = vshrl.u32 %v3666, 7
  %v3668 = vsub.s32 7, %v3667
  %v3669 = vrot.slane %v35, %v3668
  %v3670 = vlaneseq
  %v3671 = vshrl.u32 %v3670, 7
  %v3672 = vsub.s32 7, %v3671
  %v3673 = vrot.slane %v36, %v3672
  %v3676 = vcombine.low %v3669, %v3673
  %v3678 = vunpack.c.l.s4 1983009808
  %v3679 = vunpack.c.0.s8 %v3678
  %v3680 = vlaneseq
  %v3681 = vshrl.u32 %v3680, 7
  %v3682 = vsub.s32 %v3679, %v3681
  %v3683 = vrot.slane %v3676, %v3682
  %v3685 = vmul.f32 %v19, %v3683
  %v3686 = vadd.f32 %v3685, 0.0
  %v3687 = vlaneseq
  %v3688 = vshrl.u32 %v3687, 7
  %v3689 = vsub.s32 7, %v3688
  %v3690 = vrot.slane %v51, %v3689
  %v3691 = vlaneseq
  %v3692 = vshrl.u32 %v3691, 7
  %v3693 = vsub.s32 7, %v3692
  %v3694 = vrot.slane %v52, %v3693
  %v3697 = vcombine.low %v3690, %v3694
  %v3699 = vunpack.c.l.s4 1983009808
  %v3700 = vunpack.c.0.s8 %v3699
  %v3701 = vlaneseq
  %v3702 = vshrl.u32 %v3701, 7
  %v3703 = vsub.s32 %v3700, %v3702
  %v3704 = vrot.slane %v3697, %v3703
  %v3706 = vmul.f32 %v27, %v3704
  %v3707 = vadd.f32 %v3706, 0.0
  %v3708 = vlaneseq
  %v3709 = vshrl.u32 %v3708, 7
  %v3710 = vsub.s32 7, %v3709
  %v3711 = vrot.slane %v75, %v3710
  %v3712 = vlaneseq
  %v3713 = vshrl.u32 %v3712, 7
  %v3714 = vsub.s32 7, %v3713
  %v3715 = vrot.slane %v76, %v3714
  %v3718 = vcombine.low %v3711, %v3715
  %v3720 = vunpack.c.l.s4 1983009808
  %v3721 = vunpack.c.0.s8 %v3720
  %v3722 = vlaneseq
  %v3723 = vshrl.u32 %v3722, 7
  %v3724 = vsub.s32 %v3721, %v3723
  %v3725 = vrot.slane %v3718, %v3724
  %v3727 = vmul.f32 %v67, %v3725
  %v3728 = vadd.f32 %v3727, 0.0
  %v3729 = vlaneseq
  %v3730 = vshrl.u32 %v3729, 7
  %v3731 = vsub.s32 7, %v3730
  %v3732 = vrot.slane %v37, %v3731
  %v3733 = vlaneseq
  %v3734 = vshrl.u32 %v3733, 7
  %v3735 = vsub.s32 7, %v3734
  %v3736 = vrot.slane %v38, %v3735
  %v3739 = vcombine.low %v3732, %v3736
  %v3741 = vunpack.c.l.s4 1983009808
  %v3742 = vunpack.c.0.s8 %v3741
  %v3743 = vlaneseq
  %v3744 = vshrl.u32 %v3743, 7
  %v3745 = vsub.s32 %v3742, %v3744
  %v3746 = vrot.slane %v3739, %v3745
  %v3748 = vmul.f32 %v20, %v3746
  %v3749 = vadd.f32 %v3686, %v3748
  %v3750 = vlaneseq
  %v3751 = vshrl.u32 %v3750, 7
  %v3752 = vsub.s32 7, %v3751
  %v3753 = vrot.slane %v53, %v3752
  %v3754 = vlaneseq
  %v3755 = vshrl.u32 %v3754, 7
  %v3756 = vsub.s32 7, %v3755
  %v3757 = vrot.slane %v54, %v3756
  %v3760 = vcombine.low %v3753, %v3757
  %v3762 = vunpack.c.l.s4 1983009808
  %v3763 = vunpack.c.0.s8 %v3762
  %v3764 = vlaneseq
  %v3765 = vshrl.u32 %v3764, 7
  %v3766 = vsub.s32 %v3763, %v3765
  %v3767 = vrot.slane %v3760, %v3766
  %v3769 = vmul.f32 %v28, %v3767
  %v3770 = vadd.f32 %v3707, %v3769
  %v3771 = vlaneseq
  %v3772 = vshrl.u32 %v3771, 7
  %v3773 = vsub.s32 7, %v3772
  %v3774 = vrot.slane %v77, %v3773
  %v3775 = vlaneseq
  %v3776 = vshrl.u32 %v3775, 7
  %v3777 = vsub.s32 7, %v3776
  %v3778 = vrot.slane %v78, %v3777
  %v3781 = vcombine.low %v3774, %v3778
  %v3783 = vunpack.c.l.s4 1983009808
  %v3784 = vunpack.c.0.s8 %v3783
  %v3785 = vlaneseq
  %v3786 = vshrl.u32 %v3785, 7
  %v3787 = vsub.s32 %v3784, %v3786
  %v3788 = vrot.slane %v3781, %v3787
  %v3790 = vmul.f32 %v68, %v3788
  %v3791 = vadd.f32 %v3728, %v3790
  %v3792 = vlaneseq
  %v3793 = vshrl.u32 %v3792, 7
  %v3794 = vsub.s32 7, %v3793
  %v3795 = vrot.slane %v39, %v3794
  %v3796 = vlaneseq
  %v3797 = vshrl.u32 %v3796, 7
  %v3798 = vsub.s32 7, %v3797
  %v3799 = vrot.slane %v40, %v3798
  %v3802 = vcombine.low %v3795, %v3799
  %v3804 = vunpack.c.l.s4 1983009808
  %v3805 = vunpack.c.0.s8 %v3804
  %v3806 = vlaneseq
  %v3807 = vshrl.u32 %v3806, 7
  %v3808 = vsub.s32 %v3805, %v3807
  %v3809 = vrot.slane %v3802, %v3808
  %v3811 = vmul.f32 %v21, %v3809
  %v3812 = vadd.f32 %v3749, %v3811
  %v3813 = vlaneseq
  %v3814 = vshrl.u32 %v3813, 7
  %v3815 = vsub.s32 7, %v3814
  %v3816 = vrot.slane %v55, %v3815
  %v3817 = vlaneseq
  %v3818 = vshrl.u32 %v3817, 7
  %v3819 = vsub.s32 7, %v3818
  %v3820 = vrot.slane %v56, %v3819
  %v3823 = vcombine.low %v3816, %v3820
  %v3825 = vunpack.c.l.s4 1983009808
  %v3826 = vunpack.c.0.s8 %v3825
  %v3827 = vlaneseq
  %v3828 = vshrl.u32 %v3827, 7
  %v3829 = vsub.s32 %v3826, %v3828
  %v3830 = vrot.slane %v3823, %v3829
  %v3832 = vmul.f32 %v29, %v3830
  %v3833 = vadd.f32 %v3770, %v3832
  %v3834 = vlaneseq
  %v3835 = vshrl.u32 %v3834, 7
  %v3836 = vsub.s32 7, %v3835
  %v3837 = vrot.slane %v79, %v3836
  %v3838 = vlaneseq
  %v3839 = vshrl.u32 %v3838, 7
  %v3840 = vsub.s32 7, %v3839
  %v3841 = vrot.slane %v80, %v3840
  %v3844 = vcombine.low %v3837, %v3841
  %v3846 = vunpack.c.l.s4 1983009808
  %v3847 = vunpack.c.0.s8 %v3846
  %v3848 = vlaneseq
  %v3849 = vshrl.u32 %v3848, 7
  %v3850 = vsub.s32 %v3847, %v3849
  %v3851 = vrot.slane %v3844, %v3850
  %v3853 = vmul.f32 %v69, %v3851
  %v3854 = vadd.f32 %v3791, %v3853
  %v3855 = vlaneseq
  %v3856 = vshrl.u32 %v3855, 7
  %v3857 = vsub.s32 7, %v3856
  %v3858 = vrot.slane %v41, %v3857
  %v3859 = vlaneseq
  %v3860 = vshrl.u32 %v3859, 7
  %v3861 = vsub.s32 7, %v3860
  %v3862 = vrot.slane %v42, %v3861
  %v3865 = vcombine.low %v3858, %v3862
  %v3867 = vunpack.c.l.s4 1983009808
  %v3868 = vunpack.c.0.s8 %v3867
  %v3869 = vlaneseq
  %v3870 = vshrl.u32 %v3869, 7
  %v3871 = vsub.s32 %v3868, %v3870
  %v3872 = vrot.slane %v3865, %v3871
  %v3874 = vmul.f32 %v22, %v3872
  %v3875 = vadd.f32 %v3812, %v3874
  %v3876 = vlaneseq
  %v3877 = vshrl.u32 %v3876, 7
  %v3878 = vsub.s32 7, %v3877
  %v3879 = vrot.slane %v57, %v3878
  %v3880 = vlaneseq
  %v3881 = vshrl.u32 %v3880, 7
  %v3882 = vsub.s32 7, %v3881
  %v3883 = vrot.slane %v58, %v3882
  %v3886 = vcombine.low %v3879, %v3883
  %v3888 = vunpack.c.l.s4 1983009808
  %v3889 = vunpack.c.0.s8 %v3888
  %v3890 = vlaneseq
  %v3891 = vshrl.u32 %v3890, 7
  %v3892 = vsub.s32 %v3889, %v3891
  %v3893 = vrot.slane %v3886, %v3892
  %v3895 = vmul.f32 %v30, %v3893
  %v3896 = vadd.f32 %v3833, %v3895
  %v3897 = vlaneseq
  %v3898 = vshrl.u32 %v3897, 7
  %v3899 = vsub.s32 7, %v3898
  %v3900 = vrot.slane %v81, %v3899
  %v3901 = vlaneseq
  %v3902 = vshrl.u32 %v3901, 7
  %v3903 = vsub.s32 7, %v3902
  %v3904 = vrot.slane %v82, %v3903
  %v3907 = vcombine.low %v3900, %v3904
  %v3909 = vunpack.c.l.s4 1983009808
  %v3910 = vunpack.c.0.s8 %v3909
  %v3911 = vlaneseq
  %v3912 = vshrl.u32 %v3911, 7
  %v3913 = vsub.s32 %v3910, %v3912
  %v3914 = vrot.slane %v3907, %v3913
  %v3916 = vmul.f32 %v70, %v3914
  %v3917 = vadd.f32 %v3854, %v3916
  %v3918 = vlaneseq
  %v3919 = vshrl.u32 %v3918, 7
  %v3920 = vsub.s32 7, %v3919
  %v3921 = vrot.slane %v43, %v3920
  %v3922 = vlaneseq
  %v3923 = vshrl.u32 %v3922, 7
  %v3924 = vsub.s32 7, %v3923
  %v3925 = vrot.slane %v44, %v3924
  %v3928 = vcombine.low %v3921, %v3925
  %v3930 = vunpack.c.l.s4 1983009808
  %v3931 = vunpack.c.0.s8 %v3930
  %v3932 = vlaneseq
  %v3933 = vshrl.u32 %v3932, 7
  %v3934 = vsub.s32 %v3931, %v3933
  %v3935 = vrot.slane %v3928, %v3934
  %v3937 = vmul.f32 %v23, %v3935
  %v3938 = vadd.f32 %v3875, %v3937
  %v3939 = vlaneseq
  %v3940 = vshrl.u32 %v3939, 7
  %v3941 = vsub.s32 7, %v3940
  %v3942 = vrot.slane %v59, %v3941
  %v3943 = vlaneseq
  %v3944 = vshrl.u32 %v3943, 7
  %v3945 = vsub.s32 7, %v3944
  %v3946 = vrot.slane %v60, %v3945
  %v3949 = vcombine.low %v3942, %v3946
  %v3951 = vunpack.c.l.s4 1983009808
  %v3952 = vunpack.c.0.s8 %v3951
  %v3953 = vlaneseq
  %v3954 = vshrl.u32 %v3953, 7
  %v3955 = vsub.s32 %v3952, %v3954
  %v3956 = vrot.slane %v3949, %v3955
  %v3958 = vmul.f32 %v31, %v3956
  %v3959 = vadd.f32 %v3896, %v3958
  %v3960 = vlaneseq
  %v3961 = vshrl.u32 %v3960, 7
  %v3962 = vsub.s32 7, %v3961
  %v3963 = vrot.slane %v83, %v3962
  %v3964 = vlaneseq
  %v3965 = vshrl.u32 %v3964, 7
  %v3966 = vsub.s32 7, %v3965
  %v3967 = vrot.slane %v84, %v3966
  %v3970 = vcombine.low %v3963, %v3967
  %v3972 = vunpack.c.l.s4 1983009808
  %v3973 = vunpack.c.0.s8 %v3972
  %v3974 = vlaneseq
  %v3975 = vshrl.u32 %v3974, 7
  %v3976 = vsub.s32 %v3973, %v3975
  %v3977 = vrot.slane %v3970, %v3976
  %v3979 = vmul.f32 %v71, %v3977
  %v3980 = vadd.f32 %v3917, %v3979
  %v3981 = vlaneseq
  %v3982 = vshrl.u32 %v3981, 7
  %v3983 = vsub.s32 7, %v3982
  %v3984 = vrot.slane %v45, %v3983
  %v3985 = vlaneseq
  %v3986 = vshrl.u32 %v3985, 7
  %v3987 = vsub.s32 7, %v3986
  %v3988 = vrot.slane %v46, %v3987
  %v3991 = vcombine.low %v3984, %v3988
  %v3993 = vunpack.c.l.s4 1983009808
  %v3994 = vunpack.c.0.s8 %v3993
  %v3995 = vlaneseq
  %v3996 = vshrl.u32 %v3995, 7
  %v3997 = vsub.s32 %v3994, %v3996
  %v3998 = vrot.slane %v3991, %v3997
  %v4000 = vmul.f32 %v24, %v3998
  %v4001 = vadd.f32 %v3938, %v4000
  %v4002 = vlaneseq
  %v4003 = vshrl.u32 %v4002, 7
  %v4004 = vsub.s32 7, %v4003
  %v4005 = vrot.slane %v61, %v4004
  %v4006 = vlaneseq
  %v4007 = vshrl.u32 %v4006, 7
  %v4008 = vsub.s32 7, %v4007
  %v4009 = vrot.slane %v62, %v4008
  %v4012 = vcombine.low %v4005, %v4009
  %v4014 = vunpack.c.l.s4 1983009808
  %v4015 = vunpack.c.0.s8 %v4014
  %v4016 = vlaneseq
  %v4017 = vshrl.u32 %v4016, 7
  %v4018 = vsub.s32 %v4015, %v4017
  %v4019 = vrot.slane %v4012, %v4018
  %v4021 = vmul.f32 %v32, %v4019
  %v4022 = vadd.f32 %v3959, %v4021
  %v4023 = vlaneseq
  %v4024 = vshrl.u32 %v4023, 7
  %v4025 = vsub.s32 7, %v4024
  %v4026 = vrot.slane %v85, %v4025
  %v4027 = vlaneseq
  %v4028 = vshrl.u32 %v4027, 7
  %v4029 = vsub.s32 7, %v4028
  %v4030 = vrot.slane %v86, %v4029
  %v4033 = vcombine.low %v4026, %v4030
  %v4035 = vunpack.c.l.s4 1983009808
  %v4036 = vunpack.c.0.s8 %v4035
  %v4037 = vlaneseq
  %v4038 = vshrl.u32 %v4037, 7
  %v4039 = vsub.s32 %v4036, %v4038
  %v4040 = vrot.slane %v4033, %v4039
  %v4042 = vmul.f32 %v72, %v4040
  %v4043 = vadd.f32 %v3980, %v4042
  %v4044 = vlaneseq
  %v4045 = vshrl.u32 %v4044, 7
  %v4046 = vsub.s32 7, %v4045
  %v4047 = vrot.slane %v47, %v4046
  %v4048 = vlaneseq
  %v4049 = vshrl.u32 %v4048, 7
  %v4050 = vsub.s32 7, %v4049
  %v4051 = vrot.slane %v48, %v4050
  %v4054 = vcombine.low %v4047, %v4051
  %v4056 = vunpack.c.l.s4 1983009808
  %v4057 = vunpack.c.0.s8 %v4056
  %v4058 = vlaneseq
  %v4059 = vshrl.u32 %v4058, 7
  %v4060 = vsub.s32 %v4057, %v4059
  %v4061 = vrot.slane %v4054, %v4060
  %v4063 = vmul.f32 %v25, %v4061
  %v4064 = vadd.f32 %v4001, %v4063
  %v4065 = vlaneseq
  %v4066 = vshrl.u32 %v4065, 7
  %v4067 = vsub.s32 7, %v4066
  %v4068 = vrot.slane %v63, %v4067
  %v4069 = vlaneseq
  %v4070 = vshrl.u32 %v4069, 7
  %v4071 = vsub.s32 7, %v4070
  %v4072 = vrot.slane %v64, %v4071
  %v4075 = vcombine.low %v4068, %v4072
  %v4077 = vunpack.c.l.s4 1983009808
  %v4078 = vunpack.c.0.s8 %v4077
  %v4079 = vlaneseq
  %v4080 = vshrl.u32 %v4079, 7
  %v4081 = vsub.s32 %v4078, %v4080
  %v4082 = vrot.slane %v4075, %v4081
  %v4084 = vmul.f32 %v33, %v4082
  %v4085 = vadd.f32 %v4022, %v4084
  %v4086 = vlaneseq
  %v4087 = vshrl.u32 %v4086, 7
  %v4088 = vsub.s32 7, %v4087
  %v4089 = vrot.slane %v87, %v4088
  %v4090 = vlaneseq
  %v4091 = vshrl.u32 %v4090, 7
  %v4092 = vsub.s32 7, %v4091
  %v4093 = vrot.slane %v88, %v4092
  %v4096 = vcombine.low %v4089, %v4093
  %v4098 = vunpack.c.l.s4 1983009808
  %v4099 = vunpack.c.0.s8 %v4098
  %v4100 = vlaneseq
  %v4101 = vshrl.u32 %v4100, 7
  %v4102 = vsub.s32 %v4099, %v4101
  %v4103 = vrot.slane %v4096, %v4102
  %v4105 = vmul.f32 %v73, %v4103
  %v4106 = vadd.f32 %v4043, %v4105
  %v4107 = vlaneseq
  %v4108 = vshrl.u32 %v4107, 7
  %v4109 = vsub.s32 7, %v4108
  %v4110 = vrot.slane %v49, %v4109
  %v4111 = vlaneseq
  %v4112 = vshrl.u32 %v4111, 7
  %v4113 = vsub.s32 7, %v4112
  %v4114 = vrot.slane %v50, %v4113
  %v4117 = vcombine.low %v4110, %v4114
  %v4119 = vunpack.c.l.s4 1983009808
  %v4120 = vunpack.c.0.s8 %v4119
  %v4121 = vlaneseq
  %v4122 = vshrl.u32 %v4121, 7
  %v4123 = vsub.s32 %v4120, %v4122
  %v4124 = vrot.slane %v4117, %v4123
  %v4126 = vmul.f32 %v26, %v4124
  %v4127 = vadd.f32 %v4064, %v4126
  %v4128 = vlaneseq
  %v4129 = vshrl.u32 %v4128, 7
  %v4130 = vsub.s32 7, %v4129
  %v4131 = vrot.slane %v65, %v4130
  %v4132 = vlaneseq
  %v4133 = vshrl.u32 %v4132, 7
  %v4134 = vsub.s32 7, %v4133
  %v4135 = vrot.slane %v66, %v4134
  %v4138 = vcombine.low %v4131, %v4135
  %v4140 = vunpack.c.l.s4 1983009808
  %v4141 = vunpack.c.0.s8 %v4140
  %v4142 = vlaneseq
  %v4143 = vshrl.u32 %v4142, 7
  %v4144 = vsub.s32 %v4141, %v4143
  %v4145 = vrot.slane %v4138, %v4144
  %v4147 = vmul.f32 %v34, %v4145
  %v4148 = vadd.f32 %v4085, %v4147
  %v4149 = vlaneseq
  %v4150 = vshrl.u32 %v4149, 7
  %v4151 = vsub.s32 7, %v4150
  %v4152 = vrot.slane %v89, %v4151
  %v4153 = vlaneseq
  %v4154 = vshrl.u32 %v4153, 7
  %v4155 = vsub.s32 7, %v4154
  %v4156 = vrot.slane %v90, %v4155
  %v4159 = vcombine.low %v4152, %v4156
  %v4161 = vunpack.c.l.s4 1983009808
  %v4162 = vunpack.c.0.s8 %v4161
  %v4163 = vlaneseq
  %v4164 = vshrl.u32 %v4163, 7
  %v4165 = vsub.s32 %v4162, %v4164
  %v4166 = vrot.slane %v4159, %v4165
  %v4168 = vmul.f32 %v74, %v4166
  %v4169 = vadd.f32 %v4106, %v4168
  %v4170 = vsub.f32 %v4127, %v4148
  %s4171 = scalar_lea.vmem %s4, 28
  %4172 = vst [vmem:[%s4171] sm:$0xf] %v4170
  %v4173 = vsub.f32 %v4169, %v4127
  %v4174 = vsub.f32 %v4173, %v4148
  %s4175 = scalar_lea.vmem %s5, 28
  %4176 = vst [vmem:[%s4175] sm:$0xf] %v4174
  // Predicated region
  $region18: #{inverse_pino_forward.11} parent=0 // pred_check
    _
  $region19: #{inverse_pino_forward.11} parent=0 // pred_check_branch
    %4178 = sbr.rel (0) target = $region21
  $region20: #{inverse_pino_forward.11} parent=0 // pred_region
    _
  $region21: #{inverse_pino_forward.11} parent=0 // pred_fallthru
    _
  // Predicated region
  $region22: #{inverse_pino_forward.11} parent=0 // pred_check
    _
  $region23: #{inverse_pino_forward.11} parent=0 // pred_check_branch
    %4180 = sbr.rel (0) target = $region25
  $region24: #{inverse_pino_forward.11} parent=0 // pred_region
    _
  $region25: #{inverse_pino_forward.11} parent=0 // pred_fallthru
    _
  // Predicated region
  $region26: #{inverse_pino_forward.11} parent=0 // pred_check
    _
  $region27: #{inverse_pino_forward.11} parent=0 // pred_check_branch
    %4182 = sbr.rel (0) target = $region29
  $region28: #{inverse_pino_forward.11} parent=0 // pred_region
    _
  $region29: #{inverse_pino_forward.11} parent=0 // pred_fallthru
    _
  // Predicated region
  $region30: #{inverse_pino_forward.11} parent=0 // pred_check
    _
  $region31: #{inverse_pino_forward.11} parent=0 // pred_check_branch
    %4184 = sbr.rel (0) target = $region33
  $region32: #{inverse_pino_forward.11} parent=0 // pred_region
    _
  $region33: #{inverse_pino_forward.11} parent=0 // pred_fallthru
    _

// kernel: reverse.8
$region0: #{reverse.8}
  #allocation0 [shape = 's32[1]{0}', space=sflag, size = 0x4, scoped, tag = 'scoped memory for reverse.8']
  %s0 = inlined_call_operand.vmem [shape: f32[8,2,8,8,3], index: 0, kind: input, shape index: {}]
  %s1 = inlined_call_operand.vmem [shape: f32[8,2,8,8,3], index: 1, kind: output, shape index: {}]
  %s2 = scalar_lea.vmem %s0, 16
  %v3 = vld [vmem:[%s2] sm:$0xff]
  %4 = vst [vmem:[%s1] sm:$0xff] %v3
  %s5 = scalar_lea.vmem %s0, 64
  %v6 = vld [vmem:[%s5] sm:$0xff]
  %s7 = scalar_lea.vmem %s1, 48
  %8 = vst [vmem:[%s7] sm:$0xff] %v6
  %s9 = scalar_lea.vmem %s0, 112
  %v10 = vld [vmem:[%s9] sm:$0xff]
  %s11 = scalar_lea.vmem %s1, 96
  %12 = vst [vmem:[%s11] sm:$0xff] %v10
  %s13 = scalar_lea.vmem %s0, 160
  %v14 = vld [vmem:[%s13] sm:$0xff]
  %s15 = scalar_lea.vmem %s1, 144
  %16 = vst [vmem:[%s15] sm:$0xff] %v14
  %s17 = scalar_lea.vmem %s0, 208
  %v18 = vld [vmem:[%s17] sm:$0xff]
  %s19 = scalar_lea.vmem %s1, 192
  %20 = vst [vmem:[%s19] sm:$0xff] %v18
  %s21 = scalar_lea.vmem %s0, 256
  %v22 = vld [vmem:[%s21] sm:$0xff]
  %s23 = scalar_lea.vmem %s1, 240
  %24 = vst [vmem:[%s23] sm:$0xff] %v22
  %s25 = scalar_lea.vmem %s0, 304
  %v26 = vld [vmem:[%s25] sm:$0xff]
  %s27 = scalar_lea.vmem %s1, 288
  %28 = vst [vmem:[%s27] sm:$0xff] %v26
  %s29 = scalar_lea.vmem %s0, 352
  %v30 = vld [vmem:[%s29] sm:$0xff]
  %s31 = scalar_lea.vmem %s1, 336
  %32 = vst [vmem:[%s31] sm:$0xff] %v30
  %s33 = scalar_lea.vmem %s0, 40
  %v34 = vld [vmem:[%s33] sm:$0xff]
  %s35 = scalar_lea.vmem %s1, 24
  %36 = vst [vmem:[%s35] sm:$0xff] %v34
  %s37 = scalar_lea.vmem %s0, 88
  %v38 = vld [vmem:[%s37] sm:$0xff]
  %s39 = scalar_lea.vmem %s1, 72
  %40 = vst [vmem:[%s39] sm:$0xff] %v38
  %s41 = scalar_lea.vmem %s0, 136
  %v42 = vld [vmem:[%s41] sm:$0xff]
  %s43 = scalar_lea.vmem %s1, 120
  %44 = vst [vmem:[%s43] sm:$0xff] %v42
  %s45 = scalar_lea.vmem %s0, 184
  %v46 = vld [vmem:[%s45] sm:$0xff]
  %s47 = scalar_lea.vmem %s1, 168
  %48 = vst [vmem:[%s47] sm:$0xff] %v46
  %s49 = scalar_lea.vmem %s0, 232
  %v50 = vld [vmem:[%s49] sm:$0xff]
  %s51 = scalar_lea.vmem %s1, 216
  %52 = vst [vmem:[%s51] sm:$0xff] %v50
  %s53 = scalar_lea.vmem %s0, 280
  %v54 = vld [vmem:[%s53] sm:$0xff]
  %s55 = scalar_lea.vmem %s1, 264
  %56 = vst [vmem:[%s55] sm:$0xff] %v54
  %s57 = scalar_lea.vmem %s0, 328
  %v58 = vld [vmem:[%s57] sm:$0xff]
  %s59 = scalar_lea.vmem %s1, 312
  %60 = vst [vmem:[%s59] sm:$0xff] %v58
  %s61 = scalar_lea.vmem %s0, 376
  %v62 = vld [vmem:[%s61] sm:$0xff]
  %s63 = scalar_lea.vmem %s1, 360
  %64 = vst [vmem:[%s63] sm:$0xff] %v62
  %s65 = scalar_lea.vmem %s0, 8
  %v66 = vld [vmem:[%s65] sm:$0xff]
  %s67 = scalar_lea.vmem %s1, 8
  %68 = vst [vmem:[%s67] sm:$0xff] %v66
  %s69 = scalar_lea.vmem %s0, 56
  %v70 = vld [vmem:[%s69] sm:$0xff]
  %s71 = scalar_lea.vmem %s1, 56
  %72 = vst [vmem:[%s71] sm:$0xff] %v70
  %s73 = scalar_lea.vmem %s0, 104
  %v74 = vld [vmem:[%s73] sm:$0xff]
  %s75 = scalar_lea.vmem %s1, 104
  %76 = vst [vmem:[%s75] sm:$0xff] %v74
  %s77 = scalar_lea.vmem %s0, 152
  %v78 = vld [vmem:[%s77] sm:$0xff]
  %s79 = scalar_lea.vmem %s1, 152
  %80 = vst [vmem:[%s79] sm:$0xff] %v78
  %s81 = scalar_lea.vmem %s0, 200
  %v82 = vld [vmem:[%s81] sm:$0xff]
  %s83 = scalar_lea.vmem %s1, 200
  %84 = vst [vmem:[%s83] sm:$0xff] %v82
  %s85 = scalar_lea.vmem %s0, 248
  %v86 = vld [vmem:[%s85] sm:$0xff]
  %s87 = scalar_lea.vmem %s1, 248
  %88 = vst [vmem:[%s87] sm:$0xff] %v86
  %s89 = scalar_lea.vmem %s0, 296
  %v90 = vld [vmem:[%s89] sm:$0xff]
  %s91 = scalar_lea.vmem %s1, 296
  %92 = vst [vmem:[%s91] sm:$0xff] %v90
  %s93 = scalar_lea.vmem %s0, 344
  %v94 = vld [vmem:[%s93] sm:$0xff]
  %s95 = scalar_lea.vmem %s1, 344
  %96 = vst [vmem:[%s95] sm:$0xff] %v94
  %s97 = scalar_lea.vmem %s0, 32
  %v98 = vld [vmem:[%s97] sm:$0xff]
  %s99 = scalar_lea.vmem %s1, 32
  %100 = vst [vmem:[%s99] sm:$0xff] %v98
  %s101 = scalar_lea.vmem %s0, 80
  %v102 = vld [vmem:[%s101] sm:$0xff]
  %s103 = scalar_lea.vmem %s1, 80
  %104 = vst [vmem:[%s103] sm:$0xff] %v102
  %s105 = scalar_lea.vmem %s0, 128
  %v106 = vld [vmem:[%s105] sm:$0xff]
  %s107 = scalar_lea.vmem %s1, 128
  %108 = vst [vmem:[%s107] sm:$0xff] %v106
  %s109 = scalar_lea.vmem %s0, 176
  %v110 = vld [vmem:[%s109] sm:$0xff]
  %s111 = scalar_lea.vmem %s1, 176
  %112 = vst [vmem:[%s111] sm:$0xff] %v110
  %s113 = scalar_lea.vmem %s0, 224
  %v114 = vld [vmem:[%s113] sm:$0xff]
  %s115 = scalar_lea.vmem %s1, 224
  %116 = vst [vmem:[%s115] sm:$0xff] %v114
  %s117 = scalar_lea.vmem %s0, 272
  %v118 = vld [vmem:[%s117] sm:$0xff]
  %s119 = scalar_lea.vmem %s1, 272
  %120 = vst [vmem:[%s119] sm:$0xff] %v118
  %s121 = scalar_lea.vmem %s0, 320
  %v122 = vld [vmem:[%s121] sm:$0xff]
  %s123 = scalar_lea.vmem %s1, 320
  %124 = vst [vmem:[%s123] sm:$0xff] %v122
  %s125 = scalar_lea.vmem %s0, 368
  %v126 = vld [vmem:[%s125] sm:$0xff]
  %s127 = scalar_lea.vmem %s1, 368
  %128 = vst [vmem:[%s127] sm:$0xff] %v126
  %v129 = vld [vmem:[%s0] sm:$0xff]
  %s130 = scalar_lea.vmem %s1, 16
  %131 = vst [vmem:[%s130] sm:$0xff] %v129
  %s132 = scalar_lea.vmem %s0, 48
  %v133 = vld [vmem:[%s132] sm:$0xff]
  %s134 = scalar_lea.vmem %s1, 64
  %135 = vst [vmem:[%s134] sm:$0xff] %v133
  %s136 = scalar_lea.vmem %s0, 96
  %v137 = vld [vmem:[%s136] sm:$0xff]
  %s138 = scalar_lea.vmem %s1, 112
  %139 = vst [vmem:[%s138] sm:$0xff] %v137
  %s140 = scalar_lea.vmem %s0, 144
  %v141 = vld [vmem:[%s140] sm:$0xff]
  %s142 = scalar_lea.vmem %s1, 160
  %143 = vst [vmem:[%s142] sm:$0xff] %v141
  %s144 = scalar_lea.vmem %s0, 192
  %v145 = vld [vmem:[%s144] sm:$0xff]
  %s146 = scalar_lea.vmem %s1, 208
  %147 = vst [vmem:[%s146] sm:$0xff] %v145
  %s148 = scalar_lea.vmem %s0, 240
  %v149 = vld [vmem:[%s148] sm:$0xff]
  %s150 = scalar_lea.vmem %s1, 256
  %151 = vst [vmem:[%s150] sm:$0xff] %v149
  %s152 = scalar_lea.vmem %s0, 288
  %v153 = vld [vmem:[%s152] sm:$0xff]
  %s154 = scalar_lea.vmem %s1, 304
  %155 = vst [vmem:[%s154] sm:$0xff] %v153
  %s156 = scalar_lea.vmem %s0, 336
  %v157 = vld [vmem:[%s156] sm:$0xff]
  %s158 = scalar_lea.vmem %s1, 352
  %159 = vst [vmem:[%s158] sm:$0xff] %v157
  %s160 = scalar_lea.vmem %s0, 24
  %v161 = vld [vmem:[%s160] sm:$0xff]
  %s162 = scalar_lea.vmem %s1, 40
  %163 = vst [vmem:[%s162] sm:$0xff] %v161
  %s164 = scalar_lea.vmem %s0, 72
  %v165 = vld [vmem:[%s164] sm:$0xff]
  %s166 = scalar_lea.vmem %s1, 88
  %167 = vst [vmem:[%s166] sm:$0xff] %v165
  %s168 = scalar_lea.vmem %s0, 120
  %v169 = vld [vmem:[%s168] sm:$0xff]
  %s170 = scalar_lea.vmem %s1, 136
  %171 = vst [vmem:[%s170] sm:$0xff] %v169
  %s172 = scalar_lea.vmem %s0, 168
  %v173 = vld [vmem:[%s172] sm:$0xff]
  %s174 = scalar_lea.vmem %s1, 184
  %175 = vst [vmem:[%s174] sm:$0xff] %v173
  %s176 = scalar_lea.vmem %s0, 216
  %v177 = vld [vmem:[%s176] sm:$0xff]
  %s178 = scalar_lea.vmem %s1, 232
  %179 = vst [vmem:[%s178] sm:$0xff] %v177
  %s180 = scalar_lea.vmem %s0, 264
  %v181 = vld [vmem:[%s180] sm:$0xff]
  %s182 = scalar_lea.vmem %s1, 280
  %183 = vst [vmem:[%s182] sm:$0xff] %v181
  %s184 = scalar_lea.vmem %s0, 312
  %v185 = vld [vmem:[%s184] sm:$0xff]
  %s186 = scalar_lea.vmem %s1, 328
  %187 = vst [vmem:[%s186] sm:$0xff] %v185
  %s188 = scalar_lea.vmem %s0, 360
  %v189 = vld [vmem:[%s188] sm:$0xff]
  %s190 = scalar_lea.vmem %s1, 376
  %191 = vst [vmem:[%s190] sm:$0xff] %v189

// kernel: inverse_pino_forward.12
$region0: #{inverse_pino_forward.12}
  #allocation0 [shape = 'u32[]', space=smem, size = 0x4, offset = 0x4, fixed_abs, tag = 'smem constant byte address 0x4 - core index']
  #allocation1 [shape = 'u32[144,128]{1,0:T(1,128)}', space=vmem, size = 0x12000, scoped, tag = 'internal scratch']
  %s0 = inlined_call_operand.vmem [shape: bf16[8,1024], index: 0, kind: input, shape index: {}]
  %s1 = inlined_call_operand.vmem [shape: bf16[8,8], index: 1, kind: input, shape index: {}]
  %s2 = inlined_call_operand.vmem [shape: f32[8,1], index: 2, kind: input, shape index: {}]
  %s3 = inlined_call_operand.vmem [shape: bf16[8,1024], index: 3, kind: input, shape index: {}, may-alias: {3,4}]
  %s4 = inlined_call_operand.vmem [shape: bf16[8,1024], index: 4, kind: output, shape index: {}, may-alias: {3,4}]
  %s5 = sld [smem:[#allocation0]]
  $region26: #{inverse_pino_forward.12} parent=0
    _
  %s7 = ssub.s32 1, %s5
  %s8 = scalar_select 0, %s7, %s5
  // Predicated region
  $region2: #{inverse_pino_forward.12} parent=0 // pred_check
    _
  $region3: #{inverse_pino_forward.12} parent=0 // pred_check_branch
    %10 = sbr.rel (0) target = $region5
  $region4: #{inverse_pino_forward.12} parent=0 // pred_region
    _
  $region5: #{inverse_pino_forward.12} parent=0 // pred_fallthru
    _
  // Predicated region
  $region6: #{inverse_pino_forward.12} parent=0 // pred_check
    _
  $region7: #{inverse_pino_forward.12} parent=0 // pred_check_branch
    %12 = sbr.rel (0) target = $region9
  $region8: #{inverse_pino_forward.12} parent=0 // pred_region
    _
  $region9: #{inverse_pino_forward.12} parent=0 // pred_fallthru
    _
  // Predicated region
  $region10: #{inverse_pino_forward.12} parent=0 // pred_check
    _
  $region11: #{inverse_pino_forward.12} parent=0 // pred_check_branch
    %14 = sbr.rel (0) target = $region13
  $region12: #{inverse_pino_forward.12} parent=0 // pred_region
    _
  $region13: #{inverse_pino_forward.12} parent=0 // pred_fallthru
    _
  // Predicated region
  $region14: #{inverse_pino_forward.12} parent=0 // pred_check
    _
  $region15: #{inverse_pino_forward.12} parent=0 // pred_check_branch
    %16 = sbr.rel (0) target = $region17
  $region16: #{inverse_pino_forward.12} parent=0 // pred_region
    _
  $region17: #{inverse_pino_forward.12} parent=0 // pred_fallthru
    _
  %v18 = vld [vmem:[%s1] sm:$0xf]
  %v19 = vld [vmem:[%s0] sm:$0xff]
  %v20 = vld [vmem:[%s0 + $0x8] sm:$0xff]
  %v21 = vld [vmem:[%s0 + $0x10] sm:$0xff]
  %v22 = vld [vmem:[%s0 + $0x18] sm:$0xff]
  %v23 = vld [vmem:[%s2] sm:$0xff]
  %25 = vset.pattern.permute.xlu0 0
  %26 = vperm.xlu0 %25, %v23
  %v27 = vpop.permute.xlu0 %26
  %v33 = vunpack.c.l.b16 %v19
  %v34 = vunpack.c.h.b16 %v19
  %v35 = vunpack.c.l.b16 %v20
  %v36 = vunpack.c.h.b16 %v20
  %v37 = vunpack.c.l.b16 %v21
  %v38 = vunpack.c.h.b16 %v21
  %v39 = vunpack.c.l.b16 %v22
  %v40 = vunpack.c.h.b16 %v22
  %v41 = vpack.c.b16 %v33, %v33
  %v42 = vpack.c.b16 %v34, %v34
  %v43 = vpack.c.b16 %v35, %v35
  %v44 = vpack.c.b16 %v36, %v36
  %v45 = vpack.c.b16 %v37, %v37
  %v46 = vpack.c.b16 %v38, %v38
  %v47 = vpack.c.b16 %v39, %v39
  %v48 = vpack.c.b16 %v40, %v40
  %vm49 = vcmask 64512
  %v51 = vsel %vm49, %v18, 0
  %vm53 = vcmask 1043456
  %v55 = vsel %vm53, %v41, 0
  %v58 = vsel %vm53, %v42, 0
  %v61 = vsel %vm53, %v43, 0
  %v64 = vsel %vm53, %v44, 0
  %v67 = vsel %vm53, %v45, 0
  %v70 = vsel %vm53, %v46, 0
  %v73 = vsel %vm53, %v47, 0
  %v76 = vsel %vm53, %v48, 0
  %78 = vmatprep.subr.bf16.mxu0 0
  %79 = vmatpush1.bf16.msra.mxu0 0
  %80 = vmatprep.subr.bf16.mxu0 0
  %81 = vmatpush1.bf16.msra.mxu0 0
  %82 = vmatprep.subr.bf16.mxu0 0
  %83 = vmatpush1.bf16.msra.mxu0 0
  %84 = vmatprep.subr.bf16.mxu0 0
  %85 = vmatpush1.bf16.msra.mxu0 0
  %86 = vmatprep.subr.bf16.mxu0 0
  %87 = vmatpush1.bf16.msra.mxu0 0
  %88 = vmatprep.subr.bf16.mxu0 0
  %89 = vmatpush1.bf16.msra.mxu0 0
  %90 = vmatprep.subr.bf16.mxu0 0
  %91 = vmatpush1.bf16.msra.mxu0 0
  %92 = vmatprep.subr.bf16.mxu0 %v58
  %93 = vmatpush1.bf16.msra.mxu0 %v55
  %94 = vmatprep.subr.bf16.mxu0 0
  %95 = vmatpush2.bf16.msra.mxu0 0
  %96 = vmatprep.subr.bf16.mxu0 0
  %97 = vmatpush2.bf16.msra.mxu0 0
  %98 = vmatprep.subr.bf16.mxu0 0
  %99 = vmatpush2.bf16.msra.mxu0 0
  %100 = vmatprep.subr.bf16.mxu0 0
  %101 = vmatpush2.bf16.msra.mxu0 0
  %102 = vmatprep.subr.bf16.mxu0 0
  %103 = vmatpush2.bf16.msra.mxu0 0
  %104 = vmatprep.subr.bf16.mxu0 0
  %105 = vmatpush2.bf16.msra.mxu0 0
  %106 = vmatprep.subr.bf16.mxu0 0
  %107 = vmatpush2.bf16.msra.mxu0 0
  %108 = vmatprep.subr.bf16.mxu0 0
  %109 = vmatpush2.bf16.msra.mxu0 0
  %110 = vmatprep.mubr.bf16.mxu0 0
  %111 = vmatmul.mubr.bf16.gmra.mxu0 %v51
  %v112 = vpop.f32.mrf.mxu0
  %v113 = vadd.f32 %v27, %v112
  %v114 = vpop.f32.mrf.mxu0
  %v115 = vadd.f32 %v27, %v114
  %v116 = vpop.f32.mrf.mxu0
  %v117 = vpop.f32.mrf.mxu0
  %118 = vdwg.mxu0
  %119 = vmatprep.subr.bf16.mxu0 0
  %120 = vmatpush1.bf16.msra.mxu0 0
  %121 = vmatprep.subr.bf16.mxu0 0
  %122 = vmatpush1.bf16.msra.mxu0 0
  %123 = vmatprep.subr.bf16.mxu0 0
  %124 = vmatpush1.bf16.msra.mxu0 0
  %125 = vmatprep.subr.bf16.mxu0 0
  %126 = vmatpush1.bf16.msra.mxu0 0
  %127 = vmatprep.subr.bf16.mxu0 0
  %128 = vmatpush1.bf16.msra.mxu0 0
  %129 = vmatprep.subr.bf16.mxu0 0
  %130 = vmatpush1.bf16.msra.mxu0 0
  %131 = vmatprep.subr.bf16.mxu0 0
  %132 = vmatpush1.bf16.msra.mxu0 0
  %133 = vmatprep.subr.bf16.mxu0 %v64
  %134 = vmatpush1.bf16.msra.mxu0 %v61
  %135 = vmatprep.subr.bf16.mxu0 0
  %136 = vmatpush2.bf16.msra.mxu0 0
  %137 = vmatprep.subr.bf16.mxu0 0
  %138 = vmatpush2.bf16.msra.mxu0 0
  %139 = vmatprep.subr.bf16.mxu0 0
  %140 = vmatpush2.bf16.msra.mxu0 0
  %141 = vmatprep.subr.bf16.mxu0 0
  %142 = vmatpush2.bf16.msra.mxu0 0
  %143 = vmatprep.subr.bf16.mxu0 0
  %144 = vmatpush2.bf16.msra.mxu0 0
  %145 = vmatprep.subr.bf16.mxu0 0
  %146 = vmatpush2.bf16.msra.mxu0 0
  %147 = vmatprep.subr.bf16.mxu0 0
  %148 = vmatpush2.bf16.msra.mxu0 0
  %149 = vmatprep.subr.bf16.mxu0 0
  %150 = vmatpush2.bf16.msra.mxu0 0
  %151 = vmatprep.mubr.bf16.mxu0 0
  %152 = vmatmul.mubr.bf16.gmra.mxu0 %v51
  %v153 = vpop.f32.mrf.mxu0
  %v154 = vadd.f32 %v27, %v153
  %v155 = vpop.f32.mrf.mxu0
  %v156 = vadd.f32 %v27, %v155
  %v157 = vpop.f32.mrf.mxu0
  %v158 = vpop.f32.mrf.mxu0
  %159 = vdwg.mxu0
  %160 = vmatprep.subr.bf16.mxu0 0
  %161 = vmatpush1.bf16.msra.mxu0 0
  %162 = vmatprep.subr.bf16.mxu0 0
  %163 = vmatpush1.bf16.msra.mxu0 0
  %164 = vmatprep.subr.bf16.mxu0 0
  %165 = vmatpush1.bf16.msra.mxu0 0
  %166 = vmatprep.subr.bf16.mxu0 0
  %167 = vmatpush1.bf16.msra.mxu0 0
  %168 = vmatprep.subr.bf16.mxu0 0
  %169 = vmatpush1.bf16.msra.mxu0 0
  %170 = vmatprep.subr.bf16.mxu0 0
  %171 = vmatpush1.bf16.msra.mxu0 0
  %172 = vmatprep.subr.bf16.mxu0 0
  %173 = vmatpush1.bf16.msra.mxu0 0
  %174 = vmatprep.subr.bf16.mxu0 %v70
  %175 = vmatpush1.bf16.msra.mxu0 %v67
  %176 = vmatprep.subr.bf16.mxu0 0
  %177 = vmatpush2.bf16.msra.mxu0 0
  %178 = vmatprep.subr.bf16.mxu0 0
  %179 = vmatpush2.bf16.msra.mxu0 0
  %180 = vmatprep.subr.bf16.mxu0 0
  %181 = vmatpush2.bf16.msra.mxu0 0
  %182 = vmatprep.subr.bf16.mxu0 0
  %183 = vmatpush2.bf16.msra.mxu0 0
  %184 = vmatprep.subr.bf16.mxu0 0
  %185 = vmatpush2.bf16.msra.mxu0 0
  %186 = vmatprep.subr.bf16.mxu0 0
  %187 = vmatpush2.bf16.msra.mxu0 0
  %188 = vmatprep.subr.bf16.mxu0 0
  %189 = vmatpush2.bf16.msra.mxu0 0
  %190 = vmatprep.subr.bf16.mxu0 0
  %191 = vmatpush2.bf16.msra.mxu0 0
  %192 = vmatprep.mubr.bf16.mxu0 0
  %193 = vmatmul.mubr.bf16.gmra.mxu0 %v51
  %v194 = vpop.f32.mrf.mxu0
  %v195 = vadd.f32 %v27, %v194
  %v196 = vpop.f32.mrf.mxu0
  %v197 = vadd.f32 %v27, %v196
  %v198 = vpop.f32.mrf.mxu0
  %v199 = vpop.f32.mrf.mxu0
  %200 = vdwg.mxu0
  %201 = vmatprep.subr.bf16.mxu0 0
  %202 = vmatpush1.bf16.msra.mxu0 0
  %203 = vmatprep.subr.bf16.mxu0 0
  %204 = vmatpush1.bf16.msra.mxu0 0
  %205 = vmatprep.subr.bf16.mxu0 0
  %206 = vmatpush1.bf16.msra.mxu0 0
  %207 = vmatprep.subr.bf16.mxu0 0
  %208 = vmatpush1.bf16.msra.mxu0 0
  %209 = vmatprep.subr.bf16.mxu0 0
  %210 = vmatpush1.bf16.msra.mxu0 0
  %211 = vmatprep.subr.bf16.mxu0 0
  %212 = vmatpush1.bf16.msra.mxu0 0
  %213 = vmatprep.subr.bf16.mxu0 0
  %214 = vmatpush1.bf16.msra.mxu0 0
  %215 = vmatprep.subr.bf16.mxu0 %v76
  %216 = vmatpush1.bf16.msra.mxu0 %v73
  %217 = vmatprep.subr.bf16.mxu0 0
  %218 = vmatpush2.bf16.msra.mxu0 0
  %219 = vmatprep.subr.bf16.mxu0 0
  %220 = vmatpush2.bf16.msra.mxu0 0
  %221 = vmatprep.subr.bf16.mxu0 0
  %222 = vmatpush2.bf16.msra.mxu0 0
  %223 = vmatprep.subr.bf16.mxu0 0
  %224 = vmatpush2.bf16.msra.mxu0 0
  %225 = vmatprep.subr.bf16.mxu0 0
  %226 = vmatpush2.bf16.msra.mxu0 0
  %227 = vmatprep.subr.bf16.mxu0 0
  %228 = vmatpush2.bf16.msra.mxu0 0
  %229 = vmatprep.subr.bf16.mxu0 0
  %230 = vmatpush2.bf16.msra.mxu0 0
  %231 = vmatprep.subr.bf16.mxu0 0
  %232 = vmatpush2.bf16.msra.mxu0 0
  %233 = vmatprep.mubr.bf16.mxu0 0
  %234 = vmatmul.mubr.bf16.gmra.mxu0 %v51
  %v235 = vpop.f32.mrf.mxu0
  %v236 = vadd.f32 %v27, %v235
  %v237 = vpop.f32.mrf.mxu0
  %v238 = vadd.f32 %v27, %v237
  %v239 = vpop.f32.mrf.mxu0
  %v240 = vpop.f32.mrf.mxu0
  %241 = vdwg.mxu0
  %v242 = vld [vmem:[%s3] sm:$0xff]
  %v243 = vld [vmem:[%s3 + $0x8] sm:$0xff]
  %v244 = vld [vmem:[%s3 + $0x10] sm:$0xff]
  %v245 = vld [vmem:[%s3 + $0x18] sm:$0xff]
  %v246 = vunpack.c.l.bf16 %v242
  %v247 = vunpack.c.h.bf16 %v242
  %v248 = vunpack.c.l.bf16 %v243
  %v249 = vunpack.c.h.bf16 %v243
  %v250 = vunpack.c.l.bf16 %v244
  %v251 = vunpack.c.h.bf16 %v244
  %v252 = vunpack.c.l.bf16 %v245
  %v253 = vunpack.c.h.bf16 %v245
  %v254 = vadd.f32 %v113, %v246
  %v255 = vadd.f32 %v115, %v247
  %v256 = vadd.f32 %v154, %v248
  %v257 = vadd.f32 %v156, %v249
  %v258 = vadd.f32 %v195, %v250
  %v259 = vadd.f32 %v197, %v251
  %v260 = vadd.f32 %v236, %v252
  %v261 = vadd.f32 %v238, %v253
  %v262 = vmul.f32 %v254, 0.5
  %v263 = vmul.f32 %v255, 0.5
  %v264 = vmul.f32 %v256, 0.5
  %v265 = vmul.f32 %v257, 0.5
  %v266 = vmul.f32 %v258, 0.5
  %v267 = vmul.f32 %v259, 0.5
  %v268 = vmul.f32 %v260, 0.5
  %v269 = vmul.f32 %v261, 0.5
  %v270 = vmul.f32 %v254, 0.044715
  %v271 = vmul.f32 %v255, 0.044715
  %v272 = vmul.f32 %v256, 0.044715
  %v273 = vmul.f32 %v257, 0.044715
  %v274 = vmul.f32 %v258, 0.044715
  %v275 = vmul.f32 %v259, 0.044715
  %v276 = vmul.f32 %v260, 0.044715
  %v277 = vmul.f32 %v261, 0.044715
  %v278 = vmul.f32 %v270, %v254
  %v279 = vmul.f32 %v271, %v255
  %v280 = vmul.f32 %v272, %v256
  %v281 = vmul.f32 %v273, %v257
  %v282 = vmul.f32 %v274, %v258
  %v283 = vmul.f32 %v275, %v259
  %v284 = vmul.f32 %v276, %v260
  %v285 = vmul.f32 %v277, %v261
  %v286 = vmul.f32 %v278, %v254
  %v287 = vmul.f32 %v279, %v255
  %v288 = vmul.f32 %v280, %v256
  %v289 = vmul.f32 %v281, %v257
  %v290 = vmul.f32 %v282, %v258
  %v291 = vmul.f32 %v283, %v259
  %v292 = vmul.f32 %v284, %v260
  %v293 = vmul.f32 %v285, %v261
  %v294 = vadd.f32 %v254, %v286
  %v295 = vadd.f32 %v255, %v287
  %v296 = vadd.f32 %v256, %v288
  %v297 = vadd.f32 %v257, %v289
  %v298 = vadd.f32 %v258, %v290
  %v299 = vadd.f32 %v259, %v291
  %v300 = vadd.f32 %v260, %v292
  %v301 = vadd.f32 %v261, %v293
  %v302 = vmul.f32 %v294, 0.7978846
  %v303 = vmul.f32 %v295, 0.7978846
  %v304 = vmul.f32 %v296, 0.7978846
  %v305 = vmul.f32 %v297, 0.7978846
  %v306 = vmul.f32 %v298, 0.7978846
  %v307 = vmul.f32 %v299, 0.7978846
  %v308 = vmul.f32 %v300, 0.7978846
  %v309 = vmul.f32 %v301, 0.7978846
  %v310 = vtanh.pop %v302
  %v311 = vtanh.pop %v303
  %v312 = vtanh.pop %v304
  %v313 = vtanh.pop %v305
  %v314 = vtanh.pop %v306
  %v315 = vtanh.pop %v307
  %v316 = vtanh.pop %v308
  %v317 = vtanh.pop %v309
  %v318 = vadd.f32 %v310, 1.0
  %v319 = vadd.f32 %v311, 1.0
  %v320 = vadd.f32 %v312, 1.0
  %v321 = vadd.f32 %v313, 1.0
  %v322 = vadd.f32 %v314, 1.0
  %v323 = vadd.f32 %v315, 1.0
  %v324 = vadd.f32 %v316, 1.0
  %v325 = vadd.f32 %v317, 1.0
  %v326 = vmul.f32 %v262, %v318
  %v327 = vmul.f32 %v263, %v319
  %v328 = vmul.f32 %v264, %v320
  %v329 = vmul.f32 %v265, %v321
  %v330 = vmul.f32 %v266, %v322
  %v331 = vmul.f32 %v267, %v323
  %v332 = vmul.f32 %v268, %v324
  %v333 = vmul.f32 %v269, %v325
  %v334 = vpack.c.bf16 %v326, %v326
  %v335 = vpack.c.bf16 %v327, %v327
  %v336 = vpack.c.bf16 %v328, %v328
  %v337 = vpack.c.bf16 %v329, %v329
  %v338 = vpack.c.bf16 %v330, %v330
  %v339 = vpack.c.bf16 %v331, %v331
  %v340 = vpack.c.bf16 %v332, %v332
  %v341 = vpack.c.bf16 %v333, %v333
  %v350 = vunpack.c.l.b16 %v334
  %v351 = vunpack.c.l.b16 %v335
  %v352 = vunpack.c.l.b16 %v336
  %v353 = vunpack.c.l.b16 %v337
  %v354 = vunpack.c.l.b16 %v338
  %v355 = vunpack.c.l.b16 %v339
  %v356 = vunpack.c.l.b16 %v340
  %v357 = vunpack.c.l.b16 %v341
  %v358 = vpack.c.b16 %v351, %v350
  %v359 = vpack.c.b16 %v353, %v352
  %v360 = vpack.c.b16 %v355, %v354
  %v361 = vpack.c.b16 %v357, %v356
  %366 = vst [vmem:[%s4] sm:$0xff] %v358
  %367 = vst [vmem:[%s4 + $0x8] sm:$0xff] %v359
  %368 = vst [vmem:[%s4 + $0x10] sm:$0xff] %v360
  %369 = vst [vmem:[%s4 + $0x18] sm:$0xff] %v361
  // Predicated region
  $region18: #{inverse_pino_forward.12} parent=0 // pred_check
    _
  $region19: #{inverse_pino_forward.12} parent=0 // pred_check_branch
    %371 = sbr.rel (0) target = $region21
  $region20: #{inverse_pino_forward.12} parent=0 // pred_region
    _
  $region21: #{inverse_pino_forward.12} parent=0 // pred_fallthru
    _
  // Predicated region
  $region22: #{inverse_pino_forward.12} parent=0 // pred_check
    _
  $region23: #{inverse_pino_forward.12} parent=0 // pred_check_branch
    %373 = sbr.rel (0) target = $region25
  $region24: #{inverse_pino_forward.12} parent=0 // pred_region
    _
  $region25: #{inverse_pino_forward.12} parent=0 // pred_fallthru
    _

// kernel: inverse_pino_forward.18
$region0: #{inverse_pino_forward.18}
  #allocation0 [shape = 'u32[]', space=smem, size = 0x4, offset = 0x4, fixed_abs, tag = 'smem constant byte address 0x4 - core index']
  #allocation1 [shape = 'u32[144,128]{1,0:T(1,128)}', space=vmem, size = 0x12000, scoped, tag = 'internal scratch']
  %s0 = inlined_call_operand.vmem [shape: bf16[8,1024], index: 0, kind: input, shape index: {}]
  %s1 = inlined_call_operand.vmem [shape: bf16[8,8], index: 1, kind: input, shape index: {}]
  %s2 = inlined_call_operand.vmem [shape: f32[8,1], index: 2, kind: input, shape index: {}]
  %s3 = inlined_call_operand.vmem [shape: bf16[8,1024], index: 3, kind: input, shape index: {}, may-alias: {3,4}]
  %s4 = inlined_call_operand.vmem [shape: bf16[8,1024], index: 4, kind: output, shape index: {}, may-alias: {3,4}]
  %s5 = sld [smem:[#allocation0]]
  $region26: #{inverse_pino_forward.18} parent=0
    _
  %s7 = ssub.s32 1, %s5
  %s8 = scalar_select 0, %s7, %s5
  // Predicated region
  $region2: #{inverse_pino_forward.18} parent=0 // pred_check
    _
  $region3: #{inverse_pino_forward.18} parent=0 // pred_check_branch
    %10 = sbr.rel (0) target = $region5
  $region4: #{inverse_pino_forward.18} parent=0 // pred_region
    _
  $region5: #{inverse_pino_forward.18} parent=0 // pred_fallthru
    _
  // Predicated region
  $region6: #{inverse_pino_forward.18} parent=0 // pred_check
    _
  $region7: #{inverse_pino_forward.18} parent=0 // pred_check_branch
    %12 = sbr.rel (0) target = $region9
  $region8: #{inverse_pino_forward.18} parent=0 // pred_region
    _
  $region9: #{inverse_pino_forward.18} parent=0 // pred_fallthru
    _
  // Predicated region
  $region10: #{inverse_pino_forward.18} parent=0 // pred_check
    _
  $region11: #{inverse_pino_forward.18} parent=0 // pred_check_branch
    %14 = sbr.rel (0) target = $region13
  $region12: #{inverse_pino_forward.18} parent=0 // pred_region
    _
  $region13: #{inverse_pino_forward.18} parent=0 // pred_fallthru
    _
  // Predicated region
  $region14: #{inverse_pino_forward.18} parent=0 // pred_check
    _
  $region15: #{inverse_pino_forward.18} parent=0 // pred_check_branch
    %16 = sbr.rel (0) target = $region17
  $region16: #{inverse_pino_forward.18} parent=0 // pred_region
    _
  $region17: #{inverse_pino_forward.18} parent=0 // pred_fallthru
    _
  %v18 = vld [vmem:[%s1] sm:$0xf]
  %v19 = vld [vmem:[%s0] sm:$0xff]
  %v20 = vld [vmem:[%s0 + $0x8] sm:$0xff]
  %v21 = vld [vmem:[%s0 + $0x10] sm:$0xff]
  %v22 = vld [vmem:[%s0 + $0x18] sm:$0xff]
  %v23 = vld [vmem:[%s2] sm:$0xff]
  %25 = vset.pattern.permute.xlu0 0
  %26 = vperm.xlu0 %25, %v23
  %v27 = vpop.permute.xlu0 %26
  %v33 = vunpack.c.l.b16 %v19
  %v34 = vunpack.c.h.b16 %v19
  %v35 = vunpack.c.l.b16 %v20
  %v36 = vunpack.c.h.b16 %v20
  %v37 = vunpack.c.l.b16 %v21
  %v38 = vunpack.c.h.b16 %v21
  %v39 = vunpack.c.l.b16 %v22
  %v40 = vunpack.c.h.b16 %v22
  %v41 = vpack.c.b16 %v33, %v33
  %v42 = vpack.c.b16 %v34, %v34
  %v43 = vpack.c.b16 %v35, %v35
  %v44 = vpack.c.b16 %v36, %v36
  %v45 = vpack.c.b16 %v37, %v37
  %v46 = vpack.c.b16 %v38, %v38
  %v47 = vpack.c.b16 %v39, %v39
  %v48 = vpack.c.b16 %v40, %v40
  %vm49 = vcmask 64512
  %v51 = vsel %vm49, %v18, 0
  %vm53 = vcmask 1043456
  %v55 = vsel %vm53, %v41, 0
  %v58 = vsel %vm53, %v42, 0
  %v61 = vsel %vm53, %v43, 0
  %v64 = vsel %vm53, %v44, 0
  %v67 = vsel %vm53, %v45, 0
  %v70 = vsel %vm53, %v46, 0
  %v73 = vsel %vm53, %v47, 0
  %v76 = vsel %vm53, %v48, 0
  %78 = vmatprep.subr.bf16.mxu0 0
  %79 = vmatpush1.bf16.msra.mxu0 0
  %80 = vmatprep.subr.bf16.mxu0 0
  %81 = vmatpush1.bf16.msra.mxu0 0
  %82 = vmatprep.subr.bf16.mxu0 0
  %83 = vmatpush1.bf16.msra.mxu0 0
  %84 = vmatprep.subr.bf16.mxu0 0
  %85 = vmatpush1.bf16.msra.mxu0 0
  %86 = vmatprep.subr.bf16.mxu0 0
  %87 = vmatpush1.bf16.msra.mxu0 0
  %88 = vmatprep.subr.bf16.mxu0 0
  %89 = vmatpush1.bf16.msra.mxu0 0
  %90 = vmatprep.subr.bf16.mxu0 0
  %91 = vmatpush1.bf16.msra.mxu0 0
  %92 = vmatprep.subr.bf16.mxu0 %v58
  %93 = vmatpush1.bf16.msra.mxu0 %v55
  %94 = vmatprep.subr.bf16.mxu0 0
  %95 = vmatpush2.bf16.msra.mxu0 0
  %96 = vmatprep.subr.bf16.mxu0 0
  %97 = vmatpush2.bf16.msra.mxu0 0
  %98 = vmatprep.subr.bf16.mxu0 0
  %99 = vmatpush2.bf16.msra.mxu0 0
  %100 = vmatprep.subr.bf16.mxu0 0
  %101 = vmatpush2.bf16.msra.mxu0 0
  %102 = vmatprep.subr.bf16.mxu0 0
  %103 = vmatpush2.bf16.msra.mxu0 0
  %104 = vmatprep.subr.bf16.mxu0 0
  %105 = vmatpush2.bf16.msra.mxu0 0
  %106 = vmatprep.subr.bf16.mxu0 0
  %107 = vmatpush2.bf16.msra.mxu0 0
  %108 = vmatprep.subr.bf16.mxu0 0
  %109 = vmatpush2.bf16.msra.mxu0 0
  %110 = vmatprep.mubr.bf16.mxu0 0
  %111 = vmatmul.mubr.bf16.gmra.mxu0 %v51
  %v112 = vpop.f32.mrf.mxu0
  %v113 = vadd.f32 %v27, %v112
  %v114 = vpop.f32.mrf.mxu0
  %v115 = vadd.f32 %v27, %v114
  %v116 = vpop.f32.mrf.mxu0
  %v117 = vpop.f32.mrf.mxu0
  %118 = vdwg.mxu0
  %119 = vmatprep.subr.bf16.mxu0 0
  %120 = vmatpush1.bf16.msra.mxu0 0
  %121 = vmatprep.subr.bf16.mxu0 0
  %122 = vmatpush1.bf16.msra.mxu0 0
  %123 = vmatprep.subr.bf16.mxu0 0
  %124 = vmatpush1.bf16.msra.mxu0 0
  %125 = vmatprep.subr.bf16.mxu0 0
  %126 = vmatpush1.bf16.msra.mxu0 0
  %127 = vmatprep.subr.bf16.mxu0 0
  %128 = vmatpush1.bf16.msra.mxu0 0
  %129 = vmatprep.subr.bf16.mxu0 0
  %130 = vmatpush1.bf16.msra.mxu0 0
  %131 = vmatprep.subr.bf16.mxu0 0
  %132 = vmatpush1.bf16.msra.mxu0 0
  %133 = vmatprep.subr.bf16.mxu0 %v64
  %134 = vmatpush1.bf16.msra.mxu0 %v61
  %135 = vmatprep.subr.bf16.mxu0 0
  %136 = vmatpush2.bf16.msra.mxu0 0
  %137 = vmatprep.subr.bf16.mxu0 0
  %138 = vmatpush2.bf16.msra.mxu0 0
  %139 = vmatprep.subr.bf16.mxu0 0
  %140 = vmatpush2.bf16.msra.mxu0 0
  %141 = vmatprep.subr.bf16.mxu0 0
  %142 = vmatpush2.bf16.msra.mxu0 0
  %143 = vmatprep.subr.bf16.mxu0 0
  %144 = vmatpush2.bf16.msra.mxu0 0
  %145 = vmatprep.subr.bf16.mxu0 0
  %146 = vmatpush2.bf16.msra.mxu0 0
  %147 = vmatprep.subr.bf16.mxu0 0
  %148 = vmatpush2.bf16.msra.mxu0 0
  %149 = vmatprep.subr.bf16.mxu0 0
  %150 = vmatpush2.bf16.msra.mxu0 0
  %151 = vmatprep.mubr.bf16.mxu0 0
  %152 = vmatmul.mubr.bf16.gmra.mxu0 %v51
  %v153 = vpop.f32.mrf.mxu0
  %v154 = vadd.f32 %v27, %v153
  %v155 = vpop.f32.mrf.mxu0
  %v156 = vadd.f32 %v27, %v155
  %v157 = vpop.f32.mrf.mxu0
  %v158 = vpop.f32.mrf.mxu0
  %159 = vdwg.mxu0
  %160 = vmatprep.subr.bf16.mxu0 0
  %161 = vmatpush1.bf16.msra.mxu0 0
  %162 = vmatprep.subr.bf16.mxu0 0
  %163 = vmatpush1.bf16.msra.mxu0 0
  %164 = vmatprep.subr.bf16.mxu0 0
  %165 = vmatpush1.bf16.msra.mxu0 0
  %166 = vmatprep.subr.bf16.mxu0 0
  %167 = vmatpush1.bf16.msra.mxu0 0
  %168 = vmatprep.subr.bf16.mxu0 0
  %169 = vmatpush1.bf16.msra.mxu0 0
  %170 = vmatprep.subr.bf16.mxu0 0
  %171 = vmatpush1.bf16.msra.mxu0 0
  %172 = vmatprep.subr.bf16.mxu0 0
  %173 = vmatpush1.bf16.msra.mxu0 0
  %174 = vmatprep.subr.bf16.mxu0 %v70
  %175 = vmatpush1.bf16.msra.mxu0 %v67
  %176 = vmatprep.subr.bf16.mxu0 0
  %177 = vmatpush2.bf16.msra.mxu0 0
  %178 = vmatprep.subr.bf16.mxu0 0
  %179 = vmatpush2.bf16.msra.mxu0 0
  %180 = vmatprep.subr.bf16.mxu0 0
  %181 = vmatpush2.bf16.msra.mxu0 0
  %182 = vmatprep.subr.bf16.mxu0 0
  %183 = vmatpush2.bf16.msra.mxu0 0
  %184 = vmatprep.subr.bf16.mxu0 0
  %185 = vmatpush2.bf16.msra.mxu0 0
  %186 = vmatprep.subr.bf16.mxu0 0
  %187 = vmatpush2.bf16.msra.mxu0 0
  %188 = vmatprep.subr.bf16.mxu0 0
  %189 = vmatpush2.bf16.msra.mxu0 0
  %190 = vmatprep.subr.bf16.mxu0 0
  %191 = vmatpush2.bf16.msra.mxu0 0
  %192 = vmatprep.mubr.bf16.mxu0 0
  %193 = vmatmul.mubr.bf16.gmra.mxu0 %v51
  %v194 = vpop.f32.mrf.mxu0
  %v195 = vadd.f32 %v27, %v194
  %v196 = vpop.f32.mrf.mxu0
  %v197 = vadd.f32 %v27, %v196
  %v198 = vpop.f32.mrf.mxu0
  %v199 = vpop.f32.mrf.mxu0
  %200 = vdwg.mxu0
  %201 = vmatprep.subr.bf16.mxu0 0
  %202 = vmatpush1.bf16.msra.mxu0 0
  %203 = vmatprep.subr.bf16.mxu0 0
  %204 = vmatpush1.bf16.msra.mxu0 0
  %205 = vmatprep.subr.bf16.mxu0 0
  %206 = vmatpush1.bf16.msra.mxu0 0
  %207 = vmatprep.subr.bf16.mxu0 0
  %208 = vmatpush1.bf16.msra.mxu0 0
  %209 = vmatprep.subr.bf16.mxu0 0
  %210 = vmatpush1.bf16.msra.mxu0 0
  %211 = vmatprep.subr.bf16.mxu0 0
  %212 = vmatpush1.bf16.msra.mxu0 0
  %213 = vmatprep.subr.bf16.mxu0 0
  %214 = vmatpush1.bf16.msra.mxu0 0
  %215 = vmatprep.subr.bf16.mxu0 %v76
  %216 = vmatpush1.bf16.msra.mxu0 %v73
  %217 = vmatprep.subr.bf16.mxu0 0
  %218 = vmatpush2.bf16.msra.mxu0 0
  %219 = vmatprep.subr.bf16.mxu0 0
  %220 = vmatpush2.bf16.msra.mxu0 0
  %221 = vmatprep.subr.bf16.mxu0 0
  %222 = vmatpush2.bf16.msra.mxu0 0
  %223 = vmatprep.subr.bf16.mxu0 0
  %224 = vmatpush2.bf16.msra.mxu0 0
  %225 = vmatprep.subr.bf16.mxu0 0
  %226 = vmatpush2.bf16.msra.mxu0 0
  %227 = vmatprep.subr.bf16.mxu0 0
  %228 = vmatpush2.bf16.msra.mxu0 0
  %229 = vmatprep.subr.bf16.mxu0 0
  %230 = vmatpush2.bf16.msra.mxu0 0
  %231 = vmatprep.subr.bf16.mxu0 0
  %232 = vmatpush2.bf16.msra.mxu0 0
  %233 = vmatprep.mubr.bf16.mxu0 0
  %234 = vmatmul.mubr.bf16.gmra.mxu0 %v51
  %v235 = vpop.f32.mrf.mxu0
  %v236 = vadd.f32 %v27, %v235
  %v237 = vpop.f32.mrf.mxu0
  %v238 = vadd.f32 %v27, %v237
  %v239 = vpop.f32.mrf.mxu0
  %v240 = vpop.f32.mrf.mxu0
  %241 = vdwg.mxu0
  %v242 = vld [vmem:[%s3] sm:$0xff]
  %v243 = vld [vmem:[%s3 + $0x8] sm:$0xff]
  %v244 = vld [vmem:[%s3 + $0x10] sm:$0xff]
  %v245 = vld [vmem:[%s3 + $0x18] sm:$0xff]
  %v246 = vunpack.c.l.bf16 %v242
  %v247 = vunpack.c.h.bf16 %v242
  %v248 = vunpack.c.l.bf16 %v243
  %v249 = vunpack.c.h.bf16 %v243
  %v250 = vunpack.c.l.bf16 %v244
  %v251 = vunpack.c.h.bf16 %v244
  %v252 = vunpack.c.l.bf16 %v245
  %v253 = vunpack.c.h.bf16 %v245
  %v254 = vadd.f32 %v113, %v246
  %v255 = vadd.f32 %v115, %v247
  %v256 = vadd.f32 %v154, %v248
  %v257 = vadd.f32 %v156, %v249
  %v258 = vadd.f32 %v195, %v250
  %v259 = vadd.f32 %v197, %v251
  %v260 = vadd.f32 %v236, %v252
  %v261 = vadd.f32 %v238, %v253
  %v262 = vpack.c.bf16 %v254, %v254
  %v263 = vpack.c.bf16 %v255, %v255
  %v264 = vpack.c.bf16 %v256, %v256
  %v265 = vpack.c.bf16 %v257, %v257
  %v266 = vpack.c.bf16 %v258, %v258
  %v267 = vpack.c.bf16 %v259, %v259
  %v268 = vpack.c.bf16 %v260, %v260
  %v269 = vpack.c.bf16 %v261, %v261
  %v278 = vunpack.c.l.b16 %v262
  %v279 = vunpack.c.l.b16 %v263
  %v280 = vunpack.c.l.b16 %v264
  %v281 = vunpack.c.l.b16 %v265
  %v282 = vunpack.c.l.b16 %v266
  %v283 = vunpack.c.l.b16 %v267
  %v284 = vunpack.c.l.b16 %v268
  %v285 = vunpack.c.l.b16 %v269
  %v286 = vpack.c.b16 %v279, %v278
  %v287 = vpack.c.b16 %v281, %v280
  %v288 = vpack.c.b16 %v283, %v282
  %v289 = vpack.c.b16 %v285, %v284
  %294 = vst [vmem:[%s4] sm:$0xff] %v286
  %295 = vst [vmem:[%s4 + $0x8] sm:$0xff] %v287
  %296 = vst [vmem:[%s4 + $0x10] sm:$0xff] %v288
  %297 = vst [vmem:[%s4 + $0x18] sm:$0xff] %v289
  // Predicated region
  $region18: #{inverse_pino_forward.18} parent=0 // pred_check
    _
  $region19: #{inverse_pino_forward.18} parent=0 // pred_check_branch
    %299 = sbr.rel (0) target = $region21
  $region20: #{inverse_pino_forward.18} parent=0 // pred_region
    _
  $region21: #{inverse_pino_forward.18} parent=0 // pred_fallthru
    _
  // Predicated region
  $region22: #{inverse_pino_forward.18} parent=0 // pred_check
    _
  $region23: #{inverse_pino_forward.18} parent=0 // pred_check_branch
    %301 = sbr.rel (0) target = $region25
  $region24: #{inverse_pino_forward.18} parent=0 // pred_region
    _
  $region25: #{inverse_pino_forward.18} parent=0 // pred_fallthru
    _

// kernel: inverse_pino_forward.19
$region0: #{inverse_pino_forward.19}
  #allocation0 [shape = 'u32[]', space=smem, size = 0x4, offset = 0x4, fixed_abs, tag = 'smem constant byte address 0x4 - core index']
  #allocation1 [shape = 'u32[144,128]{1,0:T(1,128)}', space=vmem, size = 0x12000, scoped, tag = 'internal scratch']
  #allocation2 [shape = 'f32[8,2]{1,0:T(8,128)}', space=vmem, size = 0x1000, scoped, tag = 'scratch operand']
  %s0 = inlined_call_operand.vmem [shape: bf16[8,2,512], index: 0, kind: input, shape index: {}]
  %s1 = inlined_call_operand.vmem [shape: f32[8,8], index: 1, kind: input, shape index: {}]
  %s2 = inlined_call_operand.vmem [shape: f32[8,1], index: 2, kind: input, shape index: {}]
  %s3 = inlined_call_operand.vmem [shape: f32[128,8], index: 3, kind: input, shape index: {}]
  %s4 = inlined_call_operand.vmem [shape: f32[128,1], index: 4, kind: input, shape index: {}]
  %s5 = inlined_call_operand.vmem [shape: f32[64,128], index: 5, kind: input, shape index: {}]
  %s6 = inlined_call_operand.vmem [shape: f32[64,1], index: 6, kind: input, shape index: {}]
  %s7 = inlined_call_operand.vmem [shape: f32[3,64], index: 7, kind: input, shape index: {}]
  %s8 = inlined_call_operand.vmem [shape: f32[3,1], index: 8, kind: input, shape index: {}]
  %s9 = inlined_call_operand.vmem [shape: f32[3,2], index: 9, kind: output, shape index: {}]
  %s10 = sld [smem:[#allocation0]]
  $region54: #{inverse_pino_forward.19} parent=0
    _
  %s12 = ssub.s32 1, %s10
  %s13 = scalar_select 0, %s12, %s10
  // Predicated region
  $region2: #{inverse_pino_forward.19} parent=0 // pred_check
    _
  $region3: #{inverse_pino_forward.19} parent=0 // pred_check_branch
    %15 = sbr.rel (0) target = $region5
  $region4: #{inverse_pino_forward.19} parent=0 // pred_region
    _
  $region5: #{inverse_pino_forward.19} parent=0 // pred_fallthru
    _
  // Predicated region
  $region6: #{inverse_pino_forward.19} parent=0 // pred_check
    _
  $region7: #{inverse_pino_forward.19} parent=0 // pred_check_branch
    %17 = sbr.rel (0) target = $region9
  $region8: #{inverse_pino_forward.19} parent=0 // pred_region
    _
  $region9: #{inverse_pino_forward.19} parent=0 // pred_fallthru
    _
  // Predicated region
  $region10: #{inverse_pino_forward.19} parent=0 // pred_check
    _
  $region11: #{inverse_pino_forward.19} parent=0 // pred_check_branch
    %19 = sbr.rel (0) target = $region13
  $region12: #{inverse_pino_forward.19} parent=0 // pred_region
    _
  $region13: #{inverse_pino_forward.19} parent=0 // pred_fallthru
    _
  // Predicated region
  $region14: #{inverse_pino_forward.19} parent=0 // pred_check
    _
  $region15: #{inverse_pino_forward.19} parent=0 // pred_check_branch
    %21 = sbr.rel (0) target = $region17
  $region16: #{inverse_pino_forward.19} parent=0 // pred_region
    _
  $region17: #{inverse_pino_forward.19} parent=0 // pred_fallthru
    _
  // Predicated region
  $region18: #{inverse_pino_forward.19} parent=0 // pred_check
    _
  $region19: #{inverse_pino_forward.19} parent=0 // pred_check_branch
    %23 = sbr.rel (0) target = $region21
  $region20: #{inverse_pino_forward.19} parent=0 // pred_region
    _
  $region21: #{inverse_pino_forward.19} parent=0 // pred_fallthru
    _
  // Predicated region
  $region22: #{inverse_pino_forward.19} parent=0 // pred_check
    _
  $region23: #{inverse_pino_forward.19} parent=0 // pred_check_branch
    %25 = sbr.rel (0) target = $region25
  $region24: #{inverse_pino_forward.19} parent=0 // pred_region
    _
  $region25: #{inverse_pino_forward.19} parent=0 // pred_fallthru
    _
  // Predicated region
  $region26: #{inverse_pino_forward.19} parent=0 // pred_check
    _
  $region27: #{inverse_pino_forward.19} parent=0 // pred_check_branch
    %27 = sbr.rel (0) target = $region29
  $region28: #{inverse_pino_forward.19} parent=0 // pred_region
    _
  $region29: #{inverse_pino_forward.19} parent=0 // pred_fallthru
    _
  // Predicated region
  $region30: #{inverse_pino_forward.19} parent=0 // pred_check
    _
  $region31: #{inverse_pino_forward.19} parent=0 // pred_check_branch
    %29 = sbr.rel (0) target = $region33
  $region32: #{inverse_pino_forward.19} parent=0 // pred_region
    _
  $region33: #{inverse_pino_forward.19} parent=0 // pred_fallthru
    _
  // Predicated region
  $region34: #{inverse_pino_forward.19} parent=0 // pred_check
    _
  $region35: #{inverse_pino_forward.19} parent=0 // pred_check_branch
    %31 = sbr.rel (0) target = $region37
  $region36: #{inverse_pino_forward.19} parent=0 // pred_region
    _
  $region37: #{inverse_pino_forward.19} parent=0 // pred_fallthru
    _
  %p32 = scmp.eq.s32.totalorder 0, 0
  // Predicated region
  $region38: #{inverse_pino_forward.19} parent=0 // pred_check
    %p33 = pneg %p32
  $region39: #{inverse_pino_forward.19} parent=0 // pred_check_branch
    %35 = sbr.rel (%p33) target = $region41
  $region40: #{inverse_pino_forward.19} parent=0 // pred_region
    %vm36 = vcmask 15360
    %37 = vst.msk [vmem:[#allocation2] sm:$0xff] %vm36, 0.0
  $region41: #{inverse_pino_forward.19} parent=0 // pred_fallthru
    _
  %v38 = vld [vmem:[%s0] sm:$0xf]
  %v39 = vld [vmem:[%s0 + $0x4] sm:$0xf]
  %v40 = vld [vmem:[%s0 + $0x8] sm:$0xf]
  %v41 = vld [vmem:[%s0 + $0xc] sm:$0xf]
  %v42 = vld [vmem:[%s0 + $0x10] sm:$0xf]
  %v43 = vld [vmem:[%s0 + $0x14] sm:$0xf]
  %v44 = vld [vmem:[%s0 + $0x18] sm:$0xf]
  %v45 = vld [vmem:[%s0 + $0x1c] sm:$0xf]
  %v46 = vunpack.c.l.bf16 %v38
  %v47 = vunpack.c.l.bf16 %v39
  %v48 = vunpack.c.l.bf16 %v40
  %v49 = vunpack.c.l.bf16 %v41
  %v50 = vunpack.c.l.bf16 %v42
  %v51 = vunpack.c.l.bf16 %v43
  %v52 = vunpack.c.l.bf16 %v44
  %v53 = vunpack.c.l.bf16 %v45
  %v54 = vlaneseq
  %v55 = vand.u32 %v54, 127
  %v56 = vadd.s32 %v55, 128
  %v57 = vadd.s32 %v55, 256
  %v58 = vadd.s32 %v55, 384
  %s59 = smul.u32 0, 512
  %v60 = vstv %s59
  %v61 = vadd.s32 %v55, %v60
  %v62 = vadd.s32 %v56, %v60
  %v63 = vadd.s32 %v57, %v60
  %v64 = vadd.s32 %v58, %v60
  %vm65 = vcmp.lt.s32.totalorder %v61, 512
  %vm66 = vcmp.lt.s32.totalorder %v62, 512
  %vm67 = vcmp.lt.s32.totalorder %v63, 512
  %vm68 = vcmp.lt.s32.totalorder %v64, 512
  %v77 = vcombine.high %v46, %v46
  %v79 = vunpack.c.l.s4 1983009808
  %v80 = vunpack.c.0.s8 %v79
  %v81 = vlaneseq
  %v82 = vshrl.u32 %v81, 7
  %v83 = vsub.s32 %v80, %v82
  %v84 = vrot.slane %v46, %v83
  %v86 = vunpack.c.l.s4 1983009808
  %v87 = vunpack.c.0.s8 %v86
  %v88 = vlaneseq
  %v89 = vshrl.u32 %v88, 7
  %v90 = vsub.s32 %v87, %v89
  %v91 = vrot.slane %v77, %v90
  %v92 = vcombine.high %v84, %v84
  %v93 = vcombine.high %v91, %v91
  %v94 = vcombine.high %v47, %v47
  %v96 = vunpack.c.l.s4 1983009808
  %v97 = vunpack.c.0.s8 %v96
  %v98 = vlaneseq
  %v99 = vshrl.u32 %v98, 7
  %v100 = vsub.s32 %v97, %v99
  %v101 = vrot.slane %v47, %v100
  %v103 = vunpack.c.l.s4 1983009808
  %v104 = vunpack.c.0.s8 %v103
  %v105 = vlaneseq
  %v106 = vshrl.u32 %v105, 7
  %v107 = vsub.s32 %v104, %v106
  %v108 = vrot.slane %v94, %v107
  %v109 = vcombine.high %v101, %v101
  %v110 = vcombine.high %v108, %v108
  %v111 = vcombine.high %v48, %v48
  %v113 = vunpack.c.l.s4 1983009808
  %v114 = vunpack.c.0.s8 %v113
  %v115 = vlaneseq
  %v116 = vshrl.u32 %v115, 7
  %v117 = vsub.s32 %v114, %v116
  %v118 = vrot.slane %v48, %v117
  %v120 = vunpack.c.l.s4 1983009808
  %v121 = vunpack.c.0.s8 %v120
  %v122 = vlaneseq
  %v123 = vshrl.u32 %v122, 7
  %v124 = vsub.s32 %v121, %v123
  %v125 = vrot.slane %v111, %v124
  %v126 = vcombine.high %v118, %v118
  %v127 = vcombine.high %v125, %v125
  %v128 = vcombine.high %v49, %v49
  %v130 = vunpack.c.l.s4 1983009808
  %v131 = vunpack.c.0.s8 %v130
  %v132 = vlaneseq
  %v133 = vshrl.u32 %v132, 7
  %v134 = vsub.s32 %v131, %v133
  %v135 = vrot.slane %v49, %v134
  %v137 = vunpack.c.l.s4 1983009808
  %v138 = vunpack.c.0.s8 %v137
  %v139 = vlaneseq
  %v140 = vshrl.u32 %v139, 7
  %v141 = vsub.s32 %v138, %v140
  %v142 = vrot.slane %v128, %v141
  %v143 = vcombine.high %v135, %v135
  %v144 = vcombine.high %v142, %v142
  %v145 = vcombine.high %v50, %v50
  %v147 = vunpack.c.l.s4 1983009808
  %v148 = vunpack.c.0.s8 %v147
  %v149 = vlaneseq
  %v150 = vshrl.u32 %v149, 7
  %v151 = vsub.s32 %v148, %v150
  %v152 = vrot.slane %v50, %v151
  %v154 = vunpack.c.l.s4 1983009808
  %v155 = vunpack.c.0.s8 %v154
  %v156 = vlaneseq
  %v157 = vshrl.u32 %v156, 7
  %v158 = vsub.s32 %v155, %v157
  %v159 = vrot.slane %v145, %v158
  %v160 = vcombine.high %v152, %v152
  %v161 = vcombine.high %v159, %v159
  %v162 = vcombine.high %v51, %v51
  %v164 = vunpack.c.l.s4 1983009808
  %v165 = vunpack.c.0.s8 %v164
  %v166 = vlaneseq
  %v167 = vshrl.u32 %v166, 7
  %v168 = vsub.s32 %v165, %v167
  %v169 = vrot.slane %v51, %v168
  %v171 = vunpack.c.l.s4 1983009808
  %v172 = vunpack.c.0.s8 %v171
  %v173 = vlaneseq
  %v174 = vshrl.u32 %v173, 7
  %v175 = vsub.s32 %v172, %v174
  %v176 = vrot.slane %v162, %v175
  %v177 = vcombine.high %v169, %v169
  %v178 = vcombine.high %v176, %v176
  %v179 = vcombine.high %v52, %v52
  %v181 = vunpack.c.l.s4 1983009808
  %v182 = vunpack.c.0.s8 %v181
  %v183 = vlaneseq
  %v184 = vshrl.u32 %v183, 7
  %v185 = vsub.s32 %v182, %v184
  %v186 = vrot.slane %v52, %v185
  %v188 = vunpack.c.l.s4 1983009808
  %v189 = vunpack.c.0.s8 %v188
  %v190 = vlaneseq
  %v191 = vshrl.u32 %v190, 7
  %v192 = vsub.s32 %v189, %v191
  %v193 = vrot.slane %v179, %v192
  %v194 = vcombine.high %v186, %v186
  %v195 = vcombine.high %v193, %v193
  %v196 = vcombine.high %v53, %v53
  %v198 = vunpack.c.l.s4 1983009808
  %v199 = vunpack.c.0.s8 %v198
  %v200 = vlaneseq
  %v201 = vshrl.u32 %v200, 7
  %v202 = vsub.s32 %v199, %v201
  %v203 = vrot.slane %v53, %v202
  %v205 = vunpack.c.l.s4 1983009808
  %v206 = vunpack.c.0.s8 %v205
  %v207 = vlaneseq
  %v208 = vshrl.u32 %v207, 7
  %v209 = vsub.s32 %v206, %v208
  %v210 = vrot.slane %v196, %v209
  %v211 = vcombine.high %v203, %v203
  %v212 = vcombine.high %v210, %v210
  %v245 = vsel %vm65, %v84, 0.0
  %v246 = vsel %vm66, %v92, 0.0
  %v247 = vsel %vm67, %v91, 0.0
  %v248 = vsel %vm68, %v93, 0.0
  %v249 = vsel %vm65, %v101, 0.0
  %v250 = vsel %vm66, %v109, 0.0
  %v251 = vsel %vm67, %v108, 0.0
  %v252 = vsel %vm68, %v110, 0.0
  %v253 = vsel %vm65, %v118, 0.0
  %v254 = vsel %vm66, %v126, 0.0
  %v255 = vsel %vm67, %v125, 0.0
  %v256 = vsel %vm68, %v127, 0.0
  %v257 = vsel %vm65, %v135, 0.0
  %v258 = vsel %vm66, %v143, 0.0
  %v259 = vsel %vm67, %v142, 0.0
  %v260 = vsel %vm68, %v144, 0.0
  %v261 = vsel %vm65, %v152, 0.0
  %v262 = vsel %vm66, %v160, 0.0
  %v263 = vsel %vm67, %v159, 0.0
  %v264 = vsel %vm68, %v161, 0.0
  %v265 = vsel %vm65, %v169, 0.0
  %v266 = vsel %vm66, %v177, 0.0
  %v267 = vsel %vm67, %v176, 0.0
  %v268 = vsel %vm68, %v178, 0.0
  %v269 = vsel %vm65, %v186, 0.0
  %v270 = vsel %vm66, %v194, 0.0
  %v271 = vsel %vm67, %v193, 0.0
  %v272 = vsel %vm68, %v195, 0.0
  %v273 = vsel %vm65, %v203, 0.0
  %v274 = vsel %vm66, %v211, 0.0
  %v275 = vsel %vm67, %v210, 0.0
  %v276 = vsel %vm68, %v212, 0.0
  %v277 = vld [vmem:[#allocation2] sm:$0xff]
  %vm278 = vcmask 1041408
  %v279 = vsel %vm278, %v245, 0.0
  %v280 = vsel %vm278, %v246, 0.0
  %v281 = vadd.f32 %v279, %v280
  %v282 = vsel %vm278, %v247, 0.0
  %v283 = vadd.f32 %v281, %v282
  %v284 = vsel %vm278, %v248, 0.0
  %v285 = vadd.f32 %v283, %v284
  %286 = vadd.xlane.f32.xlu0 %v285
  %v287 = vpop.xlane.xlu0 %286
  %v288 = vsel %vm278, %v249, 0.0
  %v289 = vsel %vm278, %v250, 0.0
  %v290 = vadd.f32 %v288, %v289
  %v291 = vsel %vm278, %v251, 0.0
  %v292 = vadd.f32 %v290, %v291
  %v293 = vsel %vm278, %v252, 0.0
  %v294 = vadd.f32 %v292, %v293
  %295 = vadd.xlane.f32.xlu0 %v294
  %v296 = vpop.xlane.xlu0 %295
  %v297 = vsel %vm278, %v253, 0.0
  %v298 = vsel %vm278, %v254, 0.0
  %v299 = vadd.f32 %v297, %v298
  %v300 = vsel %vm278, %v255, 0.0
  %v301 = vadd.f32 %v299, %v300
  %v302 = vsel %vm278, %v256, 0.0
  %v303 = vadd.f32 %v301, %v302
  %304 = vadd.xlane.f32.xlu0 %v303
  %v305 = vpop.xlane.xlu0 %304
  %v306 = vsel %vm278, %v257, 0.0
  %v307 = vsel %vm278, %v258, 0.0
  %v308 = vadd.f32 %v306, %v307
  %v309 = vsel %vm278, %v259, 0.0
  %v310 = vadd.f32 %v308, %v309
  %v311 = vsel %vm278, %v260, 0.0
  %v312 = vadd.f32 %v310, %v311
  %313 = vadd.xlane.f32.xlu0 %v312
  %v314 = vpop.xlane.xlu0 %313
  %v315 = vsel %vm278, %v261, 0.0
  %v316 = vsel %vm278, %v262, 0.0
  %v317 = vadd.f32 %v315, %v316
  %v318 = vsel %vm278, %v263, 0.0
  %v319 = vadd.f32 %v317, %v318
  %v320 = vsel %vm278, %v264, 0.0
  %v321 = vadd.f32 %v319, %v320
  %322 = vadd.xlane.f32.xlu0 %v321
  %v323 = vpop.xlane.xlu0 %322
  %v324 = vsel %vm278, %v265, 0.0
  %v325 = vsel %vm278, %v266, 0.0
  %v326 = vadd.f32 %v324, %v325
  %v327 = vsel %vm278, %v267, 0.0
  %v328 = vadd.f32 %v326, %v327
  %v329 = vsel %vm278, %v268, 0.0
  %v330 = vadd.f32 %v328, %v329
  %331 = vadd.xlane.f32.xlu0 %v330
  %v332 = vpop.xlane.xlu0 %331
  %v333 = vsel %vm278, %v269, 0.0
  %v334 = vsel %vm278, %v270, 0.0
  %v335 = vadd.f32 %v333, %v334
  %v336 = vsel %vm278, %v271, 0.0
  %v337 = vadd.f32 %v335, %v336
  %v338 = vsel %vm278, %v272, 0.0
  %v339 = vadd.f32 %v337, %v338
  %340 = vadd.xlane.f32.xlu0 %v339
  %v341 = vpop.xlane.xlu0 %340
  %v342 = vsel %vm278, %v273, 0.0
  %v343 = vsel %vm278, %v274, 0.0
  %v344 = vadd.f32 %v342, %v343
  %v345 = vsel %vm278, %v275, 0.0
  %v346 = vadd.f32 %v344, %v345
  %v347 = vsel %vm278, %v276, 0.0
  %v348 = vadd.f32 %v346, %v347
  %349 = vadd.xlane.f32.xlu0 %v348
  %v350 = vpop.xlane.xlu0 %349
  %v359 = vlaneseq
  %v360 = vshrl.u32 %v359, 7
  %v361 = vsub.s32 %v55, %v360
  %v362 = vrot.slane %v287, %v361
  %v363 = vlaneseq
  %v364 = vshrl.u32 %v363, 7
  %v365 = vsub.s32 %v55, %v364
  %v366 = vrot.slane %v296, %v365
  %v367 = vlaneseq
  %v368 = vshrl.u32 %v367, 7
  %v369 = vsub.s32 %v55, %v368
  %v370 = vrot.slane %v305, %v369
  %v371 = vlaneseq
  %v372 = vshrl.u32 %v371, 7
  %v373 = vsub.s32 %v55, %v372
  %v374 = vrot.slane %v314, %v373
  %v375 = vlaneseq
  %v376 = vshrl.u32 %v375, 7
  %v377 = vsub.s32 %v55, %v376
  %v378 = vrot.slane %v323, %v377
  %v379 = vlaneseq
  %v380 = vshrl.u32 %v379, 7
  %v381 = vsub.s32 %v55, %v380
  %v382 = vrot.slane %v332, %v381
  %v383 = vlaneseq
  %v384 = vshrl.u32 %v383, 7
  %v385 = vsub.s32 %v55, %v384
  %v386 = vrot.slane %v341, %v385
  %v387 = vlaneseq
  %v388 = vshrl.u32 %v387, 7
  %v389 = vsub.s32 %v55, %v388
  %v390 = vrot.slane %v350, %v389
  %vm391 = vcmask 1041409
  %v392 = vsel %vm391, %v366, %v362
  %vm393 = vcmask 1042434
  %v394 = vsel %vm393, %v370, %v392
  %vm395 = vcmask 1043459
  %v396 = vsel %vm395, %v374, %v394
  %vm397 = vcmask 1044484
  %v398 = vsel %vm397, %v378, %v396
  %vm399 = vcmask 1045509
  %v400 = vsel %vm399, %v382, %v398
  %vm401 = vcmask 1046534
  %v402 = vsel %vm401, %v386, %v400
  %vm403 = vcmask 1047559
  %v404 = vsel %vm403, %v390, %v402
  %v406 = vadd.f32 %v277, %v404
  %vm407 = vcmask 15360
  %408 = vst.msk [vmem:[#allocation2] sm:$0xff] %vm407, %v406
  // Predicated region
  $region42: #{inverse_pino_forward.19} parent=0 // pred_check
    %p409 = pneg %p32
  $region43: #{inverse_pino_forward.19} parent=0 // pred_check_branch
    %411 = sbr.rel (%p409) target = $region45
  $region44: #{inverse_pino_forward.19} parent=0 // pred_region
    %v412 = vld [vmem:[#allocation2] sm:$0xff]
    %v413 = vmul.f32 %v412, 0.001953125
    %v414 = vld [vmem:[%s1] sm:$0xff]
    %v415 = vld [vmem:[%s2] sm:$0xff]
    %417 = vset.pattern.permute.xlu0 0
    %418 = vperm.xlu0 %417, %v415
    %v419 = vpop.permute.xlu0 %418
    %vm421 = vcmask 64512
    %v423 = vsel %vm421, %v414, 0
    %425 = vmatprep.subr.mxu0 0.0
    %426 = vmatpush1.msra.mxu0 0.0
    %427 = vmatprep.subr.mxu0 0.0
    %428 = vmatpush1.msra.mxu0 0.0
    %429 = vmatprep.subr.mxu0 0.0
    %430 = vmatpush1.msra.mxu0 0.0
    %431 = vmatprep.subr.mxu0 0.0
    %432 = vmatpush1.msra.mxu0 0.0
    %433 = vmatprep.subr.mxu0 0.0
    %434 = vmatpush1.msra.mxu0 0.0
    %435 = vmatprep.subr.mxu0 0.0
    %436 = vmatpush1.msra.mxu0 0.0
    %437 = vmatprep.subr.mxu0 0.0
    %438 = vmatpush1.msra.mxu0 0.0
    %439 = vmatprep.subr.mxu0 0.0
    %440 = vmatpush1.msra.mxu0 0.0
    %441 = vmatprep.subr.mxu0 0.0
    %442 = vmatpush1.msra.mxu0 0.0
    %443 = vmatprep.subr.mxu0 0.0
    %444 = vmatpush1.msra.mxu0 0.0
    %445 = vmatprep.subr.mxu0 0.0
    %446 = vmatpush1.msra.mxu0 0.0
    %447 = vmatprep.subr.mxu0 0.0
    %448 = vmatpush1.msra.mxu0 0.0
    %449 = vmatprep.subr.mxu0 0.0
    %450 = vmatpush1.msra.mxu0 0.0
    %451 = vmatprep.subr.mxu0 0.0
    %452 = vmatpush1.msra.mxu0 0.0
    %453 = vmatprep.subr.mxu0 0.0
    %454 = vmatpush1.msra.mxu0 0.0
    %455 = vmatprep.subr.mxu0 0.0
    %456 = vmatpush1.msra.mxu0 %v413
    %457 = vmatprep.subr.mxu0 0.0
    %458 = vmatpush2.msra.mxu0 0.0
    %459 = vmatprep.subr.mxu0 0.0
    %460 = vmatpush2.msra.mxu0 0.0
    %461 = vmatprep.subr.mxu0 0.0
    %462 = vmatpush2.msra.mxu0 0.0
    %463 = vmatprep.subr.mxu0 0.0
    %464 = vmatpush2.msra.mxu0 0.0
    %465 = vmatprep.subr.mxu0 0.0
    %466 = vmatpush2.msra.mxu0 0.0
    %467 = vmatprep.subr.mxu0 0.0
    %468 = vmatpush2.msra.mxu0 0.0
    %469 = vmatprep.subr.mxu0 0.0
    %470 = vmatpush2.msra.mxu0 0.0
    %471 = vmatprep.subr.mxu0 0.0
    %472 = vmatpush2.msra.mxu0 0.0
    %473 = vmatprep.subr.mxu0 0.0
    %474 = vmatpush2.msra.mxu0 0.0
    %475 = vmatprep.subr.mxu0 0.0
    %476 = vmatpush2.msra.mxu0 0.0
    %477 = vmatprep.subr.mxu0 0.0
    %478 = vmatpush2.msra.mxu0 0.0
    %479 = vmatprep.subr.mxu0 0.0
    %480 = vmatpush2.msra.mxu0 0.0
    %481 = vmatprep.subr.mxu0 0.0
    %482 = vmatpush2.msra.mxu0 0.0
    %483 = vmatprep.subr.mxu0 0.0
    %484 = vmatpush2.msra.mxu0 0.0
    %485 = vmatprep.subr.mxu0 0.0
    %486 = vmatpush2.msra.mxu0 0.0
    %487 = vmatprep.subr.mxu0 0.0
    %488 = vmatpush2.msra.mxu0 0.0
    %489 = vmatprep.mubr.f32.mxu0 0.0
    %490 = vmatmul.mubr.f32.gmra.mxu0 %v423
    %v491 = vpop.f32.mrf.mxu0
    %v492 = vadd.f32 %v419, %v491
    %v493 = vpop.f32.mrf.mxu0
    %494 = vdwg.mxu0
    %v495 = vld [vmem:[%s3] sm:$0xff]
    %v496 = vld [vmem:[%s3 + $0x8] sm:$0xff]
    %v497 = vld [vmem:[%s3 + $0x10] sm:$0xff]
    %v498 = vld [vmem:[%s3 + $0x18] sm:$0xff]
    %v499 = vld [vmem:[%s3 + $0x20] sm:$0xff]
    %v500 = vld [vmem:[%s3 + $0x28] sm:$0xff]
    %v501 = vld [vmem:[%s3 + $0x30] sm:$0xff]
    %v502 = vld [vmem:[%s3 + $0x38] sm:$0xff]
    %v503 = vld [vmem:[%s3 + $0x40] sm:$0xff]
    %v504 = vld [vmem:[%s3 + $0x48] sm:$0xff]
    %v505 = vld [vmem:[%s3 + $0x50] sm:$0xff]
    %v506 = vld [vmem:[%s3 + $0x58] sm:$0xff]
    %v507 = vld [vmem:[%s3 + $0x60] sm:$0xff]
    %v508 = vld [vmem:[%s3 + $0x68] sm:$0xff]
    %v509 = vld [vmem:[%s3 + $0x70] sm:$0xff]
    %v510 = vld [vmem:[%s3 + $0x78] sm:$0xff]
    %v511 = vld [vmem:[%s4] sm:$0xff]
    %v512 = vld [vmem:[%s4 + $0x8] sm:$0xff]
    %v513 = vld [vmem:[%s4 + $0x10] sm:$0xff]
    %v514 = vld [vmem:[%s4 + $0x18] sm:$0xff]
    %v515 = vld [vmem:[%s4 + $0x20] sm:$0xff]
    %v516 = vld [vmem:[%s4 + $0x28] sm:$0xff]
    %v517 = vld [vmem:[%s4 + $0x30] sm:$0xff]
    %v518 = vld [vmem:[%s4 + $0x38] sm:$0xff]
    %v519 = vld [vmem:[%s4 + $0x40] sm:$0xff]
    %v520 = vld [vmem:[%s4 + $0x48] sm:$0xff]
    %v521 = vld [vmem:[%s4 + $0x50] sm:$0xff]
    %v522 = vld [vmem:[%s4 + $0x58] sm:$0xff]
    %v523 = vld [vmem:[%s4 + $0x60] sm:$0xff]
    %v524 = vld [vmem:[%s4 + $0x68] sm:$0xff]
    %v525 = vld [vmem:[%s4 + $0x70] sm:$0xff]
    %v526 = vld [vmem:[%s4 + $0x78] sm:$0xff]
    %528 = vset.pattern.permute.xlu0 0
    %529 = vperm.xlu0 %528, %v511
    %v530 = vpop.permute.xlu0 %529
    %533 = vset.pattern.permute.xlu0 0
    %534 = vperm.xlu0 %533, %v512
    %v535 = vpop.permute.xlu0 %534
    %538 = vset.pattern.permute.xlu0 0
    %539 = vperm.xlu0 %538, %v513
    %v540 = vpop.permute.xlu0 %539
    %543 = vset.pattern.permute.xlu0 0
    %544 = vperm.xlu0 %543, %v514
    %v545 = vpop.permute.xlu0 %544
    %548 = vset.pattern.permute.xlu0 0
    %549 = vperm.xlu0 %548, %v515
    %v550 = vpop.permute.xlu0 %549
    %553 = vset.pattern.permute.xlu0 0
    %554 = vperm.xlu0 %553, %v516
    %v555 = vpop.permute.xlu0 %554
    %558 = vset.pattern.permute.xlu0 0
    %559 = vperm.xlu0 %558, %v517
    %v560 = vpop.permute.xlu0 %559
    %563 = vset.pattern.permute.xlu0 0
    %564 = vperm.xlu0 %563, %v518
    %v565 = vpop.permute.xlu0 %564
    %568 = vset.pattern.permute.xlu0 0
    %569 = vperm.xlu0 %568, %v519
    %v570 = vpop.permute.xlu0 %569
    %573 = vset.pattern.permute.xlu0 0
    %574 = vperm.xlu0 %573, %v520
    %v575 = vpop.permute.xlu0 %574
    %578 = vset.pattern.permute.xlu0 0
    %579 = vperm.xlu0 %578, %v521
    %v580 = vpop.permute.xlu0 %579
    %583 = vset.pattern.permute.xlu0 0
    %584 = vperm.xlu0 %583, %v522
    %v585 = vpop.permute.xlu0 %584
    %588 = vset.pattern.permute.xlu0 0
    %589 = vperm.xlu0 %588, %v523
    %v590 = vpop.permute.xlu0 %589
    %593 = vset.pattern.permute.xlu0 0
    %594 = vperm.xlu0 %593, %v524
    %v595 = vpop.permute.xlu0 %594
    %598 = vset.pattern.permute.xlu0 0
    %599 = vperm.xlu0 %598, %v525
    %v600 = vpop.permute.xlu0 %599
    %603 = vset.pattern.permute.xlu0 0
    %604 = vperm.xlu0 %603, %v526
    %v605 = vpop.permute.xlu0 %604
    %v608 = vsel %vm421, %v495, 0
    %v611 = vsel %vm421, %v496, 0
    %v614 = vsel %vm421, %v497, 0
    %v617 = vsel %vm421, %v498, 0
    %v620 = vsel %vm421, %v499, 0
    %v623 = vsel %vm421, %v500, 0
    %v626 = vsel %vm421, %v501, 0
    %v629 = vsel %vm421, %v502, 0
    %v632 = vsel %vm421, %v503, 0
    %v635 = vsel %vm421, %v504, 0
    %v638 = vsel %vm421, %v505, 0
    %v641 = vsel %vm421, %v506, 0
    %v644 = vsel %vm421, %v507, 0
    %v647 = vsel %vm421, %v508, 0
    %v650 = vsel %vm421, %v509, 0
    %v653 = vsel %vm421, %v510, 0
    %655 = vmatprep.subr.mxu0 0.0
    %656 = vmatpush1.msra.mxu0 0.0
    %657 = vmatprep.subr.mxu0 0.0
    %658 = vmatpush1.msra.mxu0 0.0
    %659 = vmatprep.subr.mxu0 0.0
    %660 = vmatpush1.msra.mxu0 0.0
    %661 = vmatprep.subr.mxu0 0.0
    %662 = vmatpush1.msra.mxu0 0.0
    %663 = vmatprep.subr.mxu0 0.0
    %664 = vmatpush1.msra.mxu0 0.0
    %665 = vmatprep.subr.mxu0 0.0
    %666 = vmatpush1.msra.mxu0 0.0
    %667 = vmatprep.subr.mxu0 0.0
    %668 = vmatpush1.msra.mxu0 0.0
    %669 = vmatprep.subr.mxu0 0.0
    %670 = vmatpush1.msra.mxu0 0.0
    %671 = vmatprep.subr.mxu0 0.0
    %672 = vmatpush1.msra.mxu0 0.0
    %673 = vmatprep.subr.mxu0 0.0
    %674 = vmatpush1.msra.mxu0 0.0
    %675 = vmatprep.subr.mxu0 0.0
    %676 = vmatpush1.msra.mxu0 0.0
    %677 = vmatprep.subr.mxu0 0.0
    %678 = vmatpush1.msra.mxu0 0.0
    %679 = vmatprep.subr.mxu0 0.0
    %680 = vmatpush1.msra.mxu0 0.0
    %681 = vmatprep.subr.mxu0 0.0
    %682 = vmatpush1.msra.mxu0 0.0
    %683 = vmatprep.subr.mxu0 0.0
    %684 = vmatpush1.msra.mxu0 0.0
    %685 = vmatprep.subr.mxu0 0.0
    %686 = vmatpush1.msra.mxu0 %v492
    %687 = vmatprep.subr.mxu0 0.0
    %688 = vmatpush2.msra.mxu0 0.0
    %689 = vmatprep.subr.mxu0 0.0
    %690 = vmatpush2.msra.mxu0 0.0
    %691 = vmatprep.subr.mxu0 0.0
    %692 = vmatpush2.msra.mxu0 0.0
    %693 = vmatprep.subr.mxu0 0.0
    %694 = vmatpush2.msra.mxu0 0.0
    %695 = vmatprep.subr.mxu0 0.0
    %696 = vmatpush2.msra.mxu0 0.0
    %697 = vmatprep.subr.mxu0 0.0
    %698 = vmatpush2.msra.mxu0 0.0
    %699 = vmatprep.subr.mxu0 0.0
    %700 = vmatpush2.msra.mxu0 0.0
    %701 = vmatprep.subr.mxu0 0.0
    %702 = vmatpush2.msra.mxu0 0.0
    %703 = vmatprep.subr.mxu0 0.0
    %704 = vmatpush2.msra.mxu0 0.0
    %705 = vmatprep.subr.mxu0 0.0
    %706 = vmatpush2.msra.mxu0 0.0
    %707 = vmatprep.subr.mxu0 0.0
    %708 = vmatpush2.msra.mxu0 0.0
    %709 = vmatprep.subr.mxu0 0.0
    %710 = vmatpush2.msra.mxu0 0.0
    %711 = vmatprep.subr.mxu0 0.0
    %712 = vmatpush2.msra.mxu0 0.0
    %713 = vmatprep.subr.mxu0 0.0
    %714 = vmatpush2.msra.mxu0 0.0
    %715 = vmatprep.subr.mxu0 0.0
    %716 = vmatpush2.msra.mxu0 0.0
    %717 = vmatprep.subr.mxu0 0.0
    %718 = vmatpush2.msra.mxu0 0.0
    %719 = vmatprep.mubr.f32.mxu0 0.0
    %720 = vmatmul.mubr.f32.gmra.mxu0 %v608
    %v721 = vpop.f32.mrf.mxu0
    %v722 = vadd.f32 %v530, %v721
    %v723 = vpop.f32.mrf.mxu0
    %724 = vmatprep.mubr.f32.mxu0 0.0
    %725 = vmatmul.mubr.f32.gmra.mxu0 %v611
    %v726 = vpop.f32.mrf.mxu0
    %v727 = vadd.f32 %v535, %v726
    %v728 = vpop.f32.mrf.mxu0
    %729 = vmatprep.mubr.f32.mxu0 0.0
    %730 = vmatmul.mubr.f32.gmra.mxu0 %v614
    %v731 = vpop.f32.mrf.mxu0
    %v732 = vadd.f32 %v540, %v731
    %v733 = vpop.f32.mrf.mxu0
    %734 = vmatprep.mubr.f32.mxu0 0.0
    %735 = vmatmul.mubr.f32.gmra.mxu0 %v617
    %v736 = vpop.f32.mrf.mxu0
    %v737 = vadd.f32 %v545, %v736
    %v738 = vpop.f32.mrf.mxu0
    %739 = vmatprep.mubr.f32.mxu0 0.0
    %740 = vmatmul.mubr.f32.gmra.mxu0 %v620
    %v741 = vpop.f32.mrf.mxu0
    %v742 = vadd.f32 %v550, %v741
    %v743 = vpop.f32.mrf.mxu0
    %744 = vmatprep.mubr.f32.mxu0 0.0
    %745 = vmatmul.mubr.f32.gmra.mxu0 %v623
    %v746 = vpop.f32.mrf.mxu0
    %v747 = vadd.f32 %v555, %v746
    %v748 = vpop.f32.mrf.mxu0
    %749 = vmatprep.mubr.f32.mxu0 0.0
    %750 = vmatmul.mubr.f32.gmra.mxu0 %v626
    %v751 = vpop.f32.mrf.mxu0
    %v752 = vadd.f32 %v560, %v751
    %v753 = vpop.f32.mrf.mxu0
    %754 = vmatprep.mubr.f32.mxu0 0.0
    %755 = vmatmul.mubr.f32.gmra.mxu0 %v629
    %v756 = vpop.f32.mrf.mxu0
    %v757 = vadd.f32 %v565, %v756
    %v758 = vpop.f32.mrf.mxu0
    %759 = vmatprep.mubr.f32.mxu0 0.0
    %760 = vmatmul.mubr.f32.gmra.mxu0 %v632
    %v761 = vpop.f32.mrf.mxu0
    %v762 = vadd.f32 %v570, %v761
    %v763 = vpop.f32.mrf.mxu0
    %764 = vmatprep.mubr.f32.mxu0 0.0
    %765 = vmatmul.mubr.f32.gmra.mxu0 %v635
    %v766 = vpop.f32.mrf.mxu0
    %v767 = vadd.f32 %v575, %v766
    %v768 = vpop.f32.mrf.mxu0
    %769 = vmatprep.mubr.f32.mxu0 0.0
    %770 = vmatmul.mubr.f32.gmra.mxu0 %v638
    %v771 = vpop.f32.mrf.mxu0
    %v772 = vadd.f32 %v580, %v771
    %v773 = vpop.f32.mrf.mxu0
    %774 = vmatprep.mubr.f32.mxu0 0.0
    %775 = vmatmul.mubr.f32.gmra.mxu0 %v641
    %v776 = vpop.f32.mrf.mxu0
    %v777 = vadd.f32 %v585, %v776
    %v778 = vpop.f32.mrf.mxu0
    %779 = vmatprep.mubr.f32.mxu0 0.0
    %780 = vmatmul.mubr.f32.gmra.mxu0 %v644
    %v781 = vpop.f32.mrf.mxu0
    %v782 = vadd.f32 %v590, %v781
    %v783 = vpop.f32.mrf.mxu0
    %784 = vmatprep.mubr.f32.mxu0 0.0
    %785 = vmatmul.mubr.f32.gmra.mxu0 %v647
    %v786 = vpop.f32.mrf.mxu0
    %v787 = vadd.f32 %v595, %v786
    %v788 = vpop.f32.mrf.mxu0
    %789 = vmatprep.mubr.f32.mxu0 0.0
    %790 = vmatmul.mubr.f32.gmra.mxu0 %v650
    %v791 = vpop.f32.mrf.mxu0
    %v792 = vadd.f32 %v600, %v791
    %v793 = vpop.f32.mrf.mxu0
    %794 = vmatprep.mubr.f32.mxu0 0.0
    %795 = vmatmul.mubr.f32.gmra.mxu0 %v653
    %v796 = vpop.f32.mrf.mxu0
    %v797 = vadd.f32 %v605, %v796
    %v798 = vpop.f32.mrf.mxu0
    %799 = vdwg.mxu0
    %v800 = vmax.f32 %v722, 0.0
    %v801 = vmax.f32 %v727, 0.0
    %v802 = vmax.f32 %v732, 0.0
    %v803 = vmax.f32 %v737, 0.0
    %v804 = vmax.f32 %v742, 0.0
    %v805 = vmax.f32 %v747, 0.0
    %v806 = vmax.f32 %v752, 0.0
    %v807 = vmax.f32 %v757, 0.0
    %v808 = vmax.f32 %v762, 0.0
    %v809 = vmax.f32 %v767, 0.0
    %v810 = vmax.f32 %v772, 0.0
    %v811 = vmax.f32 %v777, 0.0
    %v812 = vmax.f32 %v782, 0.0
    %v813 = vmax.f32 %v787, 0.0
    %v814 = vmax.f32 %v792, 0.0
    %v815 = vmax.f32 %v797, 0.0
    %v816 = vld [vmem:[%s5] sm:$0xff]
    %v817 = vld [vmem:[%s5 + $0x8] sm:$0xff]
    %v818 = vld [vmem:[%s5 + $0x10] sm:$0xff]
    %v819 = vld [vmem:[%s5 + $0x18] sm:$0xff]
    %v820 = vld [vmem:[%s5 + $0x20] sm:$0xff]
    %v821 = vld [vmem:[%s5 + $0x28] sm:$0xff]
    %v822 = vld [vmem:[%s5 + $0x30] sm:$0xff]
    %v823 = vld [vmem:[%s5 + $0x38] sm:$0xff]
    %v824 = vld [vmem:[%s6] sm:$0xff]
    %v825 = vld [vmem:[%s6 + $0x8] sm:$0xff]
    %v826 = vld [vmem:[%s6 + $0x10] sm:$0xff]
    %v827 = vld [vmem:[%s6 + $0x18] sm:$0xff]
    %v828 = vld [vmem:[%s6 + $0x20] sm:$0xff]
    %v829 = vld [vmem:[%s6 + $0x28] sm:$0xff]
    %v830 = vld [vmem:[%s6 + $0x30] sm:$0xff]
    %v831 = vld [vmem:[%s6 + $0x38] sm:$0xff]
    %833 = vset.pattern.permute.xlu0 0
    %834 = vperm.xlu0 %833, %v824
    %v835 = vpop.permute.xlu0 %834
    %838 = vset.pattern.permute.xlu0 0
    %839 = vperm.xlu0 %838, %v825
    %v840 = vpop.permute.xlu0 %839
    %843 = vset.pattern.permute.xlu0 0
    %844 = vperm.xlu0 %843, %v826
    %v845 = vpop.permute.xlu0 %844
    %848 = vset.pattern.permute.xlu0 0
    %849 = vperm.xlu0 %848, %v827
    %v850 = vpop.permute.xlu0 %849
    %853 = vset.pattern.permute.xlu0 0
    %854 = vperm.xlu0 %853, %v828
    %v855 = vpop.permute.xlu0 %854
    %858 = vset.pattern.permute.xlu0 0
    %859 = vperm.xlu0 %858, %v829
    %v860 = vpop.permute.xlu0 %859
    %863 = vset.pattern.permute.xlu0 0
    %864 = vperm.xlu0 %863, %v830
    %v865 = vpop.permute.xlu0 %864
    %868 = vset.pattern.permute.xlu0 0
    %869 = vperm.xlu0 %868, %v831
    %v870 = vpop.permute.xlu0 %869
    %872 = vmatprep.subr.mxu0 0.0
    %873 = vmatpush1.msra.mxu0 %v815
    %874 = vmatprep.subr.mxu0 0.0
    %875 = vmatpush1.msra.mxu0 %v814
    %876 = vmatprep.subr.mxu0 0.0
    %877 = vmatpush1.msra.mxu0 %v813
    %878 = vmatprep.subr.mxu0 0.0
    %879 = vmatpush1.msra.mxu0 %v812
    %880 = vmatprep.subr.mxu0 0.0
    %881 = vmatpush1.msra.mxu0 %v811
    %882 = vmatprep.subr.mxu0 0.0
    %883 = vmatpush1.msra.mxu0 %v810
    %884 = vmatprep.subr.mxu0 0.0
    %885 = vmatpush1.msra.mxu0 %v809
    %886 = vmatprep.subr.mxu0 0.0
    %887 = vmatpush1.msra.mxu0 %v808
    %888 = vmatprep.subr.mxu0 0.0
    %889 = vmatpush1.msra.mxu0 %v807
    %890 = vmatprep.subr.mxu0 0.0
    %891 = vmatpush1.msra.mxu0 %v806
    %892 = vmatprep.subr.mxu0 0.0
    %893 = vmatpush1.msra.mxu0 %v805
    %894 = vmatprep.subr.mxu0 0.0
    %895 = vmatpush1.msra.mxu0 %v804
    %896 = vmatprep.subr.mxu0 0.0
    %897 = vmatpush1.msra.mxu0 %v803
    %898 = vmatprep.subr.mxu0 0.0
    %899 = vmatpush1.msra.mxu0 %v802
    %900 = vmatprep.subr.mxu0 0.0
    %901 = vmatpush1.msra.mxu0 %v801
    %902 = vmatprep.subr.mxu0 0.0
    %903 = vmatpush1.msra.mxu0 %v800
    %904 = vmatprep.subr.mxu0 0.0
    %905 = vmatpush2.msra.mxu0 0.0
    %906 = vmatprep.subr.mxu0 0.0
    %907 = vmatpush2.msra.mxu0 0.0
    %908 = vmatprep.subr.mxu0 0.0
    %909 = vmatpush2.msra.mxu0 0.0
    %910 = vmatprep.subr.mxu0 0.0
    %911 = vmatpush2.msra.mxu0 0.0
    %912 = vmatprep.subr.mxu0 0.0
    %913 = vmatpush2.msra.mxu0 0.0
    %914 = vmatprep.subr.mxu0 0.0
    %915 = vmatpush2.msra.mxu0 0.0
    %916 = vmatprep.subr.mxu0 0.0
    %917 = vmatpush2.msra.mxu0 0.0
    %918 = vmatprep.subr.mxu0 0.0
    %919 = vmatpush2.msra.mxu0 0.0
    %920 = vmatprep.subr.mxu0 0.0
    %921 = vmatpush2.msra.mxu0 0.0
    %922 = vmatprep.subr.mxu0 0.0
    %923 = vmatpush2.msra.mxu0 0.0
    %924 = vmatprep.subr.mxu0 0.0
    %925 = vmatpush2.msra.mxu0 0.0
    %926 = vmatprep.subr.mxu0 0.0
    %927 = vmatpush2.msra.mxu0 0.0
    %928 = vmatprep.subr.mxu0 0.0
    %929 = vmatpush2.msra.mxu0 0.0
    %930 = vmatprep.subr.mxu0 0.0
    %931 = vmatpush2.msra.mxu0 0.0
    %932 = vmatprep.subr.mxu0 0.0
    %933 = vmatpush2.msra.mxu0 0.0
    %934 = vmatprep.subr.mxu0 0.0
    %935 = vmatpush2.msra.mxu0 0.0
    %936 = vmatprep.mubr.f32.mxu0 0.0
    %937 = vmatmul.mubr.f32.gmra.mxu0 %v816
    %v938 = vpop.f32.mrf.mxu0
    %v939 = vadd.f32 %v835, %v938
    %v940 = vpop.f32.mrf.mxu0
    %941 = vmatprep.mubr.f32.mxu0 0.0
    %942 = vmatmul.mubr.f32.gmra.mxu0 %v817
    %v943 = vpop.f32.mrf.mxu0
    %v944 = vadd.f32 %v840, %v943
    %v945 = vpop.f32.mrf.mxu0
    %946 = vmatprep.mubr.f32.mxu0 0.0
    %947 = vmatmul.mubr.f32.gmra.mxu0 %v818
    %v948 = vpop.f32.mrf.mxu0
    %v949 = vadd.f32 %v845, %v948
    %v950 = vpop.f32.mrf.mxu0
    %951 = vmatprep.mubr.f32.mxu0 0.0
    %952 = vmatmul.mubr.f32.gmra.mxu0 %v819
    %v953 = vpop.f32.mrf.mxu0
    %v954 = vadd.f32 %v850, %v953
    %v955 = vpop.f32.mrf.mxu0
    %956 = vmatprep.mubr.f32.mxu0 0.0
    %957 = vmatmul.mubr.f32.gmra.mxu0 %v820
    %v958 = vpop.f32.mrf.mxu0
    %v959 = vadd.f32 %v855, %v958
    %v960 = vpop.f32.mrf.mxu0
    %961 = vmatprep.mubr.f32.mxu0 0.0
    %962 = vmatmul.mubr.f32.gmra.mxu0 %v821
    %v963 = vpop.f32.mrf.mxu0
    %v964 = vadd.f32 %v860, %v963
    %v965 = vpop.f32.mrf.mxu0
    %966 = vmatprep.mubr.f32.mxu0 0.0
    %967 = vmatmul.mubr.f32.gmra.mxu0 %v822
    %v968 = vpop.f32.mrf.mxu0
    %v969 = vadd.f32 %v865, %v968
    %v970 = vpop.f32.mrf.mxu0
    %971 = vmatprep.mubr.f32.mxu0 0.0
    %972 = vmatmul.mubr.f32.gmra.mxu0 %v823
    %v973 = vpop.f32.mrf.mxu0
    %v974 = vadd.f32 %v870, %v973
    %v975 = vpop.f32.mrf.mxu0
    %976 = vdwg.mxu0
    %v977 = vmax.f32 %v939, 0.0
    %v978 = vmax.f32 %v944, 0.0
    %v979 = vmax.f32 %v949, 0.0
    %v980 = vmax.f32 %v954, 0.0
    %v981 = vmax.f32 %v959, 0.0
    %v982 = vmax.f32 %v964, 0.0
    %v983 = vmax.f32 %v969, 0.0
    %v984 = vmax.f32 %v974, 0.0
    %v985 = vld [vmem:[%s7] sm:$0x7]
    %v986 = vld [vmem:[%s8] sm:$0x7]
    %988 = vset.pattern.permute.xlu0 0
    %989 = vperm.xlu0 %988, %v986
    %v990 = vpop.permute.xlu0 %989
    %vm992 = vcmask 523264
    %v994 = vsel %vm992, %v985, 0
    %996 = vmatprep.subr.mxu0 0.0
    %997 = vmatpush1.msra.mxu0 0.0
    %998 = vmatprep.subr.mxu0 0.0
    %999 = vmatpush1.msra.mxu0 0.0
    %1000 = vmatprep.subr.mxu0 0.0
    %1001 = vmatpush1.msra.mxu0 0.0
    %1002 = vmatprep.subr.mxu0 0.0
    %1003 = vmatpush1.msra.mxu0 0.0
    %1004 = vmatprep.subr.mxu0 0.0
    %1005 = vmatpush1.msra.mxu0 0.0
    %1006 = vmatprep.subr.mxu0 0.0
    %1007 = vmatpush1.msra.mxu0 0.0
    %1008 = vmatprep.subr.mxu0 0.0
    %1009 = vmatpush1.msra.mxu0 0.0
    %1010 = vmatprep.subr.mxu0 0.0
    %1011 = vmatpush1.msra.mxu0 0.0
    %1012 = vmatprep.subr.mxu0 0.0
    %1013 = vmatpush1.msra.mxu0 %v984
    %1014 = vmatprep.subr.mxu0 0.0
    %1015 = vmatpush1.msra.mxu0 %v983
    %1016 = vmatprep.subr.mxu0 0.0
    %1017 = vmatpush1.msra.mxu0 %v982
    %1018 = vmatprep.subr.mxu0 0.0
    %1019 = vmatpush1.msra.mxu0 %v981
    %1020 = vmatprep.subr.mxu0 0.0
    %1021 = vmatpush1.msra.mxu0 %v980
    %1022 = vmatprep.subr.mxu0 0.0
    %1023 = vmatpush1.msra.mxu0 %v979
    %1024 = vmatprep.subr.mxu0 0.0
    %1025 = vmatpush1.msra.mxu0 %v978
    %1026 = vmatprep.subr.mxu0 0.0
    %1027 = vmatpush1.msra.mxu0 %v977
    %1028 = vmatprep.subr.mxu0 0.0
    %1029 = vmatpush2.msra.mxu0 0.0
    %1030 = vmatprep.subr.mxu0 0.0
    %1031 = vmatpush2.msra.mxu0 0.0
    %1032 = vmatprep.subr.mxu0 0.0
    %1033 = vmatpush2.msra.mxu0 0.0
    %1034 = vmatprep.subr.mxu0 0.0
    %1035 = vmatpush2.msra.mxu0 0.0
    %1036 = vmatprep.subr.mxu0 0.0
    %1037 = vmatpush2.msra.mxu0 0.0
    %1038 = vmatprep.subr.mxu0 0.0
    %1039 = vmatpush2.msra.mxu0 0.0
    %1040 = vmatprep.subr.mxu0 0.0
    %1041 = vmatpush2.msra.mxu0 0.0
    %1042 = vmatprep.subr.mxu0 0.0
    %1043 = vmatpush2.msra.mxu0 0.0
    %1044 = vmatprep.subr.mxu0 0.0
    %1045 = vmatpush2.msra.mxu0 0.0
    %1046 = vmatprep.subr.mxu0 0.0
    %1047 = vmatpush2.msra.mxu0 0.0
    %1048 = vmatprep.subr.mxu0 0.0
    %1049 = vmatpush2.msra.mxu0 0.0
    %1050 = vmatprep.subr.mxu0 0.0
    %1051 = vmatpush2.msra.mxu0 0.0
    %1052 = vmatprep.subr.mxu0 0.0
    %1053 = vmatpush2.msra.mxu0 0.0
    %1054 = vmatprep.subr.mxu0 0.0
    %1055 = vmatpush2.msra.mxu0 0.0
    %1056 = vmatprep.subr.mxu0 0.0
    %1057 = vmatpush2.msra.mxu0 0.0
    %1058 = vmatprep.subr.mxu0 0.0
    %1059 = vmatpush2.msra.mxu0 0.0
    %1060 = vmatprep.mubr.f32.mxu0 0.0
    %1061 = vmatmul.mubr.f32.gmra.mxu0 %v994
    %v1062 = vpop.f32.mrf.mxu0
    %v1063 = vadd.f32 %v990, %v1062
    %v1064 = vpop.f32.mrf.mxu0
    %1065 = vdwg.mxu0
    %vm1066 = vcmask 10240
    %1067 = vst.msk [vmem:[%s9] sm:$0x7] %vm1066, %v1063
  $region45: #{inverse_pino_forward.19} parent=0 // pred_fallthru
    _
  // Predicated region
  $region46: #{inverse_pino_forward.19} parent=0 // pred_check
    _
  $region47: #{inverse_pino_forward.19} parent=0 // pred_check_branch
    %1069 = sbr.rel (0) target = $region49
  $region48: #{inverse_pino_forward.19} parent=0 // pred_region
    _
  $region49: #{inverse_pino_forward.19} parent=0 // pred_fallthru
    _
  // Predicated region
  $region50: #{inverse_pino_forward.19} parent=0 // pred_check
    _
  $region51: #{inverse_pino_forward.19} parent=0 // pred_check_branch
    %1071 = sbr.rel (0) target = $region53
  $region52: #{inverse_pino_forward.19} parent=0 // pred_region
    _
  $region53: #{inverse_pino_forward.19} parent=0 // pred_fallthru
    _

</llo_original>
